<compile_context>
chip_gen: v7x
topology: tpu7x:2x2x1
jax: 0.10.0
libtpu: 0.0.40
codegen_flags: <defaults>
</compile_context>

<pallas_src>
import functools

import numpy as np

import jax
import jax.numpy as jnp
from jax import lax
from jax.experimental import pallas as pl
from jax.experimental.pallas import tpu as pltpu

EPS = 1e-5
LANE = 128


def _round_up(x, m):
    return (x + m - 1) // m * m


def _vmem_limit_bytes():
    """Generation-aware VMEM cap: ~3/4 of physical (96 MiB v5e/v6e, 48 MiB v7x)."""
    try:
        info = pltpu.get_tpu_info()
        for attr in ("vmem_capacity_bytes", "vmem_size_bytes", "vmem_bytes"):
            cap = getattr(info, attr, None)
            if cap:
                return int(min(cap * 3 // 4, 100 * 1024 * 1024))
    except Exception:
        pass
    return 48 * 1024 * 1024


def _compiler_params(n_axes, vmem_limit):
    return pltpu.CompilerParams(
        dimension_semantics=("parallel",) * n_axes,
        vmem_limit_bytes=vmem_limit,
    )


def _pick_row_tile(rows, target):
    """Return (row_tile, padded_rows).

    Prefer an exact multiple-of-8 divisor of `rows` in [target//4, target];
    otherwise pad rows up to a multiple of the tile (padded rows are masked out
    of the BN statistics in-kernel)."""
    t = (min(target, rows) // 8) * 8
    lo = max(8, (target // 4 // 8) * 8)
    while t >= lo:
        if rows % t == 0:
            return t, rows
        t -= 8
    tile = min(target, _round_up(rows, 8))
    return tile, _round_up(rows, tile)


def _pick_h_tile(H, W, C, vmem_limit):
    """Largest divisor of H (<=32) whose pass-2 per-step VMEM estimate fits."""
    Wp = W + 2
    best = 1
    for th in range(1, min(H, 32) + 1):
        if H % th:
            continue
        R = th * Wp
        est = (((th + 2) * Wp + 2) * C * 2      # bf16 flat halo buffer
               + R * 9 * C * 2                  # bf16 im2col patches
               + R * C * 4 + th * W * C * 4     # f32 conv result (wide + valid)
               + 4 * th * W * C * 2             # double-buffered in/out blocks
               + 2 * 9 * C * C * 2)             # double-buffered 3x3 weights
        if est <= vmem_limit // 3:
            best = th
    return best


# --------------------------------------------------------------------------- #
# Passes 1 & 3: (optional per-channel affine + ReLU) -> 1x1 conv as a row-wise
# MXU matmul + per-tile BN (sum, M2) statistics.  Grid tiles N*H*W rows.
# --------------------------------------------------------------------------- #
def _conv1x1_stats_kernel(x_ref, aff_ref, w_ref, y_ref, st_ref, *,
                          apply_affine, apply_relu, row_tile, valid_rows):
    x = x_ref[...]                                          # bf16 (row_tile, Ci)
    if apply_affine:
        a = x.astype(jnp.float32) * aff_ref[0:1, :] + aff_ref[1:2, :]
        if apply_relu:
            a = jnp.maximum(a, 0.0)
        a = a.astype(jnp.bfloat16)
    else:
        a = x                                               # pass 1: raw input

    y = jnp.dot(a, w_ref[...], preferred_element_type=jnp.float32)  # f32

    # Per-tile (sum, M2) for training-mode BatchNorm; combined with Chan's
    # parallel algorithm in the wrapper (no sumsq - mean^2 cancellation).
    # Zero-padded tail rows (if any) are masked out of the statistics.
    if valid_rows is not None:
        base = pl.program_id(0) * row_tile
        rid = base + lax.broadcasted_iota(jnp.int32, (row_tile, 1), 0)
        mask = rid < valid_rows
        nv = jnp.minimum(row_tile, valid_rows - base).astype(jnp.float32)
        ys = jnp.where(mask, y, 0.0)
        s = jnp.sum(ys, axis=0, keepdims=True)
        d = jnp.where(mask, y - s / nv, 0.0)
    else:
        s = jnp.sum(y, axis=0, keepdims=True)
        d = y - s / float(row_tile)
    st_ref[0] = jnp.concatenate([s, jnp.sum(d * d, axis=0, keepdims=True)], axis=0)

    y_ref[...] = y.astype(y_ref.dtype)                      # bf16 intermediate


def _conv1x1_stats(x2d, aff, w_bf16, row_tile, vmem_limit, *,
                   apply_affine, apply_relu, valid_rows):
    rows_p, ci = x2d.shape
    co = w_bf16.shape[1]
    grid = rows_p // row_tile
    kernel = functools.partial(
        _conv1x1_stats_kernel, apply_affine=apply_affine, apply_relu=apply_relu,
        row_tile=row_tile,
        valid_rows=(valid_rows if rows_p != valid_rows else None))
    return pl.pallas_call(
        kernel,
        grid=(grid,),
        in_specs=[
            pl.BlockSpec((row_tile, ci), lambda i: (i, 0)),
            pl.BlockSpec((2, ci), lambda i: (0, 0)),
            pl.BlockSpec((ci, co), lambda i: (0, 0)),
        ],
        out_specs=[
            pl.BlockSpec((row_tile, co), lambda i: (i, 0)),
            pl.BlockSpec((1, 2, co), lambda i: (i, 0, 0)),
        ],
        out_shape=[
            jax.ShapeDtypeStruct((rows_p, co), jnp.bfloat16),
            jax.ShapeDtypeStruct((grid, 2, co), jnp.float32),
        ],
        compiler_params=_compiler_params(1, vmem_limit),
    )(x2d, aff, w_bf16)


# --------------------------------------------------------------------------- #
# Pass 2: BN1 + ReLU -> 3x3 conv (stride 1, pad 1) + BN2 partial statistics.
# Grid over (batch, H-tiles).  The 1-row halos arrive as extra (clamped-index)
# input blocks of the same bf16 y1 array; a flat bf16 zero-padded halo buffer
# turns the 9 taps into contiguous row-shifted slabs, concatenated into a
# single K=9C im2col MXU matmul (no per-tap accumulator read-modify-writes).
# --------------------------------------------------------------------------- #
def _bn_relu_conv3x3_stats_kernel(yc_ref, yt_ref, yb_ref, aff_ref, w_ref,
                                  y2_ref, st_ref, hb_ref, *, th, W, C, n_h_tiles):
    i = pl.program_id(1)
    Wp = W + 2
    scale = aff_ref[0:1, :]
    shift = aff_ref[1:2, :]

    def bn_relu(v):                                    # (rows, C) bf16 -> bf16
        return jnp.maximum(v.astype(jnp.float32) * scale + shift, 0.0
                           ).astype(jnp.bfloat16)

    # Flat ((th+2)*(W+2) + 2, C) zero-padded halo buffer (bf16): zero borders and
    # guard rows once, then contiguous data-row stores.
    hb_ref[...] = jnp.zeros_like(hb_ref)

    top = bn_relu(yt_ref[0, 0])                        # (W, C)
    hb_ref[pl.ds(1, W)] = jnp.where(i > 0, top, jnp.zeros_like(top))
    bot = bn_relu(yb_ref[0, 0])
    hb_ref[pl.ds((th + 1) * Wp + 1, W)] = jnp.where(
        i < n_h_tiles - 1, bot, jnp.zeros_like(bot))

    ctr = bn_relu(yc_ref[0].reshape(th * W, C))        # (th*W, C) bf16
    for r in range(th):
        hb_ref[pl.ds((r + 1) * Wp + 1, W)] = ctr[r * W:(r + 1) * W]

    # 3x3 conv: flat row-shifted slabs -> one K=9C matmul (f32 accumulation).
    R = th * Wp
    patches = jnp.concatenate(
        [hb_ref[pl.ds(dh * Wp + dw, R)] for dh in range(3) for dw in range(3)],
        axis=1)                                                   # (R, 9C) bf16
    y2w = jnp.dot(patches, w_ref[...], preferred_element_type=jnp.float32)
    y2v = y2w.reshape(th, Wp, C)[:, :W, :]                        # valid cols, f32

    y2_ref[0] = y2v.astype(y2_ref.dtype)                          # bf16 intermediate

    s2 = jnp.sum(y2v, axis=(0, 1), keepdims=True)                 # (1, 1, C)
    d = y2v - s2 / float(th * W)
    m2 = jnp.sum(d * d, axis=(0, 1), keepdims=True)
    st_ref[0, 0] = jnp.concatenate([s2[0], m2[0]], axis=0)        # (2, C)


def _bn_relu_conv3x3_stats(y1_img, aff, w2r, th, vmem_limit):
    n, H, W, C = y1_img.shape
    n_h = H // th
    kernel = functools.partial(_bn_relu_conv3x3_stats_kernel,
                               th=th, W=W, C=C, n_h_tiles=n_h)
    Wp = W + 2
    return pl.pallas_call(
        kernel,
        grid=(n, n_h),
        in_specs=[
            pl.BlockSpec((1, th, W, C), lambda b, i: (b, i, 0, 0)),
            # 1-row halos: clamped element rows of the same array (edges are
            # zeroed in-kernel to reproduce the conv's zero padding).
            pl.BlockSpec((1, 1, W, C),
                         lambda b, i: (b, jnp.maximum(i * th - 1, 0), 0, 0)),
            pl.BlockSpec((1, 1, W, C),
                         lambda b, i: (b, jnp.minimum((i + 1) * th, H - 1), 0, 0)),
            pl.BlockSpec((2, C), lambda b, i: (0, 0)),
            pl.BlockSpec((9 * C, C), lambda b, i: (0, 0)),
        ],
        out_specs=[
            pl.BlockSpec((1, th, W, C), lambda b, i: (b, i, 0, 0)),
            pl.BlockSpec((1, 1, 2, C), lambda b, i: (b, i, 0, 0)),
        ],
        out_shape=[
            jax.ShapeDtypeStruct((n, H, W, C), jnp.bfloat16),
            jax.ShapeDtypeStruct((n, n_h, 2, C), jnp.float32),
        ],
        scratch_shapes=[pltpu.VMEM(((th + 2) * Wp + 2, C), jnp.bfloat16)],
        compiler_params=_compiler_params(2, vmem_limit),
    )(y1_img, y1_img, y1_img, aff, w2r)


# --------------------------------------------------------------------------- #
# Pass 4: BN3 + identity residual (bf16 re-read of x) + ReLU.
# --------------------------------------------------------------------------- #
def _bn_residual_relu_kernel(y_ref, x_ref, aff_ref, o_ref):
    o_ref[...] = jnp.maximum(
        y_ref[...].astype(jnp.float32) * aff_ref[0:1, :] + aff_ref[1:2, :]
        + x_ref[...].astype(jnp.float32), 0.0)


def _bn_residual_relu(y2d, x2d, aff, row_tile, vmem_limit):
    rows_p, c = y2d.shape
    grid = rows_p // row_tile
    return pl.pallas_call(
        _bn_residual_relu_kernel,
        grid=(grid,),
        in_specs=[
            pl.BlockSpec((row_tile, c), lambda i: (i, 0)),
            pl.BlockSpec((row_tile, c), lambda i: (i, 0)),
            pl.BlockSpec((2, c), lambda i: (0, 0)),
        ],
        out_specs=pl.BlockSpec((row_tile, c), lambda i: (i, 0)),
        out_shape=jax.ShapeDtypeStruct((rows_p, c), jnp.float32),
        compiler_params=_compiler_params(1, vmem_limit),
    )(y2d, x2d, aff)


def _bn_scale_shift(stats, tile_counts, total_count, gamma, beta):
    """Chan-style parallel combine of per-tile (sum, M2) into (scale, shift)."""
    stats = stats.reshape(-1, 2, stats.shape[-1])
    s = stats[:, 0, :]
    m2 = stats[:, 1, :]
    mu = jnp.sum(s, axis=0) / total_count
    tmean = s / tile_counts[:, None]
    var = (jnp.sum(m2, axis=0)
           + jnp.sum(tile_counts[:, None] * (tmean - mu) ** 2, axis=0)) / total_count
    var = jnp.maximum(var, 0.0)                  # biased variance (PyTorch training)
    scale = gamma * lax.rsqrt(var + EPS)
    shift = beta - mu * scale
    return jnp.stack([scale, shift], axis=0)     # (2, C) f32


def bottleneck_forward(x_nchw, params, row_tile_target=1024):
    """Bottleneck forward (stride=1, downsample=None).  x_nchw: (N, Cin, H, W) f32."""
    w1, g1, b1, w2, g2, b2, w3, g3, b3 = params
    n, cin, H, W = x_nchw.shape
    mid = w1.shape[1]
    cout = w3.shape[1]
    assert cin == cout, "identity residual requires in_channels == mid * expansion"

    cp = _round_up(cin, LANE)
    cm = _round_up(mid, LANE)
    vmem_limit = _vmem_limit_bytes()

    # NCHW -> NHWC, channel-pad to a lane multiple, cast bf16 (one fused relayout;
    # bf16 halves its write and the pass-1 / pass-4 reads of x).
    x = jnp.transpose(x_nchw, (0, 2, 3, 1)).astype(jnp.float32)
    x = jnp.pad(x, ((0, 0), (0, 0), (0, 0), (0, cp - cin))).astype(jnp.bfloat16)

    # Weights in matmul layout, bf16 MXU inputs (f32 accumulation).
    w1p = jnp.pad(w1, ((0, cp - cin), (0, cm - mid))).astype(jnp.bfloat16)
    w2p = jnp.pad(w2, ((0, 0), (0, 0), (0, cm - mid), (0, cm - mid)))
    w2r = w2p.reshape(9 * cm, cm).astype(jnp.bfloat16)       # (kh,kw,ci) x co
    w3p = jnp.pad(w3, ((0, cm - mid), (0, cp - cout))).astype(jnp.bfloat16)

    def _padc(v, c):
        return jnp.pad(v.reshape(-1).astype(jnp.float32), (0, c - v.size))

    g1p, b1p = _padc(g1, cm), _padc(b1, cm)
    g2p, b2p = _padc(g2, cm), _padc(b2, cm)
    g3p, b3p = _padc(g3, cp), _padc(b3, cp)

    rows = n * H * W
    count = float(rows)
    row_tile, rows_p = _pick_row_tile(rows, row_tile_target)
    n_tiles = rows_p // row_tile
    tc = np.full((n_tiles,), float(row_tile), np.float32)
    tc[-1] = rows - (n_tiles - 1) * row_tile
    tile_counts = jnp.asarray(tc)

    x2d = x.reshape(rows, cp)
    if rows_p != rows:
        x2d = jnp.pad(x2d, ((0, rows_p - rows), (0, 0)))
    dummy_aff = jnp.zeros((2, cp), jnp.float32)

    # Pass 1: conv1 (1x1) + BN1 statistics (identity affine skipped).
    y1, st1 = _conv1x1_stats(x2d, dummy_aff, w1p, row_tile, vmem_limit,
                             apply_affine=False, apply_relu=False, valid_rows=rows)
    aff1 = _bn_scale_shift(st1, tile_counts, count, g1p, b1p)

    # Pass 2: BN1 + ReLU -> conv2 (3x3, pad=1) + BN2 statistics.
    th = _pick_h_tile(H, W, cm, vmem_limit)
    y1_img = y1[:rows].reshape(n, H, W, cm)
    y2, st2 = _bn_relu_conv3x3_stats(y1_img, aff1, w2r, th, vmem_limit)
    n_h = H // th
    counts2 = jnp.full((n * n_h,), float(th * W), jnp.float32)
    aff2 = _bn_scale_shift(st2, counts2, count, g2p, b2p)

    # Pass 3: BN2 + ReLU -> conv3 (1x1) + BN3 statistics.
    y2_2d = y2.reshape(rows, cm)
    if rows_p != rows:
        y2_2d = jnp.pad(y2_2d, ((0, rows_p - rows), (0, 0)))
    y3, st3 = _conv1x1_stats(y2_2d, aff2, w3p, row_tile, vmem_limit,
                             apply_affine=True, apply_relu=True, valid_rows=rows)
    aff3 = _bn_scale_shift(st3, tile_counts, count, g3p, b3p)

    # Pass 4: BN3 + identity residual + ReLU.
    out2d = _bn_residual_relu(y3, x2d, aff3, row_tile, vmem_limit)

    out = out2d[:rows].reshape(n, H, W, cp)[..., :cout]
    return jnp.transpose(out, (0, 3, 1, 2))


def bottleneck_ref(x_nchw, params, matmul_dtype=jnp.float32,
                   store_dtype=jnp.float32):
    """Pure-JAX reference.  (bfloat16, bfloat16) matches the kernel's precision:
    bf16 MXU inputs, bf16 inter-layer storage, f32 accumulation / BN statistics."""
    w1, g1, b1, w2, g2, b2, w3, g3, b3 = params
    x = jnp.transpose(x_nchw, (0, 2, 3, 1)).astype(jnp.float32)

    def conv(a, w):
        return lax.conv_general_dilated(
            a.astype(matmul_dtype), w.astype(matmul_dtype),
            window_strides=(1, 1), padding='SAME',
            dimension_numbers=('NHWC', 'HWIO', 'NHWC'),
            preferred_element_type=jnp.float32)

    def bn(y, g, b):
        mu = jnp.mean(y, axis=(0, 1, 2), keepdims=True)
        var = jnp.mean((y - mu) ** 2, axis=(0, 1, 2), keepdims=True)
        ys = y.astype(store_dtype).astype(jnp.float32)
        return (ys - mu) * lax.rsqrt(var + EPS) * g + b

    ident = x.astype(store_dtype).astype(jnp.float32)
    y = jnp.maximum(bn(conv(x, w1.reshape(1, 1, *w1.shape)), g1, b1), 0.0)
    y = jnp.maximum(bn(conv(y, w2), g2, b2), 0.0)
    y = bn(conv(y, w3.reshape(1, 1, *w3.shape)), g3, b3)
    y = jnp.maximum(y + ident, 0.0)
    return jnp.transpose(y, (0, 3, 1, 2))


if __name__ == "__main__":
    # Small shapes consistent with the module: in_channels == mid * expansion so
    # downsample=None is valid (identity residual).
    N, H, W = 2, 16, 16
    mid = 4
    Cin = Cout = mid * 4  # expansion = 4

    key = jax.random.PRNGKey(0)
    ks = jax.random.split(key, 10)
    w1 = 0.2 * jax.random.normal(ks[0], (Cin, mid), jnp.float32)
    w2 = 0.2 * jax.random.normal(ks[1], (3, 3, mid, mid), jnp.float32)   # HWIO
    w3 = 0.2 * jax.random.normal(ks[2], (mid, Cout), jnp.float32)
    g1 = 1.0 + 0.1 * jax.random.normal(ks[3], (mid,), jnp.float32)
    b1 = 0.1 * jax.random.normal(ks[4], (mid,), jnp.float32)
    g2 = 1.0 + 0.1 * jax.random.normal(ks[5], (mid,), jnp.float32)
    b2 = 0.1 * jax.random.normal(ks[6], (mid,), jnp.float32)
    g3 = 1.0 + 0.1 * jax.random.normal(ks[7], (Cout,), jnp.float32)
    b3 = 0.1 * jax.random.normal(ks[8], (Cout,), jnp.float32)
    x = jax.random.normal(ks[9], (N, Cin, H, W), jnp.float32)
    params = (w1, g1, b1, w2, g2, b2, w3, g3, b3)

    fwd = jax.jit(bottleneck_forward)
    out = jax.block_until_ready(fwd(x, params))
    assert out.shape == (N, Cout, H, W)

    # Tight check vs. a reference with matched precision (bf16 matmul inputs,
    # bf16 inter-layer storage, f32 accumulation / BN statistics).
    ref_matched = bottleneck_ref(x, params, matmul_dtype=jnp.bfloat16,
                                 store_dtype=jnp.bfloat16)
    err_m = float(jnp.max(jnp.abs(out - ref_matched)))
    assert err_m < 2e-2, f"max abs err vs matched-precision ref: {err_m}"

    # Loose sanity check vs. the all-f32 reference (difference is purely the
    # bf16 MXU-input / bf16 intermediate rounding).
    ref_f32 = bottleneck_ref(x, params)
    err_f = float(jnp.max(jnp.abs(out - ref_f32)))
    assert err_f < 2e-1, f"max abs err vs f32 ref: {err_f}"

    print("KERNEL_OK")
</pallas_src>

<mosaic_0001>
module attributes {stable_mosaic.version = 11 : i64} {
  func.func @_conv1x1_stats_kernel(%arg0: i32, %arg1: memref<512x128xbf16, #tpu.memory_space<vmem>>, %arg2: memref<2x128xf32, #tpu.memory_space<vmem>>, %arg3: memref<128x128xbf16, #tpu.memory_space<vmem>>, %arg4: memref<512x128xbf16, #tpu.memory_space<vmem>>, %arg5: memref<1x2x128xf32, #tpu.memory_space<vmem>>) attributes {dimension_semantics = [#tpu.dimension_semantics<parallel>], iteration_bounds = array<i64: 1>, scalar_prefetch = 0 : i64, scratch_operands = 0 : i64, tpu.core_type = #tpu.core_type<tc>, window_params = [{transform_indices = @transform_0, window_bounds = array<i64: 512, 128>}, {pipeline_mode = #tpu.pipeline_mode<synchronous>, transform_indices = @transform_1, window_bounds = array<i64: 2, 128>}, {pipeline_mode = #tpu.pipeline_mode<synchronous>, transform_indices = @transform_2, window_bounds = array<i64: 128, 128>}, {transform_indices = @transform_3, window_bounds = array<i64: 512, 128>}, {transform_indices = @transform_4, window_bounds = array<i64: 1, 2, 128>}]} {
    %c0 = arith.constant 0 : index
    %c0_0 = arith.constant 0 : index
    %0 = vector.load %arg1[%c0, %c0_0] : memref<512x128xbf16, #tpu.memory_space<vmem>>, vector<512x128xbf16>
    %c0_1 = arith.constant 0 : index
    %c0_2 = arith.constant 0 : index
    %1 = vector.load %arg3[%c0_1, %c0_2] : memref<128x128xbf16, #tpu.memory_space<vmem>>, vector<128x128xbf16>
    %cst = arith.constant dense<0.000000e+00> : vector<512x128xf32>
    %2 = tpu.matmul %0, %1, %cst {dimension_numbers = #tpu.dot_dimension_numbers<[1], [0], [0], [1], [0, 0, 1, 1], [], []>} : vector<512x128xbf16>, vector<128x128xbf16>, vector<512x128xf32> -> vector<512x128xf32>
    %cst_3 = arith.constant dense<0.000000e+00> : vector<128xf32>
    %3 = vector.multi_reduction <add>, %2, %cst_3 [0] : vector<512x128xf32> to vector<128xf32>
    %4 = vector.shape_cast %3 : vector<128xf32> to vector<1x128xf32>
    %cst_4 = arith.constant 5.120000e+02 : f32
    %5 = vector.broadcast %cst_4 : f32 to vector<1x128xf32>
    %6 = arith.divf %4, %5 : vector<1x128xf32>
    %7 = vector.broadcast %6 : vector<1x128xf32> to vector<512x128xf32>
    %8 = arith.subf %2, %7 : vector<512x128xf32>
    %9 = arith.mulf %8, %8 : vector<512x128xf32>
    %cst_5 = arith.constant dense<0.000000e+00> : vector<128xf32>
    %10 = vector.multi_reduction <add>, %9, %cst_5 [0] : vector<512x128xf32> to vector<128xf32>
    %11 = vector.shape_cast %10 : vector<128xf32> to vector<1x128xf32>
    %12 = tpu.concatenate %4, %11 in 0 : vector<1x128xf32>, vector<1x128xf32> -> vector<2x128xf32>
    %c0_6 = arith.constant 0 : index
    %c0_7 = arith.constant 0 : index
    %c0_8 = arith.constant 0 : index
    %13 = vector.load %arg5[%c0_6, %c0_7, %c0_8] : memref<1x2x128xf32, #tpu.memory_space<vmem>>, vector<1x2x128xf32>
    %14 = vector.shape_cast %13 : vector<1x2x128xf32> to vector<2x128xf32>
    %15 = vector.shape_cast %12 : vector<2x128xf32> to vector<1x2x128xf32>
    tpu.vector_store %arg5[%c0_6, %c0_7, %c0_8], %15 {strides = array<i32>} : memref<1x2x128xf32, #tpu.memory_space<vmem>>, vector<1x2x128xf32>,
    %16 = arith.truncf %2 : vector<512x128xf32> to vector<512x128xbf16>
    %c0_9 = arith.constant 0 : index
    %c0_10 = arith.constant 0 : index
    %17 = vector.load %arg4[%c0_9, %c0_10] : memref<512x128xbf16, #tpu.memory_space<vmem>>, vector<512x128xbf16>
    tpu.vector_store %arg4[%c0_9, %c0_10], %16 {strides = array<i32>} : memref<512x128xbf16, #tpu.memory_space<vmem>>, vector<512x128xbf16>,
    return
  }
  func.func @transform_0(%arg0: i32) -> (i32, i32) {
    %c0_i32 = arith.constant 0 : i32
    %c0_i32_0 = arith.constant 0 : i32
    return %arg0, %c0_i32 : i32, i32
  }
  func.func @transform_1(%arg0: i32) -> (i32, i32) {
    %c0_i32 = arith.constant 0 : i32
    %c0_i32_0 = arith.constant 0 : i32
    %c0_i32_1 = arith.constant 0 : i32
    return %c0_i32, %c0_i32_0 : i32, i32
  }
  func.func @transform_2(%arg0: i32) -> (i32, i32) {
    %c0_i32 = arith.constant 0 : i32
    %c0_i32_0 = arith.constant 0 : i32
    %c0_i32_1 = arith.constant 0 : i32
    return %c0_i32, %c0_i32_0 : i32, i32
  }
  func.func @transform_3(%arg0: i32) -> (i32, i32) {
    %c0_i32 = arith.constant 0 : i32
    %c0_i32_0 = arith.constant 0 : i32
    return %arg0, %c0_i32 : i32, i32
  }
  func.func @transform_4(%arg0: i32) -> (i32, i32, i32) {
    %c0_i32 = arith.constant 0 : i32
    %c0_i32_0 = arith.constant 0 : i32
    %c0_i32_1 = arith.constant 0 : i32
    return %arg0, %c0_i32, %c0_i32_0 : i32, i32, i32
  }
}

module attributes {stable_mosaic.version = 11 : i64} {
  func.func @_bn_relu_conv3x3_stats_kernel(%arg0: i32, %arg1: i32, %arg2: memref<1x16x16x128xbf16, #tpu.memory_space<vmem>>, %arg3: memref<1x1x16x128xbf16, #tpu.memory_space<vmem>>, %arg4: memref<1x1x16x128xbf16, #tpu.memory_space<vmem>>, %arg5: memref<2x128xf32, #tpu.memory_space<vmem>>, %arg6: memref<1152x128xbf16, #tpu.memory_space<vmem>>, %arg7: memref<1x16x16x128xbf16, #tpu.memory_space<vmem>>, %arg8: memref<1x1x2x128xf32, #tpu.memory_space<vmem>>, %arg9: memref<326x128xbf16, #tpu.memory_space<vmem>>) attributes {dimension_semantics = [#tpu.dimension_semantics<parallel>, #tpu.dimension_semantics<parallel>], iteration_bounds = array<i64: 2, 1>, scalar_prefetch = 0 : i64, scratch_operands = 1 : i64, tpu.core_type = #tpu.core_type<tc>, window_params = [{transform_indices = @transform_0, window_bounds = array<i64: 1, 16, 16, 128>}, {transform_indices = @transform_1, window_bounds = array<i64: 1, 1, 16, 128>}, {transform_indices = @transform_2, window_bounds = array<i64: 1, 1, 16, 128>}, {pipeline_mode = #tpu.pipeline_mode<synchronous>, transform_indices = @transform_3, window_bounds = array<i64: 2, 128>}, {pipeline_mode = #tpu.pipeline_mode<synchronous>, transform_indices = @transform_4, window_bounds = array<i64: 1152, 128>}, {transform_indices = @transform_5, window_bounds = array<i64: 1, 16, 16, 128>}, {transform_indices = @transform_6, window_bounds = array<i64: 1, 1, 2, 128>}]} {
    %c0 = arith.constant 0 : index
    %c0_0 = arith.constant 0 : index
    %0 = vector.load %arg5[%c0, %c0_0] : memref<2x128xf32, #tpu.memory_space<vmem>>, vector<1x128xf32>
    %c1 = arith.constant 1 : index
    %c0_1 = arith.constant 0 : index
    %1 = vector.load %arg5[%c1, %c0_1] : memref<2x128xf32, #tpu.memory_space<vmem>>, vector<1x128xf32>
    %cst = arith.constant 0.000000e+00 : bf16
    %2 = vector.broadcast %cst : bf16 to vector<326x128xbf16>
    %c0_2 = arith.constant 0 : index
    %c0_3 = arith.constant 0 : index
    %3 = vector.load %arg9[%c0_2, %c0_3] : memref<326x128xbf16, #tpu.memory_space<vmem>>, vector<326x128xbf16>
    tpu.vector_store %arg9[%c0_2, %c0_3], %2 {strides = array<i32>} : memref<326x128xbf16, #tpu.memory_space<vmem>>, vector<326x128xbf16>,
    %c0_4 = arith.constant 0 : index
    %c0_5 = arith.constant 0 : index
    %c0_6 = arith.constant 0 : index
    %c0_7 = arith.constant 0 : index
    %4 = vector.load %arg3[%c0_4, %c0_5, %c0_6, %c0_7] : memref<1x1x16x128xbf16, #tpu.memory_space<vmem>>, vector<1x1x16x128xbf16>
    %5 = vector.shape_cast %4 : vector<1x1x16x128xbf16> to vector<16x128xbf16>
    %6 = arith.extf %5 : vector<16x128xbf16> to vector<16x128xf32>
    %7 = vector.broadcast %0 : vector<1x128xf32> to vector<16x128xf32>
    %8 = arith.mulf %6, %7 : vector<16x128xf32>
    %9 = vector.broadcast %1 : vector<1x128xf32> to vector<16x128xf32>
    %10 = arith.addf %8, %9 : vector<16x128xf32>
    %cst_8 = arith.constant 0.000000e+00 : f32
    %11 = vector.broadcast %cst_8 : f32 to vector<16x128xf32>
    %12 = arith.maximumf %10, %11 : vector<16x128xf32>
    %13 = arith.truncf %12 : vector<16x128xf32> to vector<16x128xbf16>
    %c0_i32 = arith.constant 0 : i32
    %14 = arith.cmpi sgt, %arg1, %c0_i32 : i32
    %cst_9 = arith.constant 0.000000e+00 : bf16
    %15 = vector.broadcast %cst_9 : bf16 to vector<16x128xbf16>
    %16 = arith.select %14, %13, %15 : vector<16x128xbf16>
    %c1_10 = arith.constant 1 : index
    %c0_11 = arith.constant 0 : index
    %17 = vector.load %arg9[%c1_10, %c0_11] : memref<326x128xbf16, #tpu.memory_space<vmem>>, vector<16x128xbf16>
    tpu.vector_store %arg9[%c1_10, %c0_11], %16 {strides = array<i32>} : memref<326x128xbf16, #tpu.memory_space<vmem>>, vector<16x128xbf16>,
    %c0_12 = arith.constant 0 : index
    %c0_13 = arith.constant 0 : index
    %c0_14 = arith.constant 0 : index
    %c0_15 = arith.constant 0 : index
    %18 = vector.load %arg4[%c0_12, %c0_13, %c0_14, %c0_15] : memref<1x1x16x128xbf16, #tpu.memory_space<vmem>>, vector<1x1x16x128xbf16>
    %19 = vector.shape_cast %18 : vector<1x1x16x128xbf16> to vector<16x128xbf16>
    %20 = arith.extf %19 : vector<16x128xbf16> to vector<16x128xf32>
    %21 = vector.broadcast %0 : vector<1x128xf32> to vector<16x128xf32>
    %22 = arith.mulf %20, %21 : vector<16x128xf32>
    %23 = vector.broadcast %1 : vector<1x128xf32> to vector<16x128xf32>
    %24 = arith.addf %22, %23 : vector<16x128xf32>
    %cst_16 = arith.constant 0.000000e+00 : f32
    %25 = vector.broadcast %cst_16 : f32 to vector<16x128xf32>
    %26 = arith.maximumf %24, %25 : vector<16x128xf32>
    %27 = arith.truncf %26 : vector<16x128xf32> to vector<16x128xbf16>
    %c0_i32_17 = arith.constant 0 : i32
    %28 = arith.cmpi slt, %arg1, %c0_i32_17 : i32
    %cst_18 = arith.constant 0.000000e+00 : bf16
    %29 = vector.broadcast %cst_18 : bf16 to vector<16x128xbf16>
    %30 = arith.select %28, %27, %29 : vector<16x128xbf16>
    %c307 = arith.constant 307 : index
    %c0_19 = arith.constant 0 : index
    %31 = vector.load %arg9[%c307, %c0_19] : memref<326x128xbf16, #tpu.memory_space<vmem>>, vector<16x128xbf16>
    tpu.vector_store %arg9[%c307, %c0_19], %30 {strides = array<i32>} : memref<326x128xbf16, #tpu.memory_space<vmem>>, vector<16x128xbf16>,
    %c0_20 = arith.constant 0 : index
    %c0_21 = arith.constant 0 : index
    %c0_22 = arith.constant 0 : index
    %c0_23 = arith.constant 0 : index
    %32 = vector.load %arg2[%c0_20, %c0_21, %c0_22, %c0_23] : memref<1x16x16x128xbf16, #tpu.memory_space<vmem>>, vector<1x16x16x128xbf16>
    %33 = vector.shape_cast %32 : vector<1x16x16x128xbf16> to vector<16x16x128xbf16>
    %34 = vector.shape_cast %33 : vector<16x16x128xbf16> to vector<256x128xbf16>
    %35 = arith.extf %34 : vector<256x128xbf16> to vector<256x128xf32>
    %36 = vector.broadcast %0 : vector<1x128xf32> to vector<256x128xf32>
    %37 = arith.mulf %35, %36 : vector<256x128xf32>
    %38 = vector.broadcast %1 : vector<1x128xf32> to vector<256x128xf32>
    %39 = arith.addf %37, %38 : vector<256x128xf32>
    %cst_24 = arith.constant 0.000000e+00 : f32
    %40 = vector.broadcast %cst_24 : f32 to vector<256x128xf32>
    %41 = arith.maximumf %39, %40 : vector<256x128xf32>
    %42 = arith.truncf %41 : vector<256x128xf32> to vector<256x128xbf16>
    %43 = vector.extract_strided_slice %42 {offsets = [0, 0], sizes = [16, 128], strides = [1, 1]} : vector<256x128xbf16> to vector<16x128xbf16>
    %c19 = arith.constant 19 : index
    %c0_25 = arith.constant 0 : index
    %44 = vector.load %arg9[%c19, %c0_25] : memref<326x128xbf16, #tpu.memory_space<vmem>>, vector<16x128xbf16>
    tpu.vector_store %arg9[%c19, %c0_25], %43 {strides = array<i32>} : memref<326x128xbf16, #tpu.memory_space<vmem>>, vector<16x128xbf16>,
    %45 = vector.extract_strided_slice %42 {offsets = [16, 0], sizes = [16, 128], strides = [1, 1]} : vector<256x128xbf16> to vector<16x128xbf16>
    %c37 = arith.constant 37 : index
    %c0_26 = arith.constant 0 : index
    %46 = vector.load %arg9[%c37, %c0_26] : memref<326x128xbf16, #tpu.memory_space<vmem>>, vector<16x128xbf16>
    tpu.vector_store %arg9[%c37, %c0_26], %45 {strides = array<i32>} : memref<326x128xbf16, #tpu.memory_space<vmem>>, vector<16x128xbf16>,
    %47 = vector.extract_strided_slice %42 {offsets = [32, 0], sizes = [16, 128], strides = [1, 1]} : vector<256x128xbf16> to vector<16x128xbf16>
    %c55 = arith.constant 55 : index
    %c0_27 = arith.constant 0 : index
    %48 = vector.load %arg9[%c55, %c0_27] : memref<326x128xbf16, #tpu.memory_space<vmem>>, vector<16x128xbf16>
    tpu.vector_store %arg9[%c55, %c0_27], %47 {strides = array<i32>} : memref<326x128xbf16, #tpu.memory_space<vmem>>, vector<16x128xbf16>,
    %49 = vector.extract_strided_slice %42 {offsets = [48, 0], sizes = [16, 128], strides = [1, 1]} : vector<256x128xbf16> to vector<16x128xbf16>
    %c73 = arith.constant 73 : index
    %c0_28 = arith.constant 0 : index
    %50 = vector.load %arg9[%c73, %c0_28] : memref<326x128xbf16, #tpu.memory_space<vmem>>, vector<16x128xbf16>
    tpu.vector_store %arg9[%c73, %c0_28], %49 {strides = array<i32>} : memref<326x128xbf16, #tpu.memory_space<vmem>>, vector<16x128xbf16>,
    %51 = vector.extract_strided_slice %42 {offsets = [64, 0], sizes = [16, 128], strides = [1, 1]} : vector<256x128xbf16> to vector<16x128xbf16>
    %c91 = arith.constant 91 : index
    %c0_29 = arith.constant 0 : index
    %52 = vector.load %arg9[%c91, %c0_29] : memref<326x128xbf16, #tpu.memory_space<vmem>>, vector<16x128xbf16>
    tpu.vector_store %arg9[%c91, %c0_29], %51 {strides = array<i32>} : memref<326x128xbf16, #tpu.memory_space<vmem>>, vector<16x128xbf16>,
    %53 = vector.extract_strided_slice %42 {offsets = [80, 0], sizes = [16, 128], strides = [1, 1]} : vector<256x128xbf16> to vector<16x128xbf16>
    %c109 = arith.constant 109 : index
    %c0_30 = arith.constant 0 : index
    %54 = vector.load %arg9[%c109, %c0_30] : memref<326x128xbf16, #tpu.memory_space<vmem>>, vector<16x128xbf16>
    tpu.vector_store %arg9[%c109, %c0_30], %53 {strides = array<i32>} : memref<326x128xbf16, #tpu.memory_space<vmem>>, vector<16x128xbf16>,
    %55 = vector.extract_strided_slice %42 {offsets = [96, 0], sizes = [16, 128], strides = [1, 1]} : vector<256x128xbf16> to vector<16x128xbf16>
    %c127 = arith.constant 127 : index
    %c0_31 = arith.constant 0 : index
    %56 = vector.load %arg9[%c127, %c0_31] : memref<326x128xbf16, #tpu.memory_space<vmem>>, vector<16x128xbf16>
    tpu.vector_store %arg9[%c127, %c0_31], %55 {strides = array<i32>} : memref<326x128xbf16, #tpu.memory_space<vmem>>, vector<16x128xbf16>,
    %57 = vector.extract_strided_slice %42 {offsets = [112, 0], sizes = [16, 128], strides = [1, 1]} : vector<256x128xbf16> to vector<16x128xbf16>
    %c145 = arith.constant 145 : index
    %c0_32 = arith.constant 0 : index
    %58 = vector.load %arg9[%c145, %c0_32] : memref<326x128xbf16, #tpu.memory_space<vmem>>, vector<16x128xbf16>
    tpu.vector_store %arg9[%c145, %c0_32], %57 {strides = array<i32>} : memref<326x128xbf16, #tpu.memory_space<vmem>>, vector<16x128xbf16>,
    %59 = vector.extract_strided_slice %42 {offsets = [128, 0], sizes = [16, 128], strides = [1, 1]} : vector<256x128xbf16> to vector<16x128xbf16>
    %c163 = arith.constant 163 : index
    %c0_33 = arith.constant 0 : index
    %60 = vector.load %arg9[%c163, %c0_33] : memref<326x128xbf16, #tpu.memory_space<vmem>>, vector<16x128xbf16>
    tpu.vector_store %arg9[%c163, %c0_33], %59 {strides = array<i32>} : memref<326x128xbf16, #tpu.memory_space<vmem>>, vector<16x128xbf16>,
    %61 = vector.extract_strided_slice %42 {offsets = [144, 0], sizes = [16, 128], strides = [1, 1]} : vector<256x128xbf16> to vector<16x128xbf16>
    %c181 = arith.constant 181 : index
    %c0_34 = arith.constant 0 : index
    %62 = vector.load %arg9[%c181, %c0_34] : memref<326x128xbf16, #tpu.memory_space<vmem>>, vector<16x128xbf16>
    tpu.vector_store %arg9[%c181, %c0_34], %61 {strides = array<i32>} : memref<326x128xbf16, #tpu.memory_space<vmem>>, vector<16x128xbf16>,
    %63 = vector.extract_strided_slice %42 {offsets = [160, 0], sizes = [16, 128], strides = [1, 1]} : vector<256x128xbf16> to vector<16x128xbf16>
    %c199 = arith.constant 199 : index
    %c0_35 = arith.constant 0 : index
    %64 = vector.load %arg9[%c199, %c0_35] : memref<326x128xbf16, #tpu.memory_space<vmem>>, vector<16x128xbf16>
    tpu.vector_store %arg9[%c199, %c0_35], %63 {strides = array<i32>} : memref<326x128xbf16, #tpu.memory_space<vmem>>, vector<16x128xbf16>,
    %65 = vector.extract_strided_slice %42 {offsets = [176, 0], sizes = [16, 128], strides = [1, 1]} : vector<256x128xbf16> to vector<16x128xbf16>
    %c217 = arith.constant 217 : index
    %c0_36 = arith.constant 0 : index
    %66 = vector.load %arg9[%c217, %c0_36] : memref<326x128xbf16, #tpu.memory_space<vmem>>, vector<16x128xbf16>
    tpu.vector_store %arg9[%c217, %c0_36], %65 {strides = array<i32>} : memref<326x128xbf16, #tpu.memory_space<vmem>>, vector<16x128xbf16>,
    %67 = vector.extract_strided_slice %42 {offsets = [192, 0], sizes = [16, 128], strides = [1, 1]} : vector<256x128xbf16> to vector<16x128xbf16>
    %c235 = arith.constant 235 : index
    %c0_37 = arith.constant 0 : index
    %68 = vector.load %arg9[%c235, %c0_37] : memref<326x128xbf16, #tpu.memory_space<vmem>>, vector<16x128xbf16>
    tpu.vector_store %arg9[%c235, %c0_37], %67 {strides = array<i32>} : memref<326x128xbf16, #tpu.memory_space<vmem>>, vector<16x128xbf16>,
    %69 = vector.extract_strided_slice %42 {offsets = [208, 0], sizes = [16, 128], strides = [1, 1]} : vector<256x128xbf16> to vector<16x128xbf16>
    %c253 = arith.constant 253 : index
    %c0_38 = arith.constant 0 : index
    %70 = vector.load %arg9[%c253, %c0_38] : memref<326x128xbf16, #tpu.memory_space<vmem>>, vector<16x128xbf16>
    tpu.vector_store %arg9[%c253, %c0_38], %69 {strides = array<i32>} : memref<326x128xbf16, #tpu.memory_space<vmem>>, vector<16x128xbf16>,
    %71 = vector.extract_strided_slice %42 {offsets = [224, 0], sizes = [16, 128], strides = [1, 1]} : vector<256x128xbf16> to vector<16x128xbf16>
    %c271 = arith.constant 271 : index
    %c0_39 = arith.constant 0 : index
    %72 = vector.load %arg9[%c271, %c0_39] : memref<326x128xbf16, #tpu.memory_space<vmem>>, vector<16x128xbf16>
    tpu.vector_store %arg9[%c271, %c0_39], %71 {strides = array<i32>} : memref<326x128xbf16, #tpu.memory_space<vmem>>, vector<16x128xbf16>,
    %73 = vector.extract_strided_slice %42 {offsets = [240, 0], sizes = [16, 128], strides = [1, 1]} : vector<256x128xbf16> to vector<16x128xbf16>
    %c289 = arith.constant 289 : index
    %c0_40 = arith.constant 0 : index
    %74 = vector.load %arg9[%c289, %c0_40] : memref<326x128xbf16, #tpu.memory_space<vmem>>, vector<16x128xbf16>
    tpu.vector_store %arg9[%c289, %c0_40], %73 {strides = array<i32>} : memref<326x128xbf16, #tpu.memory_space<vmem>>, vector<16x128xbf16>,
    %c0_41 = arith.constant 0 : index
    %c0_42 = arith.constant 0 : index
    %75 = vector.load %arg9[%c0_41, %c0_42] : memref<326x128xbf16, #tpu.memory_space<vmem>>, vector<288x128xbf16>
    %c1_43 = arith.constant 1 : index
    %c0_44 = arith.constant 0 : index
    %76 = vector.load %arg9[%c1_43, %c0_44] : memref<326x128xbf16, #tpu.memory_space<vmem>>, vector<288x128xbf16>
    %c2 = arith.constant 2 : index
    %c0_45 = arith.constant 0 : index
    %77 = vector.load %arg9[%c2, %c0_45] : memref<326x128xbf16, #tpu.memory_space<vmem>>, vector<288x128xbf16>
    %c18 = arith.constant 18 : index
    %c0_46 = arith.constant 0 : index
    %78 = vector.load %arg9[%c18, %c0_46] : memref<326x128xbf16, #tpu.memory_space<vmem>>, vector<288x128xbf16>
    %c19_47 = arith.constant 19 : index
    %c0_48 = arith.constant 0 : index
    %79 = vector.load %arg9[%c19_47, %c0_48] : memref<326x128xbf16, #tpu.memory_space<vmem>>, vector<288x128xbf16>
    %c20 = arith.constant 20 : index
    %c0_49 = arith.constant 0 : index
    %80 = vector.load %arg9[%c20, %c0_49] : memref<326x128xbf16, #tpu.memory_space<vmem>>, vector<288x128xbf16>
    %c36 = arith.constant 36 : index
    %c0_50 = arith.constant 0 : index
    %81 = vector.load %arg9[%c36, %c0_50] : memref<326x128xbf16, #tpu.memory_space<vmem>>, vector<288x128xbf16>
    %c37_51 = arith.constant 37 : index
    %c0_52 = arith.constant 0 : index
    %82 = vector.load %arg9[%c37_51, %c0_52] : memref<326x128xbf16, #tpu.memory_space<vmem>>, vector<288x128xbf16>
    %c38 = arith.constant 38 : index
    %c0_53 = arith.constant 0 : index
    %83 = vector.load %arg9[%c38, %c0_53] : memref<326x128xbf16, #tpu.memory_space<vmem>>, vector<288x128xbf16>
    %84 = tpu.concatenate %75, %76, %77, %78, %79, %80, %81, %82, %83 in 1 : vector<288x128xbf16>, vector<288x128xbf16>, vector<288x128xbf16>, vector<288x128xbf16>, vector<288x128xbf16>, vector<288x128xbf16>, vector<288x128xbf16>, vector<288x128xbf16>, vector<288x128xbf16> -> vector<288x1152xbf16>
    %c0_54 = arith.constant 0 : index
    %c0_55 = arith.constant 0 : index
    %85 = vector.load %arg6[%c0_54, %c0_55] : memref<1152x128xbf16, #tpu.memory_space<vmem>>, vector<1152x128xbf16>
    %cst_56 = arith.constant dense<0.000000e+00> : vector<288x128xf32>
    %86 = tpu.matmul %84, %85, %cst_56 {dimension_numbers = #tpu.dot_dimension_numbers<[1], [0], [0], [1], [0, 0, 1, 1], [], []>} : vector<288x1152xbf16>, vector<1152x128xbf16>, vector<288x128xf32> -> vector<288x128xf32>
    %87 = vector.shape_cast %86 : vector<288x128xf32> to vector<16x18x128xf32>
    %88 = vector.extract_strided_slice %87 {offsets = [0, 0, 0], sizes = [16, 16, 128], strides = [1, 1, 1]} : vector<16x18x128xf32> to vector<16x16x128xf32>
    %89 = arith.truncf %88 : vector<16x16x128xf32> to vector<16x16x128xbf16>
    %c0_57 = arith.constant 0 : index
    %c0_58 = arith.constant 0 : index
    %c0_59 = arith.constant 0 : index
    %c0_60 = arith.constant 0 : index
    %90 = vector.load %arg7[%c0_57, %c0_58, %c0_59, %c0_60] : memref<1x16x16x128xbf16, #tpu.memory_space<vmem>>, vector<1x16x16x128xbf16>
    %91 = vector.shape_cast %90 : vector<1x16x16x128xbf16> to vector<16x16x128xbf16>
    %92 = vector.shape_cast %89 : vector<16x16x128xbf16> to vector<1x16x16x128xbf16>
    tpu.vector_store %arg7[%c0_57, %c0_58, %c0_59, %c0_60], %92 {strides = array<i32>} : memref<1x16x16x128xbf16, #tpu.memory_space<vmem>>, vector<1x16x16x128xbf16>,
    %cst_61 = arith.constant dense<0.000000e+00> : vector<128xf32>
    %93 = vector.multi_reduction <add>, %88, %cst_61 [0, 1] : vector<16x16x128xf32> to vector<128xf32>
    %94 = vector.shape_cast %93 : vector<128xf32> to vector<1x1x128xf32>
    %cst_62 = arith.constant 2.560000e+02 : f32
    %95 = vector.broadcast %cst_62 : f32 to vector<1x1x128xf32>
    %96 = arith.divf %94, %95 : vector<1x1x128xf32>
    %97 = vector.broadcast %96 : vector<1x1x128xf32> to vector<16x16x128xf32>
    %98 = arith.subf %88, %97 : vector<16x16x128xf32>
    %99 = arith.mulf %98, %98 : vector<16x16x128xf32>
    %cst_63 = arith.constant dense<0.000000e+00> : vector<128xf32>
    %100 = vector.multi_reduction <add>, %99, %cst_63 [0, 1] : vector<16x16x128xf32> to vector<128xf32>
    %101 = vector.shape_cast %100 : vector<128xf32> to vector<1x1x128xf32>
    %102 = vector.shape_cast %94 : vector<1x1x128xf32> to vector<1x128xf32>
    %103 = vector.shape_cast %101 : vector<1x1x128xf32> to vector<1x128xf32>
    %104 = tpu.concatenate %102, %103 in 0 : vector<1x128xf32>, vector<1x128xf32> -> vector<2x128xf32>
    %c0_64 = arith.constant 0 : index
    %c0_65 = arith.constant 0 : index
    %c0_66 = arith.constant 0 : index
    %c0_67 = arith.constant 0 : index
    %105 = vector.load %arg8[%c0_64, %c0_65, %c0_66, %c0_67] : memref<1x1x2x128xf32, #tpu.memory_space<vmem>>, vector<1x1x2x128xf32>
    %106 = vector.shape_cast %105 : vector<1x1x2x128xf32> to vector<2x128xf32>
    %107 = vector.shape_cast %104 : vector<2x128xf32> to vector<1x1x2x128xf32>
    tpu.vector_store %arg8[%c0_64, %c0_65, %c0_66, %c0_67], %107 {strides = array<i32>} : memref<1x1x2x128xf32, #tpu.memory_space<vmem>>, vector<1x1x2x128xf32>,
    return
  }
  func.func @transform_0(%arg0: i32, %arg1: i32) -> (i32, i32, i32, i32) {
    %c0_i32 = arith.constant 0 : i32
    %c0_i32_0 = arith.constant 0 : i32
    %c0_i32_1 = arith.constant 0 : i32
    return %arg0, %arg1, %c0_i32, %c0_i32_0 : i32, i32, i32, i32
  }
  func.func @transform_1(%arg0: i32, %arg1: i32) -> (i32, i32, i32, i32) {
    %c16_i32 = arith.constant 16 : i32
    %0 = arith.muli %arg1, %c16_i32 : i32
    %c1_i32 = arith.constant 1 : i32
    %1 = arith.subi %0, %c1_i32 : i32
    %c0_i32 = arith.constant 0 : i32
    %2 = arith.maxsi %1, %c0_i32 : i32
    %c0_i32_0 = arith.constant 0 : i32
    %c0_i32_1 = arith.constant 0 : i32
    %c0_i32_2 = arith.constant 0 : i32
    return %arg0, %2, %c0_i32_0, %c0_i32_1 : i32, i32, i32, i32
  }
  func.func @transform_2(%arg0: i32, %arg1: i32) -> (i32, i32, i32, i32) {
    %c1_i32 = arith.constant 1 : i32
    %0 = arith.addi %arg1, %c1_i32 : i32
    %c16_i32 = arith.constant 16 : i32
    %1 = arith.muli %0, %c16_i32 : i32
    %c15_i32 = arith.constant 15 : i32
    %2 = arith.minsi %1, %c15_i32 : i32
    %c0_i32 = arith.constant 0 : i32
    %c0_i32_0 = arith.constant 0 : i32
    %c0_i32_1 = arith.constant 0 : i32
    return %arg0, %2, %c0_i32, %c0_i32_0 : i32, i32, i32, i32
  }
  func.func @transform_3(%arg0: i32, %arg1: i32) -> (i32, i32) {
    %c0_i32 = arith.constant 0 : i32
    %c0_i32_0 = arith.constant 0 : i32
    %c0_i32_1 = arith.constant 0 : i32
    return %c0_i32, %c0_i32_0 : i32, i32
  }
  func.func @transform_4(%arg0: i32, %arg1: i32) -> (i32, i32) {
    %c0_i32 = arith.constant 0 : i32
    %c0_i32_0 = arith.constant 0 : i32
    %c0_i32_1 = arith.constant 0 : i32
    return %c0_i32, %c0_i32_0 : i32, i32
  }
  func.func @transform_5(%arg0: i32, %arg1: i32) -> (i32, i32, i32, i32) {
    %c0_i32 = arith.constant 0 : i32
    %c0_i32_0 = arith.constant 0 : i32
    %c0_i32_1 = arith.constant 0 : i32
    return %arg0, %arg1, %c0_i32, %c0_i32_0 : i32, i32, i32, i32
  }
  func.func @transform_6(%arg0: i32, %arg1: i32) -> (i32, i32, i32, i32) {
    %c0_i32 = arith.constant 0 : i32
    %c0_i32_0 = arith.constant 0 : i32
    %c0_i32_1 = arith.constant 0 : i32
    return %arg0, %arg1, %c0_i32, %c0_i32_0 : i32, i32, i32, i32
  }
}

module attributes {stable_mosaic.version = 11 : i64} {
  func.func @_conv1x1_stats_kernel(%arg0: i32, %arg1: memref<512x128xbf16, #tpu.memory_space<vmem>>, %arg2: memref<2x128xf32, #tpu.memory_space<vmem>>, %arg3: memref<128x128xbf16, #tpu.memory_space<vmem>>, %arg4: memref<512x128xbf16, #tpu.memory_space<vmem>>, %arg5: memref<1x2x128xf32, #tpu.memory_space<vmem>>) attributes {dimension_semantics = [#tpu.dimension_semantics<parallel>], iteration_bounds = array<i64: 1>, scalar_prefetch = 0 : i64, scratch_operands = 0 : i64, tpu.core_type = #tpu.core_type<tc>, window_params = [{transform_indices = @transform_0, window_bounds = array<i64: 512, 128>}, {pipeline_mode = #tpu.pipeline_mode<synchronous>, transform_indices = @transform_1, window_bounds = array<i64: 2, 128>}, {pipeline_mode = #tpu.pipeline_mode<synchronous>, transform_indices = @transform_2, window_bounds = array<i64: 128, 128>}, {transform_indices = @transform_3, window_bounds = array<i64: 512, 128>}, {transform_indices = @transform_4, window_bounds = array<i64: 1, 2, 128>}]} {
    %c0 = arith.constant 0 : index
    %c0_0 = arith.constant 0 : index
    %0 = vector.load %arg1[%c0, %c0_0] : memref<512x128xbf16, #tpu.memory_space<vmem>>, vector<512x128xbf16>
    %1 = arith.extf %0 : vector<512x128xbf16> to vector<512x128xf32>
    %c0_1 = arith.constant 0 : index
    %c0_2 = arith.constant 0 : index
    %2 = vector.load %arg2[%c0_1, %c0_2] : memref<2x128xf32, #tpu.memory_space<vmem>>, vector<1x128xf32>
    %3 = vector.broadcast %2 : vector<1x128xf32> to vector<512x128xf32>
    %4 = arith.mulf %1, %3 : vector<512x128xf32>
    %c1 = arith.constant 1 : index
    %c0_3 = arith.constant 0 : index
    %5 = vector.load %arg2[%c1, %c0_3] : memref<2x128xf32, #tpu.memory_space<vmem>>, vector<1x128xf32>
    %6 = vector.broadcast %5 : vector<1x128xf32> to vector<512x128xf32>
    %7 = arith.addf %4, %6 : vector<512x128xf32>
    %cst = arith.constant 0.000000e+00 : f32
    %8 = vector.broadcast %cst : f32 to vector<512x128xf32>
    %9 = arith.maximumf %7, %8 : vector<512x128xf32>
    %10 = arith.truncf %9 : vector<512x128xf32> to vector<512x128xbf16>
    %c0_4 = arith.constant 0 : index
    %c0_5 = arith.constant 0 : index
    %11 = vector.load %arg3[%c0_4, %c0_5] : memref<128x128xbf16, #tpu.memory_space<vmem>>, vector<128x128xbf16>
    %cst_6 = arith.constant dense<0.000000e+00> : vector<512x128xf32>
    %12 = tpu.matmul %10, %11, %cst_6 {dimension_numbers = #tpu.dot_dimension_numbers<[1], [0], [0], [1], [0, 0, 1, 1], [], []>} : vector<512x128xbf16>, vector<128x128xbf16>, vector<512x128xf32> -> vector<512x128xf32>
    %cst_7 = arith.constant dense<0.000000e+00> : vector<128xf32>
    %13 = vector.multi_reduction <add>, %12, %cst_7 [0] : vector<512x128xf32> to vector<128xf32>
    %14 = vector.shape_cast %13 : vector<128xf32> to vector<1x128xf32>
    %cst_8 = arith.constant 5.120000e+02 : f32
    %15 = vector.broadcast %cst_8 : f32 to vector<1x128xf32>
    %16 = arith.divf %14, %15 : vector<1x128xf32>
    %17 = vector.broadcast %16 : vector<1x128xf32> to vector<512x128xf32>
    %18 = arith.subf %12, %17 : vector<512x128xf32>
    %19 = arith.mulf %18, %18 : vector<512x128xf32>
    %cst_9 = arith.constant dense<0.000000e+00> : vector<128xf32>
    %20 = vector.multi_reduction <add>, %19, %cst_9 [0] : vector<512x128xf32> to vector<128xf32>
    %21 = vector.shape_cast %20 : vector<128xf32> to vector<1x128xf32>
    %22 = tpu.concatenate %14, %21 in 0 : vector<1x128xf32>, vector<1x128xf32> -> vector<2x128xf32>
    %c0_10 = arith.constant 0 : index
    %c0_11 = arith.constant 0 : index
    %c0_12 = arith.constant 0 : index
    %23 = vector.load %arg5[%c0_10, %c0_11, %c0_12] : memref<1x2x128xf32, #tpu.memory_space<vmem>>, vector<1x2x128xf32>
    %24 = vector.shape_cast %23 : vector<1x2x128xf32> to vector<2x128xf32>
    %25 = vector.shape_cast %22 : vector<2x128xf32> to vector<1x2x128xf32>
    tpu.vector_store %arg5[%c0_10, %c0_11, %c0_12], %25 {strides = array<i32>} : memref<1x2x128xf32, #tpu.memory_space<vmem>>, vector<1x2x128xf32>,
    %26 = arith.truncf %12 : vector<512x128xf32> to vector<512x128xbf16>
    %c0_13 = arith.constant 0 : index
    %c0_14 = arith.constant 0 : index
    %27 = vector.load %arg4[%c0_13, %c0_14] : memref<512x128xbf16, #tpu.memory_space<vmem>>, vector<512x128xbf16>
    tpu.vector_store %arg4[%c0_13, %c0_14], %26 {strides = array<i32>} : memref<512x128xbf16, #tpu.memory_space<vmem>>, vector<512x128xbf16>,
    return
  }
  func.func @transform_0(%arg0: i32) -> (i32, i32) {
    %c0_i32 = arith.constant 0 : i32
    %c0_i32_0 = arith.constant 0 : i32
    return %arg0, %c0_i32 : i32, i32
  }
  func.func @transform_1(%arg0: i32) -> (i32, i32) {
    %c0_i32 = arith.constant 0 : i32
    %c0_i32_0 = arith.constant 0 : i32
    %c0_i32_1 = arith.constant 0 : i32
    return %c0_i32, %c0_i32_0 : i32, i32
  }
  func.func @transform_2(%arg0: i32) -> (i32, i32) {
    %c0_i32 = arith.constant 0 : i32
    %c0_i32_0 = arith.constant 0 : i32
    %c0_i32_1 = arith.constant 0 : i32
    return %c0_i32, %c0_i32_0 : i32, i32
  }
  func.func @transform_3(%arg0: i32) -> (i32, i32) {
    %c0_i32 = arith.constant 0 : i32
    %c0_i32_0 = arith.constant 0 : i32
    return %arg0, %c0_i32 : i32, i32
  }
  func.func @transform_4(%arg0: i32) -> (i32, i32, i32) {
    %c0_i32 = arith.constant 0 : i32
    %c0_i32_0 = arith.constant 0 : i32
    %c0_i32_1 = arith.constant 0 : i32
    return %arg0, %c0_i32, %c0_i32_0 : i32, i32, i32
  }
}

module attributes {stable_mosaic.version = 11 : i64} {
  func.func @_bn_residual_relu_kernel(%arg0: i32, %arg1: memref<512x128xbf16, #tpu.memory_space<vmem>>, %arg2: memref<512x128xbf16, #tpu.memory_space<vmem>>, %arg3: memref<2x128xf32, #tpu.memory_space<vmem>>, %arg4: memref<512x128xf32, #tpu.memory_space<vmem>>) attributes {dimension_semantics = [#tpu.dimension_semantics<parallel>], iteration_bounds = array<i64: 1>, scalar_prefetch = 0 : i64, scratch_operands = 0 : i64, tpu.core_type = #tpu.core_type<tc>, window_params = [{transform_indices = @transform_0, window_bounds = array<i64: 512, 128>}, {transform_indices = @transform_1, window_bounds = array<i64: 512, 128>}, {pipeline_mode = #tpu.pipeline_mode<synchronous>, transform_indices = @transform_2, window_bounds = array<i64: 2, 128>}, {transform_indices = @transform_3, window_bounds = array<i64: 512, 128>}]} {
    %c0 = arith.constant 0 : index
    %c0_0 = arith.constant 0 : index
    %0 = vector.load %arg1[%c0, %c0_0] : memref<512x128xbf16, #tpu.memory_space<vmem>>, vector<512x128xbf16>
    %1 = arith.extf %0 : vector<512x128xbf16> to vector<512x128xf32>
    %c0_1 = arith.constant 0 : index
    %c0_2 = arith.constant 0 : index
    %2 = vector.load %arg3[%c0_1, %c0_2] : memref<2x128xf32, #tpu.memory_space<vmem>>, vector<1x128xf32>
    %3 = vector.broadcast %2 : vector<1x128xf32> to vector<512x128xf32>
    %4 = arith.mulf %1, %3 : vector<512x128xf32>
    %c1 = arith.constant 1 : index
    %c0_3 = arith.constant 0 : index
    %5 = vector.load %arg3[%c1, %c0_3] : memref<2x128xf32, #tpu.memory_space<vmem>>, vector<1x128xf32>
    %6 = vector.broadcast %5 : vector<1x128xf32> to vector<512x128xf32>
    %7 = arith.addf %4, %6 : vector<512x128xf32>
    %c0_4 = arith.constant 0 : index
    %c0_5 = arith.constant 0 : index
    %8 = vector.load %arg2[%c0_4, %c0_5] : memref<512x128xbf16, #tpu.memory_space<vmem>>, vector<512x128xbf16>
    %9 = arith.extf %8 : vector<512x128xbf16> to vector<512x128xf32>
    %10 = arith.addf %7, %9 : vector<512x128xf32>
    %cst = arith.constant 0.000000e+00 : f32
    %11 = vector.broadcast %cst : f32 to vector<512x128xf32>
    %12 = arith.maximumf %10, %11 : vector<512x128xf32>
    %c0_6 = arith.constant 0 : index
    %c0_7 = arith.constant 0 : index
    %13 = vector.load %arg4[%c0_6, %c0_7] : memref<512x128xf32, #tpu.memory_space<vmem>>, vector<512x128xf32>
    tpu.vector_store %arg4[%c0_6, %c0_7], %12 {strides = array<i32>} : memref<512x128xf32, #tpu.memory_space<vmem>>, vector<512x128xf32>,
    return
  }
  func.func @transform_0(%arg0: i32) -> (i32, i32) {
    %c0_i32 = arith.constant 0 : i32
    %c0_i32_0 = arith.constant 0 : i32
    return %arg0, %c0_i32 : i32, i32
  }
  func.func @transform_1(%arg0: i32) -> (i32, i32) {
    %c0_i32 = arith.constant 0 : i32
    %c0_i32_0 = arith.constant 0 : i32
    return %arg0, %c0_i32 : i32, i32
  }
  func.func @transform_2(%arg0: i32) -> (i32, i32) {
    %c0_i32 = arith.constant 0 : i32
    %c0_i32_0 = arith.constant 0 : i32
    %c0_i32_1 = arith.constant 0 : i32
    return %c0_i32, %c0_i32_0 : i32, i32
  }
  func.func @transform_3(%arg0: i32) -> (i32, i32) {
    %c0_i32 = arith.constant 0 : i32
    %c0_i32_0 = arith.constant 0 : i32
    return %arg0, %c0_i32 : i32, i32
  }
}

</mosaic_0001>

<llo_original>
// kernel: bottleneck_forward.4
$region0: #{bottleneck_forward.4}
  #allocation0 [shape = 'u32[]', space=smem, size = 0x4, offset = 0x4, fixed_abs, tag = 'smem constant byte address 0x4 - core index']
  #allocation1 [shape = 'u32[144,128]{1,0:T(1,128)}', space=vmem, size = 0x12000, scoped, tag = 'internal scratch']
  %s0 = inlined_call_operand.vmem [shape: bf16[512,128], index: 0, kind: input, shape index: {}]
  %s1 = inlined_call_operand.vmem [shape: f32[2,128], index: 1, kind: input, shape index: {}]
  %s2 = inlined_call_operand.vmem [shape: bf16[128,128], index: 2, kind: input, shape index: {}]
  %s3 = inlined_call_operand.vmem [shape: bf16[512,128], index: 3, kind: output, shape index: {0}]
  %s4 = inlined_call_operand.vmem [shape: f32[1,2,128], index: 4, kind: output, shape index: {1}]
  %5 = xla_tuple %s3, %s4
  %s6 = sld [smem:[#allocation0]]
  $region30: #{bottleneck_forward.4} parent=0
    _
  %s8 = ssub.s32 1, %s6
  %s9 = scalar_select 0, %s8, %s6
  // Predicated region
  $region2: #{bottleneck_forward.4} parent=0 // pred_check
    _
  $region3: #{bottleneck_forward.4} parent=0 // pred_check_branch
    %11 = sbr.rel (0) target = $region5
  $region4: #{bottleneck_forward.4} parent=0 // pred_region
    _
  $region5: #{bottleneck_forward.4} parent=0 // pred_fallthru
    _
  // Predicated region
  $region6: #{bottleneck_forward.4} parent=0 // pred_check
    _
  $region7: #{bottleneck_forward.4} parent=0 // pred_check_branch
    %13 = sbr.rel (0) target = $region9
  $region8: #{bottleneck_forward.4} parent=0 // pred_region
    _
  $region9: #{bottleneck_forward.4} parent=0 // pred_fallthru
    _
  // Predicated region
  $region10: #{bottleneck_forward.4} parent=0 // pred_check
    _
  $region11: #{bottleneck_forward.4} parent=0 // pred_check_branch
    %15 = sbr.rel (0) target = $region13
  $region12: #{bottleneck_forward.4} parent=0 // pred_region
    _
  $region13: #{bottleneck_forward.4} parent=0 // pred_fallthru
    _
  %v17 = vld [vmem:[%s0] sm:$0xf]
  %v18 = vld [vmem:[%s0 + $0x4] sm:$0xf]
  %v19 = vld [vmem:[%s0 + $0x8] sm:$0xf]
  %v20 = vld [vmem:[%s0 + $0xc] sm:$0xf]
  %v21 = vld [vmem:[%s0 + $0x10] sm:$0xf]
  %v22 = vld [vmem:[%s0 + $0x14] sm:$0xf]
  %v23 = vld [vmem:[%s0 + $0x18] sm:$0xf]
  %v24 = vld [vmem:[%s0 + $0x1c] sm:$0xf]
  %v25 = vld [vmem:[%s0 + $0x20] sm:$0xf]
  %v26 = vld [vmem:[%s0 + $0x24] sm:$0xf]
  %v27 = vld [vmem:[%s0 + $0x28] sm:$0xf]
  %v28 = vld [vmem:[%s0 + $0x2c] sm:$0xf]
  %v29 = vld [vmem:[%s0 + $0x30] sm:$0xf]
  %v30 = vld [vmem:[%s0 + $0x34] sm:$0xf]
  %v31 = vld [vmem:[%s0 + $0x38] sm:$0xf]
  %v32 = vld [vmem:[%s0 + $0x3c] sm:$0xf]
  %v33 = vld [vmem:[%s0 + $0x40] sm:$0xf]
  %v34 = vld [vmem:[%s0 + $0x44] sm:$0xf]
  %v35 = vld [vmem:[%s0 + $0x48] sm:$0xf]
  %v36 = vld [vmem:[%s0 + $0x4c] sm:$0xf]
  %v37 = vld [vmem:[%s0 + $0x50] sm:$0xf]
  %v38 = vld [vmem:[%s0 + $0x54] sm:$0xf]
  %v39 = vld [vmem:[%s0 + $0x58] sm:$0xf]
  %v40 = vld [vmem:[%s0 + $0x5c] sm:$0xf]
  %v41 = vld [vmem:[%s0 + $0x60] sm:$0xf]
  %v42 = vld [vmem:[%s0 + $0x64] sm:$0xf]
  %v43 = vld [vmem:[%s0 + $0x68] sm:$0xf]
  %v44 = vld [vmem:[%s0 + $0x6c] sm:$0xf]
  %v45 = vld [vmem:[%s0 + $0x70] sm:$0xf]
  %v46 = vld [vmem:[%s0 + $0x74] sm:$0xf]
  %v47 = vld [vmem:[%s0 + $0x78] sm:$0xf]
  %v48 = vld [vmem:[%s0 + $0x7c] sm:$0xf]
  %v49 = vld [vmem:[%s0 + $0x80] sm:$0xf]
  %v50 = vld [vmem:[%s0 + $0x84] sm:$0xf]
  %v51 = vld [vmem:[%s0 + $0x88] sm:$0xf]
  %v52 = vld [vmem:[%s0 + $0x8c] sm:$0xf]
  %v53 = vld [vmem:[%s0 + $0x90] sm:$0xf]
  %v54 = vld [vmem:[%s0 + $0x94] sm:$0xf]
  %v55 = vld [vmem:[%s0 + $0x98] sm:$0xf]
  %v56 = vld [vmem:[%s0 + $0x9c] sm:$0xf]
  %v57 = vld [vmem:[%s0 + $0xa0] sm:$0xf]
  %v58 = vld [vmem:[%s0 + $0xa4] sm:$0xf]
  %v59 = vld [vmem:[%s0 + $0xa8] sm:$0xf]
  %v60 = vld [vmem:[%s0 + $0xac] sm:$0xf]
  %v61 = vld [vmem:[%s0 + $0xb0] sm:$0xf]
  %v62 = vld [vmem:[%s0 + $0xb4] sm:$0xf]
  %v63 = vld [vmem:[%s0 + $0xb8] sm:$0xf]
  %v64 = vld [vmem:[%s0 + $0xbc] sm:$0xf]
  %v65 = vld [vmem:[%s0 + $0xc0] sm:$0xf]
  %v66 = vld [vmem:[%s0 + $0xc4] sm:$0xf]
  %v67 = vld [vmem:[%s0 + $0xc8] sm:$0xf]
  %v68 = vld [vmem:[%s0 + $0xcc] sm:$0xf]
  %v69 = vld [vmem:[%s0 + $0xd0] sm:$0xf]
  %v70 = vld [vmem:[%s0 + $0xd4] sm:$0xf]
  %v71 = vld [vmem:[%s0 + $0xd8] sm:$0xf]
  %v72 = vld [vmem:[%s0 + $0xdc] sm:$0xf]
  %v73 = vld [vmem:[%s0 + $0xe0] sm:$0xf]
  %v74 = vld [vmem:[%s0 + $0xe4] sm:$0xf]
  %v75 = vld [vmem:[%s0 + $0xe8] sm:$0xf]
  %v76 = vld [vmem:[%s0 + $0xec] sm:$0xf]
  %v77 = vld [vmem:[%s0 + $0xf0] sm:$0xf]
  %v78 = vld [vmem:[%s0 + $0xf4] sm:$0xf]
  %v79 = vld [vmem:[%s0 + $0xf8] sm:$0xf]
  %v80 = vld [vmem:[%s0 + $0xfc] sm:$0xf]
  %v81 = vld [vmem:[%s2] sm:$0xf]
  %v82 = vld [vmem:[%s2 + $0x4] sm:$0xf]
  %v83 = vld [vmem:[%s2 + $0x8] sm:$0xf]
  %v84 = vld [vmem:[%s2 + $0xc] sm:$0xf]
  %v85 = vld [vmem:[%s2 + $0x10] sm:$0xf]
  %v86 = vld [vmem:[%s2 + $0x14] sm:$0xf]
  %v87 = vld [vmem:[%s2 + $0x18] sm:$0xf]
  %v88 = vld [vmem:[%s2 + $0x1c] sm:$0xf]
  %v89 = vld [vmem:[%s2 + $0x20] sm:$0xf]
  %v90 = vld [vmem:[%s2 + $0x24] sm:$0xf]
  %v91 = vld [vmem:[%s2 + $0x28] sm:$0xf]
  %v92 = vld [vmem:[%s2 + $0x2c] sm:$0xf]
  %v93 = vld [vmem:[%s2 + $0x30] sm:$0xf]
  %v94 = vld [vmem:[%s2 + $0x34] sm:$0xf]
  %v95 = vld [vmem:[%s2 + $0x38] sm:$0xf]
  %v96 = vld [vmem:[%s2 + $0x3c] sm:$0xf]
  %v161 = vunpack.c.l.b16 %v17
  %v162 = vunpack.c.l.b16 %v18
  %v163 = vunpack.c.l.b16 %v19
  %v164 = vunpack.c.l.b16 %v20
  %v165 = vunpack.c.l.b16 %v21
  %v166 = vunpack.c.l.b16 %v22
  %v167 = vunpack.c.l.b16 %v23
  %v168 = vunpack.c.l.b16 %v24
  %v169 = vunpack.c.l.b16 %v25
  %v170 = vunpack.c.l.b16 %v26
  %v171 = vunpack.c.l.b16 %v27
  %v172 = vunpack.c.l.b16 %v28
  %v173 = vunpack.c.l.b16 %v29
  %v174 = vunpack.c.l.b16 %v30
  %v175 = vunpack.c.l.b16 %v31
  %v176 = vunpack.c.l.b16 %v32
  %v177 = vunpack.c.l.b16 %v33
  %v178 = vunpack.c.l.b16 %v34
  %v179 = vunpack.c.l.b16 %v35
  %v180 = vunpack.c.l.b16 %v36
  %v181 = vunpack.c.l.b16 %v37
  %v182 = vunpack.c.l.b16 %v38
  %v183 = vunpack.c.l.b16 %v39
  %v184 = vunpack.c.l.b16 %v40
  %v185 = vunpack.c.l.b16 %v41
  %v186 = vunpack.c.l.b16 %v42
  %v187 = vunpack.c.l.b16 %v43
  %v188 = vunpack.c.l.b16 %v44
  %v189 = vunpack.c.l.b16 %v45
  %v190 = vunpack.c.l.b16 %v46
  %v191 = vunpack.c.l.b16 %v47
  %v192 = vunpack.c.l.b16 %v48
  %v193 = vunpack.c.l.b16 %v49
  %v194 = vunpack.c.l.b16 %v50
  %v195 = vunpack.c.l.b16 %v51
  %v196 = vunpack.c.l.b16 %v52
  %v197 = vunpack.c.l.b16 %v53
  %v198 = vunpack.c.l.b16 %v54
  %v199 = vunpack.c.l.b16 %v55
  %v200 = vunpack.c.l.b16 %v56
  %v201 = vunpack.c.l.b16 %v57
  %v202 = vunpack.c.l.b16 %v58
  %v203 = vunpack.c.l.b16 %v59
  %v204 = vunpack.c.l.b16 %v60
  %v205 = vunpack.c.l.b16 %v61
  %v206 = vunpack.c.l.b16 %v62
  %v207 = vunpack.c.l.b16 %v63
  %v208 = vunpack.c.l.b16 %v64
  %v209 = vunpack.c.l.b16 %v65
  %v210 = vunpack.c.l.b16 %v66
  %v211 = vunpack.c.l.b16 %v67
  %v212 = vunpack.c.l.b16 %v68
  %v213 = vunpack.c.l.b16 %v69
  %v214 = vunpack.c.l.b16 %v70
  %v215 = vunpack.c.l.b16 %v71
  %v216 = vunpack.c.l.b16 %v72
  %v217 = vunpack.c.l.b16 %v73
  %v218 = vunpack.c.l.b16 %v74
  %v219 = vunpack.c.l.b16 %v75
  %v220 = vunpack.c.l.b16 %v76
  %v221 = vunpack.c.l.b16 %v77
  %v222 = vunpack.c.l.b16 %v78
  %v223 = vunpack.c.l.b16 %v79
  %v224 = vunpack.c.l.b16 %v80
  %v225 = vpack.c.b16 %v162, %v161
  %v226 = vpack.c.b16 %v164, %v163
  %v227 = vpack.c.b16 %v166, %v165
  %v228 = vpack.c.b16 %v168, %v167
  %v229 = vpack.c.b16 %v170, %v169
  %v230 = vpack.c.b16 %v172, %v171
  %v231 = vpack.c.b16 %v174, %v173
  %v232 = vpack.c.b16 %v176, %v175
  %v233 = vpack.c.b16 %v178, %v177
  %v234 = vpack.c.b16 %v180, %v179
  %v235 = vpack.c.b16 %v182, %v181
  %v236 = vpack.c.b16 %v184, %v183
  %v237 = vpack.c.b16 %v186, %v185
  %v238 = vpack.c.b16 %v188, %v187
  %v239 = vpack.c.b16 %v190, %v189
  %v240 = vpack.c.b16 %v192, %v191
  %v241 = vpack.c.b16 %v194, %v193
  %v242 = vpack.c.b16 %v196, %v195
  %v243 = vpack.c.b16 %v198, %v197
  %v244 = vpack.c.b16 %v200, %v199
  %v245 = vpack.c.b16 %v202, %v201
  %v246 = vpack.c.b16 %v204, %v203
  %v247 = vpack.c.b16 %v206, %v205
  %v248 = vpack.c.b16 %v208, %v207
  %v249 = vpack.c.b16 %v210, %v209
  %v250 = vpack.c.b16 %v212, %v211
  %v251 = vpack.c.b16 %v214, %v213
  %v252 = vpack.c.b16 %v216, %v215
  %v253 = vpack.c.b16 %v218, %v217
  %v254 = vpack.c.b16 %v220, %v219
  %v255 = vpack.c.b16 %v222, %v221
  %v256 = vpack.c.b16 %v224, %v223
  %v305 = vunpack.c.l.b16 %v81
  %v306 = vunpack.c.l.b16 %v82
  %v307 = vunpack.c.l.b16 %v83
  %v308 = vunpack.c.l.b16 %v84
  %v309 = vunpack.c.l.b16 %v85
  %v310 = vunpack.c.l.b16 %v86
  %v311 = vunpack.c.l.b16 %v87
  %v312 = vunpack.c.l.b16 %v88
  %v313 = vunpack.c.l.b16 %v89
  %v314 = vunpack.c.l.b16 %v90
  %v315 = vunpack.c.l.b16 %v91
  %v316 = vunpack.c.l.b16 %v92
  %v317 = vunpack.c.l.b16 %v93
  %v318 = vunpack.c.l.b16 %v94
  %v319 = vunpack.c.l.b16 %v95
  %v320 = vunpack.c.l.b16 %v96
  %v321 = vpack.c.b16 %v306, %v305
  %v322 = vpack.c.b16 %v308, %v307
  %v323 = vpack.c.b16 %v310, %v309
  %v324 = vpack.c.b16 %v312, %v311
  %v325 = vpack.c.b16 %v314, %v313
  %v326 = vpack.c.b16 %v316, %v315
  %v327 = vpack.c.b16 %v318, %v317
  %v328 = vpack.c.b16 %v320, %v319
  %337 = vmatprep.subr.bf16.mxu0 0
  %338 = vmatpush1.bf16.msra.mxu0 %v321
  %339 = vmatprep.subr.bf16.mxu0 0
  %340 = vmatpush1.bf16.msra.mxu0 %v322
  %341 = vmatprep.subr.bf16.mxu0 0
  %342 = vmatpush1.bf16.msra.mxu0 %v323
  %343 = vmatprep.subr.bf16.mxu0 0
  %344 = vmatpush1.bf16.msra.mxu0 %v324
  %345 = vmatprep.subr.bf16.mxu0 0
  %346 = vmatpush1.bf16.msra.mxu0 %v325
  %347 = vmatprep.subr.bf16.mxu0 0
  %348 = vmatpush1.bf16.msra.mxu0 %v326
  %349 = vmatprep.subr.bf16.mxu0 0
  %350 = vmatpush1.bf16.msra.mxu0 %v327
  %351 = vmatprep.subr.bf16.mxu0 0
  %352 = vmatpush1.bf16.msra.mxu0 %v328
  %353 = vmatprep.subr.bf16.mxu0 0
  %354 = vmatpush1.bf16.msra.mxu0 0
  %355 = vmatprep.subr.bf16.mxu0 0
  %356 = vmatpush1.bf16.msra.mxu0 0
  %357 = vmatprep.subr.bf16.mxu0 0
  %358 = vmatpush1.bf16.msra.mxu0 0
  %359 = vmatprep.subr.bf16.mxu0 0
  %360 = vmatpush1.bf16.msra.mxu0 0
  %361 = vmatprep.subr.bf16.mxu0 0
  %362 = vmatpush1.bf16.msra.mxu0 0
  %363 = vmatprep.subr.bf16.mxu0 0
  %364 = vmatpush1.bf16.msra.mxu0 0
  %365 = vmatprep.subr.bf16.mxu0 0
  %366 = vmatpush1.bf16.msra.mxu0 0
  %367 = vmatprep.subr.bf16.mxu0 0
  %368 = vmatpush1.bf16.msra.mxu0 0
  %369 = vmatprep.mubr.bf16.mxu0 0
  %370 = vmatmul.mubr.bf16.gmra.mrb[0].mxu0 %v225
  %v371 = vpop.f32.mrb[0].mxu0
  %v372 = vadd.f32 0.0, %v371
  %v373 = vpop.f32.mrb[0].mxu0
  %v374 = vpop.f32.mrb[0].mxu0
  %v375 = vadd.f32 0.0, %v374
  %v376 = vpop.f32.mrb[0].mxu0
  %377 = vmatprep.mubr.bf16.mxu0 0
  %378 = vmatmul.mubr.bf16.gmra.mrb[0].mxu0 %v226
  %v379 = vpop.f32.mrb[0].mxu0
  %v380 = vadd.f32 0.0, %v379
  %v381 = vpop.f32.mrb[0].mxu0
  %v382 = vpop.f32.mrb[0].mxu0
  %v383 = vadd.f32 0.0, %v382
  %v384 = vpop.f32.mrb[0].mxu0
  %385 = vmatprep.mubr.bf16.mxu0 0
  %386 = vmatmul.mubr.bf16.gmra.mrb[0].mxu0 %v227
  %v387 = vpop.f32.mrb[0].mxu0
  %v388 = vadd.f32 0.0, %v387
  %v389 = vpop.f32.mrb[0].mxu0
  %v390 = vpop.f32.mrb[0].mxu0
  %v391 = vadd.f32 0.0, %v390
  %v392 = vpop.f32.mrb[0].mxu0
  %393 = vmatprep.mubr.bf16.mxu0 0
  %394 = vmatmul.mubr.bf16.gmra.mrb[0].mxu0 %v228
  %v395 = vpop.f32.mrb[0].mxu0
  %v396 = vadd.f32 0.0, %v395
  %v397 = vpop.f32.mrb[0].mxu0
  %v398 = vpop.f32.mrb[0].mxu0
  %v399 = vadd.f32 0.0, %v398
  %v400 = vpop.f32.mrb[0].mxu0
  %401 = vmatprep.mubr.bf16.mxu0 0
  %402 = vmatmul.mubr.bf16.gmra.mrb[0].mxu0 %v229
  %v403 = vpop.f32.mrb[0].mxu0
  %v404 = vadd.f32 0.0, %v403
  %v405 = vpop.f32.mrb[0].mxu0
  %v406 = vpop.f32.mrb[0].mxu0
  %v407 = vadd.f32 0.0, %v406
  %v408 = vpop.f32.mrb[0].mxu0
  %409 = vmatprep.mubr.bf16.mxu0 0
  %410 = vmatmul.mubr.bf16.gmra.mrb[0].mxu0 %v230
  %v411 = vpop.f32.mrb[0].mxu0
  %v412 = vadd.f32 0.0, %v411
  %v413 = vpop.f32.mrb[0].mxu0
  %v414 = vpop.f32.mrb[0].mxu0
  %v415 = vadd.f32 0.0, %v414
  %v416 = vpop.f32.mrb[0].mxu0
  %417 = vmatprep.mubr.bf16.mxu0 0
  %418 = vmatmul.mubr.bf16.gmra.mrb[0].mxu0 %v231
  %v419 = vpop.f32.mrb[0].mxu0
  %v420 = vadd.f32 0.0, %v419
  %v421 = vpop.f32.mrb[0].mxu0
  %v422 = vpop.f32.mrb[0].mxu0
  %v423 = vadd.f32 0.0, %v422
  %v424 = vpop.f32.mrb[0].mxu0
  %425 = vmatprep.mubr.bf16.mxu0 0
  %426 = vmatmul.mubr.bf16.gmra.mrb[0].mxu0 %v232
  %v427 = vpop.f32.mrb[0].mxu0
  %v428 = vadd.f32 0.0, %v427
  %v429 = vpop.f32.mrb[0].mxu0
  %v430 = vpop.f32.mrb[0].mxu0
  %v431 = vadd.f32 0.0, %v430
  %v432 = vpop.f32.mrb[0].mxu0
  %433 = vmatprep.mubr.bf16.mxu0 0
  %434 = vmatmul.mubr.bf16.gmra.mrb[0].mxu0 %v233
  %v435 = vpop.f32.mrb[0].mxu0
  %v436 = vadd.f32 0.0, %v435
  %v437 = vpop.f32.mrb[0].mxu0
  %v438 = vpop.f32.mrb[0].mxu0
  %v439 = vadd.f32 0.0, %v438
  %v440 = vpop.f32.mrb[0].mxu0
  %441 = vmatprep.mubr.bf16.mxu0 0
  %442 = vmatmul.mubr.bf16.gmra.mrb[0].mxu0 %v234
  %v443 = vpop.f32.mrb[0].mxu0
  %v444 = vadd.f32 0.0, %v443
  %v445 = vpop.f32.mrb[0].mxu0
  %v446 = vpop.f32.mrb[0].mxu0
  %v447 = vadd.f32 0.0, %v446
  %v448 = vpop.f32.mrb[0].mxu0
  %449 = vmatprep.mubr.bf16.mxu0 0
  %450 = vmatmul.mubr.bf16.gmra.mrb[0].mxu0 %v235
  %v451 = vpop.f32.mrb[0].mxu0
  %v452 = vadd.f32 0.0, %v451
  %v453 = vpop.f32.mrb[0].mxu0
  %v454 = vpop.f32.mrb[0].mxu0
  %v455 = vadd.f32 0.0, %v454
  %v456 = vpop.f32.mrb[0].mxu0
  %457 = vmatprep.mubr.bf16.mxu0 0
  %458 = vmatmul.mubr.bf16.gmra.mrb[0].mxu0 %v236
  %v459 = vpop.f32.mrb[0].mxu0
  %v460 = vadd.f32 0.0, %v459
  %v461 = vpop.f32.mrb[0].mxu0
  %v462 = vpop.f32.mrb[0].mxu0
  %v463 = vadd.f32 0.0, %v462
  %v464 = vpop.f32.mrb[0].mxu0
  %465 = vmatprep.mubr.bf16.mxu0 0
  %466 = vmatmul.mubr.bf16.gmra.mrb[0].mxu0 %v237
  %v467 = vpop.f32.mrb[0].mxu0
  %v468 = vadd.f32 0.0, %v467
  %v469 = vpop.f32.mrb[0].mxu0
  %v470 = vpop.f32.mrb[0].mxu0
  %v471 = vadd.f32 0.0, %v470
  %v472 = vpop.f32.mrb[0].mxu0
  %473 = vmatprep.mubr.bf16.mxu0 0
  %474 = vmatmul.mubr.bf16.gmra.mrb[0].mxu0 %v238
  %v475 = vpop.f32.mrb[0].mxu0
  %v476 = vadd.f32 0.0, %v475
  %v477 = vpop.f32.mrb[0].mxu0
  %v478 = vpop.f32.mrb[0].mxu0
  %v479 = vadd.f32 0.0, %v478
  %v480 = vpop.f32.mrb[0].mxu0
  %481 = vmatprep.mubr.bf16.mxu0 0
  %482 = vmatmul.mubr.bf16.gmra.mrb[0].mxu0 %v239
  %v483 = vpop.f32.mrb[0].mxu0
  %v484 = vadd.f32 0.0, %v483
  %v485 = vpop.f32.mrb[0].mxu0
  %v486 = vpop.f32.mrb[0].mxu0
  %v487 = vadd.f32 0.0, %v486
  %v488 = vpop.f32.mrb[0].mxu0
  %489 = vmatprep.mubr.bf16.mxu0 0
  %490 = vmatmul.mubr.bf16.gmra.mrb[0].mxu0 %v240
  %v491 = vpop.f32.mrb[0].mxu0
  %v492 = vadd.f32 0.0, %v491
  %v493 = vpop.f32.mrb[0].mxu0
  %v494 = vpop.f32.mrb[0].mxu0
  %v495 = vadd.f32 0.0, %v494
  %v496 = vpop.f32.mrb[0].mxu0
  %497 = vmatprep.mubr.bf16.mxu0 0
  %498 = vmatmul.mubr.bf16.gmra.mrb[0].mxu0 %v241
  %v499 = vpop.f32.mrb[0].mxu0
  %v500 = vadd.f32 0.0, %v499
  %v501 = vpop.f32.mrb[0].mxu0
  %v502 = vpop.f32.mrb[0].mxu0
  %v503 = vadd.f32 0.0, %v502
  %v504 = vpop.f32.mrb[0].mxu0
  %505 = vmatprep.mubr.bf16.mxu0 0
  %506 = vmatmul.mubr.bf16.gmra.mrb[0].mxu0 %v242
  %v507 = vpop.f32.mrb[0].mxu0
  %v508 = vadd.f32 0.0, %v507
  %v509 = vpop.f32.mrb[0].mxu0
  %v510 = vpop.f32.mrb[0].mxu0
  %v511 = vadd.f32 0.0, %v510
  %v512 = vpop.f32.mrb[0].mxu0
  %513 = vmatprep.mubr.bf16.mxu0 0
  %514 = vmatmul.mubr.bf16.gmra.mrb[0].mxu0 %v243
  %v515 = vpop.f32.mrb[0].mxu0
  %v516 = vadd.f32 0.0, %v515
  %v517 = vpop.f32.mrb[0].mxu0
  %v518 = vpop.f32.mrb[0].mxu0
  %v519 = vadd.f32 0.0, %v518
  %v520 = vpop.f32.mrb[0].mxu0
  %521 = vmatprep.mubr.bf16.mxu0 0
  %522 = vmatmul.mubr.bf16.gmra.mrb[0].mxu0 %v244
  %v523 = vpop.f32.mrb[0].mxu0
  %v524 = vadd.f32 0.0, %v523
  %v525 = vpop.f32.mrb[0].mxu0
  %v526 = vpop.f32.mrb[0].mxu0
  %v527 = vadd.f32 0.0, %v526
  %v528 = vpop.f32.mrb[0].mxu0
  %529 = vmatprep.mubr.bf16.mxu0 0
  %530 = vmatmul.mubr.bf16.gmra.mrb[0].mxu0 %v245
  %v531 = vpop.f32.mrb[0].mxu0
  %v532 = vadd.f32 0.0, %v531
  %v533 = vpop.f32.mrb[0].mxu0
  %v534 = vpop.f32.mrb[0].mxu0
  %v535 = vadd.f32 0.0, %v534
  %v536 = vpop.f32.mrb[0].mxu0
  %537 = vmatprep.mubr.bf16.mxu0 0
  %538 = vmatmul.mubr.bf16.gmra.mrb[0].mxu0 %v246
  %v539 = vpop.f32.mrb[0].mxu0
  %v540 = vadd.f32 0.0, %v539
  %v541 = vpop.f32.mrb[0].mxu0
  %v542 = vpop.f32.mrb[0].mxu0
  %v543 = vadd.f32 0.0, %v542
  %v544 = vpop.f32.mrb[0].mxu0
  %545 = vmatprep.mubr.bf16.mxu0 0
  %546 = vmatmul.mubr.bf16.gmra.mrb[0].mxu0 %v247
  %v547 = vpop.f32.mrb[0].mxu0
  %v548 = vadd.f32 0.0, %v547
  %v549 = vpop.f32.mrb[0].mxu0
  %v550 = vpop.f32.mrb[0].mxu0
  %v551 = vadd.f32 0.0, %v550
  %v552 = vpop.f32.mrb[0].mxu0
  %553 = vmatprep.mubr.bf16.mxu0 0
  %554 = vmatmul.mubr.bf16.gmra.mrb[0].mxu0 %v248
  %v555 = vpop.f32.mrb[0].mxu0
  %v556 = vadd.f32 0.0, %v555
  %v557 = vpop.f32.mrb[0].mxu0
  %v558 = vpop.f32.mrb[0].mxu0
  %v559 = vadd.f32 0.0, %v558
  %v560 = vpop.f32.mrb[0].mxu0
  %561 = vmatprep.mubr.bf16.mxu0 0
  %562 = vmatmul.mubr.bf16.gmra.mrb[0].mxu0 %v249
  %v563 = vpop.f32.mrb[0].mxu0
  %v564 = vadd.f32 0.0, %v563
  %v565 = vpop.f32.mrb[0].mxu0
  %v566 = vpop.f32.mrb[0].mxu0
  %v567 = vadd.f32 0.0, %v566
  %v568 = vpop.f32.mrb[0].mxu0
  %569 = vmatprep.mubr.bf16.mxu0 0
  %570 = vmatmul.mubr.bf16.gmra.mrb[0].mxu0 %v250
  %v571 = vpop.f32.mrb[0].mxu0
  %v572 = vadd.f32 0.0, %v571
  %v573 = vpop.f32.mrb[0].mxu0
  %v574 = vpop.f32.mrb[0].mxu0
  %v575 = vadd.f32 0.0, %v574
  %v576 = vpop.f32.mrb[0].mxu0
  %577 = vmatprep.mubr.bf16.mxu0 0
  %578 = vmatmul.mubr.bf16.gmra.mrb[0].mxu0 %v251
  %v579 = vpop.f32.mrb[0].mxu0
  %v580 = vadd.f32 0.0, %v579
  %v581 = vpop.f32.mrb[0].mxu0
  %v582 = vpop.f32.mrb[0].mxu0
  %v583 = vadd.f32 0.0, %v582
  %v584 = vpop.f32.mrb[0].mxu0
  %585 = vmatprep.mubr.bf16.mxu0 0
  %586 = vmatmul.mubr.bf16.gmra.mrb[0].mxu0 %v252
  %v587 = vpop.f32.mrb[0].mxu0
  %v588 = vadd.f32 0.0, %v587
  %v589 = vpop.f32.mrb[0].mxu0
  %v590 = vpop.f32.mrb[0].mxu0
  %v591 = vadd.f32 0.0, %v590
  %v592 = vpop.f32.mrb[0].mxu0
  %593 = vmatprep.mubr.bf16.mxu0 0
  %594 = vmatmul.mubr.bf16.gmra.mrb[0].mxu0 %v253
  %v595 = vpop.f32.mrb[0].mxu0
  %v596 = vadd.f32 0.0, %v595
  %v597 = vpop.f32.mrb[0].mxu0
  %v598 = vpop.f32.mrb[0].mxu0
  %v599 = vadd.f32 0.0, %v598
  %v600 = vpop.f32.mrb[0].mxu0
  %601 = vmatprep.mubr.bf16.mxu0 0
  %602 = vmatmul.mubr.bf16.gmra.mrb[0].mxu0 %v254
  %v603 = vpop.f32.mrb[0].mxu0
  %v604 = vadd.f32 0.0, %v603
  %v605 = vpop.f32.mrb[0].mxu0
  %v606 = vpop.f32.mrb[0].mxu0
  %v607 = vadd.f32 0.0, %v606
  %v608 = vpop.f32.mrb[0].mxu0
  %609 = vmatprep.mubr.bf16.mxu0 0
  %610 = vmatmul.mubr.bf16.gmra.mrb[0].mxu0 %v255
  %v611 = vpop.f32.mrb[0].mxu0
  %v612 = vadd.f32 0.0, %v611
  %v613 = vpop.f32.mrb[0].mxu0
  %v614 = vpop.f32.mrb[0].mxu0
  %v615 = vadd.f32 0.0, %v614
  %v616 = vpop.f32.mrb[0].mxu0
  %617 = vmatprep.mubr.bf16.mxu0 0
  %618 = vmatmul.mubr.bf16.gmra.mrb[0].mxu0 %v256
  %v619 = vpop.f32.mrb[0].mxu0
  %v620 = vadd.f32 0.0, %v619
  %v621 = vpop.f32.mrb[0].mxu0
  %v622 = vpop.f32.mrb[0].mxu0
  %v623 = vadd.f32 0.0, %v622
  %v624 = vpop.f32.mrb[0].mxu0
  %625 = vdwg.mxu0
  %v626 = vadd.f32 %v372, %v375
  %v627 = vadd.f32 %v626, %v380
  %v628 = vadd.f32 %v627, %v383
  %v629 = vadd.f32 %v628, %v388
  %v630 = vadd.f32 %v629, %v391
  %v631 = vadd.f32 %v630, %v396
  %v632 = vadd.f32 %v631, %v399
  %v633 = vadd.f32 %v632, %v404
  %v634 = vadd.f32 %v633, %v407
  %v635 = vadd.f32 %v634, %v412
  %v636 = vadd.f32 %v635, %v415
  %v637 = vadd.f32 %v636, %v420
  %v638 = vadd.f32 %v637, %v423
  %v639 = vadd.f32 %v638, %v428
  %v640 = vadd.f32 %v639, %v431
  %v641 = vadd.f32 %v640, %v436
  %v642 = vadd.f32 %v641, %v439
  %v643 = vadd.f32 %v642, %v444
  %v644 = vadd.f32 %v643, %v447
  %v645 = vadd.f32 %v644, %v452
  %v646 = vadd.f32 %v645, %v455
  %v647 = vadd.f32 %v646, %v460
  %v648 = vadd.f32 %v647, %v463
  %v649 = vadd.f32 %v648, %v468
  %v650 = vadd.f32 %v649, %v471
  %v651 = vadd.f32 %v650, %v476
  %v652 = vadd.f32 %v651, %v479
  %v653 = vadd.f32 %v652, %v484
  %v654 = vadd.f32 %v653, %v487
  %v655 = vadd.f32 %v654, %v492
  %v656 = vadd.f32 %v655, %v495
  %v657 = vadd.f32 %v656, %v500
  %v658 = vadd.f32 %v657, %v503
  %v659 = vadd.f32 %v658, %v508
  %v660 = vadd.f32 %v659, %v511
  %v661 = vadd.f32 %v660, %v516
  %v662 = vadd.f32 %v661, %v519
  %v663 = vadd.f32 %v662, %v524
  %v664 = vadd.f32 %v663, %v527
  %v665 = vadd.f32 %v664, %v532
  %v666 = vadd.f32 %v665, %v535
  %v667 = vadd.f32 %v666, %v540
  %v668 = vadd.f32 %v667, %v543
  %v669 = vadd.f32 %v668, %v548
  %v670 = vadd.f32 %v669, %v551
  %v671 = vadd.f32 %v670, %v556
  %v672 = vadd.f32 %v671, %v559
  %v673 = vadd.f32 %v672, %v564
  %v674 = vadd.f32 %v673, %v567
  %v675 = vadd.f32 %v674, %v572
  %v676 = vadd.f32 %v675, %v575
  %v677 = vadd.f32 %v676, %v580
  %v678 = vadd.f32 %v677, %v583
  %v679 = vadd.f32 %v678, %v588
  %v680 = vadd.f32 %v679, %v591
  %v681 = vadd.f32 %v680, %v596
  %v682 = vadd.f32 %v681, %v599
  %v683 = vadd.f32 %v682, %v604
  %v684 = vadd.f32 %v683, %v607
  %v685 = vadd.f32 %v684, %v612
  %v686 = vadd.f32 %v685, %v615
  %v687 = vadd.f32 %v686, %v620
  %v688 = vadd.f32 %v687, %v623
  %v689 = vrot.slane %v688, 4
  %v690 = vadd.f32 %v688, %v689
  %v691 = vrot.slane %v690, 2
  %v692 = vadd.f32 %v690, %v691
  %v693 = vrot.slane %v692, 1
  %v694 = vadd.f32 %v692, %v693
  %v695 = vrcp.pop 512.0
  %v696 = vmul.f32 %v694, %v695
  %v697 = vsub.f32 %v372, %v696
  %v698 = vsub.f32 %v375, %v696
  %v699 = vsub.f32 %v380, %v696
  %v700 = vsub.f32 %v383, %v696
  %v701 = vsub.f32 %v388, %v696
  %v702 = vsub.f32 %v391, %v696
  %v703 = vsub.f32 %v396, %v696
  %v704 = vsub.f32 %v399, %v696
  %v705 = vsub.f32 %v404, %v696
  %v706 = vsub.f32 %v407, %v696
  %v707 = vsub.f32 %v412, %v696
  %v708 = vsub.f32 %v415, %v696
  %v709 = vsub.f32 %v420, %v696
  %v710 = vsub.f32 %v423, %v696
  %v711 = vsub.f32 %v428, %v696
  %v712 = vsub.f32 %v431, %v696
  %v713 = vsub.f32 %v436, %v696
  %v714 = vsub.f32 %v439, %v696
  %v715 = vsub.f32 %v444, %v696
  %v716 = vsub.f32 %v447, %v696
  %v717 = vsub.f32 %v452, %v696
  %v718 = vsub.f32 %v455, %v696
  %v719 = vsub.f32 %v460, %v696
  %v720 = vsub.f32 %v463, %v696
  %v721 = vsub.f32 %v468, %v696
  %v722 = vsub.f32 %v471, %v696
  %v723 = vsub.f32 %v476, %v696
  %v724 = vsub.f32 %v479, %v696
  %v725 = vsub.f32 %v484, %v696
  %v726 = vsub.f32 %v487, %v696
  %v727 = vsub.f32 %v492, %v696
  %v728 = vsub.f32 %v495, %v696
  %v729 = vsub.f32 %v500, %v696
  %v730 = vsub.f32 %v503, %v696
  %v731 = vsub.f32 %v508, %v696
  %v732 = vsub.f32 %v511, %v696
  %v733 = vsub.f32 %v516, %v696
  %v734 = vsub.f32 %v519, %v696
  %v735 = vsub.f32 %v524, %v696
  %v736 = vsub.f32 %v527, %v696
  %v737 = vsub.f32 %v532, %v696
  %v738 = vsub.f32 %v535, %v696
  %v739 = vsub.f32 %v540, %v696
  %v740 = vsub.f32 %v543, %v696
  %v741 = vsub.f32 %v548, %v696
  %v742 = vsub.f32 %v551, %v696
  %v743 = vsub.f32 %v556, %v696
  %v744 = vsub.f32 %v559, %v696
  %v745 = vsub.f32 %v564, %v696
  %v746 = vsub.f32 %v567, %v696
  %v747 = vsub.f32 %v572, %v696
  %v748 = vsub.f32 %v575, %v696
  %v749 = vsub.f32 %v580, %v696
  %v750 = vsub.f32 %v583, %v696
  %v751 = vsub.f32 %v588, %v696
  %v752 = vsub.f32 %v591, %v696
  %v753 = vsub.f32 %v596, %v696
  %v754 = vsub.f32 %v599, %v696
  %v755 = vsub.f32 %v604, %v696
  %v756 = vsub.f32 %v607, %v696
  %v757 = vsub.f32 %v612, %v696
  %v758 = vsub.f32 %v615, %v696
  %v759 = vsub.f32 %v620, %v696
  %v760 = vsub.f32 %v623, %v696
  %v761 = vmul.f32 %v697, %v697
  %v762 = vmul.f32 %v698, %v698
  %v763 = vmul.f32 %v699, %v699
  %v764 = vmul.f32 %v700, %v700
  %v765 = vmul.f32 %v701, %v701
  %v766 = vmul.f32 %v702, %v702
  %v767 = vmul.f32 %v703, %v703
  %v768 = vmul.f32 %v704, %v704
  %v769 = vmul.f32 %v705, %v705
  %v770 = vmul.f32 %v706, %v706
  %v771 = vmul.f32 %v707, %v707
  %v772 = vmul.f32 %v708, %v708
  %v773 = vmul.f32 %v709, %v709
  %v774 = vmul.f32 %v710, %v710
  %v775 = vmul.f32 %v711, %v711
  %v776 = vmul.f32 %v712, %v712
  %v777 = vmul.f32 %v713, %v713
  %v778 = vmul.f32 %v714, %v714
  %v779 = vmul.f32 %v715, %v715
  %v780 = vmul.f32 %v716, %v716
  %v781 = vmul.f32 %v717, %v717
  %v782 = vmul.f32 %v718, %v718
  %v783 = vmul.f32 %v719, %v719
  %v784 = vmul.f32 %v720, %v720
  %v785 = vmul.f32 %v721, %v721
  %v786 = vmul.f32 %v722, %v722
  %v787 = vmul.f32 %v723, %v723
  %v788 = vmul.f32 %v724, %v724
  %v789 = vmul.f32 %v725, %v725
  %v790 = vmul.f32 %v726, %v726
  %v791 = vmul.f32 %v727, %v727
  %v792 = vmul.f32 %v728, %v728
  %v793 = vmul.f32 %v729, %v729
  %v794 = vmul.f32 %v730, %v730
  %v795 = vmul.f32 %v731, %v731
  %v796 = vmul.f32 %v732, %v732
  %v797 = vmul.f32 %v733, %v733
  %v798 = vmul.f32 %v734, %v734
  %v799 = vmul.f32 %v735, %v735
  %v800 = vmul.f32 %v736, %v736
  %v801 = vmul.f32 %v737, %v737
  %v802 = vmul.f32 %v738, %v738
  %v803 = vmul.f32 %v739, %v739
  %v804 = vmul.f32 %v740, %v740
  %v805 = vmul.f32 %v741, %v741
  %v806 = vmul.f32 %v742, %v742
  %v807 = vmul.f32 %v743, %v743
  %v808 = vmul.f32 %v744, %v744
  %v809 = vmul.f32 %v745, %v745
  %v810 = vmul.f32 %v746, %v746
  %v811 = vmul.f32 %v747, %v747
  %v812 = vmul.f32 %v748, %v748
  %v813 = vmul.f32 %v749, %v749
  %v814 = vmul.f32 %v750, %v750
  %v815 = vmul.f32 %v751, %v751
  %v816 = vmul.f32 %v752, %v752
  %v817 = vmul.f32 %v753, %v753
  %v818 = vmul.f32 %v754, %v754
  %v819 = vmul.f32 %v755, %v755
  %v820 = vmul.f32 %v756, %v756
  %v821 = vmul.f32 %v757, %v757
  %v822 = vmul.f32 %v758, %v758
  %v823 = vmul.f32 %v759, %v759
  %v824 = vmul.f32 %v760, %v760
  %v825 = vadd.f32 %v761, %v762
  %v826 = vadd.f32 %v825, %v763
  %v827 = vadd.f32 %v826, %v764
  %v828 = vadd.f32 %v827, %v765
  %v829 = vadd.f32 %v828, %v766
  %v830 = vadd.f32 %v829, %v767
  %v831 = vadd.f32 %v830, %v768
  %v832 = vadd.f32 %v831, %v769
  %v833 = vadd.f32 %v832, %v770
  %v834 = vadd.f32 %v833, %v771
  %v835 = vadd.f32 %v834, %v772
  %v836 = vadd.f32 %v835, %v773
  %v837 = vadd.f32 %v836, %v774
  %v838 = vadd.f32 %v837, %v775
  %v839 = vadd.f32 %v838, %v776
  %v840 = vadd.f32 %v839, %v777
  %v841 = vadd.f32 %v840, %v778
  %v842 = vadd.f32 %v841, %v779
  %v843 = vadd.f32 %v842, %v780
  %v844 = vadd.f32 %v843, %v781
  %v845 = vadd.f32 %v844, %v782
  %v846 = vadd.f32 %v845, %v783
  %v847 = vadd.f32 %v846, %v784
  %v848 = vadd.f32 %v847, %v785
  %v849 = vadd.f32 %v848, %v786
  %v850 = vadd.f32 %v849, %v787
  %v851 = vadd.f32 %v850, %v788
  %v852 = vadd.f32 %v851, %v789
  %v853 = vadd.f32 %v852, %v790
  %v854 = vadd.f32 %v853, %v791
  %v855 = vadd.f32 %v854, %v792
  %v856 = vadd.f32 %v855, %v793
  %v857 = vadd.f32 %v856, %v794
  %v858 = vadd.f32 %v857, %v795
  %v859 = vadd.f32 %v858, %v796
  %v860 = vadd.f32 %v859, %v797
  %v861 = vadd.f32 %v860, %v798
  %v862 = vadd.f32 %v861, %v799
  %v863 = vadd.f32 %v862, %v800
  %v864 = vadd.f32 %v863, %v801
  %v865 = vadd.f32 %v864, %v802
  %v866 = vadd.f32 %v865, %v803
  %v867 = vadd.f32 %v866, %v804
  %v868 = vadd.f32 %v867, %v805
  %v869 = vadd.f32 %v868, %v806
  %v870 = vadd.f32 %v869, %v807
  %v871 = vadd.f32 %v870, %v808
  %v872 = vadd.f32 %v871, %v809
  %v873 = vadd.f32 %v872, %v810
  %v874 = vadd.f32 %v873, %v811
  %v875 = vadd.f32 %v874, %v812
  %v876 = vadd.f32 %v875, %v813
  %v877 = vadd.f32 %v876, %v814
  %v878 = vadd.f32 %v877, %v815
  %v879 = vadd.f32 %v878, %v816
  %v880 = vadd.f32 %v879, %v817
  %v881 = vadd.f32 %v880, %v818
  %v882 = vadd.f32 %v881, %v819
  %v883 = vadd.f32 %v882, %v820
  %v884 = vadd.f32 %v883, %v821
  %v885 = vadd.f32 %v884, %v822
  %v886 = vadd.f32 %v885, %v823
  %v887 = vadd.f32 %v886, %v824
  %v888 = vrot.slane %v887, 4
  %v889 = vadd.f32 %v887, %v888
  %v890 = vrot.slane %v889, 2
  %v891 = vadd.f32 %v889, %v890
  %v892 = vrot.slane %v891, 1
  %v893 = vadd.f32 %v891, %v892
  %vm894 = vcmask 1040384
  %v895 = vsel %vm894, %v694, %v893
  %896 = vst [vmem:[%s4] sm:$0x3] %v895
  %v897 = vpack.c.bf16 %v375, %v372
  %v898 = vpack.c.bf16 %v383, %v380
  %v899 = vpack.c.bf16 %v391, %v388
  %v900 = vpack.c.bf16 %v399, %v396
  %v901 = vpack.c.bf16 %v407, %v404
  %v902 = vpack.c.bf16 %v415, %v412
  %v903 = vpack.c.bf16 %v423, %v420
  %v904 = vpack.c.bf16 %v431, %v428
  %v905 = vpack.c.bf16 %v439, %v436
  %v906 = vpack.c.bf16 %v447, %v444
  %v907 = vpack.c.bf16 %v455, %v452
  %v908 = vpack.c.bf16 %v463, %v460
  %v909 = vpack.c.bf16 %v471, %v468
  %v910 = vpack.c.bf16 %v479, %v476
  %v911 = vpack.c.bf16 %v487, %v484
  %v912 = vpack.c.bf16 %v495, %v492
  %v913 = vpack.c.bf16 %v503, %v500
  %v914 = vpack.c.bf16 %v511, %v508
  %v915 = vpack.c.bf16 %v519, %v516
  %v916 = vpack.c.bf16 %v527, %v524
  %v917 = vpack.c.bf16 %v535, %v532
  %v918 = vpack.c.bf16 %v543, %v540
  %v919 = vpack.c.bf16 %v551, %v548
  %v920 = vpack.c.bf16 %v559, %v556
  %v921 = vpack.c.bf16 %v567, %v564
  %v922 = vpack.c.bf16 %v575, %v572
  %v923 = vpack.c.bf16 %v583, %v580
  %v924 = vpack.c.bf16 %v591, %v588
  %v925 = vpack.c.bf16 %v599, %v596
  %v926 = vpack.c.bf16 %v607, %v604
  %v927 = vpack.c.bf16 %v615, %v612
  %v928 = vpack.c.bf16 %v623, %v620
  %v961 = vunpack.c.l.b16 %v897
  %v962 = vunpack.c.h.b16 %v897
  %v963 = vunpack.c.l.b16 %v898
  %v964 = vunpack.c.h.b16 %v898
  %v965 = vunpack.c.l.b16 %v899
  %v966 = vunpack.c.h.b16 %v899
  %v967 = vunpack.c.l.b16 %v900
  %v968 = vunpack.c.h.b16 %v900
  %v969 = vunpack.c.l.b16 %v901
  %v970 = vunpack.c.h.b16 %v901
  %v971 = vunpack.c.l.b16 %v902
  %v972 = vunpack.c.h.b16 %v902
  %v973 = vunpack.c.l.b16 %v903
  %v974 = vunpack.c.h.b16 %v903
  %v975 = vunpack.c.l.b16 %v904
  %v976 = vunpack.c.h.b16 %v904
  %v977 = vunpack.c.l.b16 %v905
  %v978 = vunpack.c.h.b16 %v905
  %v979 = vunpack.c.l.b16 %v906
  %v980 = vunpack.c.h.b16 %v906
  %v981 = vunpack.c.l.b16 %v907
  %v982 = vunpack.c.h.b16 %v907
  %v983 = vunpack.c.l.b16 %v908
  %v984 = vunpack.c.h.b16 %v908
  %v985 = vunpack.c.l.b16 %v909
  %v986 = vunpack.c.h.b16 %v909
  %v987 = vunpack.c.l.b16 %v910
  %v988 = vunpack.c.h.b16 %v910
  %v989 = vunpack.c.l.b16 %v911
  %v990 = vunpack.c.h.b16 %v911
  %v991 = vunpack.c.l.b16 %v912
  %v992 = vunpack.c.h.b16 %v912
  %v993 = vunpack.c.l.b16 %v913
  %v994 = vunpack.c.h.b16 %v913
  %v995 = vunpack.c.l.b16 %v914
  %v996 = vunpack.c.h.b16 %v914
  %v997 = vunpack.c.l.b16 %v915
  %v998 = vunpack.c.h.b16 %v915
  %v999 = vunpack.c.l.b16 %v916
  %v1000 = vunpack.c.h.b16 %v916
  %v1001 = vunpack.c.l.b16 %v917
  %v1002 = vunpack.c.h.b16 %v917
  %v1003 = vunpack.c.l.b16 %v918
  %v1004 = vunpack.c.h.b16 %v918
  %v1005 = vunpack.c.l.b16 %v919
  %v1006 = vunpack.c.h.b16 %v919
  %v1007 = vunpack.c.l.b16 %v920
  %v1008 = vunpack.c.h.b16 %v920
  %v1009 = vunpack.c.l.b16 %v921
  %v1010 = vunpack.c.h.b16 %v921
  %v1011 = vunpack.c.l.b16 %v922
  %v1012 = vunpack.c.h.b16 %v922
  %v1013 = vunpack.c.l.b16 %v923
  %v1014 = vunpack.c.h.b16 %v923
  %v1015 = vunpack.c.l.b16 %v924
  %v1016 = vunpack.c.h.b16 %v924
  %v1017 = vunpack.c.l.b16 %v925
  %v1018 = vunpack.c.h.b16 %v925
  %v1019 = vunpack.c.l.b16 %v926
  %v1020 = vunpack.c.h.b16 %v926
  %v1021 = vunpack.c.l.b16 %v927
  %v1022 = vunpack.c.h.b16 %v927
  %v1023 = vunpack.c.l.b16 %v928
  %v1024 = vunpack.c.h.b16 %v928
  %v1025 = vpack.c.b16 %v961, %v961
  %v1026 = vpack.c.b16 %v962, %v962
  %v1027 = vpack.c.b16 %v963, %v963
  %v1028 = vpack.c.b16 %v964, %v964
  %v1029 = vpack.c.b16 %v965, %v965
  %v1030 = vpack.c.b16 %v966, %v966
  %v1031 = vpack.c.b16 %v967, %v967
  %v1032 = vpack.c.b16 %v968, %v968
  %v1033 = vpack.c.b16 %v969, %v969
  %v1034 = vpack.c.b16 %v970, %v970
  %v1035 = vpack.c.b16 %v971, %v971
  %v1036 = vpack.c.b16 %v972, %v972
  %v1037 = vpack.c.b16 %v973, %v973
  %v1038 = vpack.c.b16 %v974, %v974
  %v1039 = vpack.c.b16 %v975, %v975
  %v1040 = vpack.c.b16 %v976, %v976
  %v1041 = vpack.c.b16 %v977, %v977
  %v1042 = vpack.c.b16 %v978, %v978
  %v1043 = vpack.c.b16 %v979, %v979
  %v1044 = vpack.c.b16 %v980, %v980
  %v1045 = vpack.c.b16 %v981, %v981
  %v1046 = vpack.c.b16 %v982, %v982
  %v1047 = vpack.c.b16 %v983, %v983
  %v1048 = vpack.c.b16 %v984, %v984
  %v1049 = vpack.c.b16 %v985, %v985
  %v1050 = vpack.c.b16 %v986, %v986
  %v1051 = vpack.c.b16 %v987, %v987
  %v1052 = vpack.c.b16 %v988, %v988
  %v1053 = vpack.c.b16 %v989, %v989
  %v1054 = vpack.c.b16 %v990, %v990
  %v1055 = vpack.c.b16 %v991, %v991
  %v1056 = vpack.c.b16 %v992, %v992
  %v1057 = vpack.c.b16 %v993, %v993
  %v1058 = vpack.c.b16 %v994, %v994
  %v1059 = vpack.c.b16 %v995, %v995
  %v1060 = vpack.c.b16 %v996, %v996
  %v1061 = vpack.c.b16 %v997, %v997
  %v1062 = vpack.c.b16 %v998, %v998
  %v1063 = vpack.c.b16 %v999, %v999
  %v1064 = vpack.c.b16 %v1000, %v1000
  %v1065 = vpack.c.b16 %v1001, %v1001
  %v1066 = vpack.c.b16 %v1002, %v1002
  %v1067 = vpack.c.b16 %v1003, %v1003
  %v1068 = vpack.c.b16 %v1004, %v1004
  %v1069 = vpack.c.b16 %v1005, %v1005
  %v1070 = vpack.c.b16 %v1006, %v1006
  %v1071 = vpack.c.b16 %v1007, %v1007
  %v1072 = vpack.c.b16 %v1008, %v1008
  %v1073 = vpack.c.b16 %v1009, %v1009
  %v1074 = vpack.c.b16 %v1010, %v1010
  %v1075 = vpack.c.b16 %v1011, %v1011
  %v1076 = vpack.c.b16 %v1012, %v1012
  %v1077 = vpack.c.b16 %v1013, %v1013
  %v1078 = vpack.c.b16 %v1014, %v1014
  %v1079 = vpack.c.b16 %v1015, %v1015
  %v1080 = vpack.c.b16 %v1016, %v1016
  %v1081 = vpack.c.b16 %v1017, %v1017
  %v1082 = vpack.c.b16 %v1018, %v1018
  %v1083 = vpack.c.b16 %v1019, %v1019
  %v1084 = vpack.c.b16 %v1020, %v1020
  %v1085 = vpack.c.b16 %v1021, %v1021
  %v1086 = vpack.c.b16 %v1022, %v1022
  %v1087 = vpack.c.b16 %v1023, %v1023
  %v1088 = vpack.c.b16 %v1024, %v1024
  %1153 = vst [vmem:[%s3] sm:$0xf] %v1025
  %1154 = vst [vmem:[%s3 + $0x4] sm:$0xf] %v1026
  %1155 = vst [vmem:[%s3 + $0x8] sm:$0xf] %v1027
  %1156 = vst [vmem:[%s3 + $0xc] sm:$0xf] %v1028
  %1157 = vst [vmem:[%s3 + $0x10] sm:$0xf] %v1029
  %1158 = vst [vmem:[%s3 + $0x14] sm:$0xf] %v1030
  %1159 = vst [vmem:[%s3 + $0x18] sm:$0xf] %v1031
  %1160 = vst [vmem:[%s3 + $0x1c] sm:$0xf] %v1032
  %1161 = vst [vmem:[%s3 + $0x20] sm:$0xf] %v1033
  %1162 = vst [vmem:[%s3 + $0x24] sm:$0xf] %v1034
  %1163 = vst [vmem:[%s3 + $0x28] sm:$0xf] %v1035
  %1164 = vst [vmem:[%s3 + $0x2c] sm:$0xf] %v1036
  %1165 = vst [vmem:[%s3 + $0x30] sm:$0xf] %v1037
  %1166 = vst [vmem:[%s3 + $0x34] sm:$0xf] %v1038
  %1167 = vst [vmem:[%s3 + $0x38] sm:$0xf] %v1039
  %1168 = vst [vmem:[%s3 + $0x3c] sm:$0xf] %v1040
  %1169 = vst [vmem:[%s3 + $0x40] sm:$0xf] %v1041
  %1170 = vst [vmem:[%s3 + $0x44] sm:$0xf] %v1042
  %1171 = vst [vmem:[%s3 + $0x48] sm:$0xf] %v1043
  %1172 = vst [vmem:[%s3 + $0x4c] sm:$0xf] %v1044
  %1173 = vst [vmem:[%s3 + $0x50] sm:$0xf] %v1045
  %1174 = vst [vmem:[%s3 + $0x54] sm:$0xf] %v1046
  %1175 = vst [vmem:[%s3 + $0x58] sm:$0xf] %v1047
  %1176 = vst [vmem:[%s3 + $0x5c] sm:$0xf] %v1048
  %1177 = vst [vmem:[%s3 + $0x60] sm:$0xf] %v1049
  %1178 = vst [vmem:[%s3 + $0x64] sm:$0xf] %v1050
  %1179 = vst [vmem:[%s3 + $0x68] sm:$0xf] %v1051
  %1180 = vst [vmem:[%s3 + $0x6c] sm:$0xf] %v1052
  %1181 = vst [vmem:[%s3 + $0x70] sm:$0xf] %v1053
  %1182 = vst [vmem:[%s3 + $0x74] sm:$0xf] %v1054
  %1183 = vst [vmem:[%s3 + $0x78] sm:$0xf] %v1055
  %1184 = vst [vmem:[%s3 + $0x7c] sm:$0xf] %v1056
  %1185 = vst [vmem:[%s3 + $0x80] sm:$0xf] %v1057
  %1186 = vst [vmem:[%s3 + $0x84] sm:$0xf] %v1058
  %1187 = vst [vmem:[%s3 + $0x88] sm:$0xf] %v1059
  %1188 = vst [vmem:[%s3 + $0x8c] sm:$0xf] %v1060
  %1189 = vst [vmem:[%s3 + $0x90] sm:$0xf] %v1061
  %1190 = vst [vmem:[%s3 + $0x94] sm:$0xf] %v1062
  %1191 = vst [vmem:[%s3 + $0x98] sm:$0xf] %v1063
  %1192 = vst [vmem:[%s3 + $0x9c] sm:$0xf] %v1064
  %1193 = vst [vmem:[%s3 + $0xa0] sm:$0xf] %v1065
  %1194 = vst [vmem:[%s3 + $0xa4] sm:$0xf] %v1066
  %1195 = vst [vmem:[%s3 + $0xa8] sm:$0xf] %v1067
  %1196 = vst [vmem:[%s3 + $0xac] sm:$0xf] %v1068
  %1197 = vst [vmem:[%s3 + $0xb0] sm:$0xf] %v1069
  %1198 = vst [vmem:[%s3 + $0xb4] sm:$0xf] %v1070
  %1199 = vst [vmem:[%s3 + $0xb8] sm:$0xf] %v1071
  %1200 = vst [vmem:[%s3 + $0xbc] sm:$0xf] %v1072
  %1201 = vst [vmem:[%s3 + $0xc0] sm:$0xf] %v1073
  %1202 = vst [vmem:[%s3 + $0xc4] sm:$0xf] %v1074
  %1203 = vst [vmem:[%s3 + $0xc8] sm:$0xf] %v1075
  %1204 = vst [vmem:[%s3 + $0xcc] sm:$0xf] %v1076
  %1205 = vst [vmem:[%s3 + $0xd0] sm:$0xf] %v1077
  %1206 = vst [vmem:[%s3 + $0xd4] sm:$0xf] %v1078
  %1207 = vst [vmem:[%s3 + $0xd8] sm:$0xf] %v1079
  %1208 = vst [vmem:[%s3 + $0xdc] sm:$0xf] %v1080
  %1209 = vst [vmem:[%s3 + $0xe0] sm:$0xf] %v1081
  %1210 = vst [vmem:[%s3 + $0xe4] sm:$0xf] %v1082
  %1211 = vst [vmem:[%s3 + $0xe8] sm:$0xf] %v1083
  %1212 = vst [vmem:[%s3 + $0xec] sm:$0xf] %v1084
  %1213 = vst [vmem:[%s3 + $0xf0] sm:$0xf] %v1085
  %1214 = vst [vmem:[%s3 + $0xf4] sm:$0xf] %v1086
  %1215 = vst [vmem:[%s3 + $0xf8] sm:$0xf] %v1087
  %1216 = vst [vmem:[%s3 + $0xfc] sm:$0xf] %v1088
  // Predicated region
  $region14: #{bottleneck_forward.4} parent=0 // pred_check
    _
  $region15: #{bottleneck_forward.4} parent=0 // pred_check_branch
    %1218 = sbr.rel (0) target = $region17
  $region16: #{bottleneck_forward.4} parent=0 // pred_region
    _
  $region17: #{bottleneck_forward.4} parent=0 // pred_fallthru
    _
  // Predicated region
  $region18: #{bottleneck_forward.4} parent=0 // pred_check
    _
  $region19: #{bottleneck_forward.4} parent=0 // pred_check_branch
    %1220 = sbr.rel (0) target = $region21
  $region20: #{bottleneck_forward.4} parent=0 // pred_region
    _
  $region21: #{bottleneck_forward.4} parent=0 // pred_fallthru
    _
  // Predicated region
  $region22: #{bottleneck_forward.4} parent=0 // pred_check
    _
  $region23: #{bottleneck_forward.4} parent=0 // pred_check_branch
    %1222 = sbr.rel (0) target = $region25
  $region24: #{bottleneck_forward.4} parent=0 // pred_region
    _
  $region25: #{bottleneck_forward.4} parent=0 // pred_fallthru
    _
  // Predicated region
  $region26: #{bottleneck_forward.4} parent=0 // pred_check
    _
  $region27: #{bottleneck_forward.4} parent=0 // pred_check_branch
    %1224 = sbr.rel (0) target = $region29
  $region28: #{bottleneck_forward.4} parent=0 // pred_region
    _
  $region29: #{bottleneck_forward.4} parent=0 // pred_fallthru
    _

// kernel: bottleneck_forward.7
$region0: #{bottleneck_forward.7}
  #allocation0 [shape = 'u32[]', space=smem, size = 0x4, offset = 0x4, fixed_abs, tag = 'smem constant byte address 0x4 - core index']
  #allocation1 [shape = 'u32[144,128]{1,0:T(1,128)}', space=vmem, size = 0x12000, scoped, tag = 'internal scratch']
  %s0 = inlined_call_operand.vmem [shape: bf16[512,128], index: 0, kind: input, shape index: {}]
  %s1 = inlined_call_operand.vmem [shape: bf16[512,128], index: 1, kind: input, shape index: {}]
  %s2 = inlined_call_operand.vmem [shape: f32[2,128], index: 2, kind: input, shape index: {}]
  %s3 = inlined_call_operand.vmem [shape: f32[512,128], index: 3, kind: output, shape index: {}]
  %s4 = sld [smem:[#allocation0]]
  $region22: #{bottleneck_forward.7} parent=0
    _
  %s6 = ssub.s32 1, %s4
  %s7 = scalar_select 0, %s6, %s4
  // Predicated region
  $region2: #{bottleneck_forward.7} parent=0 // pred_check
    _
  $region3: #{bottleneck_forward.7} parent=0 // pred_check_branch
    %9 = sbr.rel (0) target = $region5
  $region4: #{bottleneck_forward.7} parent=0 // pred_region
    _
  $region5: #{bottleneck_forward.7} parent=0 // pred_fallthru
    _
  // Predicated region
  $region6: #{bottleneck_forward.7} parent=0 // pred_check
    _
  $region7: #{bottleneck_forward.7} parent=0 // pred_check_branch
    %11 = sbr.rel (0) target = $region9
  $region8: #{bottleneck_forward.7} parent=0 // pred_region
    _
  $region9: #{bottleneck_forward.7} parent=0 // pred_fallthru
    _
  // Predicated region
  $region10: #{bottleneck_forward.7} parent=0 // pred_check
    _
  $region11: #{bottleneck_forward.7} parent=0 // pred_check_branch
    %13 = sbr.rel (0) target = $region13
  $region12: #{bottleneck_forward.7} parent=0 // pred_region
    _
  $region13: #{bottleneck_forward.7} parent=0 // pred_fallthru
    _
  %v14 = vld [vmem:[%s0] sm:$0xf]
  %v15 = vld [vmem:[%s0 + $0x4] sm:$0xf]
  %v16 = vld [vmem:[%s0 + $0x8] sm:$0xf]
  %v17 = vld [vmem:[%s0 + $0xc] sm:$0xf]
  %v18 = vld [vmem:[%s0 + $0x10] sm:$0xf]
  %v19 = vld [vmem:[%s0 + $0x14] sm:$0xf]
  %v20 = vld [vmem:[%s0 + $0x18] sm:$0xf]
  %v21 = vld [vmem:[%s0 + $0x1c] sm:$0xf]
  %v22 = vld [vmem:[%s0 + $0x20] sm:$0xf]
  %v23 = vld [vmem:[%s0 + $0x24] sm:$0xf]
  %v24 = vld [vmem:[%s0 + $0x28] sm:$0xf]
  %v25 = vld [vmem:[%s0 + $0x2c] sm:$0xf]
  %v26 = vld [vmem:[%s0 + $0x30] sm:$0xf]
  %v27 = vld [vmem:[%s0 + $0x34] sm:$0xf]
  %v28 = vld [vmem:[%s0 + $0x38] sm:$0xf]
  %v29 = vld [vmem:[%s0 + $0x3c] sm:$0xf]
  %v30 = vld [vmem:[%s0 + $0x40] sm:$0xf]
  %v31 = vld [vmem:[%s0 + $0x44] sm:$0xf]
  %v32 = vld [vmem:[%s0 + $0x48] sm:$0xf]
  %v33 = vld [vmem:[%s0 + $0x4c] sm:$0xf]
  %v34 = vld [vmem:[%s0 + $0x50] sm:$0xf]
  %v35 = vld [vmem:[%s0 + $0x54] sm:$0xf]
  %v36 = vld [vmem:[%s0 + $0x58] sm:$0xf]
  %v37 = vld [vmem:[%s0 + $0x5c] sm:$0xf]
  %v38 = vld [vmem:[%s0 + $0x60] sm:$0xf]
  %v39 = vld [vmem:[%s0 + $0x64] sm:$0xf]
  %v40 = vld [vmem:[%s0 + $0x68] sm:$0xf]
  %v41 = vld [vmem:[%s0 + $0x6c] sm:$0xf]
  %v42 = vld [vmem:[%s0 + $0x70] sm:$0xf]
  %v43 = vld [vmem:[%s0 + $0x74] sm:$0xf]
  %v44 = vld [vmem:[%s0 + $0x78] sm:$0xf]
  %v45 = vld [vmem:[%s0 + $0x7c] sm:$0xf]
  %v46 = vld [vmem:[%s0 + $0x80] sm:$0xf]
  %v47 = vld [vmem:[%s0 + $0x84] sm:$0xf]
  %v48 = vld [vmem:[%s0 + $0x88] sm:$0xf]
  %v49 = vld [vmem:[%s0 + $0x8c] sm:$0xf]
  %v50 = vld [vmem:[%s0 + $0x90] sm:$0xf]
  %v51 = vld [vmem:[%s0 + $0x94] sm:$0xf]
  %v52 = vld [vmem:[%s0 + $0x98] sm:$0xf]
  %v53 = vld [vmem:[%s0 + $0x9c] sm:$0xf]
  %v54 = vld [vmem:[%s0 + $0xa0] sm:$0xf]
  %v55 = vld [vmem:[%s0 + $0xa4] sm:$0xf]
  %v56 = vld [vmem:[%s0 + $0xa8] sm:$0xf]
  %v57 = vld [vmem:[%s0 + $0xac] sm:$0xf]
  %v58 = vld [vmem:[%s0 + $0xb0] sm:$0xf]
  %v59 = vld [vmem:[%s0 + $0xb4] sm:$0xf]
  %v60 = vld [vmem:[%s0 + $0xb8] sm:$0xf]
  %v61 = vld [vmem:[%s0 + $0xbc] sm:$0xf]
  %v62 = vld [vmem:[%s0 + $0xc0] sm:$0xf]
  %v63 = vld [vmem:[%s0 + $0xc4] sm:$0xf]
  %v64 = vld [vmem:[%s0 + $0xc8] sm:$0xf]
  %v65 = vld [vmem:[%s0 + $0xcc] sm:$0xf]
  %v66 = vld [vmem:[%s0 + $0xd0] sm:$0xf]
  %v67 = vld [vmem:[%s0 + $0xd4] sm:$0xf]
  %v68 = vld [vmem:[%s0 + $0xd8] sm:$0xf]
  %v69 = vld [vmem:[%s0 + $0xdc] sm:$0xf]
  %v70 = vld [vmem:[%s0 + $0xe0] sm:$0xf]
  %v71 = vld [vmem:[%s0 + $0xe4] sm:$0xf]
  %v72 = vld [vmem:[%s0 + $0xe8] sm:$0xf]
  %v73 = vld [vmem:[%s0 + $0xec] sm:$0xf]
  %v74 = vld [vmem:[%s0 + $0xf0] sm:$0xf]
  %v75 = vld [vmem:[%s0 + $0xf4] sm:$0xf]
  %v76 = vld [vmem:[%s0 + $0xf8] sm:$0xf]
  %v77 = vld [vmem:[%s0 + $0xfc] sm:$0xf]
  %v78 = vunpack.c.l.bf16 %v14
  %v79 = vunpack.c.l.bf16 %v15
  %v80 = vunpack.c.l.bf16 %v16
  %v81 = vunpack.c.l.bf16 %v17
  %v82 = vunpack.c.l.bf16 %v18
  %v83 = vunpack.c.l.bf16 %v19
  %v84 = vunpack.c.l.bf16 %v20
  %v85 = vunpack.c.l.bf16 %v21
  %v86 = vunpack.c.l.bf16 %v22
  %v87 = vunpack.c.l.bf16 %v23
  %v88 = vunpack.c.l.bf16 %v24
  %v89 = vunpack.c.l.bf16 %v25
  %v90 = vunpack.c.l.bf16 %v26
  %v91 = vunpack.c.l.bf16 %v27
  %v92 = vunpack.c.l.bf16 %v28
  %v93 = vunpack.c.l.bf16 %v29
  %v94 = vunpack.c.l.bf16 %v30
  %v95 = vunpack.c.l.bf16 %v31
  %v96 = vunpack.c.l.bf16 %v32
  %v97 = vunpack.c.l.bf16 %v33
  %v98 = vunpack.c.l.bf16 %v34
  %v99 = vunpack.c.l.bf16 %v35
  %v100 = vunpack.c.l.bf16 %v36
  %v101 = vunpack.c.l.bf16 %v37
  %v102 = vunpack.c.l.bf16 %v38
  %v103 = vunpack.c.l.bf16 %v39
  %v104 = vunpack.c.l.bf16 %v40
  %v105 = vunpack.c.l.bf16 %v41
  %v106 = vunpack.c.l.bf16 %v42
  %v107 = vunpack.c.l.bf16 %v43
  %v108 = vunpack.c.l.bf16 %v44
  %v109 = vunpack.c.l.bf16 %v45
  %v110 = vunpack.c.l.bf16 %v46
  %v111 = vunpack.c.l.bf16 %v47
  %v112 = vunpack.c.l.bf16 %v48
  %v113 = vunpack.c.l.bf16 %v49
  %v114 = vunpack.c.l.bf16 %v50
  %v115 = vunpack.c.l.bf16 %v51
  %v116 = vunpack.c.l.bf16 %v52
  %v117 = vunpack.c.l.bf16 %v53
  %v118 = vunpack.c.l.bf16 %v54
  %v119 = vunpack.c.l.bf16 %v55
  %v120 = vunpack.c.l.bf16 %v56
  %v121 = vunpack.c.l.bf16 %v57
  %v122 = vunpack.c.l.bf16 %v58
  %v123 = vunpack.c.l.bf16 %v59
  %v124 = vunpack.c.l.bf16 %v60
  %v125 = vunpack.c.l.bf16 %v61
  %v126 = vunpack.c.l.bf16 %v62
  %v127 = vunpack.c.l.bf16 %v63
  %v128 = vunpack.c.l.bf16 %v64
  %v129 = vunpack.c.l.bf16 %v65
  %v130 = vunpack.c.l.bf16 %v66
  %v131 = vunpack.c.l.bf16 %v67
  %v132 = vunpack.c.l.bf16 %v68
  %v133 = vunpack.c.l.bf16 %v69
  %v134 = vunpack.c.l.bf16 %v70
  %v135 = vunpack.c.l.bf16 %v71
  %v136 = vunpack.c.l.bf16 %v72
  %v137 = vunpack.c.l.bf16 %v73
  %v138 = vunpack.c.l.bf16 %v74
  %v139 = vunpack.c.l.bf16 %v75
  %v140 = vunpack.c.l.bf16 %v76
  %v141 = vunpack.c.l.bf16 %v77
  %v142 = vld [vmem:[%s2] sm:$0x1]
  %v143 = vlaneseq
  %v144 = vshrl.u32 %v143, 7
  %v145 = vsub.s32 0, %v144
  %v146 = vrot.slane %v142, %v145
  %v147 = vmul.f32 %v78, %v146
  %v148 = vmul.f32 %v79, %v146
  %v149 = vmul.f32 %v80, %v146
  %v150 = vmul.f32 %v81, %v146
  %v151 = vmul.f32 %v82, %v146
  %v152 = vmul.f32 %v83, %v146
  %v153 = vmul.f32 %v84, %v146
  %v154 = vmul.f32 %v85, %v146
  %v155 = vmul.f32 %v86, %v146
  %v156 = vmul.f32 %v87, %v146
  %v157 = vmul.f32 %v88, %v146
  %v158 = vmul.f32 %v89, %v146
  %v159 = vmul.f32 %v90, %v146
  %v160 = vmul.f32 %v91, %v146
  %v161 = vmul.f32 %v92, %v146
  %v162 = vmul.f32 %v93, %v146
  %v163 = vmul.f32 %v94, %v146
  %v164 = vmul.f32 %v95, %v146
  %v165 = vmul.f32 %v96, %v146
  %v166 = vmul.f32 %v97, %v146
  %v167 = vmul.f32 %v98, %v146
  %v168 = vmul.f32 %v99, %v146
  %v169 = vmul.f32 %v100, %v146
  %v170 = vmul.f32 %v101, %v146
  %v171 = vmul.f32 %v102, %v146
  %v172 = vmul.f32 %v103, %v146
  %v173 = vmul.f32 %v104, %v146
  %v174 = vmul.f32 %v105, %v146
  %v175 = vmul.f32 %v106, %v146
  %v176 = vmul.f32 %v107, %v146
  %v177 = vmul.f32 %v108, %v146
  %v178 = vmul.f32 %v109, %v146
  %v179 = vmul.f32 %v110, %v146
  %v180 = vmul.f32 %v111, %v146
  %v181 = vmul.f32 %v112, %v146
  %v182 = vmul.f32 %v113, %v146
  %v183 = vmul.f32 %v114, %v146
  %v184 = vmul.f32 %v115, %v146
  %v185 = vmul.f32 %v116, %v146
  %v186 = vmul.f32 %v117, %v146
  %v187 = vmul.f32 %v118, %v146
  %v188 = vmul.f32 %v119, %v146
  %v189 = vmul.f32 %v120, %v146
  %v190 = vmul.f32 %v121, %v146
  %v191 = vmul.f32 %v122, %v146
  %v192 = vmul.f32 %v123, %v146
  %v193 = vmul.f32 %v124, %v146
  %v194 = vmul.f32 %v125, %v146
  %v195 = vmul.f32 %v126, %v146
  %v196 = vmul.f32 %v127, %v146
  %v197 = vmul.f32 %v128, %v146
  %v198 = vmul.f32 %v129, %v146
  %v199 = vmul.f32 %v130, %v146
  %v200 = vmul.f32 %v131, %v146
  %v201 = vmul.f32 %v132, %v146
  %v202 = vmul.f32 %v133, %v146
  %v203 = vmul.f32 %v134, %v146
  %v204 = vmul.f32 %v135, %v146
  %v205 = vmul.f32 %v136, %v146
  %v206 = vmul.f32 %v137, %v146
  %v207 = vmul.f32 %v138, %v146
  %v208 = vmul.f32 %v139, %v146
  %v209 = vmul.f32 %v140, %v146
  %v210 = vmul.f32 %v141, %v146
  %v211 = vld [vmem:[%s2 + $0x1] sm:$0x1]
  %v212 = vlaneseq
  %v213 = vshrl.u32 %v212, 7
  %v214 = vsub.s32 0, %v213
  %v215 = vrot.slane %v211, %v214
  %v216 = vadd.f32 %v147, %v215
  %v217 = vadd.f32 %v148, %v215
  %v218 = vadd.f32 %v149, %v215
  %v219 = vadd.f32 %v150, %v215
  %v220 = vadd.f32 %v151, %v215
  %v221 = vadd.f32 %v152, %v215
  %v222 = vadd.f32 %v153, %v215
  %v223 = vadd.f32 %v154, %v215
  %v224 = vadd.f32 %v155, %v215
  %v225 = vadd.f32 %v156, %v215
  %v226 = vadd.f32 %v157, %v215
  %v227 = vadd.f32 %v158, %v215
  %v228 = vadd.f32 %v159, %v215
  %v229 = vadd.f32 %v160, %v215
  %v230 = vadd.f32 %v161, %v215
  %v231 = vadd.f32 %v162, %v215
  %v232 = vadd.f32 %v163, %v215
  %v233 = vadd.f32 %v164, %v215
  %v234 = vadd.f32 %v165, %v215
  %v235 = vadd.f32 %v166, %v215
  %v236 = vadd.f32 %v167, %v215
  %v237 = vadd.f32 %v168, %v215
  %v238 = vadd.f32 %v169, %v215
  %v239 = vadd.f32 %v170, %v215
  %v240 = vadd.f32 %v171, %v215
  %v241 = vadd.f32 %v172, %v215
  %v242 = vadd.f32 %v173, %v215
  %v243 = vadd.f32 %v174, %v215
  %v244 = vadd.f32 %v175, %v215
  %v245 = vadd.f32 %v176, %v215
  %v246 = vadd.f32 %v177, %v215
  %v247 = vadd.f32 %v178, %v215
  %v248 = vadd.f32 %v179, %v215
  %v249 = vadd.f32 %v180, %v215
  %v250 = vadd.f32 %v181, %v215
  %v251 = vadd.f32 %v182, %v215
  %v252 = vadd.f32 %v183, %v215
  %v253 = vadd.f32 %v184, %v215
  %v254 = vadd.f32 %v185, %v215
  %v255 = vadd.f32 %v186, %v215
  %v256 = vadd.f32 %v187, %v215
  %v257 = vadd.f32 %v188, %v215
  %v258 = vadd.f32 %v189, %v215
  %v259 = vadd.f32 %v190, %v215
  %v260 = vadd.f32 %v191, %v215
  %v261 = vadd.f32 %v192, %v215
  %v262 = vadd.f32 %v193, %v215
  %v263 = vadd.f32 %v194, %v215
  %v264 = vadd.f32 %v195, %v215
  %v265 = vadd.f32 %v196, %v215
  %v266 = vadd.f32 %v197, %v215
  %v267 = vadd.f32 %v198, %v215
  %v268 = vadd.f32 %v199, %v215
  %v269 = vadd.f32 %v200, %v215
  %v270 = vadd.f32 %v201, %v215
  %v271 = vadd.f32 %v202, %v215
  %v272 = vadd.f32 %v203, %v215
  %v273 = vadd.f32 %v204, %v215
  %v274 = vadd.f32 %v205, %v215
  %v275 = vadd.f32 %v206, %v215
  %v276 = vadd.f32 %v207, %v215
  %v277 = vadd.f32 %v208, %v215
  %v278 = vadd.f32 %v209, %v215
  %v279 = vadd.f32 %v210, %v215
  %v280 = vld [vmem:[%s1] sm:$0xf]
  %v281 = vld [vmem:[%s1 + $0x4] sm:$0xf]
  %v282 = vld [vmem:[%s1 + $0x8] sm:$0xf]
  %v283 = vld [vmem:[%s1 + $0xc] sm:$0xf]
  %v284 = vld [vmem:[%s1 + $0x10] sm:$0xf]
  %v285 = vld [vmem:[%s1 + $0x14] sm:$0xf]
  %v286 = vld [vmem:[%s1 + $0x18] sm:$0xf]
  %v287 = vld [vmem:[%s1 + $0x1c] sm:$0xf]
  %v288 = vld [vmem:[%s1 + $0x20] sm:$0xf]
  %v289 = vld [vmem:[%s1 + $0x24] sm:$0xf]
  %v290 = vld [vmem:[%s1 + $0x28] sm:$0xf]
  %v291 = vld [vmem:[%s1 + $0x2c] sm:$0xf]
  %v292 = vld [vmem:[%s1 + $0x30] sm:$0xf]
  %v293 = vld [vmem:[%s1 + $0x34] sm:$0xf]
  %v294 = vld [vmem:[%s1 + $0x38] sm:$0xf]
  %v295 = vld [vmem:[%s1 + $0x3c] sm:$0xf]
  %v296 = vld [vmem:[%s1 + $0x40] sm:$0xf]
  %v297 = vld [vmem:[%s1 + $0x44] sm:$0xf]
  %v298 = vld [vmem:[%s1 + $0x48] sm:$0xf]
  %v299 = vld [vmem:[%s1 + $0x4c] sm:$0xf]
  %v300 = vld [vmem:[%s1 + $0x50] sm:$0xf]
  %v301 = vld [vmem:[%s1 + $0x54] sm:$0xf]
  %v302 = vld [vmem:[%s1 + $0x58] sm:$0xf]
  %v303 = vld [vmem:[%s1 + $0x5c] sm:$0xf]
  %v304 = vld [vmem:[%s1 + $0x60] sm:$0xf]
  %v305 = vld [vmem:[%s1 + $0x64] sm:$0xf]
  %v306 = vld [vmem:[%s1 + $0x68] sm:$0xf]
  %v307 = vld [vmem:[%s1 + $0x6c] sm:$0xf]
  %v308 = vld [vmem:[%s1 + $0x70] sm:$0xf]
  %v309 = vld [vmem:[%s1 + $0x74] sm:$0xf]
  %v310 = vld [vmem:[%s1 + $0x78] sm:$0xf]
  %v311 = vld [vmem:[%s1 + $0x7c] sm:$0xf]
  %v312 = vld [vmem:[%s1 + $0x80] sm:$0xf]
  %v313 = vld [vmem:[%s1 + $0x84] sm:$0xf]
  %v314 = vld [vmem:[%s1 + $0x88] sm:$0xf]
  %v315 = vld [vmem:[%s1 + $0x8c] sm:$0xf]
  %v316 = vld [vmem:[%s1 + $0x90] sm:$0xf]
  %v317 = vld [vmem:[%s1 + $0x94] sm:$0xf]
  %v318 = vld [vmem:[%s1 + $0x98] sm:$0xf]
  %v319 = vld [vmem:[%s1 + $0x9c] sm:$0xf]
  %v320 = vld [vmem:[%s1 + $0xa0] sm:$0xf]
  %v321 = vld [vmem:[%s1 + $0xa4] sm:$0xf]
  %v322 = vld [vmem:[%s1 + $0xa8] sm:$0xf]
  %v323 = vld [vmem:[%s1 + $0xac] sm:$0xf]
  %v324 = vld [vmem:[%s1 + $0xb0] sm:$0xf]
  %v325 = vld [vmem:[%s1 + $0xb4] sm:$0xf]
  %v326 = vld [vmem:[%s1 + $0xb8] sm:$0xf]
  %v327 = vld [vmem:[%s1 + $0xbc] sm:$0xf]
  %v328 = vld [vmem:[%s1 + $0xc0] sm:$0xf]
  %v329 = vld [vmem:[%s1 + $0xc4] sm:$0xf]
  %v330 = vld [vmem:[%s1 + $0xc8] sm:$0xf]
  %v331 = vld [vmem:[%s1 + $0xcc] sm:$0xf]
  %v332 = vld [vmem:[%s1 + $0xd0] sm:$0xf]
  %v333 = vld [vmem:[%s1 + $0xd4] sm:$0xf]
  %v334 = vld [vmem:[%s1 + $0xd8] sm:$0xf]
  %v335 = vld [vmem:[%s1 + $0xdc] sm:$0xf]
  %v336 = vld [vmem:[%s1 + $0xe0] sm:$0xf]
  %v337 = vld [vmem:[%s1 + $0xe4] sm:$0xf]
  %v338 = vld [vmem:[%s1 + $0xe8] sm:$0xf]
  %v339 = vld [vmem:[%s1 + $0xec] sm:$0xf]
  %v340 = vld [vmem:[%s1 + $0xf0] sm:$0xf]
  %v341 = vld [vmem:[%s1 + $0xf4] sm:$0xf]
  %v342 = vld [vmem:[%s1 + $0xf8] sm:$0xf]
  %v343 = vld [vmem:[%s1 + $0xfc] sm:$0xf]
  %v344 = vunpack.c.l.bf16 %v280
  %v345 = vunpack.c.l.bf16 %v281
  %v346 = vunpack.c.l.bf16 %v282
  %v347 = vunpack.c.l.bf16 %v283
  %v348 = vunpack.c.l.bf16 %v284
  %v349 = vunpack.c.l.bf16 %v285
  %v350 = vunpack.c.l.bf16 %v286
  %v351 = vunpack.c.l.bf16 %v287
  %v352 = vunpack.c.l.bf16 %v288
  %v353 = vunpack.c.l.bf16 %v289
  %v354 = vunpack.c.l.bf16 %v290
  %v355 = vunpack.c.l.bf16 %v291
  %v356 = vunpack.c.l.bf16 %v292
  %v357 = vunpack.c.l.bf16 %v293
  %v358 = vunpack.c.l.bf16 %v294
  %v359 = vunpack.c.l.bf16 %v295
  %v360 = vunpack.c.l.bf16 %v296
  %v361 = vunpack.c.l.bf16 %v297
  %v362 = vunpack.c.l.bf16 %v298
  %v363 = vunpack.c.l.bf16 %v299
  %v364 = vunpack.c.l.bf16 %v300
  %v365 = vunpack.c.l.bf16 %v301
  %v366 = vunpack.c.l.bf16 %v302
  %v367 = vunpack.c.l.bf16 %v303
  %v368 = vunpack.c.l.bf16 %v304
  %v369 = vunpack.c.l.bf16 %v305
  %v370 = vunpack.c.l.bf16 %v306
  %v371 = vunpack.c.l.bf16 %v307
  %v372 = vunpack.c.l.bf16 %v308
  %v373 = vunpack.c.l.bf16 %v309
  %v374 = vunpack.c.l.bf16 %v310
  %v375 = vunpack.c.l.bf16 %v311
  %v376 = vunpack.c.l.bf16 %v312
  %v377 = vunpack.c.l.bf16 %v313
  %v378 = vunpack.c.l.bf16 %v314
  %v379 = vunpack.c.l.bf16 %v315
  %v380 = vunpack.c.l.bf16 %v316
  %v381 = vunpack.c.l.bf16 %v317
  %v382 = vunpack.c.l.bf16 %v318
  %v383 = vunpack.c.l.bf16 %v319
  %v384 = vunpack.c.l.bf16 %v320
  %v385 = vunpack.c.l.bf16 %v321
  %v386 = vunpack.c.l.bf16 %v322
  %v387 = vunpack.c.l.bf16 %v323
  %v388 = vunpack.c.l.bf16 %v324
  %v389 = vunpack.c.l.bf16 %v325
  %v390 = vunpack.c.l.bf16 %v326
  %v391 = vunpack.c.l.bf16 %v327
  %v392 = vunpack.c.l.bf16 %v328
  %v393 = vunpack.c.l.bf16 %v329
  %v394 = vunpack.c.l.bf16 %v330
  %v395 = vunpack.c.l.bf16 %v331
  %v396 = vunpack.c.l.bf16 %v332
  %v397 = vunpack.c.l.bf16 %v333
  %v398 = vunpack.c.l.bf16 %v334
  %v399 = vunpack.c.l.bf16 %v335
  %v400 = vunpack.c.l.bf16 %v336
  %v401 = vunpack.c.l.bf16 %v337
  %v402 = vunpack.c.l.bf16 %v338
  %v403 = vunpack.c.l.bf16 %v339
  %v404 = vunpack.c.l.bf16 %v340
  %v405 = vunpack.c.l.bf16 %v341
  %v406 = vunpack.c.l.bf16 %v342
  %v407 = vunpack.c.l.bf16 %v343
  %v408 = vadd.f32 %v216, %v344
  %v409 = vadd.f32 %v217, %v345
  %v410 = vadd.f32 %v218, %v346
  %v411 = vadd.f32 %v219, %v347
  %v412 = vadd.f32 %v220, %v348
  %v413 = vadd.f32 %v221, %v349
  %v414 = vadd.f32 %v222, %v350
  %v415 = vadd.f32 %v223, %v351
  %v416 = vadd.f32 %v224, %v352
  %v417 = vadd.f32 %v225, %v353
  %v418 = vadd.f32 %v226, %v354
  %v419 = vadd.f32 %v227, %v355
  %v420 = vadd.f32 %v228, %v356
  %v421 = vadd.f32 %v229, %v357
  %v422 = vadd.f32 %v230, %v358
  %v423 = vadd.f32 %v231, %v359
  %v424 = vadd.f32 %v232, %v360
  %v425 = vadd.f32 %v233, %v361
  %v426 = vadd.f32 %v234, %v362
  %v427 = vadd.f32 %v235, %v363
  %v428 = vadd.f32 %v236, %v364
  %v429 = vadd.f32 %v237, %v365
  %v430 = vadd.f32 %v238, %v366
  %v431 = vadd.f32 %v239, %v367
  %v432 = vadd.f32 %v240, %v368
  %v433 = vadd.f32 %v241, %v369
  %v434 = vadd.f32 %v242, %v370
  %v435 = vadd.f32 %v243, %v371
  %v436 = vadd.f32 %v244, %v372
  %v437 = vadd.f32 %v245, %v373
  %v438 = vadd.f32 %v246, %v374
  %v439 = vadd.f32 %v247, %v375
  %v440 = vadd.f32 %v248, %v376
  %v441 = vadd.f32 %v249, %v377
  %v442 = vadd.f32 %v250, %v378
  %v443 = vadd.f32 %v251, %v379
  %v444 = vadd.f32 %v252, %v380
  %v445 = vadd.f32 %v253, %v381
  %v446 = vadd.f32 %v254, %v382
  %v447 = vadd.f32 %v255, %v383
  %v448 = vadd.f32 %v256, %v384
  %v449 = vadd.f32 %v257, %v385
  %v450 = vadd.f32 %v258, %v386
  %v451 = vadd.f32 %v259, %v387
  %v452 = vadd.f32 %v260, %v388
  %v453 = vadd.f32 %v261, %v389
  %v454 = vadd.f32 %v262, %v390
  %v455 = vadd.f32 %v263, %v391
  %v456 = vadd.f32 %v264, %v392
  %v457 = vadd.f32 %v265, %v393
  %v458 = vadd.f32 %v266, %v394
  %v459 = vadd.f32 %v267, %v395
  %v460 = vadd.f32 %v268, %v396
  %v461 = vadd.f32 %v269, %v397
  %v462 = vadd.f32 %v270, %v398
  %v463 = vadd.f32 %v271, %v399
  %v464 = vadd.f32 %v272, %v400
  %v465 = vadd.f32 %v273, %v401
  %v466 = vadd.f32 %v274, %v402
  %v467 = vadd.f32 %v275, %v403
  %v468 = vadd.f32 %v276, %v404
  %v469 = vadd.f32 %v277, %v405
  %v470 = vadd.f32 %v278, %v406
  %v471 = vadd.f32 %v279, %v407
  %v472 = vmax.f32 %v408, 0.0
  %v473 = vmax.f32 %v409, 0.0
  %v474 = vmax.f32 %v410, 0.0
  %v475 = vmax.f32 %v411, 0.0
  %v476 = vmax.f32 %v412, 0.0
  %v477 = vmax.f32 %v413, 0.0
  %v478 = vmax.f32 %v414, 0.0
  %v479 = vmax.f32 %v415, 0.0
  %v480 = vmax.f32 %v416, 0.0
  %v481 = vmax.f32 %v417, 0.0
  %v482 = vmax.f32 %v418, 0.0
  %v483 = vmax.f32 %v419, 0.0
  %v484 = vmax.f32 %v420, 0.0
  %v485 = vmax.f32 %v421, 0.0
  %v486 = vmax.f32 %v422, 0.0
  %v487 = vmax.f32 %v423, 0.0
  %v488 = vmax.f32 %v424, 0.0
  %v489 = vmax.f32 %v425, 0.0
  %v490 = vmax.f32 %v426, 0.0
  %v491 = vmax.f32 %v427, 0.0
  %v492 = vmax.f32 %v428, 0.0
  %v493 = vmax.f32 %v429, 0.0
  %v494 = vmax.f32 %v430, 0.0
  %v495 = vmax.f32 %v431, 0.0
  %v496 = vmax.f32 %v432, 0.0
  %v497 = vmax.f32 %v433, 0.0
  %v498 = vmax.f32 %v434, 0.0
  %v499 = vmax.f32 %v435, 0.0
  %v500 = vmax.f32 %v436, 0.0
  %v501 = vmax.f32 %v437, 0.0
  %v502 = vmax.f32 %v438, 0.0
  %v503 = vmax.f32 %v439, 0.0
  %v504 = vmax.f32 %v440, 0.0
  %v505 = vmax.f32 %v441, 0.0
  %v506 = vmax.f32 %v442, 0.0
  %v507 = vmax.f32 %v443, 0.0
  %v508 = vmax.f32 %v444, 0.0
  %v509 = vmax.f32 %v445, 0.0
  %v510 = vmax.f32 %v446, 0.0
  %v511 = vmax.f32 %v447, 0.0
  %v512 = vmax.f32 %v448, 0.0
  %v513 = vmax.f32 %v449, 0.0
  %v514 = vmax.f32 %v450, 0.0
  %v515 = vmax.f32 %v451, 0.0
  %v516 = vmax.f32 %v452, 0.0
  %v517 = vmax.f32 %v453, 0.0
  %v518 = vmax.f32 %v454, 0.0
  %v519 = vmax.f32 %v455, 0.0
  %v520 = vmax.f32 %v456, 0.0
  %v521 = vmax.f32 %v457, 0.0
  %v522 = vmax.f32 %v458, 0.0
  %v523 = vmax.f32 %v459, 0.0
  %v524 = vmax.f32 %v460, 0.0
  %v525 = vmax.f32 %v461, 0.0
  %v526 = vmax.f32 %v462, 0.0
  %v527 = vmax.f32 %v463, 0.0
  %v528 = vmax.f32 %v464, 0.0
  %v529 = vmax.f32 %v465, 0.0
  %v530 = vmax.f32 %v466, 0.0
  %v531 = vmax.f32 %v467, 0.0
  %v532 = vmax.f32 %v468, 0.0
  %v533 = vmax.f32 %v469, 0.0
  %v534 = vmax.f32 %v470, 0.0
  %v535 = vmax.f32 %v471, 0.0
  %536 = vst [vmem:[%s3] sm:$0xff] %v472
  %537 = vst [vmem:[%s3 + $0x8] sm:$0xff] %v473
  %538 = vst [vmem:[%s3 + $0x10] sm:$0xff] %v474
  %539 = vst [vmem:[%s3 + $0x18] sm:$0xff] %v475
  %540 = vst [vmem:[%s3 + $0x20] sm:$0xff] %v476
  %541 = vst [vmem:[%s3 + $0x28] sm:$0xff] %v477
  %542 = vst [vmem:[%s3 + $0x30] sm:$0xff] %v478
  %543 = vst [vmem:[%s3 + $0x38] sm:$0xff] %v479
  %544 = vst [vmem:[%s3 + $0x40] sm:$0xff] %v480
  %545 = vst [vmem:[%s3 + $0x48] sm:$0xff] %v481
  %546 = vst [vmem:[%s3 + $0x50] sm:$0xff] %v482
  %547 = vst [vmem:[%s3 + $0x58] sm:$0xff] %v483
  %548 = vst [vmem:[%s3 + $0x60] sm:$0xff] %v484
  %549 = vst [vmem:[%s3 + $0x68] sm:$0xff] %v485
  %550 = vst [vmem:[%s3 + $0x70] sm:$0xff] %v486
  %551 = vst [vmem:[%s3 + $0x78] sm:$0xff] %v487
  %552 = vst [vmem:[%s3 + $0x80] sm:$0xff] %v488
  %553 = vst [vmem:[%s3 + $0x88] sm:$0xff] %v489
  %554 = vst [vmem:[%s3 + $0x90] sm:$0xff] %v490
  %555 = vst [vmem:[%s3 + $0x98] sm:$0xff] %v491
  %556 = vst [vmem:[%s3 + $0xa0] sm:$0xff] %v492
  %557 = vst [vmem:[%s3 + $0xa8] sm:$0xff] %v493
  %558 = vst [vmem:[%s3 + $0xb0] sm:$0xff] %v494
  %559 = vst [vmem:[%s3 + $0xb8] sm:$0xff] %v495
  %560 = vst [vmem:[%s3 + $0xc0] sm:$0xff] %v496
  %561 = vst [vmem:[%s3 + $0xc8] sm:$0xff] %v497
  %562 = vst [vmem:[%s3 + $0xd0] sm:$0xff] %v498
  %563 = vst [vmem:[%s3 + $0xd8] sm:$0xff] %v499
  %564 = vst [vmem:[%s3 + $0xe0] sm:$0xff] %v500
  %565 = vst [vmem:[%s3 + $0xe8] sm:$0xff] %v501
  %566 = vst [vmem:[%s3 + $0xf0] sm:$0xff] %v502
  %567 = vst [vmem:[%s3 + $0xf8] sm:$0xff] %v503
  %568 = vst [vmem:[%s3 + $0x100] sm:$0xff] %v504
  %569 = vst [vmem:[%s3 + $0x108] sm:$0xff] %v505
  %570 = vst [vmem:[%s3 + $0x110] sm:$0xff] %v506
  %571 = vst [vmem:[%s3 + $0x118] sm:$0xff] %v507
  %572 = vst [vmem:[%s3 + $0x120] sm:$0xff] %v508
  %573 = vst [vmem:[%s3 + $0x128] sm:$0xff] %v509
  %574 = vst [vmem:[%s3 + $0x130] sm:$0xff] %v510
  %575 = vst [vmem:[%s3 + $0x138] sm:$0xff] %v511
  %576 = vst [vmem:[%s3 + $0x140] sm:$0xff] %v512
  %577 = vst [vmem:[%s3 + $0x148] sm:$0xff] %v513
  %578 = vst [vmem:[%s3 + $0x150] sm:$0xff] %v514
  %579 = vst [vmem:[%s3 + $0x158] sm:$0xff] %v515
  %580 = vst [vmem:[%s3 + $0x160] sm:$0xff] %v516
  %581 = vst [vmem:[%s3 + $0x168] sm:$0xff] %v517
  %582 = vst [vmem:[%s3 + $0x170] sm:$0xff] %v518
  %583 = vst [vmem:[%s3 + $0x178] sm:$0xff] %v519
  %584 = vst [vmem:[%s3 + $0x180] sm:$0xff] %v520
  %585 = vst [vmem:[%s3 + $0x188] sm:$0xff] %v521
  %586 = vst [vmem:[%s3 + $0x190] sm:$0xff] %v522
  %587 = vst [vmem:[%s3 + $0x198] sm:$0xff] %v523
  %588 = vst [vmem:[%s3 + $0x1a0] sm:$0xff] %v524
  %589 = vst [vmem:[%s3 + $0x1a8] sm:$0xff] %v525
  %590 = vst [vmem:[%s3 + $0x1b0] sm:$0xff] %v526
  %591 = vst [vmem:[%s3 + $0x1b8] sm:$0xff] %v527
  %592 = vst [vmem:[%s3 + $0x1c0] sm:$0xff] %v528
  %593 = vst [vmem:[%s3 + $0x1c8] sm:$0xff] %v529
  %594 = vst [vmem:[%s3 + $0x1d0] sm:$0xff] %v530
  %595 = vst [vmem:[%s3 + $0x1d8] sm:$0xff] %v531
  %596 = vst [vmem:[%s3 + $0x1e0] sm:$0xff] %v532
  %597 = vst [vmem:[%s3 + $0x1e8] sm:$0xff] %v533
  %598 = vst [vmem:[%s3 + $0x1f0] sm:$0xff] %v534
  %599 = vst [vmem:[%s3 + $0x1f8] sm:$0xff] %v535
  // Predicated region
  $region14: #{bottleneck_forward.7} parent=0 // pred_check
    _
  $region15: #{bottleneck_forward.7} parent=0 // pred_check_branch
    %601 = sbr.rel (0) target = $region17
  $region16: #{bottleneck_forward.7} parent=0 // pred_region
    _
  $region17: #{bottleneck_forward.7} parent=0 // pred_fallthru
    _
  // Predicated region
  $region18: #{bottleneck_forward.7} parent=0 // pred_check
    _
  $region19: #{bottleneck_forward.7} parent=0 // pred_check_branch
    %603 = sbr.rel (0) target = $region21
  $region20: #{bottleneck_forward.7} parent=0 // pred_region
    _
  $region21: #{bottleneck_forward.7} parent=0 // pred_fallthru
    _

// kernel: bottleneck_forward.6
$region0: #{bottleneck_forward.6}
  #allocation0 [shape = 'u32[]', space=smem, size = 0x4, offset = 0x4, fixed_abs, tag = 'smem constant byte address 0x4 - core index']
  #allocation1 [shape = 'u32[144,128]{1,0:T(1,128)}', space=vmem, size = 0x12000, scoped, tag = 'internal scratch']
  %s0 = inlined_call_operand.vmem [shape: bf16[512,128], index: 0, kind: input, shape index: {}]
  %s1 = inlined_call_operand.vmem [shape: f32[2,128], index: 1, kind: input, shape index: {}]
  %s2 = inlined_call_operand.vmem [shape: bf16[128,128], index: 2, kind: input, shape index: {}]
  %s3 = inlined_call_operand.vmem [shape: bf16[512,128], index: 3, kind: output, shape index: {0}]
  %s4 = inlined_call_operand.vmem [shape: f32[1,2,128], index: 4, kind: output, shape index: {1}]
  %5 = xla_tuple %s3, %s4
  %s6 = sld [smem:[#allocation0]]
  $region30: #{bottleneck_forward.6} parent=0
    _
  %s8 = ssub.s32 1, %s6
  %s9 = scalar_select 0, %s8, %s6
  // Predicated region
  $region2: #{bottleneck_forward.6} parent=0 // pred_check
    _
  $region3: #{bottleneck_forward.6} parent=0 // pred_check_branch
    %11 = sbr.rel (0) target = $region5
  $region4: #{bottleneck_forward.6} parent=0 // pred_region
    _
  $region5: #{bottleneck_forward.6} parent=0 // pred_fallthru
    _
  // Predicated region
  $region6: #{bottleneck_forward.6} parent=0 // pred_check
    _
  $region7: #{bottleneck_forward.6} parent=0 // pred_check_branch
    %13 = sbr.rel (0) target = $region9
  $region8: #{bottleneck_forward.6} parent=0 // pred_region
    _
  $region9: #{bottleneck_forward.6} parent=0 // pred_fallthru
    _
  // Predicated region
  $region10: #{bottleneck_forward.6} parent=0 // pred_check
    _
  $region11: #{bottleneck_forward.6} parent=0 // pred_check_branch
    %15 = sbr.rel (0) target = $region13
  $region12: #{bottleneck_forward.6} parent=0 // pred_region
    _
  $region13: #{bottleneck_forward.6} parent=0 // pred_fallthru
    _
  %v17 = vld [vmem:[%s0] sm:$0xf]
  %v18 = vld [vmem:[%s0 + $0x4] sm:$0xf]
  %v19 = vld [vmem:[%s0 + $0x8] sm:$0xf]
  %v20 = vld [vmem:[%s0 + $0xc] sm:$0xf]
  %v21 = vld [vmem:[%s0 + $0x10] sm:$0xf]
  %v22 = vld [vmem:[%s0 + $0x14] sm:$0xf]
  %v23 = vld [vmem:[%s0 + $0x18] sm:$0xf]
  %v24 = vld [vmem:[%s0 + $0x1c] sm:$0xf]
  %v25 = vld [vmem:[%s0 + $0x20] sm:$0xf]
  %v26 = vld [vmem:[%s0 + $0x24] sm:$0xf]
  %v27 = vld [vmem:[%s0 + $0x28] sm:$0xf]
  %v28 = vld [vmem:[%s0 + $0x2c] sm:$0xf]
  %v29 = vld [vmem:[%s0 + $0x30] sm:$0xf]
  %v30 = vld [vmem:[%s0 + $0x34] sm:$0xf]
  %v31 = vld [vmem:[%s0 + $0x38] sm:$0xf]
  %v32 = vld [vmem:[%s0 + $0x3c] sm:$0xf]
  %v33 = vld [vmem:[%s0 + $0x40] sm:$0xf]
  %v34 = vld [vmem:[%s0 + $0x44] sm:$0xf]
  %v35 = vld [vmem:[%s0 + $0x48] sm:$0xf]
  %v36 = vld [vmem:[%s0 + $0x4c] sm:$0xf]
  %v37 = vld [vmem:[%s0 + $0x50] sm:$0xf]
  %v38 = vld [vmem:[%s0 + $0x54] sm:$0xf]
  %v39 = vld [vmem:[%s0 + $0x58] sm:$0xf]
  %v40 = vld [vmem:[%s0 + $0x5c] sm:$0xf]
  %v41 = vld [vmem:[%s0 + $0x60] sm:$0xf]
  %v42 = vld [vmem:[%s0 + $0x64] sm:$0xf]
  %v43 = vld [vmem:[%s0 + $0x68] sm:$0xf]
  %v44 = vld [vmem:[%s0 + $0x6c] sm:$0xf]
  %v45 = vld [vmem:[%s0 + $0x70] sm:$0xf]
  %v46 = vld [vmem:[%s0 + $0x74] sm:$0xf]
  %v47 = vld [vmem:[%s0 + $0x78] sm:$0xf]
  %v48 = vld [vmem:[%s0 + $0x7c] sm:$0xf]
  %v49 = vld [vmem:[%s0 + $0x80] sm:$0xf]
  %v50 = vld [vmem:[%s0 + $0x84] sm:$0xf]
  %v51 = vld [vmem:[%s0 + $0x88] sm:$0xf]
  %v52 = vld [vmem:[%s0 + $0x8c] sm:$0xf]
  %v53 = vld [vmem:[%s0 + $0x90] sm:$0xf]
  %v54 = vld [vmem:[%s0 + $0x94] sm:$0xf]
  %v55 = vld [vmem:[%s0 + $0x98] sm:$0xf]
  %v56 = vld [vmem:[%s0 + $0x9c] sm:$0xf]
  %v57 = vld [vmem:[%s0 + $0xa0] sm:$0xf]
  %v58 = vld [vmem:[%s0 + $0xa4] sm:$0xf]
  %v59 = vld [vmem:[%s0 + $0xa8] sm:$0xf]
  %v60 = vld [vmem:[%s0 + $0xac] sm:$0xf]
  %v61 = vld [vmem:[%s0 + $0xb0] sm:$0xf]
  %v62 = vld [vmem:[%s0 + $0xb4] sm:$0xf]
  %v63 = vld [vmem:[%s0 + $0xb8] sm:$0xf]
  %v64 = vld [vmem:[%s0 + $0xbc] sm:$0xf]
  %v65 = vld [vmem:[%s0 + $0xc0] sm:$0xf]
  %v66 = vld [vmem:[%s0 + $0xc4] sm:$0xf]
  %v67 = vld [vmem:[%s0 + $0xc8] sm:$0xf]
  %v68 = vld [vmem:[%s0 + $0xcc] sm:$0xf]
  %v69 = vld [vmem:[%s0 + $0xd0] sm:$0xf]
  %v70 = vld [vmem:[%s0 + $0xd4] sm:$0xf]
  %v71 = vld [vmem:[%s0 + $0xd8] sm:$0xf]
  %v72 = vld [vmem:[%s0 + $0xdc] sm:$0xf]
  %v73 = vld [vmem:[%s0 + $0xe0] sm:$0xf]
  %v74 = vld [vmem:[%s0 + $0xe4] sm:$0xf]
  %v75 = vld [vmem:[%s0 + $0xe8] sm:$0xf]
  %v76 = vld [vmem:[%s0 + $0xec] sm:$0xf]
  %v77 = vld [vmem:[%s0 + $0xf0] sm:$0xf]
  %v78 = vld [vmem:[%s0 + $0xf4] sm:$0xf]
  %v79 = vld [vmem:[%s0 + $0xf8] sm:$0xf]
  %v80 = vld [vmem:[%s0 + $0xfc] sm:$0xf]
  %v81 = vunpack.c.l.bf16 %v17
  %v82 = vunpack.c.l.bf16 %v18
  %v83 = vunpack.c.l.bf16 %v19
  %v84 = vunpack.c.l.bf16 %v20
  %v85 = vunpack.c.l.bf16 %v21
  %v86 = vunpack.c.l.bf16 %v22
  %v87 = vunpack.c.l.bf16 %v23
  %v88 = vunpack.c.l.bf16 %v24
  %v89 = vunpack.c.l.bf16 %v25
  %v90 = vunpack.c.l.bf16 %v26
  %v91 = vunpack.c.l.bf16 %v27
  %v92 = vunpack.c.l.bf16 %v28
  %v93 = vunpack.c.l.bf16 %v29
  %v94 = vunpack.c.l.bf16 %v30
  %v95 = vunpack.c.l.bf16 %v31
  %v96 = vunpack.c.l.bf16 %v32
  %v97 = vunpack.c.l.bf16 %v33
  %v98 = vunpack.c.l.bf16 %v34
  %v99 = vunpack.c.l.bf16 %v35
  %v100 = vunpack.c.l.bf16 %v36
  %v101 = vunpack.c.l.bf16 %v37
  %v102 = vunpack.c.l.bf16 %v38
  %v103 = vunpack.c.l.bf16 %v39
  %v104 = vunpack.c.l.bf16 %v40
  %v105 = vunpack.c.l.bf16 %v41
  %v106 = vunpack.c.l.bf16 %v42
  %v107 = vunpack.c.l.bf16 %v43
  %v108 = vunpack.c.l.bf16 %v44
  %v109 = vunpack.c.l.bf16 %v45
  %v110 = vunpack.c.l.bf16 %v46
  %v111 = vunpack.c.l.bf16 %v47
  %v112 = vunpack.c.l.bf16 %v48
  %v113 = vunpack.c.l.bf16 %v49
  %v114 = vunpack.c.l.bf16 %v50
  %v115 = vunpack.c.l.bf16 %v51
  %v116 = vunpack.c.l.bf16 %v52
  %v117 = vunpack.c.l.bf16 %v53
  %v118 = vunpack.c.l.bf16 %v54
  %v119 = vunpack.c.l.bf16 %v55
  %v120 = vunpack.c.l.bf16 %v56
  %v121 = vunpack.c.l.bf16 %v57
  %v122 = vunpack.c.l.bf16 %v58
  %v123 = vunpack.c.l.bf16 %v59
  %v124 = vunpack.c.l.bf16 %v60
  %v125 = vunpack.c.l.bf16 %v61
  %v126 = vunpack.c.l.bf16 %v62
  %v127 = vunpack.c.l.bf16 %v63
  %v128 = vunpack.c.l.bf16 %v64
  %v129 = vunpack.c.l.bf16 %v65
  %v130 = vunpack.c.l.bf16 %v66
  %v131 = vunpack.c.l.bf16 %v67
  %v132 = vunpack.c.l.bf16 %v68
  %v133 = vunpack.c.l.bf16 %v69
  %v134 = vunpack.c.l.bf16 %v70
  %v135 = vunpack.c.l.bf16 %v71
  %v136 = vunpack.c.l.bf16 %v72
  %v137 = vunpack.c.l.bf16 %v73
  %v138 = vunpack.c.l.bf16 %v74
  %v139 = vunpack.c.l.bf16 %v75
  %v140 = vunpack.c.l.bf16 %v76
  %v141 = vunpack.c.l.bf16 %v77
  %v142 = vunpack.c.l.bf16 %v78
  %v143 = vunpack.c.l.bf16 %v79
  %v144 = vunpack.c.l.bf16 %v80
  %v145 = vld [vmem:[%s1] sm:$0x1]
  %v146 = vlaneseq
  %v147 = vshrl.u32 %v146, 7
  %v148 = vsub.s32 0, %v147
  %v149 = vrot.slane %v145, %v148
  %v150 = vmul.f32 %v81, %v149
  %v151 = vmul.f32 %v82, %v149
  %v152 = vmul.f32 %v83, %v149
  %v153 = vmul.f32 %v84, %v149
  %v154 = vmul.f32 %v85, %v149
  %v155 = vmul.f32 %v86, %v149
  %v156 = vmul.f32 %v87, %v149
  %v157 = vmul.f32 %v88, %v149
  %v158 = vmul.f32 %v89, %v149
  %v159 = vmul.f32 %v90, %v149
  %v160 = vmul.f32 %v91, %v149
  %v161 = vmul.f32 %v92, %v149
  %v162 = vmul.f32 %v93, %v149
  %v163 = vmul.f32 %v94, %v149
  %v164 = vmul.f32 %v95, %v149
  %v165 = vmul.f32 %v96, %v149
  %v166 = vmul.f32 %v97, %v149
  %v167 = vmul.f32 %v98, %v149
  %v168 = vmul.f32 %v99, %v149
  %v169 = vmul.f32 %v100, %v149
  %v170 = vmul.f32 %v101, %v149
  %v171 = vmul.f32 %v102, %v149
  %v172 = vmul.f32 %v103, %v149
  %v173 = vmul.f32 %v104, %v149
  %v174 = vmul.f32 %v105, %v149
  %v175 = vmul.f32 %v106, %v149
  %v176 = vmul.f32 %v107, %v149
  %v177 = vmul.f32 %v108, %v149
  %v178 = vmul.f32 %v109, %v149
  %v179 = vmul.f32 %v110, %v149
  %v180 = vmul.f32 %v111, %v149
  %v181 = vmul.f32 %v112, %v149
  %v182 = vmul.f32 %v113, %v149
  %v183 = vmul.f32 %v114, %v149
  %v184 = vmul.f32 %v115, %v149
  %v185 = vmul.f32 %v116, %v149
  %v186 = vmul.f32 %v117, %v149
  %v187 = vmul.f32 %v118, %v149
  %v188 = vmul.f32 %v119, %v149
  %v189 = vmul.f32 %v120, %v149
  %v190 = vmul.f32 %v121, %v149
  %v191 = vmul.f32 %v122, %v149
  %v192 = vmul.f32 %v123, %v149
  %v193 = vmul.f32 %v124, %v149
  %v194 = vmul.f32 %v125, %v149
  %v195 = vmul.f32 %v126, %v149
  %v196 = vmul.f32 %v127, %v149
  %v197 = vmul.f32 %v128, %v149
  %v198 = vmul.f32 %v129, %v149
  %v199 = vmul.f32 %v130, %v149
  %v200 = vmul.f32 %v131, %v149
  %v201 = vmul.f32 %v132, %v149
  %v202 = vmul.f32 %v133, %v149
  %v203 = vmul.f32 %v134, %v149
  %v204 = vmul.f32 %v135, %v149
  %v205 = vmul.f32 %v136, %v149
  %v206 = vmul.f32 %v137, %v149
  %v207 = vmul.f32 %v138, %v149
  %v208 = vmul.f32 %v139, %v149
  %v209 = vmul.f32 %v140, %v149
  %v210 = vmul.f32 %v141, %v149
  %v211 = vmul.f32 %v142, %v149
  %v212 = vmul.f32 %v143, %v149
  %v213 = vmul.f32 %v144, %v149
  %v214 = vld [vmem:[%s1 + $0x1] sm:$0x1]
  %v215 = vlaneseq
  %v216 = vshrl.u32 %v215, 7
  %v217 = vsub.s32 0, %v216
  %v218 = vrot.slane %v214, %v217
  %v219 = vadd.f32 %v150, %v218
  %v220 = vadd.f32 %v151, %v218
  %v221 = vadd.f32 %v152, %v218
  %v222 = vadd.f32 %v153, %v218
  %v223 = vadd.f32 %v154, %v218
  %v224 = vadd.f32 %v155, %v218
  %v225 = vadd.f32 %v156, %v218
  %v226 = vadd.f32 %v157, %v218
  %v227 = vadd.f32 %v158, %v218
  %v228 = vadd.f32 %v159, %v218
  %v229 = vadd.f32 %v160, %v218
  %v230 = vadd.f32 %v161, %v218
  %v231 = vadd.f32 %v162, %v218
  %v232 = vadd.f32 %v163, %v218
  %v233 = vadd.f32 %v164, %v218
  %v234 = vadd.f32 %v165, %v218
  %v235 = vadd.f32 %v166, %v218
  %v236 = vadd.f32 %v167, %v218
  %v237 = vadd.f32 %v168, %v218
  %v238 = vadd.f32 %v169, %v218
  %v239 = vadd.f32 %v170, %v218
  %v240 = vadd.f32 %v171, %v218
  %v241 = vadd.f32 %v172, %v218
  %v242 = vadd.f32 %v173, %v218
  %v243 = vadd.f32 %v174, %v218
  %v244 = vadd.f32 %v175, %v218
  %v245 = vadd.f32 %v176, %v218
  %v246 = vadd.f32 %v177, %v218
  %v247 = vadd.f32 %v178, %v218
  %v248 = vadd.f32 %v179, %v218
  %v249 = vadd.f32 %v180, %v218
  %v250 = vadd.f32 %v181, %v218
  %v251 = vadd.f32 %v182, %v218
  %v252 = vadd.f32 %v183, %v218
  %v253 = vadd.f32 %v184, %v218
  %v254 = vadd.f32 %v185, %v218
  %v255 = vadd.f32 %v186, %v218
  %v256 = vadd.f32 %v187, %v218
  %v257 = vadd.f32 %v188, %v218
  %v258 = vadd.f32 %v189, %v218
  %v259 = vadd.f32 %v190, %v218
  %v260 = vadd.f32 %v191, %v218
  %v261 = vadd.f32 %v192, %v218
  %v262 = vadd.f32 %v193, %v218
  %v263 = vadd.f32 %v194, %v218
  %v264 = vadd.f32 %v195, %v218
  %v265 = vadd.f32 %v196, %v218
  %v266 = vadd.f32 %v197, %v218
  %v267 = vadd.f32 %v198, %v218
  %v268 = vadd.f32 %v199, %v218
  %v269 = vadd.f32 %v200, %v218
  %v270 = vadd.f32 %v201, %v218
  %v271 = vadd.f32 %v202, %v218
  %v272 = vadd.f32 %v203, %v218
  %v273 = vadd.f32 %v204, %v218
  %v274 = vadd.f32 %v205, %v218
  %v275 = vadd.f32 %v206, %v218
  %v276 = vadd.f32 %v207, %v218
  %v277 = vadd.f32 %v208, %v218
  %v278 = vadd.f32 %v209, %v218
  %v279 = vadd.f32 %v210, %v218
  %v280 = vadd.f32 %v211, %v218
  %v281 = vadd.f32 %v212, %v218
  %v282 = vadd.f32 %v213, %v218
  %v283 = vmax.f32 %v219, 0.0
  %v284 = vmax.f32 %v220, 0.0
  %v285 = vmax.f32 %v221, 0.0
  %v286 = vmax.f32 %v222, 0.0
  %v287 = vmax.f32 %v223, 0.0
  %v288 = vmax.f32 %v224, 0.0
  %v289 = vmax.f32 %v225, 0.0
  %v290 = vmax.f32 %v226, 0.0
  %v291 = vmax.f32 %v227, 0.0
  %v292 = vmax.f32 %v228, 0.0
  %v293 = vmax.f32 %v229, 0.0
  %v294 = vmax.f32 %v230, 0.0
  %v295 = vmax.f32 %v231, 0.0
  %v296 = vmax.f32 %v232, 0.0
  %v297 = vmax.f32 %v233, 0.0
  %v298 = vmax.f32 %v234, 0.0
  %v299 = vmax.f32 %v235, 0.0
  %v300 = vmax.f32 %v236, 0.0
  %v301 = vmax.f32 %v237, 0.0
  %v302 = vmax.f32 %v238, 0.0
  %v303 = vmax.f32 %v239, 0.0
  %v304 = vmax.f32 %v240, 0.0
  %v305 = vmax.f32 %v241, 0.0
  %v306 = vmax.f32 %v242, 0.0
  %v307 = vmax.f32 %v243, 0.0
  %v308 = vmax.f32 %v244, 0.0
  %v309 = vmax.f32 %v245, 0.0
  %v310 = vmax.f32 %v246, 0.0
  %v311 = vmax.f32 %v247, 0.0
  %v312 = vmax.f32 %v248, 0.0
  %v313 = vmax.f32 %v249, 0.0
  %v314 = vmax.f32 %v250, 0.0
  %v315 = vmax.f32 %v251, 0.0
  %v316 = vmax.f32 %v252, 0.0
  %v317 = vmax.f32 %v253, 0.0
  %v318 = vmax.f32 %v254, 0.0
  %v319 = vmax.f32 %v255, 0.0
  %v320 = vmax.f32 %v256, 0.0
  %v321 = vmax.f32 %v257, 0.0
  %v322 = vmax.f32 %v258, 0.0
  %v323 = vmax.f32 %v259, 0.0
  %v324 = vmax.f32 %v260, 0.0
  %v325 = vmax.f32 %v261, 0.0
  %v326 = vmax.f32 %v262, 0.0
  %v327 = vmax.f32 %v263, 0.0
  %v328 = vmax.f32 %v264, 0.0
  %v329 = vmax.f32 %v265, 0.0
  %v330 = vmax.f32 %v266, 0.0
  %v331 = vmax.f32 %v267, 0.0
  %v332 = vmax.f32 %v268, 0.0
  %v333 = vmax.f32 %v269, 0.0
  %v334 = vmax.f32 %v270, 0.0
  %v335 = vmax.f32 %v271, 0.0
  %v336 = vmax.f32 %v272, 0.0
  %v337 = vmax.f32 %v273, 0.0
  %v338 = vmax.f32 %v274, 0.0
  %v339 = vmax.f32 %v275, 0.0
  %v340 = vmax.f32 %v276, 0.0
  %v341 = vmax.f32 %v277, 0.0
  %v342 = vmax.f32 %v278, 0.0
  %v343 = vmax.f32 %v279, 0.0
  %v344 = vmax.f32 %v280, 0.0
  %v345 = vmax.f32 %v281, 0.0
  %v346 = vmax.f32 %v282, 0.0
  %v347 = vpack.c.bf16 %v284, %v283
  %v348 = vpack.c.bf16 %v286, %v285
  %v349 = vpack.c.bf16 %v288, %v287
  %v350 = vpack.c.bf16 %v290, %v289
  %v351 = vpack.c.bf16 %v292, %v291
  %v352 = vpack.c.bf16 %v294, %v293
  %v353 = vpack.c.bf16 %v296, %v295
  %v354 = vpack.c.bf16 %v298, %v297
  %v355 = vpack.c.bf16 %v300, %v299
  %v356 = vpack.c.bf16 %v302, %v301
  %v357 = vpack.c.bf16 %v304, %v303
  %v358 = vpack.c.bf16 %v306, %v305
  %v359 = vpack.c.bf16 %v308, %v307
  %v360 = vpack.c.bf16 %v310, %v309
  %v361 = vpack.c.bf16 %v312, %v311
  %v362 = vpack.c.bf16 %v314, %v313
  %v363 = vpack.c.bf16 %v316, %v315
  %v364 = vpack.c.bf16 %v318, %v317
  %v365 = vpack.c.bf16 %v320, %v319
  %v366 = vpack.c.bf16 %v322, %v321
  %v367 = vpack.c.bf16 %v324, %v323
  %v368 = vpack.c.bf16 %v326, %v325
  %v369 = vpack.c.bf16 %v328, %v327
  %v370 = vpack.c.bf16 %v330, %v329
  %v371 = vpack.c.bf16 %v332, %v331
  %v372 = vpack.c.bf16 %v334, %v333
  %v373 = vpack.c.bf16 %v336, %v335
  %v374 = vpack.c.bf16 %v338, %v337
  %v375 = vpack.c.bf16 %v340, %v339
  %v376 = vpack.c.bf16 %v342, %v341
  %v377 = vpack.c.bf16 %v344, %v343
  %v378 = vpack.c.bf16 %v346, %v345
  %v379 = vld [vmem:[%s2] sm:$0xf]
  %v380 = vld [vmem:[%s2 + $0x4] sm:$0xf]
  %v381 = vld [vmem:[%s2 + $0x8] sm:$0xf]
  %v382 = vld [vmem:[%s2 + $0xc] sm:$0xf]
  %v383 = vld [vmem:[%s2 + $0x10] sm:$0xf]
  %v384 = vld [vmem:[%s2 + $0x14] sm:$0xf]
  %v385 = vld [vmem:[%s2 + $0x18] sm:$0xf]
  %v386 = vld [vmem:[%s2 + $0x1c] sm:$0xf]
  %v387 = vld [vmem:[%s2 + $0x20] sm:$0xf]
  %v388 = vld [vmem:[%s2 + $0x24] sm:$0xf]
  %v389 = vld [vmem:[%s2 + $0x28] sm:$0xf]
  %v390 = vld [vmem:[%s2 + $0x2c] sm:$0xf]
  %v391 = vld [vmem:[%s2 + $0x30] sm:$0xf]
  %v392 = vld [vmem:[%s2 + $0x34] sm:$0xf]
  %v393 = vld [vmem:[%s2 + $0x38] sm:$0xf]
  %v394 = vld [vmem:[%s2 + $0x3c] sm:$0xf]
  %v411 = vunpack.c.l.b16 %v379
  %v412 = vunpack.c.l.b16 %v380
  %v413 = vunpack.c.l.b16 %v381
  %v414 = vunpack.c.l.b16 %v382
  %v415 = vunpack.c.l.b16 %v383
  %v416 = vunpack.c.l.b16 %v384
  %v417 = vunpack.c.l.b16 %v385
  %v418 = vunpack.c.l.b16 %v386
  %v419 = vunpack.c.l.b16 %v387
  %v420 = vunpack.c.l.b16 %v388
  %v421 = vunpack.c.l.b16 %v389
  %v422 = vunpack.c.l.b16 %v390
  %v423 = vunpack.c.l.b16 %v391
  %v424 = vunpack.c.l.b16 %v392
  %v425 = vunpack.c.l.b16 %v393
  %v426 = vunpack.c.l.b16 %v394
  %v427 = vpack.c.b16 %v412, %v411
  %v428 = vpack.c.b16 %v414, %v413
  %v429 = vpack.c.b16 %v416, %v415
  %v430 = vpack.c.b16 %v418, %v417
  %v431 = vpack.c.b16 %v420, %v419
  %v432 = vpack.c.b16 %v422, %v421
  %v433 = vpack.c.b16 %v424, %v423
  %v434 = vpack.c.b16 %v426, %v425
  %443 = vmatprep.subr.bf16.mxu0 0
  %444 = vmatpush1.bf16.msra.mxu0 %v427
  %445 = vmatprep.subr.bf16.mxu0 0
  %446 = vmatpush1.bf16.msra.mxu0 %v428
  %447 = vmatprep.subr.bf16.mxu0 0
  %448 = vmatpush1.bf16.msra.mxu0 %v429
  %449 = vmatprep.subr.bf16.mxu0 0
  %450 = vmatpush1.bf16.msra.mxu0 %v430
  %451 = vmatprep.subr.bf16.mxu0 0
  %452 = vmatpush1.bf16.msra.mxu0 %v431
  %453 = vmatprep.subr.bf16.mxu0 0
  %454 = vmatpush1.bf16.msra.mxu0 %v432
  %455 = vmatprep.subr.bf16.mxu0 0
  %456 = vmatpush1.bf16.msra.mxu0 %v433
  %457 = vmatprep.subr.bf16.mxu0 0
  %458 = vmatpush1.bf16.msra.mxu0 %v434
  %459 = vmatprep.subr.bf16.mxu0 0
  %460 = vmatpush1.bf16.msra.mxu0 0
  %461 = vmatprep.subr.bf16.mxu0 0
  %462 = vmatpush1.bf16.msra.mxu0 0
  %463 = vmatprep.subr.bf16.mxu0 0
  %464 = vmatpush1.bf16.msra.mxu0 0
  %465 = vmatprep.subr.bf16.mxu0 0
  %466 = vmatpush1.bf16.msra.mxu0 0
  %467 = vmatprep.subr.bf16.mxu0 0
  %468 = vmatpush1.bf16.msra.mxu0 0
  %469 = vmatprep.subr.bf16.mxu0 0
  %470 = vmatpush1.bf16.msra.mxu0 0
  %471 = vmatprep.subr.bf16.mxu0 0
  %472 = vmatpush1.bf16.msra.mxu0 0
  %473 = vmatprep.subr.bf16.mxu0 0
  %474 = vmatpush1.bf16.msra.mxu0 0
  %475 = vmatprep.mubr.bf16.mxu0 0
  %476 = vmatmul.mubr.bf16.gmra.mrb[0].mxu0 %v347
  %v477 = vpop.f32.mrb[0].mxu0
  %v478 = vadd.f32 0.0, %v477
  %v479 = vpop.f32.mrb[0].mxu0
  %v480 = vpop.f32.mrb[0].mxu0
  %v481 = vadd.f32 0.0, %v480
  %v482 = vpop.f32.mrb[0].mxu0
  %483 = vmatprep.mubr.bf16.mxu0 0
  %484 = vmatmul.mubr.bf16.gmra.mrb[0].mxu0 %v348
  %v485 = vpop.f32.mrb[0].mxu0
  %v486 = vadd.f32 0.0, %v485
  %v487 = vpop.f32.mrb[0].mxu0
  %v488 = vpop.f32.mrb[0].mxu0
  %v489 = vadd.f32 0.0, %v488
  %v490 = vpop.f32.mrb[0].mxu0
  %491 = vmatprep.mubr.bf16.mxu0 0
  %492 = vmatmul.mubr.bf16.gmra.mrb[0].mxu0 %v349
  %v493 = vpop.f32.mrb[0].mxu0
  %v494 = vadd.f32 0.0, %v493
  %v495 = vpop.f32.mrb[0].mxu0
  %v496 = vpop.f32.mrb[0].mxu0
  %v497 = vadd.f32 0.0, %v496
  %v498 = vpop.f32.mrb[0].mxu0
  %499 = vmatprep.mubr.bf16.mxu0 0
  %500 = vmatmul.mubr.bf16.gmra.mrb[0].mxu0 %v350
  %v501 = vpop.f32.mrb[0].mxu0
  %v502 = vadd.f32 0.0, %v501
  %v503 = vpop.f32.mrb[0].mxu0
  %v504 = vpop.f32.mrb[0].mxu0
  %v505 = vadd.f32 0.0, %v504
  %v506 = vpop.f32.mrb[0].mxu0
  %507 = vmatprep.mubr.bf16.mxu0 0
  %508 = vmatmul.mubr.bf16.gmra.mrb[0].mxu0 %v351
  %v509 = vpop.f32.mrb[0].mxu0
  %v510 = vadd.f32 0.0, %v509
  %v511 = vpop.f32.mrb[0].mxu0
  %v512 = vpop.f32.mrb[0].mxu0
  %v513 = vadd.f32 0.0, %v512
  %v514 = vpop.f32.mrb[0].mxu0
  %515 = vmatprep.mubr.bf16.mxu0 0
  %516 = vmatmul.mubr.bf16.gmra.mrb[0].mxu0 %v352
  %v517 = vpop.f32.mrb[0].mxu0
  %v518 = vadd.f32 0.0, %v517
  %v519 = vpop.f32.mrb[0].mxu0
  %v520 = vpop.f32.mrb[0].mxu0
  %v521 = vadd.f32 0.0, %v520
  %v522 = vpop.f32.mrb[0].mxu0
  %523 = vmatprep.mubr.bf16.mxu0 0
  %524 = vmatmul.mubr.bf16.gmra.mrb[0].mxu0 %v353
  %v525 = vpop.f32.mrb[0].mxu0
  %v526 = vadd.f32 0.0, %v525
  %v527 = vpop.f32.mrb[0].mxu0
  %v528 = vpop.f32.mrb[0].mxu0
  %v529 = vadd.f32 0.0, %v528
  %v530 = vpop.f32.mrb[0].mxu0
  %531 = vmatprep.mubr.bf16.mxu0 0
  %532 = vmatmul.mubr.bf16.gmra.mrb[0].mxu0 %v354
  %v533 = vpop.f32.mrb[0].mxu0
  %v534 = vadd.f32 0.0, %v533
  %v535 = vpop.f32.mrb[0].mxu0
  %v536 = vpop.f32.mrb[0].mxu0
  %v537 = vadd.f32 0.0, %v536
  %v538 = vpop.f32.mrb[0].mxu0
  %539 = vmatprep.mubr.bf16.mxu0 0
  %540 = vmatmul.mubr.bf16.gmra.mrb[0].mxu0 %v355
  %v541 = vpop.f32.mrb[0].mxu0
  %v542 = vadd.f32 0.0, %v541
  %v543 = vpop.f32.mrb[0].mxu0
  %v544 = vpop.f32.mrb[0].mxu0
  %v545 = vadd.f32 0.0, %v544
  %v546 = vpop.f32.mrb[0].mxu0
  %547 = vmatprep.mubr.bf16.mxu0 0
  %548 = vmatmul.mubr.bf16.gmra.mrb[0].mxu0 %v356
  %v549 = vpop.f32.mrb[0].mxu0
  %v550 = vadd.f32 0.0, %v549
  %v551 = vpop.f32.mrb[0].mxu0
  %v552 = vpop.f32.mrb[0].mxu0
  %v553 = vadd.f32 0.0, %v552
  %v554 = vpop.f32.mrb[0].mxu0
  %555 = vmatprep.mubr.bf16.mxu0 0
  %556 = vmatmul.mubr.bf16.gmra.mrb[0].mxu0 %v357
  %v557 = vpop.f32.mrb[0].mxu0
  %v558 = vadd.f32 0.0, %v557
  %v559 = vpop.f32.mrb[0].mxu0
  %v560 = vpop.f32.mrb[0].mxu0
  %v561 = vadd.f32 0.0, %v560
  %v562 = vpop.f32.mrb[0].mxu0
  %563 = vmatprep.mubr.bf16.mxu0 0
  %564 = vmatmul.mubr.bf16.gmra.mrb[0].mxu0 %v358
  %v565 = vpop.f32.mrb[0].mxu0
  %v566 = vadd.f32 0.0, %v565
  %v567 = vpop.f32.mrb[0].mxu0
  %v568 = vpop.f32.mrb[0].mxu0
  %v569 = vadd.f32 0.0, %v568
  %v570 = vpop.f32.mrb[0].mxu0
  %571 = vmatprep.mubr.bf16.mxu0 0
  %572 = vmatmul.mubr.bf16.gmra.mrb[0].mxu0 %v359
  %v573 = vpop.f32.mrb[0].mxu0
  %v574 = vadd.f32 0.0, %v573
  %v575 = vpop.f32.mrb[0].mxu0
  %v576 = vpop.f32.mrb[0].mxu0
  %v577 = vadd.f32 0.0, %v576
  %v578 = vpop.f32.mrb[0].mxu0
  %579 = vmatprep.mubr.bf16.mxu0 0
  %580 = vmatmul.mubr.bf16.gmra.mrb[0].mxu0 %v360
  %v581 = vpop.f32.mrb[0].mxu0
  %v582 = vadd.f32 0.0, %v581
  %v583 = vpop.f32.mrb[0].mxu0
  %v584 = vpop.f32.mrb[0].mxu0
  %v585 = vadd.f32 0.0, %v584
  %v586 = vpop.f32.mrb[0].mxu0
  %587 = vmatprep.mubr.bf16.mxu0 0
  %588 = vmatmul.mubr.bf16.gmra.mrb[0].mxu0 %v361
  %v589 = vpop.f32.mrb[0].mxu0
  %v590 = vadd.f32 0.0, %v589
  %v591 = vpop.f32.mrb[0].mxu0
  %v592 = vpop.f32.mrb[0].mxu0
  %v593 = vadd.f32 0.0, %v592
  %v594 = vpop.f32.mrb[0].mxu0
  %595 = vmatprep.mubr.bf16.mxu0 0
  %596 = vmatmul.mubr.bf16.gmra.mrb[0].mxu0 %v362
  %v597 = vpop.f32.mrb[0].mxu0
  %v598 = vadd.f32 0.0, %v597
  %v599 = vpop.f32.mrb[0].mxu0
  %v600 = vpop.f32.mrb[0].mxu0
  %v601 = vadd.f32 0.0, %v600
  %v602 = vpop.f32.mrb[0].mxu0
  %603 = vmatprep.mubr.bf16.mxu0 0
  %604 = vmatmul.mubr.bf16.gmra.mrb[0].mxu0 %v363
  %v605 = vpop.f32.mrb[0].mxu0
  %v606 = vadd.f32 0.0, %v605
  %v607 = vpop.f32.mrb[0].mxu0
  %v608 = vpop.f32.mrb[0].mxu0
  %v609 = vadd.f32 0.0, %v608
  %v610 = vpop.f32.mrb[0].mxu0
  %611 = vmatprep.mubr.bf16.mxu0 0
  %612 = vmatmul.mubr.bf16.gmra.mrb[0].mxu0 %v364
  %v613 = vpop.f32.mrb[0].mxu0
  %v614 = vadd.f32 0.0, %v613
  %v615 = vpop.f32.mrb[0].mxu0
  %v616 = vpop.f32.mrb[0].mxu0
  %v617 = vadd.f32 0.0, %v616
  %v618 = vpop.f32.mrb[0].mxu0
  %619 = vmatprep.mubr.bf16.mxu0 0
  %620 = vmatmul.mubr.bf16.gmra.mrb[0].mxu0 %v365
  %v621 = vpop.f32.mrb[0].mxu0
  %v622 = vadd.f32 0.0, %v621
  %v623 = vpop.f32.mrb[0].mxu0
  %v624 = vpop.f32.mrb[0].mxu0
  %v625 = vadd.f32 0.0, %v624
  %v626 = vpop.f32.mrb[0].mxu0
  %627 = vmatprep.mubr.bf16.mxu0 0
  %628 = vmatmul.mubr.bf16.gmra.mrb[0].mxu0 %v366
  %v629 = vpop.f32.mrb[0].mxu0
  %v630 = vadd.f32 0.0, %v629
  %v631 = vpop.f32.mrb[0].mxu0
  %v632 = vpop.f32.mrb[0].mxu0
  %v633 = vadd.f32 0.0, %v632
  %v634 = vpop.f32.mrb[0].mxu0
  %635 = vmatprep.mubr.bf16.mxu0 0
  %636 = vmatmul.mubr.bf16.gmra.mrb[0].mxu0 %v367
  %v637 = vpop.f32.mrb[0].mxu0
  %v638 = vadd.f32 0.0, %v637
  %v639 = vpop.f32.mrb[0].mxu0
  %v640 = vpop.f32.mrb[0].mxu0
  %v641 = vadd.f32 0.0, %v640
  %v642 = vpop.f32.mrb[0].mxu0
  %643 = vmatprep.mubr.bf16.mxu0 0
  %644 = vmatmul.mubr.bf16.gmra.mrb[0].mxu0 %v368
  %v645 = vpop.f32.mrb[0].mxu0
  %v646 = vadd.f32 0.0, %v645
  %v647 = vpop.f32.mrb[0].mxu0
  %v648 = vpop.f32.mrb[0].mxu0
  %v649 = vadd.f32 0.0, %v648
  %v650 = vpop.f32.mrb[0].mxu0
  %651 = vmatprep.mubr.bf16.mxu0 0
  %652 = vmatmul.mubr.bf16.gmra.mrb[0].mxu0 %v369
  %v653 = vpop.f32.mrb[0].mxu0
  %v654 = vadd.f32 0.0, %v653
  %v655 = vpop.f32.mrb[0].mxu0
  %v656 = vpop.f32.mrb[0].mxu0
  %v657 = vadd.f32 0.0, %v656
  %v658 = vpop.f32.mrb[0].mxu0
  %659 = vmatprep.mubr.bf16.mxu0 0
  %660 = vmatmul.mubr.bf16.gmra.mrb[0].mxu0 %v370
  %v661 = vpop.f32.mrb[0].mxu0
  %v662 = vadd.f32 0.0, %v661
  %v663 = vpop.f32.mrb[0].mxu0
  %v664 = vpop.f32.mrb[0].mxu0
  %v665 = vadd.f32 0.0, %v664
  %v666 = vpop.f32.mrb[0].mxu0
  %667 = vmatprep.mubr.bf16.mxu0 0
  %668 = vmatmul.mubr.bf16.gmra.mrb[0].mxu0 %v371
  %v669 = vpop.f32.mrb[0].mxu0
  %v670 = vadd.f32 0.0, %v669
  %v671 = vpop.f32.mrb[0].mxu0
  %v672 = vpop.f32.mrb[0].mxu0
  %v673 = vadd.f32 0.0, %v672
  %v674 = vpop.f32.mrb[0].mxu0
  %675 = vmatprep.mubr.bf16.mxu0 0
  %676 = vmatmul.mubr.bf16.gmra.mrb[0].mxu0 %v372
  %v677 = vpop.f32.mrb[0].mxu0
  %v678 = vadd.f32 0.0, %v677
  %v679 = vpop.f32.mrb[0].mxu0
  %v680 = vpop.f32.mrb[0].mxu0
  %v681 = vadd.f32 0.0, %v680
  %v682 = vpop.f32.mrb[0].mxu0
  %683 = vmatprep.mubr.bf16.mxu0 0
  %684 = vmatmul.mubr.bf16.gmra.mrb[0].mxu0 %v373
  %v685 = vpop.f32.mrb[0].mxu0
  %v686 = vadd.f32 0.0, %v685
  %v687 = vpop.f32.mrb[0].mxu0
  %v688 = vpop.f32.mrb[0].mxu0
  %v689 = vadd.f32 0.0, %v688
  %v690 = vpop.f32.mrb[0].mxu0
  %691 = vmatprep.mubr.bf16.mxu0 0
  %692 = vmatmul.mubr.bf16.gmra.mrb[0].mxu0 %v374
  %v693 = vpop.f32.mrb[0].mxu0
  %v694 = vadd.f32 0.0, %v693
  %v695 = vpop.f32.mrb[0].mxu0
  %v696 = vpop.f32.mrb[0].mxu0
  %v697 = vadd.f32 0.0, %v696
  %v698 = vpop.f32.mrb[0].mxu0
  %699 = vmatprep.mubr.bf16.mxu0 0
  %700 = vmatmul.mubr.bf16.gmra.mrb[0].mxu0 %v375
  %v701 = vpop.f32.mrb[0].mxu0
  %v702 = vadd.f32 0.0, %v701
  %v703 = vpop.f32.mrb[0].mxu0
  %v704 = vpop.f32.mrb[0].mxu0
  %v705 = vadd.f32 0.0, %v704
  %v706 = vpop.f32.mrb[0].mxu0
  %707 = vmatprep.mubr.bf16.mxu0 0
  %708 = vmatmul.mubr.bf16.gmra.mrb[0].mxu0 %v376
  %v709 = vpop.f32.mrb[0].mxu0
  %v710 = vadd.f32 0.0, %v709
  %v711 = vpop.f32.mrb[0].mxu0
  %v712 = vpop.f32.mrb[0].mxu0
  %v713 = vadd.f32 0.0, %v712
  %v714 = vpop.f32.mrb[0].mxu0
  %715 = vmatprep.mubr.bf16.mxu0 0
  %716 = vmatmul.mubr.bf16.gmra.mrb[0].mxu0 %v377
  %v717 = vpop.f32.mrb[0].mxu0
  %v718 = vadd.f32 0.0, %v717
  %v719 = vpop.f32.mrb[0].mxu0
  %v720 = vpop.f32.mrb[0].mxu0
  %v721 = vadd.f32 0.0, %v720
  %v722 = vpop.f32.mrb[0].mxu0
  %723 = vmatprep.mubr.bf16.mxu0 0
  %724 = vmatmul.mubr.bf16.gmra.mrb[0].mxu0 %v378
  %v725 = vpop.f32.mrb[0].mxu0
  %v726 = vadd.f32 0.0, %v725
  %v727 = vpop.f32.mrb[0].mxu0
  %v728 = vpop.f32.mrb[0].mxu0
  %v729 = vadd.f32 0.0, %v728
  %v730 = vpop.f32.mrb[0].mxu0
  %731 = vdwg.mxu0
  %v732 = vadd.f32 %v478, %v481
  %v733 = vadd.f32 %v732, %v486
  %v734 = vadd.f32 %v733, %v489
  %v735 = vadd.f32 %v734, %v494
  %v736 = vadd.f32 %v735, %v497
  %v737 = vadd.f32 %v736, %v502
  %v738 = vadd.f32 %v737, %v505
  %v739 = vadd.f32 %v738, %v510
  %v740 = vadd.f32 %v739, %v513
  %v741 = vadd.f32 %v740, %v518
  %v742 = vadd.f32 %v741, %v521
  %v743 = vadd.f32 %v742, %v526
  %v744 = vadd.f32 %v743, %v529
  %v745 = vadd.f32 %v744, %v534
  %v746 = vadd.f32 %v745, %v537
  %v747 = vadd.f32 %v746, %v542
  %v748 = vadd.f32 %v747, %v545
  %v749 = vadd.f32 %v748, %v550
  %v750 = vadd.f32 %v749, %v553
  %v751 = vadd.f32 %v750, %v558
  %v752 = vadd.f32 %v751, %v561
  %v753 = vadd.f32 %v752, %v566
  %v754 = vadd.f32 %v753, %v569
  %v755 = vadd.f32 %v754, %v574
  %v756 = vadd.f32 %v755, %v577
  %v757 = vadd.f32 %v756, %v582
  %v758 = vadd.f32 %v757, %v585
  %v759 = vadd.f32 %v758, %v590
  %v760 = vadd.f32 %v759, %v593
  %v761 = vadd.f32 %v760, %v598
  %v762 = vadd.f32 %v761, %v601
  %v763 = vadd.f32 %v762, %v606
  %v764 = vadd.f32 %v763, %v609
  %v765 = vadd.f32 %v764, %v614
  %v766 = vadd.f32 %v765, %v617
  %v767 = vadd.f32 %v766, %v622
  %v768 = vadd.f32 %v767, %v625
  %v769 = vadd.f32 %v768, %v630
  %v770 = vadd.f32 %v769, %v633
  %v771 = vadd.f32 %v770, %v638
  %v772 = vadd.f32 %v771, %v641
  %v773 = vadd.f32 %v772, %v646
  %v774 = vadd.f32 %v773, %v649
  %v775 = vadd.f32 %v774, %v654
  %v776 = vadd.f32 %v775, %v657
  %v777 = vadd.f32 %v776, %v662
  %v778 = vadd.f32 %v777, %v665
  %v779 = vadd.f32 %v778, %v670
  %v780 = vadd.f32 %v779, %v673
  %v781 = vadd.f32 %v780, %v678
  %v782 = vadd.f32 %v781, %v681
  %v783 = vadd.f32 %v782, %v686
  %v784 = vadd.f32 %v783, %v689
  %v785 = vadd.f32 %v784, %v694
  %v786 = vadd.f32 %v785, %v697
  %v787 = vadd.f32 %v786, %v702
  %v788 = vadd.f32 %v787, %v705
  %v789 = vadd.f32 %v788, %v710
  %v790 = vadd.f32 %v789, %v713
  %v791 = vadd.f32 %v790, %v718
  %v792 = vadd.f32 %v791, %v721
  %v793 = vadd.f32 %v792, %v726
  %v794 = vadd.f32 %v793, %v729
  %v795 = vrot.slane %v794, 4
  %v796 = vadd.f32 %v794, %v795
  %v797 = vrot.slane %v796, 2
  %v798 = vadd.f32 %v796, %v797
  %v799 = vrot.slane %v798, 1
  %v800 = vadd.f32 %v798, %v799
  %v801 = vrcp.pop 512.0
  %v802 = vmul.f32 %v800, %v801
  %v803 = vsub.f32 %v478, %v802
  %v804 = vsub.f32 %v481, %v802
  %v805 = vsub.f32 %v486, %v802
  %v806 = vsub.f32 %v489, %v802
  %v807 = vsub.f32 %v494, %v802
  %v808 = vsub.f32 %v497, %v802
  %v809 = vsub.f32 %v502, %v802
  %v810 = vsub.f32 %v505, %v802
  %v811 = vsub.f32 %v510, %v802
  %v812 = vsub.f32 %v513, %v802
  %v813 = vsub.f32 %v518, %v802
  %v814 = vsub.f32 %v521, %v802
  %v815 = vsub.f32 %v526, %v802
  %v816 = vsub.f32 %v529, %v802
  %v817 = vsub.f32 %v534, %v802
  %v818 = vsub.f32 %v537, %v802
  %v819 = vsub.f32 %v542, %v802
  %v820 = vsub.f32 %v545, %v802
  %v821 = vsub.f32 %v550, %v802
  %v822 = vsub.f32 %v553, %v802
  %v823 = vsub.f32 %v558, %v802
  %v824 = vsub.f32 %v561, %v802
  %v825 = vsub.f32 %v566, %v802
  %v826 = vsub.f32 %v569, %v802
  %v827 = vsub.f32 %v574, %v802
  %v828 = vsub.f32 %v577, %v802
  %v829 = vsub.f32 %v582, %v802
  %v830 = vsub.f32 %v585, %v802
  %v831 = vsub.f32 %v590, %v802
  %v832 = vsub.f32 %v593, %v802
  %v833 = vsub.f32 %v598, %v802
  %v834 = vsub.f32 %v601, %v802
  %v835 = vsub.f32 %v606, %v802
  %v836 = vsub.f32 %v609, %v802
  %v837 = vsub.f32 %v614, %v802
  %v838 = vsub.f32 %v617, %v802
  %v839 = vsub.f32 %v622, %v802
  %v840 = vsub.f32 %v625, %v802
  %v841 = vsub.f32 %v630, %v802
  %v842 = vsub.f32 %v633, %v802
  %v843 = vsub.f32 %v638, %v802
  %v844 = vsub.f32 %v641, %v802
  %v845 = vsub.f32 %v646, %v802
  %v846 = vsub.f32 %v649, %v802
  %v847 = vsub.f32 %v654, %v802
  %v848 = vsub.f32 %v657, %v802
  %v849 = vsub.f32 %v662, %v802
  %v850 = vsub.f32 %v665, %v802
  %v851 = vsub.f32 %v670, %v802
  %v852 = vsub.f32 %v673, %v802
  %v853 = vsub.f32 %v678, %v802
  %v854 = vsub.f32 %v681, %v802
  %v855 = vsub.f32 %v686, %v802
  %v856 = vsub.f32 %v689, %v802
  %v857 = vsub.f32 %v694, %v802
  %v858 = vsub.f32 %v697, %v802
  %v859 = vsub.f32 %v702, %v802
  %v860 = vsub.f32 %v705, %v802
  %v861 = vsub.f32 %v710, %v802
  %v862 = vsub.f32 %v713, %v802
  %v863 = vsub.f32 %v718, %v802
  %v864 = vsub.f32 %v721, %v802
  %v865 = vsub.f32 %v726, %v802
  %v866 = vsub.f32 %v729, %v802
  %v867 = vmul.f32 %v803, %v803
  %v868 = vmul.f32 %v804, %v804
  %v869 = vmul.f32 %v805, %v805
  %v870 = vmul.f32 %v806, %v806
  %v871 = vmul.f32 %v807, %v807
  %v872 = vmul.f32 %v808, %v808
  %v873 = vmul.f32 %v809, %v809
  %v874 = vmul.f32 %v810, %v810
  %v875 = vmul.f32 %v811, %v811
  %v876 = vmul.f32 %v812, %v812
  %v877 = vmul.f32 %v813, %v813
  %v878 = vmul.f32 %v814, %v814
  %v879 = vmul.f32 %v815, %v815
  %v880 = vmul.f32 %v816, %v816
  %v881 = vmul.f32 %v817, %v817
  %v882 = vmul.f32 %v818, %v818
  %v883 = vmul.f32 %v819, %v819
  %v884 = vmul.f32 %v820, %v820
  %v885 = vmul.f32 %v821, %v821
  %v886 = vmul.f32 %v822, %v822
  %v887 = vmul.f32 %v823, %v823
  %v888 = vmul.f32 %v824, %v824
  %v889 = vmul.f32 %v825, %v825
  %v890 = vmul.f32 %v826, %v826
  %v891 = vmul.f32 %v827, %v827
  %v892 = vmul.f32 %v828, %v828
  %v893 = vmul.f32 %v829, %v829
  %v894 = vmul.f32 %v830, %v830
  %v895 = vmul.f32 %v831, %v831
  %v896 = vmul.f32 %v832, %v832
  %v897 = vmul.f32 %v833, %v833
  %v898 = vmul.f32 %v834, %v834
  %v899 = vmul.f32 %v835, %v835
  %v900 = vmul.f32 %v836, %v836
  %v901 = vmul.f32 %v837, %v837
  %v902 = vmul.f32 %v838, %v838
  %v903 = vmul.f32 %v839, %v839
  %v904 = vmul.f32 %v840, %v840
  %v905 = vmul.f32 %v841, %v841
  %v906 = vmul.f32 %v842, %v842
  %v907 = vmul.f32 %v843, %v843
  %v908 = vmul.f32 %v844, %v844
  %v909 = vmul.f32 %v845, %v845
  %v910 = vmul.f32 %v846, %v846
  %v911 = vmul.f32 %v847, %v847
  %v912 = vmul.f32 %v848, %v848
  %v913 = vmul.f32 %v849, %v849
  %v914 = vmul.f32 %v850, %v850
  %v915 = vmul.f32 %v851, %v851
  %v916 = vmul.f32 %v852, %v852
  %v917 = vmul.f32 %v853, %v853
  %v918 = vmul.f32 %v854, %v854
  %v919 = vmul.f32 %v855, %v855
  %v920 = vmul.f32 %v856, %v856
  %v921 = vmul.f32 %v857, %v857
  %v922 = vmul.f32 %v858, %v858
  %v923 = vmul.f32 %v859, %v859
  %v924 = vmul.f32 %v860, %v860
  %v925 = vmul.f32 %v861, %v861
  %v926 = vmul.f32 %v862, %v862
  %v927 = vmul.f32 %v863, %v863
  %v928 = vmul.f32 %v864, %v864
  %v929 = vmul.f32 %v865, %v865
  %v930 = vmul.f32 %v866, %v866
  %v931 = vadd.f32 %v867, %v868
  %v932 = vadd.f32 %v931, %v869
  %v933 = vadd.f32 %v932, %v870
  %v934 = vadd.f32 %v933, %v871
  %v935 = vadd.f32 %v934, %v872
  %v936 = vadd.f32 %v935, %v873
  %v937 = vadd.f32 %v936, %v874
  %v938 = vadd.f32 %v937, %v875
  %v939 = vadd.f32 %v938, %v876
  %v940 = vadd.f32 %v939, %v877
  %v941 = vadd.f32 %v940, %v878
  %v942 = vadd.f32 %v941, %v879
  %v943 = vadd.f32 %v942, %v880
  %v944 = vadd.f32 %v943, %v881
  %v945 = vadd.f32 %v944, %v882
  %v946 = vadd.f32 %v945, %v883
  %v947 = vadd.f32 %v946, %v884
  %v948 = vadd.f32 %v947, %v885
  %v949 = vadd.f32 %v948, %v886
  %v950 = vadd.f32 %v949, %v887
  %v951 = vadd.f32 %v950, %v888
  %v952 = vadd.f32 %v951, %v889
  %v953 = vadd.f32 %v952, %v890
  %v954 = vadd.f32 %v953, %v891
  %v955 = vadd.f32 %v954, %v892
  %v956 = vadd.f32 %v955, %v893
  %v957 = vadd.f32 %v956, %v894
  %v958 = vadd.f32 %v957, %v895
  %v959 = vadd.f32 %v958, %v896
  %v960 = vadd.f32 %v959, %v897
  %v961 = vadd.f32 %v960, %v898
  %v962 = vadd.f32 %v961, %v899
  %v963 = vadd.f32 %v962, %v900
  %v964 = vadd.f32 %v963, %v901
  %v965 = vadd.f32 %v964, %v902
  %v966 = vadd.f32 %v965, %v903
  %v967 = vadd.f32 %v966, %v904
  %v968 = vadd.f32 %v967, %v905
  %v969 = vadd.f32 %v968, %v906
  %v970 = vadd.f32 %v969, %v907
  %v971 = vadd.f32 %v970, %v908
  %v972 = vadd.f32 %v971, %v909
  %v973 = vadd.f32 %v972, %v910
  %v974 = vadd.f32 %v973, %v911
  %v975 = vadd.f32 %v974, %v912
  %v976 = vadd.f32 %v975, %v913
  %v977 = vadd.f32 %v976, %v914
  %v978 = vadd.f32 %v977, %v915
  %v979 = vadd.f32 %v978, %v916
  %v980 = vadd.f32 %v979, %v917
  %v981 = vadd.f32 %v980, %v918
  %v982 = vadd.f32 %v981, %v919
  %v983 = vadd.f32 %v982, %v920
  %v984 = vadd.f32 %v983, %v921
  %v985 = vadd.f32 %v984, %v922
  %v986 = vadd.f32 %v985, %v923
  %v987 = vadd.f32 %v986, %v924
  %v988 = vadd.f32 %v987, %v925
  %v989 = vadd.f32 %v988, %v926
  %v990 = vadd.f32 %v989, %v927
  %v991 = vadd.f32 %v990, %v928
  %v992 = vadd.f32 %v991, %v929
  %v993 = vadd.f32 %v992, %v930
  %v994 = vrot.slane %v993, 4
  %v995 = vadd.f32 %v993, %v994
  %v996 = vrot.slane %v995, 2
  %v997 = vadd.f32 %v995, %v996
  %v998 = vrot.slane %v997, 1
  %v999 = vadd.f32 %v997, %v998
  %vm1000 = vcmask 1040384
  %v1001 = vsel %vm1000, %v800, %v999
  %1002 = vst [vmem:[%s4] sm:$0x3] %v1001
  %v1003 = vpack.c.bf16 %v481, %v478
  %v1004 = vpack.c.bf16 %v489, %v486
  %v1005 = vpack.c.bf16 %v497, %v494
  %v1006 = vpack.c.bf16 %v505, %v502
  %v1007 = vpack.c.bf16 %v513, %v510
  %v1008 = vpack.c.bf16 %v521, %v518
  %v1009 = vpack.c.bf16 %v529, %v526
  %v1010 = vpack.c.bf16 %v537, %v534
  %v1011 = vpack.c.bf16 %v545, %v542
  %v1012 = vpack.c.bf16 %v553, %v550
  %v1013 = vpack.c.bf16 %v561, %v558
  %v1014 = vpack.c.bf16 %v569, %v566
  %v1015 = vpack.c.bf16 %v577, %v574
  %v1016 = vpack.c.bf16 %v585, %v582
  %v1017 = vpack.c.bf16 %v593, %v590
  %v1018 = vpack.c.bf16 %v601, %v598
  %v1019 = vpack.c.bf16 %v609, %v606
  %v1020 = vpack.c.bf16 %v617, %v614
  %v1021 = vpack.c.bf16 %v625, %v622
  %v1022 = vpack.c.bf16 %v633, %v630
  %v1023 = vpack.c.bf16 %v641, %v638
  %v1024 = vpack.c.bf16 %v649, %v646
  %v1025 = vpack.c.bf16 %v657, %v654
  %v1026 = vpack.c.bf16 %v665, %v662
  %v1027 = vpack.c.bf16 %v673, %v670
  %v1028 = vpack.c.bf16 %v681, %v678
  %v1029 = vpack.c.bf16 %v689, %v686
  %v1030 = vpack.c.bf16 %v697, %v694
  %v1031 = vpack.c.bf16 %v705, %v702
  %v1032 = vpack.c.bf16 %v713, %v710
  %v1033 = vpack.c.bf16 %v721, %v718
  %v1034 = vpack.c.bf16 %v729, %v726
  %v1067 = vunpack.c.l.b16 %v1003
  %v1068 = vunpack.c.h.b16 %v1003
  %v1069 = vunpack.c.l.b16 %v1004
  %v1070 = vunpack.c.h.b16 %v1004
  %v1071 = vunpack.c.l.b16 %v1005
  %v1072 = vunpack.c.h.b16 %v1005
  %v1073 = vunpack.c.l.b16 %v1006
  %v1074 = vunpack.c.h.b16 %v1006
  %v1075 = vunpack.c.l.b16 %v1007
  %v1076 = vunpack.c.h.b16 %v1007
  %v1077 = vunpack.c.l.b16 %v1008
  %v1078 = vunpack.c.h.b16 %v1008
  %v1079 = vunpack.c.l.b16 %v1009
  %v1080 = vunpack.c.h.b16 %v1009
  %v1081 = vunpack.c.l.b16 %v1010
  %v1082 = vunpack.c.h.b16 %v1010
  %v1083 = vunpack.c.l.b16 %v1011
  %v1084 = vunpack.c.h.b16 %v1011
  %v1085 = vunpack.c.l.b16 %v1012
  %v1086 = vunpack.c.h.b16 %v1012
  %v1087 = vunpack.c.l.b16 %v1013
  %v1088 = vunpack.c.h.b16 %v1013
  %v1089 = vunpack.c.l.b16 %v1014
  %v1090 = vunpack.c.h.b16 %v1014
  %v1091 = vunpack.c.l.b16 %v1015
  %v1092 = vunpack.c.h.b16 %v1015
  %v1093 = vunpack.c.l.b16 %v1016
  %v1094 = vunpack.c.h.b16 %v1016
  %v1095 = vunpack.c.l.b16 %v1017
  %v1096 = vunpack.c.h.b16 %v1017
  %v1097 = vunpack.c.l.b16 %v1018
  %v1098 = vunpack.c.h.b16 %v1018
  %v1099 = vunpack.c.l.b16 %v1019
  %v1100 = vunpack.c.h.b16 %v1019
  %v1101 = vunpack.c.l.b16 %v1020
  %v1102 = vunpack.c.h.b16 %v1020
  %v1103 = vunpack.c.l.b16 %v1021
  %v1104 = vunpack.c.h.b16 %v1021
  %v1105 = vunpack.c.l.b16 %v1022
  %v1106 = vunpack.c.h.b16 %v1022
  %v1107 = vunpack.c.l.b16 %v1023
  %v1108 = vunpack.c.h.b16 %v1023
  %v1109 = vunpack.c.l.b16 %v1024
  %v1110 = vunpack.c.h.b16 %v1024
  %v1111 = vunpack.c.l.b16 %v1025
  %v1112 = vunpack.c.h.b16 %v1025
  %v1113 = vunpack.c.l.b16 %v1026
  %v1114 = vunpack.c.h.b16 %v1026
  %v1115 = vunpack.c.l.b16 %v1027
  %v1116 = vunpack.c.h.b16 %v1027
  %v1117 = vunpack.c.l.b16 %v1028
  %v1118 = vunpack.c.h.b16 %v1028
  %v1119 = vunpack.c.l.b16 %v1029
  %v1120 = vunpack.c.h.b16 %v1029
  %v1121 = vunpack.c.l.b16 %v1030
  %v1122 = vunpack.c.h.b16 %v1030
  %v1123 = vunpack.c.l.b16 %v1031
  %v1124 = vunpack.c.h.b16 %v1031
  %v1125 = vunpack.c.l.b16 %v1032
  %v1126 = vunpack.c.h.b16 %v1032
  %v1127 = vunpack.c.l.b16 %v1033
  %v1128 = vunpack.c.h.b16 %v1033
  %v1129 = vunpack.c.l.b16 %v1034
  %v1130 = vunpack.c.h.b16 %v1034
  %v1131 = vpack.c.b16 %v1067, %v1067
  %v1132 = vpack.c.b16 %v1068, %v1068
  %v1133 = vpack.c.b16 %v1069, %v1069
  %v1134 = vpack.c.b16 %v1070, %v1070
  %v1135 = vpack.c.b16 %v1071, %v1071
  %v1136 = vpack.c.b16 %v1072, %v1072
  %v1137 = vpack.c.b16 %v1073, %v1073
  %v1138 = vpack.c.b16 %v1074, %v1074
  %v1139 = vpack.c.b16 %v1075, %v1075
  %v1140 = vpack.c.b16 %v1076, %v1076
  %v1141 = vpack.c.b16 %v1077, %v1077
  %v1142 = vpack.c.b16 %v1078, %v1078
  %v1143 = vpack.c.b16 %v1079, %v1079
  %v1144 = vpack.c.b16 %v1080, %v1080
  %v1145 = vpack.c.b16 %v1081, %v1081
  %v1146 = vpack.c.b16 %v1082, %v1082
  %v1147 = vpack.c.b16 %v1083, %v1083
  %v1148 = vpack.c.b16 %v1084, %v1084
  %v1149 = vpack.c.b16 %v1085, %v1085
  %v1150 = vpack.c.b16 %v1086, %v1086
  %v1151 = vpack.c.b16 %v1087, %v1087
  %v1152 = vpack.c.b16 %v1088, %v1088
  %v1153 = vpack.c.b16 %v1089, %v1089
  %v1154 = vpack.c.b16 %v1090, %v1090
  %v1155 = vpack.c.b16 %v1091, %v1091
  %v1156 = vpack.c.b16 %v1092, %v1092
  %v1157 = vpack.c.b16 %v1093, %v1093
  %v1158 = vpack.c.b16 %v1094, %v1094
  %v1159 = vpack.c.b16 %v1095, %v1095
  %v1160 = vpack.c.b16 %v1096, %v1096
  %v1161 = vpack.c.b16 %v1097, %v1097
  %v1162 = vpack.c.b16 %v1098, %v1098
  %v1163 = vpack.c.b16 %v1099, %v1099
  %v1164 = vpack.c.b16 %v1100, %v1100
  %v1165 = vpack.c.b16 %v1101, %v1101
  %v1166 = vpack.c.b16 %v1102, %v1102
  %v1167 = vpack.c.b16 %v1103, %v1103
  %v1168 = vpack.c.b16 %v1104, %v1104
  %v1169 = vpack.c.b16 %v1105, %v1105
  %v1170 = vpack.c.b16 %v1106, %v1106
  %v1171 = vpack.c.b16 %v1107, %v1107
  %v1172 = vpack.c.b16 %v1108, %v1108
  %v1173 = vpack.c.b16 %v1109, %v1109
  %v1174 = vpack.c.b16 %v1110, %v1110
  %v1175 = vpack.c.b16 %v1111, %v1111
  %v1176 = vpack.c.b16 %v1112, %v1112
  %v1177 = vpack.c.b16 %v1113, %v1113
  %v1178 = vpack.c.b16 %v1114, %v1114
  %v1179 = vpack.c.b16 %v1115, %v1115
  %v1180 = vpack.c.b16 %v1116, %v1116
  %v1181 = vpack.c.b16 %v1117, %v1117
  %v1182 = vpack.c.b16 %v1118, %v1118
  %v1183 = vpack.c.b16 %v1119, %v1119
  %v1184 = vpack.c.b16 %v1120, %v1120
  %v1185 = vpack.c.b16 %v1121, %v1121
  %v1186 = vpack.c.b16 %v1122, %v1122
  %v1187 = vpack.c.b16 %v1123, %v1123
  %v1188 = vpack.c.b16 %v1124, %v1124
  %v1189 = vpack.c.b16 %v1125, %v1125
  %v1190 = vpack.c.b16 %v1126, %v1126
  %v1191 = vpack.c.b16 %v1127, %v1127
  %v1192 = vpack.c.b16 %v1128, %v1128
  %v1193 = vpack.c.b16 %v1129, %v1129
  %v1194 = vpack.c.b16 %v1130, %v1130
  %1259 = vst [vmem:[%s3] sm:$0xf] %v1131
  %1260 = vst [vmem:[%s3 + $0x4] sm:$0xf] %v1132
  %1261 = vst [vmem:[%s3 + $0x8] sm:$0xf] %v1133
  %1262 = vst [vmem:[%s3 + $0xc] sm:$0xf] %v1134
  %1263 = vst [vmem:[%s3 + $0x10] sm:$0xf] %v1135
  %1264 = vst [vmem:[%s3 + $0x14] sm:$0xf] %v1136
  %1265 = vst [vmem:[%s3 + $0x18] sm:$0xf] %v1137
  %1266 = vst [vmem:[%s3 + $0x1c] sm:$0xf] %v1138
  %1267 = vst [vmem:[%s3 + $0x20] sm:$0xf] %v1139
  %1268 = vst [vmem:[%s3 + $0x24] sm:$0xf] %v1140
  %1269 = vst [vmem:[%s3 + $0x28] sm:$0xf] %v1141
  %1270 = vst [vmem:[%s3 + $0x2c] sm:$0xf] %v1142
  %1271 = vst [vmem:[%s3 + $0x30] sm:$0xf] %v1143
  %1272 = vst [vmem:[%s3 + $0x34] sm:$0xf] %v1144
  %1273 = vst [vmem:[%s3 + $0x38] sm:$0xf] %v1145
  %1274 = vst [vmem:[%s3 + $0x3c] sm:$0xf] %v1146
  %1275 = vst [vmem:[%s3 + $0x40] sm:$0xf] %v1147
  %1276 = vst [vmem:[%s3 + $0x44] sm:$0xf] %v1148
  %1277 = vst [vmem:[%s3 + $0x48] sm:$0xf] %v1149
  %1278 = vst [vmem:[%s3 + $0x4c] sm:$0xf] %v1150
  %1279 = vst [vmem:[%s3 + $0x50] sm:$0xf] %v1151
  %1280 = vst [vmem:[%s3 + $0x54] sm:$0xf] %v1152
  %1281 = vst [vmem:[%s3 + $0x58] sm:$0xf] %v1153
  %1282 = vst [vmem:[%s3 + $0x5c] sm:$0xf] %v1154
  %1283 = vst [vmem:[%s3 + $0x60] sm:$0xf] %v1155
  %1284 = vst [vmem:[%s3 + $0x64] sm:$0xf] %v1156
  %1285 = vst [vmem:[%s3 + $0x68] sm:$0xf] %v1157
  %1286 = vst [vmem:[%s3 + $0x6c] sm:$0xf] %v1158
  %1287 = vst [vmem:[%s3 + $0x70] sm:$0xf] %v1159
  %1288 = vst [vmem:[%s3 + $0x74] sm:$0xf] %v1160
  %1289 = vst [vmem:[%s3 + $0x78] sm:$0xf] %v1161
  %1290 = vst [vmem:[%s3 + $0x7c] sm:$0xf] %v1162
  %1291 = vst [vmem:[%s3 + $0x80] sm:$0xf] %v1163
  %1292 = vst [vmem:[%s3 + $0x84] sm:$0xf] %v1164
  %1293 = vst [vmem:[%s3 + $0x88] sm:$0xf] %v1165
  %1294 = vst [vmem:[%s3 + $0x8c] sm:$0xf] %v1166
  %1295 = vst [vmem:[%s3 + $0x90] sm:$0xf] %v1167
  %1296 = vst [vmem:[%s3 + $0x94] sm:$0xf] %v1168
  %1297 = vst [vmem:[%s3 + $0x98] sm:$0xf] %v1169
  %1298 = vst [vmem:[%s3 + $0x9c] sm:$0xf] %v1170
  %1299 = vst [vmem:[%s3 + $0xa0] sm:$0xf] %v1171
  %1300 = vst [vmem:[%s3 + $0xa4] sm:$0xf] %v1172
  %1301 = vst [vmem:[%s3 + $0xa8] sm:$0xf] %v1173
  %1302 = vst [vmem:[%s3 + $0xac] sm:$0xf] %v1174
  %1303 = vst [vmem:[%s3 + $0xb0] sm:$0xf] %v1175
  %1304 = vst [vmem:[%s3 + $0xb4] sm:$0xf] %v1176
  %1305 = vst [vmem:[%s3 + $0xb8] sm:$0xf] %v1177
  %1306 = vst [vmem:[%s3 + $0xbc] sm:$0xf] %v1178
  %1307 = vst [vmem:[%s3 + $0xc0] sm:$0xf] %v1179
  %1308 = vst [vmem:[%s3 + $0xc4] sm:$0xf] %v1180
  %1309 = vst [vmem:[%s3 + $0xc8] sm:$0xf] %v1181
  %1310 = vst [vmem:[%s3 + $0xcc] sm:$0xf] %v1182
  %1311 = vst [vmem:[%s3 + $0xd0] sm:$0xf] %v1183
  %1312 = vst [vmem:[%s3 + $0xd4] sm:$0xf] %v1184
  %1313 = vst [vmem:[%s3 + $0xd8] sm:$0xf] %v1185
  %1314 = vst [vmem:[%s3 + $0xdc] sm:$0xf] %v1186
  %1315 = vst [vmem:[%s3 + $0xe0] sm:$0xf] %v1187
  %1316 = vst [vmem:[%s3 + $0xe4] sm:$0xf] %v1188
  %1317 = vst [vmem:[%s3 + $0xe8] sm:$0xf] %v1189
  %1318 = vst [vmem:[%s3 + $0xec] sm:$0xf] %v1190
  %1319 = vst [vmem:[%s3 + $0xf0] sm:$0xf] %v1191
  %1320 = vst [vmem:[%s3 + $0xf4] sm:$0xf] %v1192
  %1321 = vst [vmem:[%s3 + $0xf8] sm:$0xf] %v1193
  %1322 = vst [vmem:[%s3 + $0xfc] sm:$0xf] %v1194
  // Predicated region
  $region14: #{bottleneck_forward.6} parent=0 // pred_check
    _
  $region15: #{bottleneck_forward.6} parent=0 // pred_check_branch
    %1324 = sbr.rel (0) target = $region17
  $region16: #{bottleneck_forward.6} parent=0 // pred_region
    _
  $region17: #{bottleneck_forward.6} parent=0 // pred_fallthru
    _
  // Predicated region
  $region18: #{bottleneck_forward.6} parent=0 // pred_check
    _
  $region19: #{bottleneck_forward.6} parent=0 // pred_check_branch
    %1326 = sbr.rel (0) target = $region21
  $region20: #{bottleneck_forward.6} parent=0 // pred_region
    _
  $region21: #{bottleneck_forward.6} parent=0 // pred_fallthru
    _
  // Predicated region
  $region22: #{bottleneck_forward.6} parent=0 // pred_check
    _
  $region23: #{bottleneck_forward.6} parent=0 // pred_check_branch
    %1328 = sbr.rel (0) target = $region25
  $region24: #{bottleneck_forward.6} parent=0 // pred_region
    _
  $region25: #{bottleneck_forward.6} parent=0 // pred_fallthru
    _
  // Predicated region
  $region26: #{bottleneck_forward.6} parent=0 // pred_check
    _
  $region27: #{bottleneck_forward.6} parent=0 // pred_check_branch
    %1330 = sbr.rel (0) target = $region29
  $region28: #{bottleneck_forward.6} parent=0 // pred_region
    _
  $region29: #{bottleneck_forward.6} parent=0 // pred_fallthru
    _

// kernel: bottleneck_forward.5
$region0: #{bottleneck_forward.5}
  #allocation0 [shape = 'u32[]', space=smem, size = 0x4, offset = 0x4, fixed_abs, tag = 'smem constant byte address 0x4 - core index']
  #allocation1 [shape = 'u32[144,128]{1,0:T(1,128)}', space=vmem, size = 0x12000, scoped, tag = 'internal scratch']
  #allocation2 [shape = 'bf16[326,128]{1,0:T(8,128)(2,1)}', space=vmem, size = 0x14800, scoped, tag = 'scratch operand']
  %s0 = inlined_call_operand.vmem [shape: bf16[2,16,16,128], index: 0, kind: input, shape index: {}, may-alias: {0,1,2}]
  %s1 = inlined_call_operand.vmem [shape: bf16[2,16,16,128], index: 1, kind: input, shape index: {}, may-alias: {0,1,2}]
  %s2 = inlined_call_operand.vmem [shape: bf16[2,16,16,128], index: 2, kind: input, shape index: {}, may-alias: {0,1,2}]
  %s3 = inlined_call_operand.vmem [shape: f32[2,128], index: 3, kind: input, shape index: {}]
  %s4 = inlined_call_operand.vmem [shape: bf16[1152,128], index: 4, kind: input, shape index: {}]
  %s5 = inlined_call_operand.vmem [shape: bf16[2,16,16,128], index: 5, kind: output, shape index: {0}]
  %s6 = inlined_call_operand.vmem [shape: f32[2,1,2,128], index: 6, kind: output, shape index: {1}]
  %7 = xla_tuple %s5, %s6
  %s8 = sld [smem:[#allocation0]]
  $region61: #{bottleneck_forward.5} parent=0
    _
  %s10 = ssub.s32 1, %s8
  %s11 = scalar_select 0, %s10, %s8
  loop: start=0, step=1, limit=4
  $region2: #{bottleneck_forward.5} parent=0 // loop_pre_header
    _
  $region3: #{bottleneck_forward.5} parent=0 // loop_header
    %s13 = sphi 0, %s17
    %p14 = scmp.ge.s32.totalorder %s13, 4
    %s20 = sphi 0, %s32
    %s21 = sphi 0, %s28
    %s22 = sphi 0, %s20
    %s23 = sphi 0, %s21
    %s24 = sphi 0, %s22
    %s25 = sphi 0, %s23
    %s37 = sphi 0, %s39
    %s40 = sphi 0, %s37
    %s41 = sphi 0, %s40
    %s57 = sphi 0, %s41
    %s73 = sphi 0, %s75
    %s76 = sphi 0, %s73
    %s77 = sphi 0, %s76
    %s93 = sphi 0, %s77
    %s109 = sphi 0, %s111
    %s112 = sphi 0, %s109
    %s113 = sphi 0, %s112
    %s129 = sphi 0, %s113
    %s133 = sphi 0, %s133
    %s135 = sphi 0, %s133
    %s136 = sphi 0, %s135
    %s150 = sphi 0, %s136
    %s154 = sphi 0, %s154
    %s156 = sphi 0, %s154
    %s157 = sphi 0, %s156
    %s171 = sphi 0, %s157
    %s179 = sphi 0, %s181
    %s182 = sphi 0, %s179
    %s183 = sphi 0, %s182
    %s199 = sphi 0, %s183
    %s207 = sphi 0, %s209
    %s210 = sphi 0, %s207
    %s211 = sphi 0, %s210
    %s227 = sphi 0, %s211
  $region4: #{bottleneck_forward.5} parent=0 // loop_header_branch
    %16 = sbr.rel (%p14) target = $region8
  $region5: #{bottleneck_forward.5} parent=0 // loop_body
    %s18 = ssub.s32 %s13, 1
    %s19 = ssub.s32 %s13, 2
    %s26 = sadd.s32 1, %s21
    %p27 = scmp.ge.s32.totalorder %s26, 1
    %s28 = scalar_select %p27, 0, %s26
    %s29 = sadd.s32 1, %s20
    %s30 = scalar_select %p27, %s29, %s20
    %p31 = scmp.ge.s32.totalorder %s30, 2
    %s32 = scalar_select %p31, 0, %s30
    %s33 = ssub.s32 %s20, %s32
    %s34 = ssub.s32 %s21, %s28
    %s35 = sor.u32 %s33, %s34
    %p36 = scmp.eq.s32.totalorder %s35, 0
    %s38 = sadd.s32 %s37, 1
    %s39 = scalar_select %p36, %s37, %s38
    %p42 = pneg %p36
    %p43 = scmp.eq.s32.totalorder %s13, 1
    %p44 = por %p42, %p43
    %p45 = scmp.ne.s32.totalorder %s37, %s40
    %p46 = scmp.eq.s32.totalorder %s13, 0
    %p47 = por %p45, %p46
    %p48 = scmp.ne.s32.totalorder %s37, %s40
    %p49 = scmp.eq.s32.totalorder %s18, 1
    %p50 = por %p48, %p49
    %p51 = scmp.ne.s32.totalorder %s40, %s41
    %p52 = scmp.eq.s32.totalorder %s18, 0
    %p53 = por %p51, %p52
    %p54 = scmp.ne.s32.totalorder %s40, %s41
    %p55 = scmp.eq.s32.totalorder %s19, 1
    %p56 = por %p54, %p55
    %p58 = scmp.ne.s32.totalorder %s41, %s57
    %p59 = scmp.eq.s32.totalorder %s19, 0
    %p60 = por %p58, %p59
    %s61 = smul.u32 %s21, 16
    %s62 = ssub.s32 %s61, 1
    %p63 = scmp.gt.s32.totalorder %s62, 0
    %s64 = scalar_select %p63, %s62, 0
    %s65 = smul.u32 %s28, 16
    %s66 = ssub.s32 %s65, 1
    %p67 = scmp.gt.s32.totalorder %s66, 0
    %s68 = scalar_select %p67, %s66, 0
    %s69 = ssub.s32 %s20, %s32
    %s70 = ssub.s32 %s64, %s68
    %s71 = sor.u32 %s69, %s70
    %p72 = scmp.eq.s32.totalorder %s71, 0
    %s74 = sadd.s32 %s73, 1
    %s75 = scalar_select %p72, %s73, %s74
    %p78 = pneg %p72
    %p79 = scmp.eq.s32.totalorder %s13, 1
    %p80 = por %p78, %p79
    %p81 = scmp.ne.s32.totalorder %s73, %s76
    %p82 = scmp.eq.s32.totalorder %s13, 0
    %p83 = por %p81, %p82
    %p84 = scmp.ne.s32.totalorder %s73, %s76
    %p85 = scmp.eq.s32.totalorder %s18, 1
    %p86 = por %p84, %p85
    %p87 = scmp.ne.s32.totalorder %s76, %s77
    %p88 = scmp.eq.s32.totalorder %s18, 0
    %p89 = por %p87, %p88
    %p90 = scmp.ne.s32.totalorder %s76, %s77
    %p91 = scmp.eq.s32.totalorder %s19, 1
    %p92 = por %p90, %p91
    %p94 = scmp.ne.s32.totalorder %s77, %s93
    %p95 = scmp.eq.s32.totalorder %s19, 0
    %p96 = por %p94, %p95
    %s97 = sadd.s32 %s21, 1
    %s98 = smul.u32 %s97, 16
    %p99 = scmp.lt.s32.totalorder %s98, 15
    %s100 = scalar_select %p99, %s98, 15
    %s101 = sadd.s32 %s28, 1
    %s102 = smul.u32 %s101, 16
    %p103 = scmp.lt.s32.totalorder %s102, 15
    %s104 = scalar_select %p103, %s102, 15
    %s105 = ssub.s32 %s20, %s32
    %s106 = ssub.s32 %s100, %s104
    %s107 = sor.u32 %s105, %s106
    %p108 = scmp.eq.s32.totalorder %s107, 0
    %s110 = sadd.s32 %s109, 1
    %s111 = scalar_select %p108, %s109, %s110
    %p114 = pneg %p108
    %p115 = scmp.eq.s32.totalorder %s13, 1
    %p116 = por %p114, %p115
    %p117 = scmp.ne.s32.totalorder %s109, %s112
    %p118 = scmp.eq.s32.totalorder %s13, 0
    %p119 = por %p117, %p118
    %p120 = scmp.ne.s32.totalorder %s109, %s112
    %p121 = scmp.eq.s32.totalorder %s18, 1
    %p122 = por %p120, %p121
    %p123 = scmp.ne.s32.totalorder %s112, %s113
    %p124 = scmp.eq.s32.totalorder %s18, 0
    %p125 = por %p123, %p124
    %p126 = scmp.ne.s32.totalorder %s112, %s113
    %p127 = scmp.eq.s32.totalorder %s19, 1
    %p128 = por %p126, %p127
    %p130 = scmp.ne.s32.totalorder %s113, %s129
    %p131 = scmp.eq.s32.totalorder %s19, 0
    %p132 = por %p130, %p131
    %s134 = sadd.s32 %s133, 1
    %p137 = scmp.eq.s32.totalorder %s13, 1
    %p138 = scmp.ne.s32.totalorder %s133, %s135
    %p139 = scmp.eq.s32.totalorder %s13, 0
    %p140 = por %p138, %p139
    %p141 = scmp.ne.s32.totalorder %s133, %s135
    %p142 = scmp.eq.s32.totalorder %s18, 1
    %p143 = por %p141, %p142
    %p144 = scmp.ne.s32.totalorder %s135, %s136
    %p145 = scmp.eq.s32.totalorder %s18, 0
    %p146 = por %p144, %p145
    %p147 = scmp.ne.s32.totalorder %s135, %s136
    %p148 = scmp.eq.s32.totalorder %s19, 1
    %p149 = por %p147, %p148
    %p151 = scmp.ne.s32.totalorder %s136, %s150
    %p152 = scmp.eq.s32.totalorder %s19, 0
    %p153 = por %p151, %p152
    %s155 = sadd.s32 %s154, 1
    %p158 = scmp.eq.s32.totalorder %s13, 1
    %p159 = scmp.ne.s32.totalorder %s154, %s156
    %p160 = scmp.eq.s32.totalorder %s13, 0
    %p161 = por %p159, %p160
    %p162 = scmp.ne.s32.totalorder %s154, %s156
    %p163 = scmp.eq.s32.totalorder %s18, 1
    %p164 = por %p162, %p163
    %p165 = scmp.ne.s32.totalorder %s156, %s157
    %p166 = scmp.eq.s32.totalorder %s18, 0
    %p167 = por %p165, %p166
    %p168 = scmp.ne.s32.totalorder %s156, %s157
    %p169 = scmp.eq.s32.totalorder %s19, 1
    %p170 = por %p168, %p169
    %p172 = scmp.ne.s32.totalorder %s157, %s171
    %p173 = scmp.eq.s32.totalorder %s19, 0
    %p174 = por %p172, %p173
    %s175 = ssub.s32 %s20, %s32
    %s176 = ssub.s32 %s21, %s28
    %s177 = sor.u32 %s175, %s176
    %p178 = scmp.eq.s32.totalorder %s177, 0
    %s180 = sadd.s32 %s179, 1
    %s181 = scalar_select %p178, %s179, %s180
    %p184 = pneg %p178
    %p185 = scmp.eq.s32.totalorder %s13, 1
    %p186 = por %p184, %p185
    %p187 = scmp.ne.s32.totalorder %s179, %s182
    %p188 = scmp.eq.s32.totalorder %s13, 0
    %p189 = por %p187, %p188
    %p190 = scmp.ne.s32.totalorder %s179, %s182
    %p191 = scmp.eq.s32.totalorder %s18, 1
    %p192 = por %p190, %p191
    %p193 = scmp.ne.s32.totalorder %s182, %s183
    %p194 = scmp.eq.s32.totalorder %s18, 0
    %p195 = por %p193, %p194
    %p196 = scmp.ne.s32.totalorder %s182, %s183
    %p197 = scmp.eq.s32.totalorder %s19, 1
    %p198 = por %p196, %p197
    %p200 = scmp.ne.s32.totalorder %s183, %s199
    %p201 = scmp.eq.s32.totalorder %s19, 0
    %p202 = por %p200, %p201
    %s203 = ssub.s32 %s20, %s32
    %s204 = ssub.s32 %s21, %s28
    %s205 = sor.u32 %s203, %s204
    %p206 = scmp.eq.s32.totalorder %s205, 0
    %s208 = sadd.s32 %s207, 1
    %s209 = scalar_select %p206, %s207, %s208
    %p212 = pneg %p206
    %p213 = scmp.eq.s32.totalorder %s13, 1
    %p214 = por %p212, %p213
    %p215 = scmp.ne.s32.totalorder %s207, %s210
    %p216 = scmp.eq.s32.totalorder %s13, 0
    %p217 = por %p215, %p216
    %p218 = scmp.ne.s32.totalorder %s207, %s210
    %p219 = scmp.eq.s32.totalorder %s18, 1
    %p220 = por %p218, %p219
    %p221 = scmp.ne.s32.totalorder %s210, %s211
    %p222 = scmp.eq.s32.totalorder %s18, 0
    %p223 = por %p221, %p222
    %p224 = scmp.ne.s32.totalorder %s210, %s211
    %p225 = scmp.eq.s32.totalorder %s19, 1
    %p226 = por %p224, %p225
    %p228 = scmp.ne.s32.totalorder %s211, %s227
    %p229 = scmp.eq.s32.totalorder %s19, 0
    %p230 = por %p228, %p229
    %p231 = scmp.le.s32.totalorder 1, %s13
    %p232 = scmp.lt.s32.totalorder %s13, 3
    %p233 = pnand %p231, %p232
    %p234 = pneg %p233
    // Predicated region
    $region9: #{bottleneck_forward.5} parent=5 // pred_check
      _
    $region10: #{bottleneck_forward.5} parent=5 // pred_check_branch
      %236 = sbr.rel (%p233) target = $region12
    $region11: #{bottleneck_forward.5} parent=5 // pred_region
      %s237 = ssub.s32 %s13, 1
      // Predicated region
      $region13: #{bottleneck_forward.5} parent=11 // pred_check
        %p238 = pneg %p146
      $region14: #{bottleneck_forward.5} parent=11 // pred_check_branch
        %240 = sbr.rel (%p238) target = $region16
      $region15: #{bottleneck_forward.5} parent=11 // pred_region
        _
      $region16: #{bottleneck_forward.5} parent=11 // pred_fallthru
        _
      // Predicated region
      $region17: #{bottleneck_forward.5} parent=11 // pred_check
        %p241 = pneg %p167
      $region18: #{bottleneck_forward.5} parent=11 // pred_check_branch
        %243 = sbr.rel (%p241) target = $region20
      $region19: #{bottleneck_forward.5} parent=11 // pred_region
        _
      $region20: #{bottleneck_forward.5} parent=11 // pred_fallthru
        _
    $region12: #{bottleneck_forward.5} parent=5 // pred_fallthru
      _
    %p244 = scmp.lt.s32.totalorder %s13, 2
    // Predicated region
    $region21: #{bottleneck_forward.5} parent=5 // pred_check
      %p245 = pneg %p244
    $region22: #{bottleneck_forward.5} parent=5 // pred_check_branch
      %247 = sbr.rel (%p245) target = $region24
    $region23: #{bottleneck_forward.5} parent=5 // pred_region
      // Predicated region
      $region25: #{bottleneck_forward.5} parent=23 // pred_check
        %p248 = pneg %p47
      $region26: #{bottleneck_forward.5} parent=23 // pred_check_branch
        %250 = sbr.rel (%p248) target = $region28
      $region27: #{bottleneck_forward.5} parent=23 // pred_region
        %s251 = smul.u32 16, %s21
        %p252 = scmp.lt.s32.totalorder %s20, 1
        %s253 = scalar_select %p252, %s20, 1
        %p254 = scmp.lt.s32.totalorder %s251, 15
        %s255 = scalar_select %p254, %s251, 15
        %s256 = smul.addr %s255, 2
        %s257 = smul.addr %s253, 32
        %s258 = sadd.s32 %s256, %s257
        %s259 = smul.addr %s258, 4
        %s260 = scalar_lea.vmem %s0, %s259
        %s261 = smul.u32 16, %s21
      $region28: #{bottleneck_forward.5} parent=23 // pred_fallthru
        _
      // Predicated region
      $region29: #{bottleneck_forward.5} parent=23 // pred_check
        %p262 = pneg %p83
      $region30: #{bottleneck_forward.5} parent=23 // pred_check_branch
        %264 = sbr.rel (%p262) target = $region32
      $region31: #{bottleneck_forward.5} parent=23 // pred_region
        %s265 = smul.u32 %s21, 16
        %s266 = ssub.s32 %s265, 1
        %p267 = scmp.gt.s32.totalorder %s266, 0
        %s268 = scalar_select %p267, %s266, 0
        %p269 = scmp.lt.s32.totalorder %s20, 1
        %s270 = scalar_select %p269, %s20, 1
        %p271 = scmp.lt.s32.totalorder %s268, 15
        %s272 = scalar_select %p271, %s268, 15
        %s273 = smul.addr %s272, 2
        %s274 = smul.addr %s270, 32
        %s275 = sadd.s32 %s273, %s274
        %s276 = smul.addr %s275, 4
        %s277 = scalar_lea.vmem %s1, %s276
        %s278 = smul.u32 %s21, 16
        %s279 = ssub.s32 %s278, 1
        %p280 = scmp.gt.s32.totalorder %s279, 0
        %s281 = scalar_select %p280, %s279, 0
      $region32: #{bottleneck_forward.5} parent=23 // pred_fallthru
        _
      // Predicated region
      $region33: #{bottleneck_forward.5} parent=23 // pred_check
        %p282 = pneg %p119
      $region34: #{bottleneck_forward.5} parent=23 // pred_check_branch
        %284 = sbr.rel (%p282) target = $region36
      $region35: #{bottleneck_forward.5} parent=23 // pred_region
        %s285 = sadd.s32 %s21, 1
        %s286 = smul.u32 %s285, 16
        %p287 = scmp.lt.s32.totalorder %s286, 15
        %s288 = scalar_select %p287, %s286, 15
        %p289 = scmp.lt.s32.totalorder %s20, 1
        %s290 = scalar_select %p289, %s20, 1
        %p291 = scmp.lt.s32.totalorder %s288, 15
        %s292 = scalar_select %p291, %s288, 15
        %s293 = smul.addr %s292, 2
        %s294 = smul.addr %s290, 32
        %s295 = sadd.s32 %s293, %s294
        %s296 = smul.addr %s295, 4
        %s297 = scalar_lea.vmem %s2, %s296
        %s298 = sadd.s32 %s21, 1
        %s299 = smul.u32 %s298, 16
        %p300 = scmp.lt.s32.totalorder %s299, 15
        %s301 = scalar_select %p300, %s299, 15
      $region36: #{bottleneck_forward.5} parent=23 // pred_fallthru
        _
    $region24: #{bottleneck_forward.5} parent=5 // pred_fallthru
      _
    %p302 = scmp.le.s32.totalorder 1, %s13
    %p303 = scmp.lt.s32.totalorder %s13, 3
    %p304 = pnand %p302, %p303
    %p305 = pneg %p304
    // Predicated region
    $region37: #{bottleneck_forward.5} parent=5 // pred_check
      _
    $region38: #{bottleneck_forward.5} parent=5 // pred_check_branch
      %307 = sbr.rel (%p304) target = $region40
    $region39: #{bottleneck_forward.5} parent=5 // pred_region
      %s308 = ssub.s32 %s13, 1
      %s309 = smul.u32 16, %s23
      %p310 = scmp.lt.s32.totalorder %s22, 1
      %s311 = scalar_select %p310, %s22, 1
      %p312 = scmp.lt.s32.totalorder %s309, 15
      %s313 = scalar_select %p312, %s309, 15
      %s314 = smul.addr %s313, 2
      %s315 = smul.addr %s311, 32
      %s316 = sadd.s32 %s314, %s315
      %s317 = smul.addr %s316, 4
      %s318 = scalar_lea.vmem %s0, %s317
      %p319 = pneg %p53
      %p320 = pneg %p50
      %s321 = smul.u32 %s23, 16
      %s322 = ssub.s32 %s321, 1
      %p323 = scmp.gt.s32.totalorder %s322, 0
      %s324 = scalar_select %p323, %s322, 0
      %p325 = scmp.lt.s32.totalorder %s22, 1
      %s326 = scalar_select %p325, %s22, 1
      %p327 = scmp.lt.s32.totalorder %s324, 15
      %s328 = scalar_select %p327, %s324, 15
      %s329 = smul.addr %s328, 2
      %s330 = smul.addr %s326, 32
      %s331 = sadd.s32 %s329, %s330
      %s332 = smul.addr %s331, 4
      %s333 = scalar_lea.vmem %s1, %s332
      %p334 = pneg %p89
      %p335 = pneg %p86
      %s336 = sadd.s32 %s23, 1
      %s337 = smul.u32 %s336, 16
      %p338 = scmp.lt.s32.totalorder %s337, 15
      %s339 = scalar_select %p338, %s337, 15
      %p340 = scmp.lt.s32.totalorder %s22, 1
      %s341 = scalar_select %p340, %s22, 1
      %p342 = scmp.lt.s32.totalorder %s339, 15
      %s343 = scalar_select %p342, %s339, 15
      %s344 = smul.addr %s343, 2
      %s345 = smul.addr %s341, 32
      %s346 = sadd.s32 %s344, %s345
      %s347 = smul.addr %s346, 4
      %s348 = scalar_lea.vmem %s2, %s347
      %p349 = pneg %p125
      %p350 = pneg %p122
      %p351 = pneg %p146
      %p352 = pneg %p143
      %p353 = pneg %p167
      %p354 = pneg %p164
      %p355 = pneg %p195
      %p356 = pneg %p192
      %s357 = smul.u32 16, %s23
      %p358 = scmp.lt.s32.totalorder %s22, 1
      %s359 = scalar_select %p358, %s22, 1
      %p360 = scmp.lt.s32.totalorder %s357, 15
      %s361 = scalar_select %p360, %s357, 15
      %s362 = smul.addr %s361, 2
      %s363 = smul.addr %s359, 32
      %s364 = sadd.s32 %s362, %s363
      %s365 = smul.addr %s364, 4
      %s366 = scalar_lea.vmem %s5, %s365
      %p367 = pneg %p223
      %p368 = pneg %p220
      %p369 = scmp.lt.s32.totalorder %s22, 1
      %s370 = scalar_select %p369, %s22, 1
      %p371 = scmp.lt.s32.totalorder %s23, 0
      %s372 = scalar_select %p371, %s23, 0
      %s373 = sadd.s32 %s372, %s370
      %s374 = smul.addr %s373, 2
      %s375 = scalar_lea.vmem %s6, %s374
      %s376 = smul.u32 16, %s23
      %p377 = scmp.lt.s32.totalorder %s22, 1
      %s378 = scalar_select %p377, %s22, 1
      %p379 = scmp.lt.s32.totalorder %s376, 15
      %s380 = scalar_select %p379, %s376, 15
      %s381 = smul.addr %s380, 2
      %s382 = smul.addr %s378, 32
      %s383 = sadd.s32 %s381, %s382
      %s384 = smul.addr %s383, 4
      %s385 = scalar_lea.vmem %s0, %s384
      %s386 = smul.u32 16, %s23
      %s387 = smul.u32 %s23, 16
      %s388 = ssub.s32 %s387, 1
      %p389 = scmp.gt.s32.totalorder %s388, 0
      %s390 = scalar_select %p389, %s388, 0
      %p391 = scmp.lt.s32.totalorder %s22, 1
      %s392 = scalar_select %p391, %s22, 1
      %p393 = scmp.lt.s32.totalorder %s390, 15
      %s394 = scalar_select %p393, %s390, 15
      %s395 = smul.addr %s394, 2
      %s396 = smul.addr %s392, 32
      %s397 = sadd.s32 %s395, %s396
      %s398 = smul.addr %s397, 4
      %s399 = scalar_lea.vmem %s1, %s398
      %s400 = smul.u32 %s23, 16
      %s401 = ssub.s32 %s400, 1
      %p402 = scmp.gt.s32.totalorder %s401, 0
      %s403 = scalar_select %p402, %s401, 0
      %s404 = sadd.s32 %s23, 1
      %s405 = smul.u32 %s404, 16
      %p406 = scmp.lt.s32.totalorder %s405, 15
      %s407 = scalar_select %p406, %s405, 15
      %p408 = scmp.lt.s32.totalorder %s22, 1
      %s409 = scalar_select %p408, %s22, 1
      %p410 = scmp.lt.s32.totalorder %s407, 15
      %s411 = scalar_select %p410, %s407, 15
      %s412 = smul.addr %s411, 2
      %s413 = smul.addr %s409, 32
      %s414 = sadd.s32 %s412, %s413
      %s415 = smul.addr %s414, 4
      %s416 = scalar_lea.vmem %s2, %s415
      %s417 = sadd.s32 %s23, 1
      %s418 = smul.u32 %s417, 16
      %p419 = scmp.lt.s32.totalorder %s418, 15
      %s420 = scalar_select %p419, %s418, 15
      %s421 = smul.u32 16, %s23
      %p422 = scmp.lt.s32.totalorder %s22, 1
      %s423 = scalar_select %p422, %s22, 1
      %p424 = scmp.lt.s32.totalorder %s421, 15
      %s425 = scalar_select %p424, %s421, 15
      %s426 = smul.addr %s425, 2
      %s427 = smul.addr %s423, 32
      %s428 = sadd.s32 %s426, %s427
      %s429 = smul.addr %s428, 4
      %s430 = scalar_lea.vmem %s5, %s429
      %s431 = smul.u32 16, %s23
      %p432 = scmp.lt.s32.totalorder %s22, 1
      %s433 = scalar_select %p432, %s22, 1
      %p434 = scmp.lt.s32.totalorder %s23, 0
      %s435 = scalar_select %p434, %s23, 0
      %s436 = sadd.s32 %s435, %s433
      %s437 = smul.addr %s436, 2
      %s438 = scalar_lea.vmem %s6, %s437
      %v440 = vld [vmem:[%s3] sm:$0x1]
      %v441 = vld [vmem:[%s3 + $0x1] sm:$0x1]
      %442 = vst [vmem:[#allocation2] sm:$0xf] 0
      %443 = vst [vmem:[#allocation2 + $0x4] sm:$0xf] 0
      %444 = vst [vmem:[#allocation2 + $0x8] sm:$0xf] 0
      %445 = vst [vmem:[#allocation2 + $0xc] sm:$0xf] 0
      %446 = vst [vmem:[#allocation2 + $0x10] sm:$0xf] 0
      %447 = vst [vmem:[#allocation2 + $0x14] sm:$0xf] 0
      %448 = vst [vmem:[#allocation2 + $0x18] sm:$0xf] 0
      %449 = vst [vmem:[#allocation2 + $0x1c] sm:$0xf] 0
      %450 = vst [vmem:[#allocation2 + $0x20] sm:$0xf] 0
      %451 = vst [vmem:[#allocation2 + $0x24] sm:$0xf] 0
      %452 = vst [vmem:[#allocation2 + $0x28] sm:$0xf] 0
      %453 = vst [vmem:[#allocation2 + $0x2c] sm:$0xf] 0
      %454 = vst [vmem:[#allocation2 + $0x30] sm:$0xf] 0
      %455 = vst [vmem:[#allocation2 + $0x34] sm:$0xf] 0
      %456 = vst [vmem:[#allocation2 + $0x38] sm:$0xf] 0
      %457 = vst [vmem:[#allocation2 + $0x3c] sm:$0xf] 0
      %458 = vst [vmem:[#allocation2 + $0x40] sm:$0xf] 0
      %459 = vst [vmem:[#allocation2 + $0x44] sm:$0xf] 0
      %460 = vst [vmem:[#allocation2 + $0x48] sm:$0xf] 0
      %461 = vst [vmem:[#allocation2 + $0x4c] sm:$0xf] 0
      %462 = vst [vmem:[#allocation2 + $0x50] sm:$0xf] 0
      %463 = vst [vmem:[#allocation2 + $0x54] sm:$0xf] 0
      %464 = vst [vmem:[#allocation2 + $0x58] sm:$0xf] 0
      %465 = vst [vmem:[#allocation2 + $0x5c] sm:$0xf] 0
      %466 = vst [vmem:[#allocation2 + $0x60] sm:$0xf] 0
      %467 = vst [vmem:[#allocation2 + $0x64] sm:$0xf] 0
      %468 = vst [vmem:[#allocation2 + $0x68] sm:$0xf] 0
      %469 = vst [vmem:[#allocation2 + $0x6c] sm:$0xf] 0
      %470 = vst [vmem:[#allocation2 + $0x70] sm:$0xf] 0
      %471 = vst [vmem:[#allocation2 + $0x74] sm:$0xf] 0
      %472 = vst [vmem:[#allocation2 + $0x78] sm:$0xf] 0
      %473 = vst [vmem:[#allocation2 + $0x7c] sm:$0xf] 0
      %474 = vst [vmem:[#allocation2 + $0x80] sm:$0xf] 0
      %475 = vst [vmem:[#allocation2 + $0x84] sm:$0xf] 0
      %476 = vst [vmem:[#allocation2 + $0x88] sm:$0xf] 0
      %477 = vst [vmem:[#allocation2 + $0x8c] sm:$0xf] 0
      %478 = vst [vmem:[#allocation2 + $0x90] sm:$0xf] 0
      %479 = vst [vmem:[#allocation2 + $0x94] sm:$0xf] 0
      %480 = vst [vmem:[#allocation2 + $0x98] sm:$0xf] 0
      %481 = vst [vmem:[#allocation2 + $0x9c] sm:$0xf] 0
      %482 = vst [vmem:[#allocation2 + $0xa0] sm:$0x7] 0
      %v483 = vld [vmem:[%s399] sm:$0xf]
      %v484 = vld [vmem:[%s399 + $0x4] sm:$0xf]
      %v485 = vunpack.c.l.bf16 %v483
      %v486 = vunpack.c.l.bf16 %v484
      %v487 = vlaneseq
      %v488 = vshrl.u32 %v487, 7
      %v489 = vsub.s32 0, %v488
      %v490 = vrot.slane %v440, %v489
      %v491 = vmul.f32 %v485, %v490
      %v492 = vmul.f32 %v486, %v490
      %v493 = vlaneseq
      %v494 = vshrl.u32 %v493, 7
      %v495 = vsub.s32 0, %v494
      %v496 = vrot.slane %v441, %v495
      %v497 = vadd.f32 %v491, %v496
      %v498 = vadd.f32 %v492, %v496
      %v499 = vmax.f32 %v497, 0.0
      %v500 = vmax.f32 %v498, 0.0
      %v501 = vpack.c.bf16 %v500, %v499
      %p502 = scmp.gt.s32.totalorder %s23, 0
      %s503 = scalar_select %p502, 1, 0
      %v504 = vstv %s503
      %vm505 = vcmp.eq.s32.totalorder %v504, 1
      %v506 = vsel %vm505, %v501, 0
      %v508 = vunpack.c.l.b16 %v506
      %v509 = vunpack.c.h.b16 %v506
      %v510 = vpack.c.b16 %v508, %v508
      %v511 = vpack.c.b16 %v509, %v509
      %vm512 = vsmask.f32 256
      %vm513 = vsmask.f32 4368
      %vm514 = vmor %vm512, %vm513
      %v516 = vshrl.u32 %v510, 16
      %v518 = vrot.slane %v516, 7
      %v519 = vshll.u32 %v510, 16
      %v521 = vor.u32 %v518, %v519
      %v522 = vrot.slane %v518, 4
      %v524 = vshrl.u32 %v511, 16
      %v526 = vrot.slane %v524, 7
      %v527 = vshll.u32 %v511, 16
      %v529 = vor.u32 %v526, %v527
      %v530 = vsel %vm514, %v522, %v529
      %v531 = vrot.slane %v526, 4
      %vm535 = vcmask 1043456
      %vm536 = vsmask.f32 7938
      %vm537 = vmand %vm535, %vm536
      %v538 = vld [vmem:[#allocation2] sm:$0xf]
      %v539 = vsel %vm537, %v521, %v538
      %540 = vst [vmem:[#allocation2] sm:$0xf] %v539
      %541 = vst [vmem:[#allocation2 + $0x4] sm:$0xf] %v530
      %vm542 = vcmask 1040384
      %vm543 = vmand %vm542, %vm512
      %v544 = vld [vmem:[#allocation2 + $0x8] sm:$0x1]
      %v545 = vsel %vm543, %v531, %v544
      %546 = vst [vmem:[#allocation2 + $0x8] sm:$0x1] %v545
      %v547 = vld [vmem:[%s416] sm:$0xf]
      %v548 = vld [vmem:[%s416 + $0x4] sm:$0xf]
      %v549 = vunpack.c.l.bf16 %v547
      %v550 = vunpack.c.l.bf16 %v548
      %v551 = vmul.f32 %v549, %v490
      %v552 = vmul.f32 %v550, %v490
      %v553 = vadd.f32 %v551, %v496
      %v554 = vadd.f32 %v552, %v496
      %v555 = vmax.f32 %v553, 0.0
      %v556 = vmax.f32 %v554, 0.0
      %v557 = vpack.c.bf16 %v556, %v555
      %p558 = scmp.lt.s32.totalorder %s23, 0
      %s559 = scalar_select %p558, 1, 0
      %v560 = vstv %s559
      %vm561 = vcmp.eq.s32.totalorder %v560, 1
      %v562 = vsel %vm561, %v557, 0
      %v564 = vunpack.c.l.b16 %v562
      %v565 = vunpack.c.h.b16 %v562
      %v566 = vpack.c.b16 %v564, %v564
      %v567 = vpack.c.b16 %v565, %v565
      %vm568 = vsmask.f32 1280
      %vm569 = vsmask.f32 5392
      %vm570 = vmor %vm568, %vm569
      %v572 = vshrl.u32 %v566, 16
      %v574 = vrot.slane %v572, 6
      %v575 = vshll.u32 %v566, 16
      %v577 = vrot.slane %v575, 7
      %v578 = vor.u32 %v574, %v577
      %v579 = vrot.slane %v578, 4
      %v581 = vshrl.u32 %v567, 16
      %v583 = vrot.slane %v581, 6
      %v584 = vshll.u32 %v567, 16
      %v586 = vrot.slane %v584, 7
      %v587 = vor.u32 %v583, %v586
      %v588 = vsel %vm570, %v579, %v587
      %v589 = vrot.slane %v587, 4
      %vm593 = vcmask 1043457
      %vm594 = vsmask.f32 7942
      %vm595 = vmand %vm593, %vm594
      %v596 = vld [vmem:[#allocation2 + $0x98] sm:$0xe]
      %v597 = vsel %vm595, %v578, %v596
      %598 = vst [vmem:[#allocation2 + $0x98] sm:$0xe] %v597
      %599 = vst [vmem:[#allocation2 + $0x9c] sm:$0xf] %v588
      %vm600 = vcmask 1041408
      %vm601 = vmand %vm600, %vm568
      %v602 = vld [vmem:[#allocation2 + $0xa0] sm:$0x3]
      %v603 = vsel %vm601, %v589, %v602
      %604 = vst [vmem:[#allocation2 + $0xa0] sm:$0x3] %v603
      %v605 = vld [vmem:[%s385] sm:$0xf]
      %v606 = vld [vmem:[%s385 + $0x4] sm:$0xf]
      %v607 = vld [vmem:[%s385 + $0x8] sm:$0xf]
      %v608 = vld [vmem:[%s385 + $0xc] sm:$0xf]
      %v609 = vld [vmem:[%s385 + $0x10] sm:$0xf]
      %v610 = vld [vmem:[%s385 + $0x14] sm:$0xf]
      %v611 = vld [vmem:[%s385 + $0x18] sm:$0xf]
      %v612 = vld [vmem:[%s385 + $0x1c] sm:$0xf]
      %v613 = vld [vmem:[%s385 + $0x20] sm:$0xf]
      %v614 = vld [vmem:[%s385 + $0x24] sm:$0xf]
      %v615 = vld [vmem:[%s385 + $0x28] sm:$0xf]
      %v616 = vld [vmem:[%s385 + $0x2c] sm:$0xf]
      %v617 = vld [vmem:[%s385 + $0x30] sm:$0xf]
      %v618 = vld [vmem:[%s385 + $0x34] sm:$0xf]
      %v619 = vld [vmem:[%s385 + $0x38] sm:$0xf]
      %v620 = vld [vmem:[%s385 + $0x3c] sm:$0xf]
      %v621 = vld [vmem:[%s385 + $0x40] sm:$0xf]
      %v622 = vld [vmem:[%s385 + $0x44] sm:$0xf]
      %v623 = vld [vmem:[%s385 + $0x48] sm:$0xf]
      %v624 = vld [vmem:[%s385 + $0x4c] sm:$0xf]
      %v625 = vld [vmem:[%s385 + $0x50] sm:$0xf]
      %v626 = vld [vmem:[%s385 + $0x54] sm:$0xf]
      %v627 = vld [vmem:[%s385 + $0x58] sm:$0xf]
      %v628 = vld [vmem:[%s385 + $0x5c] sm:$0xf]
      %v629 = vld [vmem:[%s385 + $0x60] sm:$0xf]
      %v630 = vld [vmem:[%s385 + $0x64] sm:$0xf]
      %v631 = vld [vmem:[%s385 + $0x68] sm:$0xf]
      %v632 = vld [vmem:[%s385 + $0x6c] sm:$0xf]
      %v633 = vld [vmem:[%s385 + $0x70] sm:$0xf]
      %v634 = vld [vmem:[%s385 + $0x74] sm:$0xf]
      %v635 = vld [vmem:[%s385 + $0x78] sm:$0xf]
      %v636 = vld [vmem:[%s385 + $0x7c] sm:$0xf]
      %v637 = vunpack.c.l.bf16 %v605
      %v638 = vunpack.c.l.bf16 %v606
      %v639 = vunpack.c.l.bf16 %v607
      %v640 = vunpack.c.l.bf16 %v608
      %v641 = vunpack.c.l.bf16 %v609
      %v642 = vunpack.c.l.bf16 %v610
      %v643 = vunpack.c.l.bf16 %v611
      %v644 = vunpack.c.l.bf16 %v612
      %v645 = vunpack.c.l.bf16 %v613
      %v646 = vunpack.c.l.bf16 %v614
      %v647 = vunpack.c.l.bf16 %v615
      %v648 = vunpack.c.l.bf16 %v616
      %v649 = vunpack.c.l.bf16 %v617
      %v650 = vunpack.c.l.bf16 %v618
      %v651 = vunpack.c.l.bf16 %v619
      %v652 = vunpack.c.l.bf16 %v620
      %v653 = vunpack.c.l.bf16 %v621
      %v654 = vunpack.c.l.bf16 %v622
      %v655 = vunpack.c.l.bf16 %v623
      %v656 = vunpack.c.l.bf16 %v624
      %v657 = vunpack.c.l.bf16 %v625
      %v658 = vunpack.c.l.bf16 %v626
      %v659 = vunpack.c.l.bf16 %v627
      %v660 = vunpack.c.l.bf16 %v628
      %v661 = vunpack.c.l.bf16 %v629
      %v662 = vunpack.c.l.bf16 %v630
      %v663 = vunpack.c.l.bf16 %v631
      %v664 = vunpack.c.l.bf16 %v632
      %v665 = vunpack.c.l.bf16 %v633
      %v666 = vunpack.c.l.bf16 %v634
      %v667 = vunpack.c.l.bf16 %v635
      %v668 = vunpack.c.l.bf16 %v636
      %v669 = vmul.f32 %v637, %v490
      %v670 = vmul.f32 %v638, %v490
      %v671 = vmul.f32 %v639, %v490
      %v672 = vmul.f32 %v640, %v490
      %v673 = vmul.f32 %v641, %v490
      %v674 = vmul.f32 %v642, %v490
      %v675 = vmul.f32 %v643, %v490
      %v676 = vmul.f32 %v644, %v490
      %v677 = vmul.f32 %v645, %v490
      %v678 = vmul.f32 %v646, %v490
      %v679 = vmul.f32 %v647, %v490
      %v680 = vmul.f32 %v648, %v490
      %v681 = vmul.f32 %v649, %v490
      %v682 = vmul.f32 %v650, %v490
      %v683 = vmul.f32 %v651, %v490
      %v684 = vmul.f32 %v652, %v490
      %v685 = vmul.f32 %v653, %v490
      %v686 = vmul.f32 %v654, %v490
      %v687 = vmul.f32 %v655, %v490
      %v688 = vmul.f32 %v656, %v490
      %v689 = vmul.f32 %v657, %v490
      %v690 = vmul.f32 %v658, %v490
      %v691 = vmul.f32 %v659, %v490
      %v692 = vmul.f32 %v660, %v490
      %v693 = vmul.f32 %v661, %v490
      %v694 = vmul.f32 %v662, %v490
      %v695 = vmul.f32 %v663, %v490
      %v696 = vmul.f32 %v664, %v490
      %v697 = vmul.f32 %v665, %v490
      %v698 = vmul.f32 %v666, %v490
      %v699 = vmul.f32 %v667, %v490
      %v700 = vmul.f32 %v668, %v490
      %v701 = vadd.f32 %v669, %v496
      %v702 = vadd.f32 %v670, %v496
      %v703 = vadd.f32 %v671, %v496
      %v704 = vadd.f32 %v672, %v496
      %v705 = vadd.f32 %v673, %v496
      %v706 = vadd.f32 %v674, %v496
      %v707 = vadd.f32 %v675, %v496
      %v708 = vadd.f32 %v676, %v496
      %v709 = vadd.f32 %v677, %v496
      %v710 = vadd.f32 %v678, %v496
      %v711 = vadd.f32 %v679, %v496
      %v712 = vadd.f32 %v680, %v496
      %v713 = vadd.f32 %v681, %v496
      %v714 = vadd.f32 %v682, %v496
      %v715 = vadd.f32 %v683, %v496
      %v716 = vadd.f32 %v684, %v496
      %v717 = vadd.f32 %v685, %v496
      %v718 = vadd.f32 %v686, %v496
      %v719 = vadd.f32 %v687, %v496
      %v720 = vadd.f32 %v688, %v496
      %v721 = vadd.f32 %v689, %v496
      %v722 = vadd.f32 %v690, %v496
      %v723 = vadd.f32 %v691, %v496
      %v724 = vadd.f32 %v692, %v496
      %v725 = vadd.f32 %v693, %v496
      %v726 = vadd.f32 %v694, %v496
      %v727 = vadd.f32 %v695, %v496
      %v728 = vadd.f32 %v696, %v496
      %v729 = vadd.f32 %v697, %v496
      %v730 = vadd.f32 %v698, %v496
      %v731 = vadd.f32 %v699, %v496
      %v732 = vadd.f32 %v700, %v496
      %v733 = vmax.f32 %v701, 0.0
      %v734 = vmax.f32 %v702, 0.0
      %v735 = vmax.f32 %v703, 0.0
      %v736 = vmax.f32 %v704, 0.0
      %v737 = vmax.f32 %v705, 0.0
      %v738 = vmax.f32 %v706, 0.0
      %v739 = vmax.f32 %v707, 0.0
      %v740 = vmax.f32 %v708, 0.0
      %v741 = vmax.f32 %v709, 0.0
      %v742 = vmax.f32 %v710, 0.0
      %v743 = vmax.f32 %v711, 0.0
      %v744 = vmax.f32 %v712, 0.0
      %v745 = vmax.f32 %v713, 0.0
      %v746 = vmax.f32 %v714, 0.0
      %v747 = vmax.f32 %v715, 0.0
      %v748 = vmax.f32 %v716, 0.0
      %v749 = vmax.f32 %v717, 0.0
      %v750 = vmax.f32 %v718, 0.0
      %v751 = vmax.f32 %v719, 0.0
      %v752 = vmax.f32 %v720, 0.0
      %v753 = vmax.f32 %v721, 0.0
      %v754 = vmax.f32 %v722, 0.0
      %v755 = vmax.f32 %v723, 0.0
      %v756 = vmax.f32 %v724, 0.0
      %v757 = vmax.f32 %v725, 0.0
      %v758 = vmax.f32 %v726, 0.0
      %v759 = vmax.f32 %v727, 0.0
      %v760 = vmax.f32 %v728, 0.0
      %v761 = vmax.f32 %v729, 0.0
      %v762 = vmax.f32 %v730, 0.0
      %v763 = vmax.f32 %v731, 0.0
      %v764 = vmax.f32 %v732, 0.0
      %v765 = vpack.c.bf16 %v734, %v733
      %v766 = vpack.c.bf16 %v736, %v735
      %v767 = vpack.c.bf16 %v738, %v737
      %v768 = vpack.c.bf16 %v740, %v739
      %v769 = vpack.c.bf16 %v742, %v741
      %v770 = vpack.c.bf16 %v744, %v743
      %v771 = vpack.c.bf16 %v746, %v745
      %v772 = vpack.c.bf16 %v748, %v747
      %v773 = vpack.c.bf16 %v750, %v749
      %v774 = vpack.c.bf16 %v752, %v751
      %v775 = vpack.c.bf16 %v754, %v753
      %v776 = vpack.c.bf16 %v756, %v755
      %v777 = vpack.c.bf16 %v758, %v757
      %v778 = vpack.c.bf16 %v760, %v759
      %v779 = vpack.c.bf16 %v762, %v761
      %v780 = vpack.c.bf16 %v764, %v763
      %v782 = vunpack.c.l.b16 %v765
      %v783 = vunpack.c.h.b16 %v765
      %v784 = vpack.c.b16 %v782, %v782
      %v785 = vpack.c.b16 %v783, %v783
      %v787 = vshrl.u32 %v784, 16
      %v789 = vrot.slane %v787, 6
      %v790 = vshll.u32 %v784, 16
      %v792 = vrot.slane %v790, 7
      %v793 = vor.u32 %v789, %v792
      %v794 = vrot.slane %v793, 4
      %v796 = vshrl.u32 %v785, 16
      %v798 = vrot.slane %v796, 6
      %v799 = vshll.u32 %v785, 16
      %v801 = vrot.slane %v799, 7
      %v802 = vor.u32 %v798, %v801
      %v803 = vsel %vm570, %v794, %v802
      %v804 = vrot.slane %v802, 4
      %v808 = vld [vmem:[#allocation2 + $0x8] sm:$0xe]
      %v809 = vsel %vm595, %v793, %v808
      %810 = vst [vmem:[#allocation2 + $0x8] sm:$0xe] %v809
      %811 = vst [vmem:[#allocation2 + $0xc] sm:$0xf] %v803
      %v812 = vld [vmem:[#allocation2 + $0x10] sm:$0x3]
      %v813 = vsel %vm601, %v804, %v812
      %814 = vst [vmem:[#allocation2 + $0x10] sm:$0x3] %v813
      %v816 = vunpack.c.l.b16 %v766
      %v817 = vunpack.c.h.b16 %v766
      %v818 = vpack.c.b16 %v816, %v816
      %v819 = vpack.c.b16 %v817, %v817
      %vm820 = vsmask.f32 2304
      %vm821 = vsmask.f32 6416
      %vm822 = vmor %vm820, %vm821
      %v824 = vshrl.u32 %v818, 16
      %v826 = vrot.slane %v824, 5
      %v827 = vshll.u32 %v818, 16
      %v829 = vrot.slane %v827, 6
      %v830 = vor.u32 %v826, %v829
      %v831 = vrot.slane %v830, 4
      %v833 = vshrl.u32 %v819, 16
      %v835 = vrot.slane %v833, 5
      %v836 = vshll.u32 %v819, 16
      %v838 = vrot.slane %v836, 6
      %v839 = vor.u32 %v835, %v838
      %v840 = vsel %vm822, %v831, %v839
      %v841 = vrot.slane %v839, 4
      %vm845 = vcmask 1043458
      %vm846 = vsmask.f32 7946
      %vm847 = vmand %vm845, %vm846
      %v848 = vld [vmem:[#allocation2 + $0x10] sm:$0xc]
      %v849 = vsel %vm847, %v830, %v848
      %850 = vst [vmem:[#allocation2 + $0x10] sm:$0xc] %v849
      %851 = vst [vmem:[#allocation2 + $0x14] sm:$0xf] %v840
      %vm852 = vcmask 1042432
      %vm853 = vmand %vm852, %vm820
      %v854 = vld [vmem:[#allocation2 + $0x18] sm:$0x7]
      %v855 = vsel %vm853, %v841, %v854
      %856 = vst [vmem:[#allocation2 + $0x18] sm:$0x7] %v855
      %v858 = vunpack.c.l.b16 %v767
      %v859 = vunpack.c.h.b16 %v767
      %v860 = vpack.c.b16 %v858, %v858
      %v861 = vpack.c.b16 %v859, %v859
      %vm862 = vsmask.f32 3328
      %vm863 = vsmask.f32 7440
      %vm864 = vmor %vm862, %vm863
      %v866 = vshll.u32 %v860, 16
      %v868 = vrot.slane %v866, 5
      %v869 = vshrl.u32 %v860, 16
      %v871 = vrot.slane %v869, 4
      %v872 = vor.u32 %v871, %v868
      %v873 = vrot.slane %v872, 4
      %v875 = vshll.u32 %v861, 16
      %v877 = vrot.slane %v875, 5
      %v878 = vsel %vm864, %v873, %v877
      %v879 = vshrl.u32 %v861, 16
      %v881 = vrot.slane %v879, 4
      %v882 = vor.u32 %v881, %v877
      %v883 = vrot.slane %v882, 4
      %vm887 = vcmask 1043459
      %vm888 = vsmask.f32 7950
      %vm889 = vmand %vm887, %vm888
      %v890 = vld [vmem:[#allocation2 + $0x18] sm:$0x8]
      %v891 = vsel %vm889, %v868, %v890
      %892 = vst [vmem:[#allocation2 + $0x18] sm:$0x8] %v891
      %893 = vst [vmem:[#allocation2 + $0x1c] sm:$0xf] %v878
      %vm894 = vmand %vm535, %vm862
      %v895 = vld [vmem:[#allocation2 + $0x20] sm:$0xf]
      %v896 = vsel %vm894, %v883, %v895
      %897 = vst [vmem:[#allocation2 + $0x20] sm:$0xf] %v896
      %v899 = vunpack.c.l.b16 %v768
      %v900 = vunpack.c.h.b16 %v768
      %v901 = vpack.c.b16 %v899, %v899
      %v902 = vpack.c.b16 %v900, %v900
      %v904 = vshrl.u32 %v901, 16
      %v906 = vrot.slane %v904, 7
      %v907 = vshll.u32 %v901, 16
      %v909 = vor.u32 %v906, %v907
      %v910 = vrot.slane %v906, 4
      %v912 = vshrl.u32 %v902, 16
      %v914 = vrot.slane %v912, 7
      %v915 = vshll.u32 %v902, 16
      %v917 = vor.u32 %v914, %v915
      %v918 = vsel %vm514, %v910, %v917
      %v919 = vrot.slane %v914, 4
      %v923 = vld [vmem:[#allocation2 + $0x24] sm:$0xf]
      %v924 = vsel %vm537, %v909, %v923
      %925 = vst [vmem:[#allocation2 + $0x24] sm:$0xf] %v924
      %926 = vst [vmem:[#allocation2 + $0x28] sm:$0xf] %v918
      %v927 = vld [vmem:[#allocation2 + $0x2c] sm:$0x1]
      %v928 = vsel %vm543, %v919, %v927
      %929 = vst [vmem:[#allocation2 + $0x2c] sm:$0x1] %v928
      %v931 = vunpack.c.l.b16 %v769
      %v932 = vunpack.c.h.b16 %v769
      %v933 = vpack.c.b16 %v931, %v931
      %v934 = vpack.c.b16 %v932, %v932
      %v936 = vshrl.u32 %v933, 16
      %v938 = vrot.slane %v936, 6
      %v939 = vshll.u32 %v933, 16
      %v941 = vrot.slane %v939, 7
      %v942 = vor.u32 %v938, %v941
      %v943 = vrot.slane %v942, 4
      %v945 = vshrl.u32 %v934, 16
      %v947 = vrot.slane %v945, 6
      %v948 = vshll.u32 %v934, 16
      %v950 = vrot.slane %v948, 7
      %v951 = vor.u32 %v947, %v950
      %v952 = vsel %vm570, %v943, %v951
      %v953 = vrot.slane %v951, 4
      %v957 = vld [vmem:[#allocation2 + $0x2c] sm:$0xe]
      %v958 = vsel %vm595, %v942, %v957
      %959 = vst [vmem:[#allocation2 + $0x2c] sm:$0xe] %v958
      %960 = vst [vmem:[#allocation2 + $0x30] sm:$0xf] %v952
      %v961 = vld [vmem:[#allocation2 + $0x34] sm:$0x3]
      %v962 = vsel %vm601, %v953, %v961
      %963 = vst [vmem:[#allocation2 + $0x34] sm:$0x3] %v962
      %v965 = vunpack.c.l.b16 %v770
      %v966 = vunpack.c.h.b16 %v770
      %v967 = vpack.c.b16 %v965, %v965
      %v968 = vpack.c.b16 %v966, %v966
      %v970 = vshrl.u32 %v967, 16
      %v972 = vrot.slane %v970, 5
      %v973 = vshll.u32 %v967, 16
      %v975 = vrot.slane %v973, 6
      %v976 = vor.u32 %v972, %v975
      %v977 = vrot.slane %v976, 4
      %v979 = vshrl.u32 %v968, 16
      %v981 = vrot.slane %v979, 5
      %v982 = vshll.u32 %v968, 16
      %v984 = vrot.slane %v982, 6
      %v985 = vor.u32 %v981, %v984
      %v986 = vsel %vm822, %v977, %v985
      %v987 = vrot.slane %v985, 4
      %v991 = vld [vmem:[#allocation2 + $0x34] sm:$0xc]
      %v992 = vsel %vm847, %v976, %v991
      %993 = vst [vmem:[#allocation2 + $0x34] sm:$0xc] %v992
      %994 = vst [vmem:[#allocation2 + $0x38] sm:$0xf] %v986
      %v995 = vld [vmem:[#allocation2 + $0x3c] sm:$0x7]
      %v996 = vsel %vm853, %v987, %v995
      %997 = vst [vmem:[#allocation2 + $0x3c] sm:$0x7] %v996
      %v999 = vunpack.c.l.b16 %v771
      %v1000 = vunpack.c.h.b16 %v771
      %v1001 = vpack.c.b16 %v999, %v999
      %v1002 = vpack.c.b16 %v1000, %v1000
      %v1004 = vshll.u32 %v1001, 16
      %v1006 = vrot.slane %v1004, 5
      %v1007 = vshrl.u32 %v1001, 16
      %v1009 = vrot.slane %v1007, 4
      %v1010 = vor.u32 %v1009, %v1006
      %v1011 = vrot.slane %v1010, 4
      %v1013 = vshll.u32 %v1002, 16
      %v1015 = vrot.slane %v1013, 5
      %v1016 = vsel %vm864, %v1011, %v1015
      %v1017 = vshrl.u32 %v1002, 16
      %v1019 = vrot.slane %v1017, 4
      %v1020 = vor.u32 %v1019, %v1015
      %v1021 = vrot.slane %v1020, 4
      %v1025 = vld [vmem:[#allocation2 + $0x3c] sm:$0x8]
      %v1026 = vsel %vm889, %v1006, %v1025
      %1027 = vst [vmem:[#allocation2 + $0x3c] sm:$0x8] %v1026
      %1028 = vst [vmem:[#allocation2 + $0x40] sm:$0xf] %v1016
      %v1029 = vld [vmem:[#allocation2 + $0x44] sm:$0xf]
      %v1030 = vsel %vm894, %v1021, %v1029
      %1031 = vst [vmem:[#allocation2 + $0x44] sm:$0xf] %v1030
      %v1033 = vunpack.c.l.b16 %v772
      %v1034 = vunpack.c.h.b16 %v772
      %v1035 = vpack.c.b16 %v1033, %v1033
      %v1036 = vpack.c.b16 %v1034, %v1034
      %v1038 = vshrl.u32 %v1035, 16
      %v1040 = vrot.slane %v1038, 7
      %v1041 = vshll.u32 %v1035, 16
      %v1043 = vor.u32 %v1040, %v1041
      %v1044 = vrot.slane %v1040, 4
      %v1046 = vshrl.u32 %v1036, 16
      %v1048 = vrot.slane %v1046, 7
      %v1049 = vshll.u32 %v1036, 16
      %v1051 = vor.u32 %v1048, %v1049
      %v1052 = vsel %vm514, %v1044, %v1051
      %v1053 = vrot.slane %v1048, 4
      %v1057 = vld [vmem:[#allocation2 + $0x48] sm:$0xf]
      %v1058 = vsel %vm537, %v1043, %v1057
      %1059 = vst [vmem:[#allocation2 + $0x48] sm:$0xf] %v1058
      %1060 = vst [vmem:[#allocation2 + $0x4c] sm:$0xf] %v1052
      %v1061 = vld [vmem:[#allocation2 + $0x50] sm:$0x1]
      %v1062 = vsel %vm543, %v1053, %v1061
      %1063 = vst [vmem:[#allocation2 + $0x50] sm:$0x1] %v1062
      %v1065 = vunpack.c.l.b16 %v773
      %v1066 = vunpack.c.h.b16 %v773
      %v1067 = vpack.c.b16 %v1065, %v1065
      %v1068 = vpack.c.b16 %v1066, %v1066
      %v1070 = vshrl.u32 %v1067, 16
      %v1072 = vrot.slane %v1070, 6
      %v1073 = vshll.u32 %v1067, 16
      %v1075 = vrot.slane %v1073, 7
      %v1076 = vor.u32 %v1072, %v1075
      %v1077 = vrot.slane %v1076, 4
      %v1079 = vshrl.u32 %v1068, 16
      %v1081 = vrot.slane %v1079, 6
      %v1082 = vshll.u32 %v1068, 16
      %v1084 = vrot.slane %v1082, 7
      %v1085 = vor.u32 %v1081, %v1084
      %v1086 = vsel %vm570, %v1077, %v1085
      %v1087 = vrot.slane %v1085, 4
      %v1091 = vld [vmem:[#allocation2 + $0x50] sm:$0xe]
      %v1092 = vsel %vm595, %v1076, %v1091
      %1093 = vst [vmem:[#allocation2 + $0x50] sm:$0xe] %v1092
      %1094 = vst [vmem:[#allocation2 + $0x54] sm:$0xf] %v1086
      %v1095 = vld [vmem:[#allocation2 + $0x58] sm:$0x3]
      %v1096 = vsel %vm601, %v1087, %v1095
      %1097 = vst [vmem:[#allocation2 + $0x58] sm:$0x3] %v1096
      %v1099 = vunpack.c.l.b16 %v774
      %v1100 = vunpack.c.h.b16 %v774
      %v1101 = vpack.c.b16 %v1099, %v1099
      %v1102 = vpack.c.b16 %v1100, %v1100
      %v1104 = vshrl.u32 %v1101, 16
      %v1106 = vrot.slane %v1104, 5
      %v1107 = vshll.u32 %v1101, 16
      %v1109 = vrot.slane %v1107, 6
      %v1110 = vor.u32 %v1106, %v1109
      %v1111 = vrot.slane %v1110, 4
      %v1113 = vshrl.u32 %v1102, 16
      %v1115 = vrot.slane %v1113, 5
      %v1116 = vshll.u32 %v1102, 16
      %v1118 = vrot.slane %v1116, 6
      %v1119 = vor.u32 %v1115, %v1118
      %v1120 = vsel %vm822, %v1111, %v1119
      %v1121 = vrot.slane %v1119, 4
      %v1125 = vld [vmem:[#allocation2 + $0x58] sm:$0xc]
      %v1126 = vsel %vm847, %v1110, %v1125
      %1127 = vst [vmem:[#allocation2 + $0x58] sm:$0xc] %v1126
      %1128 = vst [vmem:[#allocation2 + $0x5c] sm:$0xf] %v1120
      %v1129 = vld [vmem:[#allocation2 + $0x60] sm:$0x7]
      %v1130 = vsel %vm853, %v1121, %v1129
      %1131 = vst [vmem:[#allocation2 + $0x60] sm:$0x7] %v1130
      %v1133 = vunpack.c.l.b16 %v775
      %v1134 = vunpack.c.h.b16 %v775
      %v1135 = vpack.c.b16 %v1133, %v1133
      %v1136 = vpack.c.b16 %v1134, %v1134
      %v1138 = vshll.u32 %v1135, 16
      %v1140 = vrot.slane %v1138, 5
      %v1141 = vshrl.u32 %v1135, 16
      %v1143 = vrot.slane %v1141, 4
      %v1144 = vor.u32 %v1143, %v1140
      %v1145 = vrot.slane %v1144, 4
      %v1147 = vshll.u32 %v1136, 16
      %v1149 = vrot.slane %v1147, 5
      %v1150 = vsel %vm864, %v1145, %v1149
      %v1151 = vshrl.u32 %v1136, 16
      %v1153 = vrot.slane %v1151, 4
      %v1154 = vor.u32 %v1153, %v1149
      %v1155 = vrot.slane %v1154, 4
      %v1159 = vld [vmem:[#allocation2 + $0x60] sm:$0x8]
      %v1160 = vsel %vm889, %v1140, %v1159
      %1161 = vst [vmem:[#allocation2 + $0x60] sm:$0x8] %v1160
      %1162 = vst [vmem:[#allocation2 + $0x64] sm:$0xf] %v1150
      %v1163 = vld [vmem:[#allocation2 + $0x68] sm:$0xf]
      %v1164 = vsel %vm894, %v1155, %v1163
      %1165 = vst [vmem:[#allocation2 + $0x68] sm:$0xf] %v1164
      %v1167 = vunpack.c.l.b16 %v776
      %v1168 = vunpack.c.h.b16 %v776
      %v1169 = vpack.c.b16 %v1167, %v1167
      %v1170 = vpack.c.b16 %v1168, %v1168
      %v1172 = vshrl.u32 %v1169, 16
      %v1174 = vrot.slane %v1172, 7
      %v1175 = vshll.u32 %v1169, 16
      %v1177 = vor.u32 %v1174, %v1175
      %v1178 = vrot.slane %v1174, 4
      %v1180 = vshrl.u32 %v1170, 16
      %v1182 = vrot.slane %v1180, 7
      %v1183 = vshll.u32 %v1170, 16
      %v1185 = vor.u32 %v1182, %v1183
      %v1186 = vsel %vm514, %v1178, %v1185
      %v1187 = vrot.slane %v1182, 4
      %v1191 = vld [vmem:[#allocation2 + $0x6c] sm:$0xf]
      %v1192 = vsel %vm537, %v1177, %v1191
      %1193 = vst [vmem:[#allocation2 + $0x6c] sm:$0xf] %v1192
      %1194 = vst [vmem:[#allocation2 + $0x70] sm:$0xf] %v1186
      %v1195 = vld [vmem:[#allocation2 + $0x74] sm:$0x1]
      %v1196 = vsel %vm543, %v1187, %v1195
      %1197 = vst [vmem:[#allocation2 + $0x74] sm:$0x1] %v1196
      %v1199 = vunpack.c.l.b16 %v777
      %v1200 = vunpack.c.h.b16 %v777
      %v1201 = vpack.c.b16 %v1199, %v1199
      %v1202 = vpack.c.b16 %v1200, %v1200
      %v1204 = vshrl.u32 %v1201, 16
      %v1206 = vrot.slane %v1204, 6
      %v1207 = vshll.u32 %v1201, 16
      %v1209 = vrot.slane %v1207, 7
      %v1210 = vor.u32 %v1206, %v1209
      %v1211 = vrot.slane %v1210, 4
      %v1213 = vshrl.u32 %v1202, 16
      %v1215 = vrot.slane %v1213, 6
      %v1216 = vshll.u32 %v1202, 16
      %v1218 = vrot.slane %v1216, 7
      %v1219 = vor.u32 %v1215, %v1218
      %v1220 = vsel %vm570, %v1211, %v1219
      %v1221 = vrot.slane %v1219, 4
      %v1225 = vld [vmem:[#allocation2 + $0x74] sm:$0xe]
      %v1226 = vsel %vm595, %v1210, %v1225
      %1227 = vst [vmem:[#allocation2 + $0x74] sm:$0xe] %v1226
      %1228 = vst [vmem:[#allocation2 + $0x78] sm:$0xf] %v1220
      %v1229 = vld [vmem:[#allocation2 + $0x7c] sm:$0x3]
      %v1230 = vsel %vm601, %v1221, %v1229
      %1231 = vst [vmem:[#allocation2 + $0x7c] sm:$0x3] %v1230
      %v1233 = vunpack.c.l.b16 %v778
      %v1234 = vunpack.c.h.b16 %v778
      %v1235 = vpack.c.b16 %v1233, %v1233
      %v1236 = vpack.c.b16 %v1234, %v1234
      %v1238 = vshrl.u32 %v1235, 16
      %v1240 = vrot.slane %v1238, 5
      %v1241 = vshll.u32 %v1235, 16
      %v1243 = vrot.slane %v1241, 6
      %v1244 = vor.u32 %v1240, %v1243
      %v1245 = vrot.slane %v1244, 4
      %v1247 = vshrl.u32 %v1236, 16
      %v1249 = vrot.slane %v1247, 5
      %v1250 = vshll.u32 %v1236, 16
      %v1252 = vrot.slane %v1250, 6
      %v1253 = vor.u32 %v1249, %v1252
      %v1254 = vsel %vm822, %v1245, %v1253
      %v1255 = vrot.slane %v1253, 4
      %v1259 = vld [vmem:[#allocation2 + $0x7c] sm:$0xc]
      %v1260 = vsel %vm847, %v1244, %v1259
      %1261 = vst [vmem:[#allocation2 + $0x7c] sm:$0xc] %v1260
      %1262 = vst [vmem:[#allocation2 + $0x80] sm:$0xf] %v1254
      %v1263 = vld [vmem:[#allocation2 + $0x84] sm:$0x7]
      %v1264 = vsel %vm853, %v1255, %v1263
      %1265 = vst [vmem:[#allocation2 + $0x84] sm:$0x7] %v1264
      %v1267 = vunpack.c.l.b16 %v779
      %v1268 = vunpack.c.h.b16 %v779
      %v1269 = vpack.c.b16 %v1267, %v1267
      %v1270 = vpack.c.b16 %v1268, %v1268
      %v1272 = vshll.u32 %v1269, 16
      %v1274 = vrot.slane %v1272, 5
      %v1275 = vshrl.u32 %v1269, 16
      %v1277 = vrot.slane %v1275, 4
      %v1278 = vor.u32 %v1277, %v1274
      %v1279 = vrot.slane %v1278, 4
      %v1281 = vshll.u32 %v1270, 16
      %v1283 = vrot.slane %v1281, 5
      %v1284 = vsel %vm864, %v1279, %v1283
      %v1285 = vshrl.u32 %v1270, 16
      %v1287 = vrot.slane %v1285, 4
      %v1288 = vor.u32 %v1287, %v1283
      %v1289 = vrot.slane %v1288, 4
      %v1293 = vld [vmem:[#allocation2 + $0x84] sm:$0x8]
      %v1294 = vsel %vm889, %v1274, %v1293
      %1295 = vst [vmem:[#allocation2 + $0x84] sm:$0x8] %v1294
      %1296 = vst [vmem:[#allocation2 + $0x88] sm:$0xf] %v1284
      %v1297 = vld [vmem:[#allocation2 + $0x8c] sm:$0xf]
      %v1298 = vsel %vm894, %v1289, %v1297
      %1299 = vst [vmem:[#allocation2 + $0x8c] sm:$0xf] %v1298
      %v1301 = vunpack.c.l.b16 %v780
      %v1302 = vunpack.c.h.b16 %v780
      %v1303 = vpack.c.b16 %v1301, %v1301
      %v1304 = vpack.c.b16 %v1302, %v1302
      %v1306 = vshrl.u32 %v1303, 16
      %v1308 = vrot.slane %v1306, 7
      %v1309 = vshll.u32 %v1303, 16
      %v1311 = vor.u32 %v1308, %v1309
      %v1312 = vrot.slane %v1308, 4
      %v1314 = vshrl.u32 %v1304, 16
      %v1316 = vrot.slane %v1314, 7
      %v1317 = vshll.u32 %v1304, 16
      %v1319 = vor.u32 %v1316, %v1317
      %v1320 = vsel %vm514, %v1312, %v1319
      %v1321 = vrot.slane %v1316, 4
      %v1325 = vld [vmem:[#allocation2 + $0x90] sm:$0xf]
      %v1326 = vsel %vm537, %v1311, %v1325
      %1327 = vst [vmem:[#allocation2 + $0x90] sm:$0xf] %v1326
      %1328 = vst [vmem:[#allocation2 + $0x94] sm:$0xf] %v1320
      %v1329 = vld [vmem:[#allocation2 + $0x98] sm:$0x1]
      %v1330 = vsel %vm543, %v1321, %v1329
      %1331 = vst [vmem:[#allocation2 + $0x98] sm:$0x1] %v1330
      %v1332 = vld [vmem:[#allocation2] sm:$0xf]
      %v1333 = vld [vmem:[#allocation2 + $0x4] sm:$0xf]
      %v1334 = vld [vmem:[#allocation2 + $0x8] sm:$0xf]
      %v1335 = vld [vmem:[#allocation2 + $0xc] sm:$0xf]
      %v1336 = vld [vmem:[#allocation2 + $0x10] sm:$0xf]
      %v1337 = vld [vmem:[#allocation2 + $0x14] sm:$0xf]
      %v1338 = vld [vmem:[#allocation2 + $0x18] sm:$0xf]
      %v1339 = vld [vmem:[#allocation2 + $0x1c] sm:$0xf]
      %v1340 = vld [vmem:[#allocation2 + $0x20] sm:$0xf]
      %v1341 = vld [vmem:[#allocation2 + $0x24] sm:$0xf]
      %v1342 = vld [vmem:[#allocation2 + $0x28] sm:$0xf]
      %v1343 = vld [vmem:[#allocation2 + $0x2c] sm:$0xf]
      %v1344 = vld [vmem:[#allocation2 + $0x30] sm:$0xf]
      %v1345 = vld [vmem:[#allocation2 + $0x34] sm:$0xf]
      %v1346 = vld [vmem:[#allocation2 + $0x38] sm:$0xf]
      %v1347 = vld [vmem:[#allocation2 + $0x3c] sm:$0xf]
      %v1348 = vld [vmem:[#allocation2 + $0x40] sm:$0xf]
      %v1349 = vld [vmem:[#allocation2 + $0x44] sm:$0xf]
      %v1350 = vld [vmem:[#allocation2 + $0x48] sm:$0xf]
      %v1351 = vld [vmem:[#allocation2 + $0x4c] sm:$0xf]
      %v1352 = vld [vmem:[#allocation2 + $0x50] sm:$0xf]
      %v1353 = vld [vmem:[#allocation2 + $0x54] sm:$0xf]
      %v1354 = vld [vmem:[#allocation2 + $0x58] sm:$0xf]
      %v1355 = vld [vmem:[#allocation2 + $0x5c] sm:$0xf]
      %v1356 = vld [vmem:[#allocation2 + $0x60] sm:$0xf]
      %v1357 = vld [vmem:[#allocation2 + $0x64] sm:$0xf]
      %v1358 = vld [vmem:[#allocation2 + $0x68] sm:$0xf]
      %v1359 = vld [vmem:[#allocation2 + $0x6c] sm:$0xf]
      %v1360 = vld [vmem:[#allocation2 + $0x70] sm:$0xf]
      %v1361 = vld [vmem:[#allocation2 + $0x74] sm:$0xf]
      %v1362 = vld [vmem:[#allocation2 + $0x78] sm:$0xf]
      %v1363 = vld [vmem:[#allocation2 + $0x7c] sm:$0xf]
      %v1364 = vld [vmem:[#allocation2 + $0x80] sm:$0xf]
      %v1365 = vld [vmem:[#allocation2 + $0x84] sm:$0xf]
      %v1366 = vld [vmem:[#allocation2 + $0x88] sm:$0xf]
      %v1367 = vld [vmem:[#allocation2 + $0x8c] sm:$0xf]
      %v1368 = vld [vmem:[#allocation2 + $0x90] sm:$0x1]
      %v1369 = vld [vmem:[#allocation2] sm:$0xe]
      %v1370 = vld [vmem:[#allocation2 + $0x8] sm:$0xe]
      %v1371 = vld [vmem:[#allocation2 + $0x90] sm:$0xf]
      %v1372 = vld [vmem:[#allocation2 + $0x94] sm:$0xf]
      %v1373 = vld [vmem:[#allocation2 + $0x98] sm:$0x1]
      %v1374 = vld [vmem:[#allocation2 + $0x98] sm:$0x3]
      %v1375 = vld [vmem:[#allocation2 + $0x8] sm:$0xc]
      %v1376 = vld [vmem:[#allocation2 + $0x10] sm:$0xc]
      %v1377 = vld [vmem:[#allocation2 + $0x98] sm:$0xf]
      %v1378 = vld [vmem:[#allocation2 + $0x9c] sm:$0xf]
      %v1379 = vld [vmem:[#allocation2 + $0xa0] sm:$0x3]
      %v1380 = vld [vmem:[#allocation2 + $0xa0] sm:$0x7]
      %v1381 = vld [vmem:[#allocation2 + $0x10] sm:$0x8]
      %v1418 = vunpack.c.l.b16 %v1332
      %v1419 = vunpack.c.l.b16 %v1333
      %v1420 = vunpack.c.l.b16 %v1334
      %v1421 = vunpack.c.l.b16 %v1335
      %v1422 = vunpack.c.l.b16 %v1336
      %v1423 = vunpack.c.l.b16 %v1337
      %v1424 = vunpack.c.l.b16 %v1338
      %v1425 = vunpack.c.l.b16 %v1339
      %v1426 = vunpack.c.l.b16 %v1340
      %v1427 = vunpack.c.l.b16 %v1341
      %v1428 = vunpack.c.l.b16 %v1342
      %v1429 = vunpack.c.l.b16 %v1343
      %v1430 = vunpack.c.l.b16 %v1344
      %v1431 = vunpack.c.l.b16 %v1345
      %v1432 = vunpack.c.l.b16 %v1346
      %v1433 = vunpack.c.l.b16 %v1347
      %v1434 = vunpack.c.l.b16 %v1348
      %v1435 = vunpack.c.l.b16 %v1349
      %v1436 = vunpack.c.l.b16 %v1350
      %v1437 = vunpack.c.l.b16 %v1351
      %v1438 = vunpack.c.l.b16 %v1352
      %v1439 = vunpack.c.l.b16 %v1353
      %v1440 = vunpack.c.l.b16 %v1354
      %v1441 = vunpack.c.l.b16 %v1355
      %v1442 = vunpack.c.l.b16 %v1356
      %v1443 = vunpack.c.l.b16 %v1357
      %v1444 = vunpack.c.l.b16 %v1358
      %v1445 = vunpack.c.l.b16 %v1359
      %v1446 = vunpack.c.l.b16 %v1360
      %v1447 = vunpack.c.l.b16 %v1361
      %v1448 = vunpack.c.l.b16 %v1362
      %v1449 = vunpack.c.l.b16 %v1363
      %v1450 = vunpack.c.l.b16 %v1364
      %v1451 = vunpack.c.l.b16 %v1365
      %v1452 = vunpack.c.l.b16 %v1366
      %v1453 = vunpack.c.l.b16 %v1367
      %v1454 = vpack.c.b16 %v1419, %v1418
      %v1455 = vpack.c.b16 %v1421, %v1420
      %v1456 = vpack.c.b16 %v1423, %v1422
      %v1457 = vpack.c.b16 %v1425, %v1424
      %v1458 = vpack.c.b16 %v1427, %v1426
      %v1459 = vpack.c.b16 %v1429, %v1428
      %v1460 = vpack.c.b16 %v1431, %v1430
      %v1461 = vpack.c.b16 %v1433, %v1432
      %v1462 = vpack.c.b16 %v1435, %v1434
      %v1463 = vpack.c.b16 %v1437, %v1436
      %v1464 = vpack.c.b16 %v1439, %v1438
      %v1465 = vpack.c.b16 %v1441, %v1440
      %v1466 = vpack.c.b16 %v1443, %v1442
      %v1467 = vpack.c.b16 %v1445, %v1444
      %v1468 = vpack.c.b16 %v1447, %v1446
      %v1469 = vpack.c.b16 %v1449, %v1448
      %v1470 = vpack.c.b16 %v1451, %v1450
      %v1471 = vpack.c.b16 %v1453, %v1452
      %v1491 = vunpack.c.l.b16 %v1368
      %v1492 = vpack.c.b16 %v1491, %v1491
      %vm1493 = vsmask.f32 7424
      %v1495 = vshrl.u32 %v1454, 16
      %v1497 = vshll.u32 %v1454, 16
      %v1499 = vrot.slane %v1497, 1
      %v1500 = vor.u32 %v1495, %v1499
      %v1502 = vshll.u32 %v1455, 16
      %v1504 = vrot.slane %v1502, 1
      %v1505 = vsel %vm1493, %v1500, %v1504
      %v1506 = vshrl.u32 %v1455, 16
      %v1508 = vor.u32 %v1506, %v1504
      %v1510 = vshll.u32 %v1456, 16
      %v1512 = vrot.slane %v1510, 1
      %v1513 = vsel %vm1493, %v1508, %v1512
      %v1514 = vshrl.u32 %v1456, 16
      %v1516 = vor.u32 %v1514, %v1512
      %v1518 = vshll.u32 %v1457, 16
      %v1520 = vrot.slane %v1518, 1
      %v1521 = vsel %vm1493, %v1516, %v1520
      %v1522 = vshrl.u32 %v1457, 16
      %v1524 = vor.u32 %v1522, %v1520
      %v1526 = vshll.u32 %v1458, 16
      %v1528 = vrot.slane %v1526, 1
      %v1529 = vsel %vm1493, %v1524, %v1528
      %v1530 = vshrl.u32 %v1458, 16
      %v1532 = vor.u32 %v1530, %v1528
      %v1534 = vshll.u32 %v1459, 16
      %v1536 = vrot.slane %v1534, 1
      %v1537 = vsel %vm1493, %v1532, %v1536
      %v1538 = vshrl.u32 %v1459, 16
      %v1540 = vor.u32 %v1538, %v1536
      %v1542 = vshll.u32 %v1460, 16
      %v1544 = vrot.slane %v1542, 1
      %v1545 = vsel %vm1493, %v1540, %v1544
      %v1546 = vshrl.u32 %v1460, 16
      %v1548 = vor.u32 %v1546, %v1544
      %v1550 = vshll.u32 %v1461, 16
      %v1552 = vrot.slane %v1550, 1
      %v1553 = vsel %vm1493, %v1548, %v1552
      %v1554 = vshrl.u32 %v1461, 16
      %v1556 = vor.u32 %v1554, %v1552
      %v1558 = vshll.u32 %v1462, 16
      %v1560 = vrot.slane %v1558, 1
      %v1561 = vsel %vm1493, %v1556, %v1560
      %v1562 = vshrl.u32 %v1462, 16
      %v1564 = vor.u32 %v1562, %v1560
      %v1566 = vshll.u32 %v1463, 16
      %v1568 = vrot.slane %v1566, 1
      %v1569 = vsel %vm1493, %v1564, %v1568
      %v1570 = vshrl.u32 %v1463, 16
      %v1572 = vor.u32 %v1570, %v1568
      %v1574 = vshll.u32 %v1464, 16
      %v1576 = vrot.slane %v1574, 1
      %v1577 = vsel %vm1493, %v1572, %v1576
      %v1578 = vshrl.u32 %v1464, 16
      %v1580 = vor.u32 %v1578, %v1576
      %v1582 = vshll.u32 %v1465, 16
      %v1584 = vrot.slane %v1582, 1
      %v1585 = vsel %vm1493, %v1580, %v1584
      %v1586 = vshrl.u32 %v1465, 16
      %v1588 = vor.u32 %v1586, %v1584
      %v1590 = vshll.u32 %v1466, 16
      %v1592 = vrot.slane %v1590, 1
      %v1593 = vsel %vm1493, %v1588, %v1592
      %v1594 = vshrl.u32 %v1466, 16
      %v1596 = vor.u32 %v1594, %v1592
      %v1598 = vshll.u32 %v1467, 16
      %v1600 = vrot.slane %v1598, 1
      %v1601 = vsel %vm1493, %v1596, %v1600
      %v1602 = vshrl.u32 %v1467, 16
      %v1604 = vor.u32 %v1602, %v1600
      %v1606 = vshll.u32 %v1468, 16
      %v1608 = vrot.slane %v1606, 1
      %v1609 = vsel %vm1493, %v1604, %v1608
      %v1610 = vshrl.u32 %v1468, 16
      %v1612 = vor.u32 %v1610, %v1608
      %v1614 = vshll.u32 %v1469, 16
      %v1616 = vrot.slane %v1614, 1
      %v1617 = vsel %vm1493, %v1612, %v1616
      %v1618 = vshrl.u32 %v1469, 16
      %v1620 = vor.u32 %v1618, %v1616
      %v1622 = vshll.u32 %v1470, 16
      %v1624 = vrot.slane %v1622, 1
      %v1625 = vsel %vm1493, %v1620, %v1624
      %v1626 = vshrl.u32 %v1470, 16
      %v1628 = vor.u32 %v1626, %v1624
      %v1630 = vshll.u32 %v1471, 16
      %v1632 = vrot.slane %v1630, 1
      %v1633 = vsel %vm1493, %v1628, %v1632
      %v1634 = vshrl.u32 %v1471, 16
      %v1636 = vor.u32 %v1634, %v1632
      %v1638 = vshll.u32 %v1492, 16
      %v1640 = vrot.slane %v1638, 1
      %v1641 = vsel %vm1493, %v1636, %v1640
      %v1661 = vunpack.c.l.b16 %v1369
      %v1662 = vpack.c.b16 %v1419, %v1661
      %vm1663 = vcmask 1046528
      %v1664 = vrot.slane %v1662, 1
      %v1665 = vrot.slane %v1455, 1
      %v1666 = vsel %vm1663, %v1664, %v1665
      %v1667 = vrot.slane %v1456, 1
      %v1668 = vsel %vm1663, %v1665, %v1667
      %v1669 = vrot.slane %v1457, 1
      %v1670 = vsel %vm1663, %v1667, %v1669
      %v1671 = vrot.slane %v1458, 1
      %v1672 = vsel %vm1663, %v1669, %v1671
      %v1673 = vrot.slane %v1459, 1
      %v1674 = vsel %vm1663, %v1671, %v1673
      %v1675 = vrot.slane %v1460, 1
      %v1676 = vsel %vm1663, %v1673, %v1675
      %v1677 = vrot.slane %v1461, 1
      %v1678 = vsel %vm1663, %v1675, %v1677
      %v1679 = vrot.slane %v1462, 1
      %v1680 = vsel %vm1663, %v1677, %v1679
      %v1681 = vrot.slane %v1463, 1
      %v1682 = vsel %vm1663, %v1679, %v1681
      %v1683 = vrot.slane %v1464, 1
      %v1684 = vsel %vm1663, %v1681, %v1683
      %v1685 = vrot.slane %v1465, 1
      %v1686 = vsel %vm1663, %v1683, %v1685
      %v1687 = vrot.slane %v1466, 1
      %v1688 = vsel %vm1663, %v1685, %v1687
      %v1689 = vrot.slane %v1467, 1
      %v1690 = vsel %vm1663, %v1687, %v1689
      %v1691 = vrot.slane %v1468, 1
      %v1692 = vsel %vm1663, %v1689, %v1691
      %v1693 = vrot.slane %v1469, 1
      %v1694 = vsel %vm1663, %v1691, %v1693
      %v1695 = vrot.slane %v1470, 1
      %v1696 = vsel %vm1663, %v1693, %v1695
      %v1697 = vrot.slane %v1471, 1
      %v1698 = vsel %vm1663, %v1695, %v1697
      %v1699 = vrot.slane %v1492, 1
      %v1700 = vsel %vm1663, %v1697, %v1699
      %v1723 = vunpack.c.l.b16 %v1370
      %v1724 = vunpack.c.l.b16 %v1371
      %v1725 = vunpack.c.l.b16 %v1372
      %v1726 = vunpack.c.l.b16 %v1373
      %v1727 = vpack.c.b16 %v1421, %v1723
      %v1728 = vpack.c.b16 %v1725, %v1724
      %v1729 = vpack.c.b16 %v1726, %v1726
      %v1730 = vrot.slane %v1727, 1
      %v1731 = vsel %vm1663, %v1730, %v1667
      %v1732 = vrot.slane %v1728, 1
      %v1733 = vsel %vm1663, %v1697, %v1732
      %v1734 = vrot.slane %v1729, 1
      %v1735 = vsel %vm1663, %v1732, %v1734
      %v1740 = vunpack.c.l.b16 %v1374
      %v1741 = vpack.c.b16 %v1740, %v1740
      %vm1742 = vsmask.f32 6400
      %v1744 = vshrl.u32 %v1727, 16
      %v1746 = vrot.slane %v1744, 1
      %v1747 = vshll.u32 %v1727, 16
      %v1749 = vrot.slane %v1747, 2
      %v1750 = vor.u32 %v1746, %v1749
      %v1751 = vrot.slane %v1514, 1
      %v1752 = vrot.slane %v1510, 2
      %v1753 = vor.u32 %v1751, %v1752
      %v1754 = vsel %vm1742, %v1750, %v1753
      %v1755 = vrot.slane %v1522, 1
      %v1756 = vrot.slane %v1518, 2
      %v1757 = vor.u32 %v1755, %v1756
      %v1758 = vsel %vm1742, %v1753, %v1757
      %v1759 = vrot.slane %v1530, 1
      %v1760 = vrot.slane %v1526, 2
      %v1761 = vor.u32 %v1759, %v1760
      %v1762 = vsel %vm1742, %v1757, %v1761
      %v1763 = vrot.slane %v1538, 1
      %v1764 = vrot.slane %v1534, 2
      %v1765 = vor.u32 %v1763, %v1764
      %v1766 = vsel %vm1742, %v1761, %v1765
      %v1767 = vrot.slane %v1546, 1
      %v1768 = vrot.slane %v1542, 2
      %v1769 = vor.u32 %v1767, %v1768
      %v1770 = vsel %vm1742, %v1765, %v1769
      %v1771 = vrot.slane %v1554, 1
      %v1772 = vrot.slane %v1550, 2
      %v1773 = vor.u32 %v1771, %v1772
      %v1774 = vsel %vm1742, %v1769, %v1773
      %v1775 = vrot.slane %v1562, 1
      %v1776 = vrot.slane %v1558, 2
      %v1777 = vor.u32 %v1775, %v1776
      %v1778 = vsel %vm1742, %v1773, %v1777
      %v1779 = vrot.slane %v1570, 1
      %v1780 = vrot.slane %v1566, 2
      %v1781 = vor.u32 %v1779, %v1780
      %v1782 = vsel %vm1742, %v1777, %v1781
      %v1783 = vrot.slane %v1578, 1
      %v1784 = vrot.slane %v1574, 2
      %v1785 = vor.u32 %v1783, %v1784
      %v1786 = vsel %vm1742, %v1781, %v1785
      %v1787 = vrot.slane %v1586, 1
      %v1788 = vrot.slane %v1582, 2
      %v1789 = vor.u32 %v1787, %v1788
      %v1790 = vsel %vm1742, %v1785, %v1789
      %v1791 = vrot.slane %v1594, 1
      %v1792 = vrot.slane %v1590, 2
      %v1793 = vor.u32 %v1791, %v1792
      %v1794 = vsel %vm1742, %v1789, %v1793
      %v1795 = vrot.slane %v1602, 1
      %v1796 = vrot.slane %v1598, 2
      %v1797 = vor.u32 %v1795, %v1796
      %v1798 = vsel %vm1742, %v1793, %v1797
      %v1799 = vrot.slane %v1610, 1
      %v1800 = vrot.slane %v1606, 2
      %v1801 = vor.u32 %v1799, %v1800
      %v1802 = vsel %vm1742, %v1797, %v1801
      %v1803 = vrot.slane %v1618, 1
      %v1804 = vrot.slane %v1614, 2
      %v1805 = vor.u32 %v1803, %v1804
      %v1806 = vsel %vm1742, %v1801, %v1805
      %v1807 = vrot.slane %v1626, 1
      %v1808 = vrot.slane %v1622, 2
      %v1809 = vor.u32 %v1807, %v1808
      %v1810 = vsel %vm1742, %v1805, %v1809
      %v1811 = vrot.slane %v1634, 1
      %v1812 = vrot.slane %v1630, 2
      %v1813 = vor.u32 %v1811, %v1812
      %v1814 = vsel %vm1742, %v1809, %v1813
      %v1816 = vshrl.u32 %v1728, 16
      %v1818 = vrot.slane %v1816, 1
      %v1819 = vshll.u32 %v1728, 16
      %v1821 = vrot.slane %v1819, 2
      %v1822 = vor.u32 %v1818, %v1821
      %v1823 = vsel %vm1742, %v1813, %v1822
      %v1825 = vshrl.u32 %v1741, 16
      %v1827 = vrot.slane %v1825, 1
      %v1828 = vshll.u32 %v1741, 16
      %v1830 = vrot.slane %v1828, 2
      %v1831 = vor.u32 %v1827, %v1830
      %v1832 = vsel %vm1742, %v1822, %v1831
      %v1852 = vunpack.c.l.b16 %v1375
      %v1853 = vpack.c.b16 %v1421, %v1852
      %vm1854 = vcmask 1045504
      %v1855 = vrot.slane %v1853, 2
      %v1856 = vrot.slane %v1456, 2
      %v1857 = vsel %vm1854, %v1855, %v1856
      %v1858 = vrot.slane %v1457, 2
      %v1859 = vsel %vm1854, %v1856, %v1858
      %v1860 = vrot.slane %v1458, 2
      %v1861 = vsel %vm1854, %v1858, %v1860
      %v1862 = vrot.slane %v1459, 2
      %v1863 = vsel %vm1854, %v1860, %v1862
      %v1864 = vrot.slane %v1460, 2
      %v1865 = vsel %vm1854, %v1862, %v1864
      %v1866 = vrot.slane %v1461, 2
      %v1867 = vsel %vm1854, %v1864, %v1866
      %v1868 = vrot.slane %v1462, 2
      %v1869 = vsel %vm1854, %v1866, %v1868
      %v1870 = vrot.slane %v1463, 2
      %v1871 = vsel %vm1854, %v1868, %v1870
      %v1872 = vrot.slane %v1464, 2
      %v1873 = vsel %vm1854, %v1870, %v1872
      %v1874 = vrot.slane %v1465, 2
      %v1875 = vsel %vm1854, %v1872, %v1874
      %v1876 = vrot.slane %v1466, 2
      %v1877 = vsel %vm1854, %v1874, %v1876
      %v1878 = vrot.slane %v1467, 2
      %v1879 = vsel %vm1854, %v1876, %v1878
      %v1880 = vrot.slane %v1468, 2
      %v1881 = vsel %vm1854, %v1878, %v1880
      %v1882 = vrot.slane %v1469, 2
      %v1883 = vsel %vm1854, %v1880, %v1882
      %v1884 = vrot.slane %v1470, 2
      %v1885 = vsel %vm1854, %v1882, %v1884
      %v1886 = vrot.slane %v1471, 2
      %v1887 = vsel %vm1854, %v1884, %v1886
      %v1888 = vrot.slane %v1728, 2
      %v1889 = vsel %vm1854, %v1886, %v1888
      %v1890 = vrot.slane %v1741, 2
      %v1891 = vsel %vm1854, %v1888, %v1890
      %v1914 = vunpack.c.l.b16 %v1376
      %v1915 = vunpack.c.l.b16 %v1377
      %v1916 = vunpack.c.l.b16 %v1378
      %v1917 = vunpack.c.l.b16 %v1379
      %v1918 = vpack.c.b16 %v1423, %v1914
      %v1919 = vpack.c.b16 %v1916, %v1915
      %v1920 = vpack.c.b16 %v1917, %v1917
      %v1921 = vrot.slane %v1918, 2
      %v1922 = vsel %vm1854, %v1921, %v1858
      %v1923 = vrot.slane %v1919, 2
      %v1924 = vsel %vm1854, %v1888, %v1923
      %v1925 = vrot.slane %v1920, 2
      %v1926 = vsel %vm1854, %v1923, %v1925
      %v1931 = vunpack.c.l.b16 %v1380
      %v1932 = vpack.c.b16 %v1931, %v1931
      %vm1933 = vsmask.f32 5376
      %v1935 = vshrl.u32 %v1918, 16
      %v1937 = vrot.slane %v1935, 2
      %v1938 = vshll.u32 %v1918, 16
      %v1940 = vrot.slane %v1938, 3
      %v1941 = vor.u32 %v1937, %v1940
      %v1942 = vrot.slane %v1522, 2
      %v1943 = vrot.slane %v1518, 3
      %v1944 = vor.u32 %v1942, %v1943
      %v1945 = vsel %vm1933, %v1941, %v1944
      %v1946 = vrot.slane %v1530, 2
      %v1947 = vrot.slane %v1526, 3
      %v1948 = vor.u32 %v1946, %v1947
      %v1949 = vsel %vm1933, %v1944, %v1948
      %v1950 = vrot.slane %v1538, 2
      %v1951 = vrot.slane %v1534, 3
      %v1952 = vor.u32 %v1950, %v1951
      %v1953 = vsel %vm1933, %v1948, %v1952
      %v1954 = vrot.slane %v1546, 2
      %v1955 = vrot.slane %v1542, 3
      %v1956 = vor.u32 %v1954, %v1955
      %v1957 = vsel %vm1933, %v1952, %v1956
      %v1958 = vrot.slane %v1554, 2
      %v1959 = vrot.slane %v1550, 3
      %v1960 = vor.u32 %v1958, %v1959
      %v1961 = vsel %vm1933, %v1956, %v1960
      %v1962 = vrot.slane %v1562, 2
      %v1963 = vrot.slane %v1558, 3
      %v1964 = vor.u32 %v1962, %v1963
      %v1965 = vsel %vm1933, %v1960, %v1964
      %v1966 = vrot.slane %v1570, 2
      %v1967 = vrot.slane %v1566, 3
      %v1968 = vor.u32 %v1966, %v1967
      %v1969 = vsel %vm1933, %v1964, %v1968
      %v1970 = vrot.slane %v1578, 2
      %v1971 = vrot.slane %v1574, 3
      %v1972 = vor.u32 %v1970, %v1971
      %v1973 = vsel %vm1933, %v1968, %v1972
      %v1974 = vrot.slane %v1586, 2
      %v1975 = vrot.slane %v1582, 3
      %v1976 = vor.u32 %v1974, %v1975
      %v1977 = vsel %vm1933, %v1972, %v1976
      %v1978 = vrot.slane %v1594, 2
      %v1979 = vrot.slane %v1590, 3
      %v1980 = vor.u32 %v1978, %v1979
      %v1981 = vsel %vm1933, %v1976, %v1980
      %v1982 = vrot.slane %v1602, 2
      %v1983 = vrot.slane %v1598, 3
      %v1984 = vor.u32 %v1982, %v1983
      %v1985 = vsel %vm1933, %v1980, %v1984
      %v1986 = vrot.slane %v1610, 2
      %v1987 = vrot.slane %v1606, 3
      %v1988 = vor.u32 %v1986, %v1987
      %v1989 = vsel %vm1933, %v1984, %v1988
      %v1990 = vrot.slane %v1618, 2
      %v1991 = vrot.slane %v1614, 3
      %v1992 = vor.u32 %v1990, %v1991
      %v1993 = vsel %vm1933, %v1988, %v1992
      %v1994 = vrot.slane %v1626, 2
      %v1995 = vrot.slane %v1622, 3
      %v1996 = vor.u32 %v1994, %v1995
      %v1997 = vsel %vm1933, %v1992, %v1996
      %v1998 = vrot.slane %v1634, 2
      %v1999 = vrot.slane %v1630, 3
      %v2000 = vor.u32 %v1998, %v1999
      %v2001 = vsel %vm1933, %v1996, %v2000
      %v2002 = vrot.slane %v1816, 2
      %v2003 = vrot.slane %v1819, 3
      %v2004 = vor.u32 %v2002, %v2003
      %v2005 = vsel %vm1933, %v2000, %v2004
      %v2007 = vshrl.u32 %v1919, 16
      %v2009 = vrot.slane %v2007, 2
      %v2010 = vshll.u32 %v1919, 16
      %v2012 = vrot.slane %v2010, 3
      %v2013 = vor.u32 %v2009, %v2012
      %v2014 = vsel %vm1933, %v2004, %v2013
      %v2016 = vshrl.u32 %v1932, 16
      %v2018 = vrot.slane %v2016, 2
      %v2019 = vshll.u32 %v1932, 16
      %v2021 = vrot.slane %v2019, 3
      %v2022 = vor.u32 %v2018, %v2021
      %v2023 = vsel %vm1933, %v2013, %v2022
      %v2043 = vunpack.c.l.b16 %v1381
      %v2044 = vpack.c.b16 %v1423, %v2043
      %vm2045 = vcmask 1044480
      %v2046 = vrot.slane %v2044, 3
      %v2047 = vrot.slane %v1457, 3
      %v2048 = vsel %vm2045, %v2046, %v2047
      %v2049 = vrot.slane %v1458, 3
      %v2050 = vsel %vm2045, %v2047, %v2049
      %v2051 = vrot.slane %v1459, 3
      %v2052 = vsel %vm2045, %v2049, %v2051
      %v2053 = vrot.slane %v1460, 3
      %v2054 = vsel %vm2045, %v2051, %v2053
      %v2055 = vrot.slane %v1461, 3
      %v2056 = vsel %vm2045, %v2053, %v2055
      %v2057 = vrot.slane %v1462, 3
      %v2058 = vsel %vm2045, %v2055, %v2057
      %v2059 = vrot.slane %v1463, 3
      %v2060 = vsel %vm2045, %v2057, %v2059
      %v2061 = vrot.slane %v1464, 3
      %v2062 = vsel %vm2045, %v2059, %v2061
      %v2063 = vrot.slane %v1465, 3
      %v2064 = vsel %vm2045, %v2061, %v2063
      %v2065 = vrot.slane %v1466, 3
      %v2066 = vsel %vm2045, %v2063, %v2065
      %v2067 = vrot.slane %v1467, 3
      %v2068 = vsel %vm2045, %v2065, %v2067
      %v2069 = vrot.slane %v1468, 3
      %v2070 = vsel %vm2045, %v2067, %v2069
      %v2071 = vrot.slane %v1469, 3
      %v2072 = vsel %vm2045, %v2069, %v2071
      %v2073 = vrot.slane %v1470, 3
      %v2074 = vsel %vm2045, %v2071, %v2073
      %v2075 = vrot.slane %v1471, 3
      %v2076 = vsel %vm2045, %v2073, %v2075
      %v2077 = vrot.slane %v1728, 3
      %v2078 = vsel %vm2045, %v2075, %v2077
      %v2079 = vrot.slane %v1919, 3
      %v2080 = vsel %vm2045, %v2077, %v2079
      %v2081 = vrot.slane %v1932, 3
      %v2082 = vsel %vm2045, %v2079, %v2081
      %v2101 = vld [vmem:[%s4] sm:$0xf]
      %v2102 = vld [vmem:[%s4 + $0x4] sm:$0xf]
      %v2103 = vld [vmem:[%s4 + $0x8] sm:$0xf]
      %v2104 = vld [vmem:[%s4 + $0xc] sm:$0xf]
      %v2105 = vld [vmem:[%s4 + $0x10] sm:$0xf]
      %v2106 = vld [vmem:[%s4 + $0x14] sm:$0xf]
      %v2107 = vld [vmem:[%s4 + $0x18] sm:$0xf]
      %v2108 = vld [vmem:[%s4 + $0x1c] sm:$0xf]
      %v2109 = vld [vmem:[%s4 + $0x20] sm:$0xf]
      %v2110 = vld [vmem:[%s4 + $0x24] sm:$0xf]
      %v2111 = vld [vmem:[%s4 + $0x28] sm:$0xf]
      %v2112 = vld [vmem:[%s4 + $0x2c] sm:$0xf]
      %v2113 = vld [vmem:[%s4 + $0x30] sm:$0xf]
      %v2114 = vld [vmem:[%s4 + $0x34] sm:$0xf]
      %v2115 = vld [vmem:[%s4 + $0x38] sm:$0xf]
      %v2116 = vld [vmem:[%s4 + $0x3c] sm:$0xf]
      %v2117 = vld [vmem:[%s4 + $0x40] sm:$0xf]
      %v2118 = vld [vmem:[%s4 + $0x44] sm:$0xf]
      %v2119 = vld [vmem:[%s4 + $0x48] sm:$0xf]
      %v2120 = vld [vmem:[%s4 + $0x4c] sm:$0xf]
      %v2121 = vld [vmem:[%s4 + $0x50] sm:$0xf]
      %v2122 = vld [vmem:[%s4 + $0x54] sm:$0xf]
      %v2123 = vld [vmem:[%s4 + $0x58] sm:$0xf]
      %v2124 = vld [vmem:[%s4 + $0x5c] sm:$0xf]
      %v2125 = vld [vmem:[%s4 + $0x60] sm:$0xf]
      %v2126 = vld [vmem:[%s4 + $0x64] sm:$0xf]
      %v2127 = vld [vmem:[%s4 + $0x68] sm:$0xf]
      %v2128 = vld [vmem:[%s4 + $0x6c] sm:$0xf]
      %v2129 = vld [vmem:[%s4 + $0x70] sm:$0xf]
      %v2130 = vld [vmem:[%s4 + $0x74] sm:$0xf]
      %v2131 = vld [vmem:[%s4 + $0x78] sm:$0xf]
      %v2132 = vld [vmem:[%s4 + $0x7c] sm:$0xf]
      %v2133 = vld [vmem:[%s4 + $0x80] sm:$0xf]
      %v2134 = vld [vmem:[%s4 + $0x84] sm:$0xf]
      %v2135 = vld [vmem:[%s4 + $0x88] sm:$0xf]
      %v2136 = vld [vmem:[%s4 + $0x8c] sm:$0xf]
      %v2137 = vld [vmem:[%s4 + $0x90] sm:$0xf]
      %v2138 = vld [vmem:[%s4 + $0x94] sm:$0xf]
      %v2139 = vld [vmem:[%s4 + $0x98] sm:$0xf]
      %v2140 = vld [vmem:[%s4 + $0x9c] sm:$0xf]
      %v2141 = vld [vmem:[%s4 + $0xa0] sm:$0xf]
      %v2142 = vld [vmem:[%s4 + $0xa4] sm:$0xf]
      %v2143 = vld [vmem:[%s4 + $0xa8] sm:$0xf]
      %v2144 = vld [vmem:[%s4 + $0xac] sm:$0xf]
      %v2145 = vld [vmem:[%s4 + $0xb0] sm:$0xf]
      %v2146 = vld [vmem:[%s4 + $0xb4] sm:$0xf]
      %v2147 = vld [vmem:[%s4 + $0xb8] sm:$0xf]
      %v2148 = vld [vmem:[%s4 + $0xbc] sm:$0xf]
      %v2149 = vld [vmem:[%s4 + $0xc0] sm:$0xf]
      %v2150 = vld [vmem:[%s4 + $0xc4] sm:$0xf]
      %v2151 = vld [vmem:[%s4 + $0xc8] sm:$0xf]
      %v2152 = vld [vmem:[%s4 + $0xcc] sm:$0xf]
      %v2153 = vld [vmem:[%s4 + $0xd0] sm:$0xf]
      %v2154 = vld [vmem:[%s4 + $0xd4] sm:$0xf]
      %v2155 = vld [vmem:[%s4 + $0xd8] sm:$0xf]
      %v2156 = vld [vmem:[%s4 + $0xdc] sm:$0xf]
      %v2157 = vld [vmem:[%s4 + $0xe0] sm:$0xf]
      %v2158 = vld [vmem:[%s4 + $0xe4] sm:$0xf]
      %v2159 = vld [vmem:[%s4 + $0xe8] sm:$0xf]
      %v2160 = vld [vmem:[%s4 + $0xec] sm:$0xf]
      %v2161 = vld [vmem:[%s4 + $0xf0] sm:$0xf]
      %v2162 = vld [vmem:[%s4 + $0xf4] sm:$0xf]
      %v2163 = vld [vmem:[%s4 + $0xf8] sm:$0xf]
      %v2164 = vld [vmem:[%s4 + $0xfc] sm:$0xf]
      %v2165 = vld [vmem:[%s4 + $0x100] sm:$0xf]
      %v2166 = vld [vmem:[%s4 + $0x104] sm:$0xf]
      %v2167 = vld [vmem:[%s4 + $0x108] sm:$0xf]
      %v2168 = vld [vmem:[%s4 + $0x10c] sm:$0xf]
      %v2169 = vld [vmem:[%s4 + $0x110] sm:$0xf]
      %v2170 = vld [vmem:[%s4 + $0x114] sm:$0xf]
      %v2171 = vld [vmem:[%s4 + $0x118] sm:$0xf]
      %v2172 = vld [vmem:[%s4 + $0x11c] sm:$0xf]
      %v2173 = vld [vmem:[%s4 + $0x120] sm:$0xf]
      %v2174 = vld [vmem:[%s4 + $0x124] sm:$0xf]
      %v2175 = vld [vmem:[%s4 + $0x128] sm:$0xf]
      %v2176 = vld [vmem:[%s4 + $0x12c] sm:$0xf]
      %v2177 = vld [vmem:[%s4 + $0x130] sm:$0xf]
      %v2178 = vld [vmem:[%s4 + $0x134] sm:$0xf]
      %v2179 = vld [vmem:[%s4 + $0x138] sm:$0xf]
      %v2180 = vld [vmem:[%s4 + $0x13c] sm:$0xf]
      %v2181 = vld [vmem:[%s4 + $0x140] sm:$0xf]
      %v2182 = vld [vmem:[%s4 + $0x144] sm:$0xf]
      %v2183 = vld [vmem:[%s4 + $0x148] sm:$0xf]
      %v2184 = vld [vmem:[%s4 + $0x14c] sm:$0xf]
      %v2185 = vld [vmem:[%s4 + $0x150] sm:$0xf]
      %v2186 = vld [vmem:[%s4 + $0x154] sm:$0xf]
      %v2187 = vld [vmem:[%s4 + $0x158] sm:$0xf]
      %v2188 = vld [vmem:[%s4 + $0x15c] sm:$0xf]
      %v2189 = vld [vmem:[%s4 + $0x160] sm:$0xf]
      %v2190 = vld [vmem:[%s4 + $0x164] sm:$0xf]
      %v2191 = vld [vmem:[%s4 + $0x168] sm:$0xf]
      %v2192 = vld [vmem:[%s4 + $0x16c] sm:$0xf]
      %v2193 = vld [vmem:[%s4 + $0x170] sm:$0xf]
      %v2194 = vld [vmem:[%s4 + $0x174] sm:$0xf]
      %v2195 = vld [vmem:[%s4 + $0x178] sm:$0xf]
      %v2196 = vld [vmem:[%s4 + $0x17c] sm:$0xf]
      %v2197 = vld [vmem:[%s4 + $0x180] sm:$0xf]
      %v2198 = vld [vmem:[%s4 + $0x184] sm:$0xf]
      %v2199 = vld [vmem:[%s4 + $0x188] sm:$0xf]
      %v2200 = vld [vmem:[%s4 + $0x18c] sm:$0xf]
      %v2201 = vld [vmem:[%s4 + $0x190] sm:$0xf]
      %v2202 = vld [vmem:[%s4 + $0x194] sm:$0xf]
      %v2203 = vld [vmem:[%s4 + $0x198] sm:$0xf]
      %v2204 = vld [vmem:[%s4 + $0x19c] sm:$0xf]
      %v2205 = vld [vmem:[%s4 + $0x1a0] sm:$0xf]
      %v2206 = vld [vmem:[%s4 + $0x1a4] sm:$0xf]
      %v2207 = vld [vmem:[%s4 + $0x1a8] sm:$0xf]
      %v2208 = vld [vmem:[%s4 + $0x1ac] sm:$0xf]
      %v2209 = vld [vmem:[%s4 + $0x1b0] sm:$0xf]
      %v2210 = vld [vmem:[%s4 + $0x1b4] sm:$0xf]
      %v2211 = vld [vmem:[%s4 + $0x1b8] sm:$0xf]
      %v2212 = vld [vmem:[%s4 + $0x1bc] sm:$0xf]
      %v2213 = vld [vmem:[%s4 + $0x1c0] sm:$0xf]
      %v2214 = vld [vmem:[%s4 + $0x1c4] sm:$0xf]
      %v2215 = vld [vmem:[%s4 + $0x1c8] sm:$0xf]
      %v2216 = vld [vmem:[%s4 + $0x1cc] sm:$0xf]
      %v2217 = vld [vmem:[%s4 + $0x1d0] sm:$0xf]
      %v2218 = vld [vmem:[%s4 + $0x1d4] sm:$0xf]
      %v2219 = vld [vmem:[%s4 + $0x1d8] sm:$0xf]
      %v2220 = vld [vmem:[%s4 + $0x1dc] sm:$0xf]
      %v2221 = vld [vmem:[%s4 + $0x1e0] sm:$0xf]
      %v2222 = vld [vmem:[%s4 + $0x1e4] sm:$0xf]
      %v2223 = vld [vmem:[%s4 + $0x1e8] sm:$0xf]
      %v2224 = vld [vmem:[%s4 + $0x1ec] sm:$0xf]
      %v2225 = vld [vmem:[%s4 + $0x1f0] sm:$0xf]
      %v2226 = vld [vmem:[%s4 + $0x1f4] sm:$0xf]
      %v2227 = vld [vmem:[%s4 + $0x1f8] sm:$0xf]
      %v2228 = vld [vmem:[%s4 + $0x1fc] sm:$0xf]
      %v2229 = vld [vmem:[%s4 + $0x200] sm:$0xf]
      %v2230 = vld [vmem:[%s4 + $0x204] sm:$0xf]
      %v2231 = vld [vmem:[%s4 + $0x208] sm:$0xf]
      %v2232 = vld [vmem:[%s4 + $0x20c] sm:$0xf]
      %v2233 = vld [vmem:[%s4 + $0x210] sm:$0xf]
      %v2234 = vld [vmem:[%s4 + $0x214] sm:$0xf]
      %v2235 = vld [vmem:[%s4 + $0x218] sm:$0xf]
      %v2236 = vld [vmem:[%s4 + $0x21c] sm:$0xf]
      %v2237 = vld [vmem:[%s4 + $0x220] sm:$0xf]
      %v2238 = vld [vmem:[%s4 + $0x224] sm:$0xf]
      %v2239 = vld [vmem:[%s4 + $0x228] sm:$0xf]
      %v2240 = vld [vmem:[%s4 + $0x22c] sm:$0xf]
      %v2241 = vld [vmem:[%s4 + $0x230] sm:$0xf]
      %v2242 = vld [vmem:[%s4 + $0x234] sm:$0xf]
      %v2243 = vld [vmem:[%s4 + $0x238] sm:$0xf]
      %v2244 = vld [vmem:[%s4 + $0x23c] sm:$0xf]
      %v2389 = vunpack.c.l.b16 %v2101
      %v2390 = vunpack.c.l.b16 %v2102
      %v2391 = vunpack.c.l.b16 %v2103
      %v2392 = vunpack.c.l.b16 %v2104
      %v2393 = vunpack.c.l.b16 %v2105
      %v2394 = vunpack.c.l.b16 %v2106
      %v2395 = vunpack.c.l.b16 %v2107
      %v2396 = vunpack.c.l.b16 %v2108
      %v2397 = vunpack.c.l.b16 %v2109
      %v2398 = vunpack.c.l.b16 %v2110
      %v2399 = vunpack.c.l.b16 %v2111
      %v2400 = vunpack.c.l.b16 %v2112
      %v2401 = vunpack.c.l.b16 %v2113
      %v2402 = vunpack.c.l.b16 %v2114
      %v2403 = vunpack.c.l.b16 %v2115
      %v2404 = vunpack.c.l.b16 %v2116
      %v2405 = vunpack.c.l.b16 %v2117
      %v2406 = vunpack.c.l.b16 %v2118
      %v2407 = vunpack.c.l.b16 %v2119
      %v2408 = vunpack.c.l.b16 %v2120
      %v2409 = vunpack.c.l.b16 %v2121
      %v2410 = vunpack.c.l.b16 %v2122
      %v2411 = vunpack.c.l.b16 %v2123
      %v2412 = vunpack.c.l.b16 %v2124
      %v2413 = vunpack.c.l.b16 %v2125
      %v2414 = vunpack.c.l.b16 %v2126
      %v2415 = vunpack.c.l.b16 %v2127
      %v2416 = vunpack.c.l.b16 %v2128
      %v2417 = vunpack.c.l.b16 %v2129
      %v2418 = vunpack.c.l.b16 %v2130
      %v2419 = vunpack.c.l.b16 %v2131
      %v2420 = vunpack.c.l.b16 %v2132
      %v2421 = vunpack.c.l.b16 %v2133
      %v2422 = vunpack.c.l.b16 %v2134
      %v2423 = vunpack.c.l.b16 %v2135
      %v2424 = vunpack.c.l.b16 %v2136
      %v2425 = vunpack.c.l.b16 %v2137
      %v2426 = vunpack.c.l.b16 %v2138
      %v2427 = vunpack.c.l.b16 %v2139
      %v2428 = vunpack.c.l.b16 %v2140
      %v2429 = vunpack.c.l.b16 %v2141
      %v2430 = vunpack.c.l.b16 %v2142
      %v2431 = vunpack.c.l.b16 %v2143
      %v2432 = vunpack.c.l.b16 %v2144
      %v2433 = vunpack.c.l.b16 %v2145
      %v2434 = vunpack.c.l.b16 %v2146
      %v2435 = vunpack.c.l.b16 %v2147
      %v2436 = vunpack.c.l.b16 %v2148
      %v2437 = vunpack.c.l.b16 %v2149
      %v2438 = vunpack.c.l.b16 %v2150
      %v2439 = vunpack.c.l.b16 %v2151
      %v2440 = vunpack.c.l.b16 %v2152
      %v2441 = vunpack.c.l.b16 %v2153
      %v2442 = vunpack.c.l.b16 %v2154
      %v2443 = vunpack.c.l.b16 %v2155
      %v2444 = vunpack.c.l.b16 %v2156
      %v2445 = vunpack.c.l.b16 %v2157
      %v2446 = vunpack.c.l.b16 %v2158
      %v2447 = vunpack.c.l.b16 %v2159
      %v2448 = vunpack.c.l.b16 %v2160
      %v2449 = vunpack.c.l.b16 %v2161
      %v2450 = vunpack.c.l.b16 %v2162
      %v2451 = vunpack.c.l.b16 %v2163
      %v2452 = vunpack.c.l.b16 %v2164
      %v2453 = vunpack.c.l.b16 %v2165
      %v2454 = vunpack.c.l.b16 %v2166
      %v2455 = vunpack.c.l.b16 %v2167
      %v2456 = vunpack.c.l.b16 %v2168
      %v2457 = vunpack.c.l.b16 %v2169
      %v2458 = vunpack.c.l.b16 %v2170
      %v2459 = vunpack.c.l.b16 %v2171
      %v2460 = vunpack.c.l.b16 %v2172
      %v2461 = vunpack.c.l.b16 %v2173
      %v2462 = vunpack.c.l.b16 %v2174
      %v2463 = vunpack.c.l.b16 %v2175
      %v2464 = vunpack.c.l.b16 %v2176
      %v2465 = vunpack.c.l.b16 %v2177
      %v2466 = vunpack.c.l.b16 %v2178
      %v2467 = vunpack.c.l.b16 %v2179
      %v2468 = vunpack.c.l.b16 %v2180
      %v2469 = vunpack.c.l.b16 %v2181
      %v2470 = vunpack.c.l.b16 %v2182
      %v2471 = vunpack.c.l.b16 %v2183
      %v2472 = vunpack.c.l.b16 %v2184
      %v2473 = vunpack.c.l.b16 %v2185
      %v2474 = vunpack.c.l.b16 %v2186
      %v2475 = vunpack.c.l.b16 %v2187
      %v2476 = vunpack.c.l.b16 %v2188
      %v2477 = vunpack.c.l.b16 %v2189
      %v2478 = vunpack.c.l.b16 %v2190
      %v2479 = vunpack.c.l.b16 %v2191
      %v2480 = vunpack.c.l.b16 %v2192
      %v2481 = vunpack.c.l.b16 %v2193
      %v2482 = vunpack.c.l.b16 %v2194
      %v2483 = vunpack.c.l.b16 %v2195
      %v2484 = vunpack.c.l.b16 %v2196
      %v2485 = vunpack.c.l.b16 %v2197
      %v2486 = vunpack.c.l.b16 %v2198
      %v2487 = vunpack.c.l.b16 %v2199
      %v2488 = vunpack.c.l.b16 %v2200
      %v2489 = vunpack.c.l.b16 %v2201
      %v2490 = vunpack.c.l.b16 %v2202
      %v2491 = vunpack.c.l.b16 %v2203
      %v2492 = vunpack.c.l.b16 %v2204
      %v2493 = vunpack.c.l.b16 %v2205
      %v2494 = vunpack.c.l.b16 %v2206
      %v2495 = vunpack.c.l.b16 %v2207
      %v2496 = vunpack.c.l.b16 %v2208
      %v2497 = vunpack.c.l.b16 %v2209
      %v2498 = vunpack.c.l.b16 %v2210
      %v2499 = vunpack.c.l.b16 %v2211
      %v2500 = vunpack.c.l.b16 %v2212
      %v2501 = vunpack.c.l.b16 %v2213
      %v2502 = vunpack.c.l.b16 %v2214
      %v2503 = vunpack.c.l.b16 %v2215
      %v2504 = vunpack.c.l.b16 %v2216
      %v2505 = vunpack.c.l.b16 %v2217
      %v2506 = vunpack.c.l.b16 %v2218
      %v2507 = vunpack.c.l.b16 %v2219
      %v2508 = vunpack.c.l.b16 %v2220
      %v2509 = vunpack.c.l.b16 %v2221
      %v2510 = vunpack.c.l.b16 %v2222
      %v2511 = vunpack.c.l.b16 %v2223
      %v2512 = vunpack.c.l.b16 %v2224
      %v2513 = vunpack.c.l.b16 %v2225
      %v2514 = vunpack.c.l.b16 %v2226
      %v2515 = vunpack.c.l.b16 %v2227
      %v2516 = vunpack.c.l.b16 %v2228
      %v2517 = vunpack.c.l.b16 %v2229
      %v2518 = vunpack.c.l.b16 %v2230
      %v2519 = vunpack.c.l.b16 %v2231
      %v2520 = vunpack.c.l.b16 %v2232
      %v2521 = vunpack.c.l.b16 %v2233
      %v2522 = vunpack.c.l.b16 %v2234
      %v2523 = vunpack.c.l.b16 %v2235
      %v2524 = vunpack.c.l.b16 %v2236
      %v2525 = vunpack.c.l.b16 %v2237
      %v2526 = vunpack.c.l.b16 %v2238
      %v2527 = vunpack.c.l.b16 %v2239
      %v2528 = vunpack.c.l.b16 %v2240
      %v2529 = vunpack.c.l.b16 %v2241
      %v2530 = vunpack.c.l.b16 %v2242
      %v2531 = vunpack.c.l.b16 %v2243
      %v2532 = vunpack.c.l.b16 %v2244
      %v2533 = vpack.c.b16 %v2390, %v2389
      %v2534 = vpack.c.b16 %v2392, %v2391
      %v2535 = vpack.c.b16 %v2394, %v2393
      %v2536 = vpack.c.b16 %v2396, %v2395
      %v2537 = vpack.c.b16 %v2398, %v2397
      %v2538 = vpack.c.b16 %v2400, %v2399
      %v2539 = vpack.c.b16 %v2402, %v2401
      %v2540 = vpack.c.b16 %v2404, %v2403
      %v2541 = vpack.c.b16 %v2406, %v2405
      %v2542 = vpack.c.b16 %v2408, %v2407
      %v2543 = vpack.c.b16 %v2410, %v2409
      %v2544 = vpack.c.b16 %v2412, %v2411
      %v2545 = vpack.c.b16 %v2414, %v2413
      %v2546 = vpack.c.b16 %v2416, %v2415
      %v2547 = vpack.c.b16 %v2418, %v2417
      %v2548 = vpack.c.b16 %v2420, %v2419
      %v2549 = vpack.c.b16 %v2422, %v2421
      %v2550 = vpack.c.b16 %v2424, %v2423
      %v2551 = vpack.c.b16 %v2426, %v2425
      %v2552 = vpack.c.b16 %v2428, %v2427
      %v2553 = vpack.c.b16 %v2430, %v2429
      %v2554 = vpack.c.b16 %v2432, %v2431
      %v2555 = vpack.c.b16 %v2434, %v2433
      %v2556 = vpack.c.b16 %v2436, %v2435
      %v2557 = vpack.c.b16 %v2438, %v2437
      %v2558 = vpack.c.b16 %v2440, %v2439
      %v2559 = vpack.c.b16 %v2442, %v2441
      %v2560 = vpack.c.b16 %v2444, %v2443
      %v2561 = vpack.c.b16 %v2446, %v2445
      %v2562 = vpack.c.b16 %v2448, %v2447
      %v2563 = vpack.c.b16 %v2450, %v2449
      %v2564 = vpack.c.b16 %v2452, %v2451
      %v2565 = vpack.c.b16 %v2454, %v2453
      %v2566 = vpack.c.b16 %v2456, %v2455
      %v2567 = vpack.c.b16 %v2458, %v2457
      %v2568 = vpack.c.b16 %v2460, %v2459
      %v2569 = vpack.c.b16 %v2462, %v2461
      %v2570 = vpack.c.b16 %v2464, %v2463
      %v2571 = vpack.c.b16 %v2466, %v2465
      %v2572 = vpack.c.b16 %v2468, %v2467
      %v2573 = vpack.c.b16 %v2470, %v2469
      %v2574 = vpack.c.b16 %v2472, %v2471
      %v2575 = vpack.c.b16 %v2474, %v2473
      %v2576 = vpack.c.b16 %v2476, %v2475
      %v2577 = vpack.c.b16 %v2478, %v2477
      %v2578 = vpack.c.b16 %v2480, %v2479
      %v2579 = vpack.c.b16 %v2482, %v2481
      %v2580 = vpack.c.b16 %v2484, %v2483
      %v2581 = vpack.c.b16 %v2486, %v2485
      %v2582 = vpack.c.b16 %v2488, %v2487
      %v2583 = vpack.c.b16 %v2490, %v2489
      %v2584 = vpack.c.b16 %v2492, %v2491
      %v2585 = vpack.c.b16 %v2494, %v2493
      %v2586 = vpack.c.b16 %v2496, %v2495
      %v2587 = vpack.c.b16 %v2498, %v2497
      %v2588 = vpack.c.b16 %v2500, %v2499
      %v2589 = vpack.c.b16 %v2502, %v2501
      %v2590 = vpack.c.b16 %v2504, %v2503
      %v2591 = vpack.c.b16 %v2506, %v2505
      %v2592 = vpack.c.b16 %v2508, %v2507
      %v2593 = vpack.c.b16 %v2510, %v2509
      %v2594 = vpack.c.b16 %v2512, %v2511
      %v2595 = vpack.c.b16 %v2514, %v2513
      %v2596 = vpack.c.b16 %v2516, %v2515
      %v2597 = vpack.c.b16 %v2518, %v2517
      %v2598 = vpack.c.b16 %v2520, %v2519
      %v2599 = vpack.c.b16 %v2522, %v2521
      %v2600 = vpack.c.b16 %v2524, %v2523
      %v2601 = vpack.c.b16 %v2526, %v2525
      %v2602 = vpack.c.b16 %v2528, %v2527
      %v2603 = vpack.c.b16 %v2530, %v2529
      %v2604 = vpack.c.b16 %v2532, %v2531
      %2677 = vmatprep.subr.bf16.mxu0 0
      %2678 = vmatpush1.bf16.msra.mxu0 %v2533
      %2679 = vmatprep.subr.bf16.mxu0 0
      %2680 = vmatpush1.bf16.msra.mxu0 %v2534
      %2681 = vmatprep.subr.bf16.mxu0 0
      %2682 = vmatpush1.bf16.msra.mxu0 %v2535
      %2683 = vmatprep.subr.bf16.mxu0 0
      %2684 = vmatpush1.bf16.msra.mxu0 %v2536
      %2685 = vmatprep.subr.bf16.mxu0 0
      %2686 = vmatpush1.bf16.msra.mxu0 %v2537
      %2687 = vmatprep.subr.bf16.mxu0 0
      %2688 = vmatpush1.bf16.msra.mxu0 %v2538
      %2689 = vmatprep.subr.bf16.mxu0 0
      %2690 = vmatpush1.bf16.msra.mxu0 %v2539
      %2691 = vmatprep.subr.bf16.mxu0 0
      %2692 = vmatpush1.bf16.msra.mxu0 %v2540
      %2693 = vmatprep.subr.bf16.mxu0 0
      %2694 = vmatpush1.bf16.msra.mxu0 %v2541
      %2695 = vmatprep.subr.bf16.mxu0 0
      %2696 = vmatpush1.bf16.msra.mxu0 %v2542
      %2697 = vmatprep.subr.bf16.mxu0 0
      %2698 = vmatpush1.bf16.msra.mxu0 %v2543
      %2699 = vmatprep.subr.bf16.mxu0 0
      %2700 = vmatpush1.bf16.msra.mxu0 %v2544
      %2701 = vmatprep.subr.bf16.mxu0 0
      %2702 = vmatpush1.bf16.msra.mxu0 %v2545
      %2703 = vmatprep.subr.bf16.mxu0 0
      %2704 = vmatpush1.bf16.msra.mxu0 %v2546
      %2705 = vmatprep.subr.bf16.mxu0 0
      %2706 = vmatpush1.bf16.msra.mxu0 %v2547
      %2707 = vmatprep.subr.bf16.mxu0 0
      %2708 = vmatpush1.bf16.msra.mxu0 %v2548
      %2709 = vmatprep.mubr.bf16.mxu0 %v1505
      %2710 = vmatmul.mubr.bf16.gmra.mrb[0].mxu0 %v1454
      %v2711 = vpop.f32.mrb[0].mxu0
      %v2712 = vadd.f32 0.0, %v2711
      %v2713 = vpop.f32.mrb[0].mxu0
      %v2714 = vpop.f32.mrb[0].mxu0
      %v2715 = vadd.f32 0.0, %v2714
      %v2716 = vpop.f32.mrb[0].mxu0
      %2717 = vmatprep.mubr.bf16.mxu0 %v1513
      %2718 = vmatmul.mubr.bf16.gmra.mrb[0].mxu0 %v1455
      %v2719 = vpop.f32.mrb[0].mxu0
      %v2720 = vadd.f32 0.0, %v2719
      %v2721 = vpop.f32.mrb[0].mxu0
      %v2722 = vpop.f32.mrb[0].mxu0
      %v2723 = vadd.f32 0.0, %v2722
      %v2724 = vpop.f32.mrb[0].mxu0
      %2725 = vmatprep.mubr.bf16.mxu0 %v1521
      %2726 = vmatmul.mubr.bf16.gmra.mrb[0].mxu0 %v1456
      %v2727 = vpop.f32.mrb[0].mxu0
      %v2728 = vadd.f32 0.0, %v2727
      %v2729 = vpop.f32.mrb[0].mxu0
      %v2730 = vpop.f32.mrb[0].mxu0
      %v2731 = vadd.f32 0.0, %v2730
      %v2732 = vpop.f32.mrb[0].mxu0
      %2733 = vmatprep.mubr.bf16.mxu0 %v1529
      %2734 = vmatmul.mubr.bf16.gmra.mrb[0].mxu0 %v1457
      %v2735 = vpop.f32.mrb[0].mxu0
      %v2736 = vadd.f32 0.0, %v2735
      %v2737 = vpop.f32.mrb[0].mxu0
      %v2738 = vpop.f32.mrb[0].mxu0
      %v2739 = vadd.f32 0.0, %v2738
      %v2740 = vpop.f32.mrb[0].mxu0
      %2741 = vmatprep.mubr.bf16.mxu0 %v1537
      %2742 = vmatmul.mubr.bf16.gmra.mrb[0].mxu0 %v1458
      %v2743 = vpop.f32.mrb[0].mxu0
      %v2744 = vadd.f32 0.0, %v2743
      %v2745 = vpop.f32.mrb[0].mxu0
      %v2746 = vpop.f32.mrb[0].mxu0
      %v2747 = vadd.f32 0.0, %v2746
      %v2748 = vpop.f32.mrb[0].mxu0
      %2749 = vmatprep.mubr.bf16.mxu0 %v1545
      %2750 = vmatmul.mubr.bf16.gmra.mrb[0].mxu0 %v1459
      %v2751 = vpop.f32.mrb[0].mxu0
      %v2752 = vadd.f32 0.0, %v2751
      %v2753 = vpop.f32.mrb[0].mxu0
      %v2754 = vpop.f32.mrb[0].mxu0
      %v2755 = vadd.f32 0.0, %v2754
      %v2756 = vpop.f32.mrb[0].mxu0
      %2757 = vmatprep.mubr.bf16.mxu0 %v1553
      %2758 = vmatmul.mubr.bf16.gmra.mrb[0].mxu0 %v1460
      %v2759 = vpop.f32.mrb[0].mxu0
      %v2760 = vadd.f32 0.0, %v2759
      %v2761 = vpop.f32.mrb[0].mxu0
      %v2762 = vpop.f32.mrb[0].mxu0
      %v2763 = vadd.f32 0.0, %v2762
      %v2764 = vpop.f32.mrb[0].mxu0
      %2765 = vmatprep.mubr.bf16.mxu0 %v1561
      %2766 = vmatmul.mubr.bf16.gmra.mrb[0].mxu0 %v1461
      %v2767 = vpop.f32.mrb[0].mxu0
      %v2768 = vadd.f32 0.0, %v2767
      %v2769 = vpop.f32.mrb[0].mxu0
      %v2770 = vpop.f32.mrb[0].mxu0
      %v2771 = vadd.f32 0.0, %v2770
      %v2772 = vpop.f32.mrb[0].mxu0
      %2773 = vmatprep.mubr.bf16.mxu0 %v1569
      %2774 = vmatmul.mubr.bf16.gmra.mrb[0].mxu0 %v1462
      %v2775 = vpop.f32.mrb[0].mxu0
      %v2776 = vadd.f32 0.0, %v2775
      %v2777 = vpop.f32.mrb[0].mxu0
      %v2778 = vpop.f32.mrb[0].mxu0
      %v2779 = vadd.f32 0.0, %v2778
      %v2780 = vpop.f32.mrb[0].mxu0
      %2781 = vmatprep.mubr.bf16.mxu0 %v1577
      %2782 = vmatmul.mubr.bf16.gmra.mrb[0].mxu0 %v1463
      %v2783 = vpop.f32.mrb[0].mxu0
      %v2784 = vadd.f32 0.0, %v2783
      %v2785 = vpop.f32.mrb[0].mxu0
      %v2786 = vpop.f32.mrb[0].mxu0
      %v2787 = vadd.f32 0.0, %v2786
      %v2788 = vpop.f32.mrb[0].mxu0
      %2789 = vmatprep.mubr.bf16.mxu0 %v1585
      %2790 = vmatmul.mubr.bf16.gmra.mrb[0].mxu0 %v1464
      %v2791 = vpop.f32.mrb[0].mxu0
      %v2792 = vadd.f32 0.0, %v2791
      %v2793 = vpop.f32.mrb[0].mxu0
      %v2794 = vpop.f32.mrb[0].mxu0
      %v2795 = vadd.f32 0.0, %v2794
      %v2796 = vpop.f32.mrb[0].mxu0
      %2797 = vmatprep.mubr.bf16.mxu0 %v1593
      %2798 = vmatmul.mubr.bf16.gmra.mrb[0].mxu0 %v1465
      %v2799 = vpop.f32.mrb[0].mxu0
      %v2800 = vadd.f32 0.0, %v2799
      %v2801 = vpop.f32.mrb[0].mxu0
      %v2802 = vpop.f32.mrb[0].mxu0
      %v2803 = vadd.f32 0.0, %v2802
      %v2804 = vpop.f32.mrb[0].mxu0
      %2805 = vmatprep.mubr.bf16.mxu0 %v1601
      %2806 = vmatmul.mubr.bf16.gmra.mrb[0].mxu0 %v1466
      %v2807 = vpop.f32.mrb[0].mxu0
      %v2808 = vadd.f32 0.0, %v2807
      %v2809 = vpop.f32.mrb[0].mxu0
      %v2810 = vpop.f32.mrb[0].mxu0
      %v2811 = vadd.f32 0.0, %v2810
      %v2812 = vpop.f32.mrb[0].mxu0
      %2813 = vmatprep.mubr.bf16.mxu0 %v1609
      %2814 = vmatmul.mubr.bf16.gmra.mrb[0].mxu0 %v1467
      %v2815 = vpop.f32.mrb[0].mxu0
      %v2816 = vadd.f32 0.0, %v2815
      %v2817 = vpop.f32.mrb[0].mxu0
      %v2818 = vpop.f32.mrb[0].mxu0
      %v2819 = vadd.f32 0.0, %v2818
      %v2820 = vpop.f32.mrb[0].mxu0
      %2821 = vmatprep.mubr.bf16.mxu0 %v1617
      %2822 = vmatmul.mubr.bf16.gmra.mrb[0].mxu0 %v1468
      %v2823 = vpop.f32.mrb[0].mxu0
      %v2824 = vadd.f32 0.0, %v2823
      %v2825 = vpop.f32.mrb[0].mxu0
      %v2826 = vpop.f32.mrb[0].mxu0
      %v2827 = vadd.f32 0.0, %v2826
      %v2828 = vpop.f32.mrb[0].mxu0
      %2829 = vmatprep.mubr.bf16.mxu0 %v1625
      %2830 = vmatmul.mubr.bf16.gmra.mrb[0].mxu0 %v1469
      %v2831 = vpop.f32.mrb[0].mxu0
      %v2832 = vadd.f32 0.0, %v2831
      %v2833 = vpop.f32.mrb[0].mxu0
      %v2834 = vpop.f32.mrb[0].mxu0
      %v2835 = vadd.f32 0.0, %v2834
      %v2836 = vpop.f32.mrb[0].mxu0
      %2837 = vmatprep.mubr.bf16.mxu0 %v1633
      %2838 = vmatmul.mubr.bf16.gmra.mrb[0].mxu0 %v1470
      %v2839 = vpop.f32.mrb[0].mxu0
      %v2840 = vadd.f32 0.0, %v2839
      %v2841 = vpop.f32.mrb[0].mxu0
      %v2842 = vpop.f32.mrb[0].mxu0
      %v2843 = vadd.f32 0.0, %v2842
      %v2844 = vpop.f32.mrb[0].mxu0
      %2845 = vmatprep.mubr.bf16.mxu0 %v1641
      %2846 = vmatmul.mubr.bf16.gmra.mrb[0].mxu0 %v1471
      %v2847 = vpop.f32.mrb[0].mxu0
      %v2848 = vadd.f32 0.0, %v2847
      %v2849 = vpop.f32.mrb[0].mxu0
      %v2850 = vpop.f32.mrb[0].mxu0
      %v2851 = vadd.f32 0.0, %v2850
      %v2852 = vpop.f32.mrb[0].mxu0
      %2853 = vdwg.mxu0
      %2854 = vmatprep.subr.bf16.mxu0 0
      %2855 = vmatpush1.bf16.msra.mxu0 %v2549
      %2856 = vmatprep.subr.bf16.mxu0 0
      %2857 = vmatpush1.bf16.msra.mxu0 %v2550
      %2858 = vmatprep.subr.bf16.mxu0 0
      %2859 = vmatpush1.bf16.msra.mxu0 %v2551
      %2860 = vmatprep.subr.bf16.mxu0 0
      %2861 = vmatpush1.bf16.msra.mxu0 %v2552
      %2862 = vmatprep.subr.bf16.mxu0 0
      %2863 = vmatpush1.bf16.msra.mxu0 %v2553
      %2864 = vmatprep.subr.bf16.mxu0 0
      %2865 = vmatpush1.bf16.msra.mxu0 %v2554
      %2866 = vmatprep.subr.bf16.mxu0 0
      %2867 = vmatpush1.bf16.msra.mxu0 %v2555
      %2868 = vmatprep.subr.bf16.mxu0 0
      %2869 = vmatpush1.bf16.msra.mxu0 %v2556
      %2870 = vmatprep.subr.bf16.mxu0 0
      %2871 = vmatpush1.bf16.msra.mxu0 %v2557
      %2872 = vmatprep.subr.bf16.mxu0 0
      %2873 = vmatpush1.bf16.msra.mxu0 %v2558
      %2874 = vmatprep.subr.bf16.mxu0 0
      %2875 = vmatpush1.bf16.msra.mxu0 %v2559
      %2876 = vmatprep.subr.bf16.mxu0 0
      %2877 = vmatpush1.bf16.msra.mxu0 %v2560
      %2878 = vmatprep.subr.bf16.mxu0 0
      %2879 = vmatpush1.bf16.msra.mxu0 %v2561
      %2880 = vmatprep.subr.bf16.mxu0 0
      %2881 = vmatpush1.bf16.msra.mxu0 %v2562
      %2882 = vmatprep.subr.bf16.mxu0 0
      %2883 = vmatpush1.bf16.msra.mxu0 %v2563
      %2884 = vmatprep.subr.bf16.mxu0 0
      %2885 = vmatpush1.bf16.msra.mxu0 %v2564
      %2886 = vmatprep.mubr.bf16.mxu0 %v1731
      %2887 = vmatmul.mubr.bf16.gmra.mrb[0].mxu0 %v1666
      %v2888 = vpop.f32.mrb[0].mxu0
      %v2889 = vadd.f32 %v2712, %v2888
      %v2890 = vpop.f32.mrb[0].mxu0
      %v2891 = vpop.f32.mrb[0].mxu0
      %v2892 = vadd.f32 %v2715, %v2891
      %v2893 = vpop.f32.mrb[0].mxu0
      %2894 = vmatprep.mubr.bf16.mxu0 %v1670
      %2895 = vmatmul.mubr.bf16.gmra.mrb[0].mxu0 %v1668
      %v2896 = vpop.f32.mrb[0].mxu0
      %v2897 = vadd.f32 %v2720, %v2896
      %v2898 = vpop.f32.mrb[0].mxu0
      %v2899 = vpop.f32.mrb[0].mxu0
      %v2900 = vadd.f32 %v2723, %v2899
      %v2901 = vpop.f32.mrb[0].mxu0
      %2902 = vmatprep.mubr.bf16.mxu0 %v1672
      %2903 = vmatmul.mubr.bf16.gmra.mrb[0].mxu0 %v1670
      %v2904 = vpop.f32.mrb[0].mxu0
      %v2905 = vadd.f32 %v2728, %v2904
      %v2906 = vpop.f32.mrb[0].mxu0
      %v2907 = vpop.f32.mrb[0].mxu0
      %v2908 = vadd.f32 %v2731, %v2907
      %v2909 = vpop.f32.mrb[0].mxu0
      %2910 = vmatprep.mubr.bf16.mxu0 %v1674
      %2911 = vmatmul.mubr.bf16.gmra.mrb[0].mxu0 %v1672
      %v2912 = vpop.f32.mrb[0].mxu0
      %v2913 = vadd.f32 %v2736, %v2912
      %v2914 = vpop.f32.mrb[0].mxu0
      %v2915 = vpop.f32.mrb[0].mxu0
      %v2916 = vadd.f32 %v2739, %v2915
      %v2917 = vpop.f32.mrb[0].mxu0
      %2918 = vmatprep.mubr.bf16.mxu0 %v1676
      %2919 = vmatmul.mubr.bf16.gmra.mrb[0].mxu0 %v1674
      %v2920 = vpop.f32.mrb[0].mxu0
      %v2921 = vadd.f32 %v2744, %v2920
      %v2922 = vpop.f32.mrb[0].mxu0
      %v2923 = vpop.f32.mrb[0].mxu0
      %v2924 = vadd.f32 %v2747, %v2923
      %v2925 = vpop.f32.mrb[0].mxu0
      %2926 = vmatprep.mubr.bf16.mxu0 %v1678
      %2927 = vmatmul.mubr.bf16.gmra.mrb[0].mxu0 %v1676
      %v2928 = vpop.f32.mrb[0].mxu0
      %v2929 = vadd.f32 %v2752, %v2928
      %v2930 = vpop.f32.mrb[0].mxu0
      %v2931 = vpop.f32.mrb[0].mxu0
      %v2932 = vadd.f32 %v2755, %v2931
      %v2933 = vpop.f32.mrb[0].mxu0
      %2934 = vmatprep.mubr.bf16.mxu0 %v1680
      %2935 = vmatmul.mubr.bf16.gmra.mrb[0].mxu0 %v1678
      %v2936 = vpop.f32.mrb[0].mxu0
      %v2937 = vadd.f32 %v2760, %v2936
      %v2938 = vpop.f32.mrb[0].mxu0
      %v2939 = vpop.f32.mrb[0].mxu0
      %v2940 = vadd.f32 %v2763, %v2939
      %v2941 = vpop.f32.mrb[0].mxu0
      %2942 = vmatprep.mubr.bf16.mxu0 %v1682
      %2943 = vmatmul.mubr.bf16.gmra.mrb[0].mxu0 %v1680
      %v2944 = vpop.f32.mrb[0].mxu0
      %v2945 = vadd.f32 %v2768, %v2944
      %v2946 = vpop.f32.mrb[0].mxu0
      %v2947 = vpop.f32.mrb[0].mxu0
      %v2948 = vadd.f32 %v2771, %v2947
      %v2949 = vpop.f32.mrb[0].mxu0
      %2950 = vmatprep.mubr.bf16.mxu0 %v1684
      %2951 = vmatmul.mubr.bf16.gmra.mrb[0].mxu0 %v1682
      %v2952 = vpop.f32.mrb[0].mxu0
      %v2953 = vadd.f32 %v2776, %v2952
      %v2954 = vpop.f32.mrb[0].mxu0
      %v2955 = vpop.f32.mrb[0].mxu0
      %v2956 = vadd.f32 %v2779, %v2955
      %v2957 = vpop.f32.mrb[0].mxu0
      %2958 = vmatprep.mubr.bf16.mxu0 %v1686
      %2959 = vmatmul.mubr.bf16.gmra.mrb[0].mxu0 %v1684
      %v2960 = vpop.f32.mrb[0].mxu0
      %v2961 = vadd.f32 %v2784, %v2960
      %v2962 = vpop.f32.mrb[0].mxu0
      %v2963 = vpop.f32.mrb[0].mxu0
      %v2964 = vadd.f32 %v2787, %v2963
      %v2965 = vpop.f32.mrb[0].mxu0
      %2966 = vmatprep.mubr.bf16.mxu0 %v1688
      %2967 = vmatmul.mubr.bf16.gmra.mrb[0].mxu0 %v1686
      %v2968 = vpop.f32.mrb[0].mxu0
      %v2969 = vadd.f32 %v2792, %v2968
      %v2970 = vpop.f32.mrb[0].mxu0
      %v2971 = vpop.f32.mrb[0].mxu0
      %v2972 = vadd.f32 %v2795, %v2971
      %v2973 = vpop.f32.mrb[0].mxu0
      %2974 = vmatprep.mubr.bf16.mxu0 %v1690
      %2975 = vmatmul.mubr.bf16.gmra.mrb[0].mxu0 %v1688
      %v2976 = vpop.f32.mrb[0].mxu0
      %v2977 = vadd.f32 %v2800, %v2976
      %v2978 = vpop.f32.mrb[0].mxu0
      %v2979 = vpop.f32.mrb[0].mxu0
      %v2980 = vadd.f32 %v2803, %v2979
      %v2981 = vpop.f32.mrb[0].mxu0
      %2982 = vmatprep.mubr.bf16.mxu0 %v1692
      %2983 = vmatmul.mubr.bf16.gmra.mrb[0].mxu0 %v1690
      %v2984 = vpop.f32.mrb[0].mxu0
      %v2985 = vadd.f32 %v2808, %v2984
      %v2986 = vpop.f32.mrb[0].mxu0
      %v2987 = vpop.f32.mrb[0].mxu0
      %v2988 = vadd.f32 %v2811, %v2987
      %v2989 = vpop.f32.mrb[0].mxu0
      %2990 = vmatprep.mubr.bf16.mxu0 %v1694
      %2991 = vmatmul.mubr.bf16.gmra.mrb[0].mxu0 %v1692
      %v2992 = vpop.f32.mrb[0].mxu0
      %v2993 = vadd.f32 %v2816, %v2992
      %v2994 = vpop.f32.mrb[0].mxu0
      %v2995 = vpop.f32.mrb[0].mxu0
      %v2996 = vadd.f32 %v2819, %v2995
      %v2997 = vpop.f32.mrb[0].mxu0
      %2998 = vmatprep.mubr.bf16.mxu0 %v1696
      %2999 = vmatmul.mubr.bf16.gmra.mrb[0].mxu0 %v1694
      %v3000 = vpop.f32.mrb[0].mxu0
      %v3001 = vadd.f32 %v2824, %v3000
      %v3002 = vpop.f32.mrb[0].mxu0
      %v3003 = vpop.f32.mrb[0].mxu0
      %v3004 = vadd.f32 %v2827, %v3003
      %v3005 = vpop.f32.mrb[0].mxu0
      %3006 = vmatprep.mubr.bf16.mxu0 %v1698
      %3007 = vmatmul.mubr.bf16.gmra.mrb[0].mxu0 %v1696
      %v3008 = vpop.f32.mrb[0].mxu0
      %v3009 = vadd.f32 %v2832, %v3008
      %v3010 = vpop.f32.mrb[0].mxu0
      %v3011 = vpop.f32.mrb[0].mxu0
      %v3012 = vadd.f32 %v2835, %v3011
      %v3013 = vpop.f32.mrb[0].mxu0
      %3014 = vmatprep.mubr.bf16.mxu0 %v1733
      %3015 = vmatmul.mubr.bf16.gmra.mrb[0].mxu0 %v1698
      %v3016 = vpop.f32.mrb[0].mxu0
      %v3017 = vadd.f32 %v2840, %v3016
      %v3018 = vpop.f32.mrb[0].mxu0
      %v3019 = vpop.f32.mrb[0].mxu0
      %v3020 = vadd.f32 %v2843, %v3019
      %v3021 = vpop.f32.mrb[0].mxu0
      %3022 = vmatprep.mubr.bf16.mxu0 %v1735
      %3023 = vmatmul.mubr.bf16.gmra.mrb[0].mxu0 %v1700
      %v3024 = vpop.f32.mrb[0].mxu0
      %v3025 = vadd.f32 %v2848, %v3024
      %v3026 = vpop.f32.mrb[0].mxu0
      %v3027 = vpop.f32.mrb[0].mxu0
      %v3028 = vadd.f32 %v2851, %v3027
      %v3029 = vpop.f32.mrb[0].mxu0
      %3030 = vdwg.mxu0
      %3031 = vmatprep.subr.bf16.mxu0 0
      %3032 = vmatpush1.bf16.msra.mxu0 %v2565
      %3033 = vmatprep.subr.bf16.mxu0 0
      %3034 = vmatpush1.bf16.msra.mxu0 %v2566
      %3035 = vmatprep.subr.bf16.mxu0 0
      %3036 = vmatpush1.bf16.msra.mxu0 %v2567
      %3037 = vmatprep.subr.bf16.mxu0 0
      %3038 = vmatpush1.bf16.msra.mxu0 %v2568
      %3039 = vmatprep.subr.bf16.mxu0 0
      %3040 = vmatpush1.bf16.msra.mxu0 %v2569
      %3041 = vmatprep.subr.bf16.mxu0 0
      %3042 = vmatpush1.bf16.msra.mxu0 %v2570
      %3043 = vmatprep.subr.bf16.mxu0 0
      %3044 = vmatpush1.bf16.msra.mxu0 %v2571
      %3045 = vmatprep.subr.bf16.mxu0 0
      %3046 = vmatpush1.bf16.msra.mxu0 %v2572
      %3047 = vmatprep.subr.bf16.mxu0 0
      %3048 = vmatpush1.bf16.msra.mxu0 %v2573
      %3049 = vmatprep.subr.bf16.mxu0 0
      %3050 = vmatpush1.bf16.msra.mxu0 %v2574
      %3051 = vmatprep.subr.bf16.mxu0 0
      %3052 = vmatpush1.bf16.msra.mxu0 %v2575
      %3053 = vmatprep.subr.bf16.mxu0 0
      %3054 = vmatpush1.bf16.msra.mxu0 %v2576
      %3055 = vmatprep.subr.bf16.mxu0 0
      %3056 = vmatpush1.bf16.msra.mxu0 %v2577
      %3057 = vmatprep.subr.bf16.mxu0 0
      %3058 = vmatpush1.bf16.msra.mxu0 %v2578
      %3059 = vmatprep.subr.bf16.mxu0 0
      %3060 = vmatpush1.bf16.msra.mxu0 %v2579
      %3061 = vmatprep.subr.bf16.mxu0 0
      %3062 = vmatpush1.bf16.msra.mxu0 %v2580
      %3063 = vmatprep.mubr.bf16.mxu0 %v1857
      %3064 = vmatmul.mubr.bf16.gmra.mrb[0].mxu0 %v1754
      %v3065 = vpop.f32.mrb[0].mxu0
      %v3066 = vadd.f32 %v2889, %v3065
      %v3067 = vpop.f32.mrb[0].mxu0
      %v3068 = vpop.f32.mrb[0].mxu0
      %v3069 = vadd.f32 %v2892, %v3068
      %v3070 = vpop.f32.mrb[0].mxu0
      %3071 = vmatprep.mubr.bf16.mxu0 %v1859
      %3072 = vmatmul.mubr.bf16.gmra.mrb[0].mxu0 %v1758
      %v3073 = vpop.f32.mrb[0].mxu0
      %v3074 = vadd.f32 %v2897, %v3073
      %v3075 = vpop.f32.mrb[0].mxu0
      %v3076 = vpop.f32.mrb[0].mxu0
      %v3077 = vadd.f32 %v2900, %v3076
      %v3078 = vpop.f32.mrb[0].mxu0
      %3079 = vmatprep.mubr.bf16.mxu0 %v1861
      %3080 = vmatmul.mubr.bf16.gmra.mrb[0].mxu0 %v1762
      %v3081 = vpop.f32.mrb[0].mxu0
      %v3082 = vadd.f32 %v2905, %v3081
      %v3083 = vpop.f32.mrb[0].mxu0
      %v3084 = vpop.f32.mrb[0].mxu0
      %v3085 = vadd.f32 %v2908, %v3084
      %v3086 = vpop.f32.mrb[0].mxu0
      %3087 = vmatprep.mubr.bf16.mxu0 %v1863
      %3088 = vmatmul.mubr.bf16.gmra.mrb[0].mxu0 %v1766
      %v3089 = vpop.f32.mrb[0].mxu0
      %v3090 = vadd.f32 %v2913, %v3089
      %v3091 = vpop.f32.mrb[0].mxu0
      %v3092 = vpop.f32.mrb[0].mxu0
      %v3093 = vadd.f32 %v2916, %v3092
      %v3094 = vpop.f32.mrb[0].mxu0
      %3095 = vmatprep.mubr.bf16.mxu0 %v1865
      %3096 = vmatmul.mubr.bf16.gmra.mrb[0].mxu0 %v1770
      %v3097 = vpop.f32.mrb[0].mxu0
      %v3098 = vadd.f32 %v2921, %v3097
      %v3099 = vpop.f32.mrb[0].mxu0
      %v3100 = vpop.f32.mrb[0].mxu0
      %v3101 = vadd.f32 %v2924, %v3100
      %v3102 = vpop.f32.mrb[0].mxu0
      %3103 = vmatprep.mubr.bf16.mxu0 %v1867
      %3104 = vmatmul.mubr.bf16.gmra.mrb[0].mxu0 %v1774
      %v3105 = vpop.f32.mrb[0].mxu0
      %v3106 = vadd.f32 %v2929, %v3105
      %v3107 = vpop.f32.mrb[0].mxu0
      %v3108 = vpop.f32.mrb[0].mxu0
      %v3109 = vadd.f32 %v2932, %v3108
      %v3110 = vpop.f32.mrb[0].mxu0
      %3111 = vmatprep.mubr.bf16.mxu0 %v1869
      %3112 = vmatmul.mubr.bf16.gmra.mrb[0].mxu0 %v1778
      %v3113 = vpop.f32.mrb[0].mxu0
      %v3114 = vadd.f32 %v2937, %v3113
      %v3115 = vpop.f32.mrb[0].mxu0
      %v3116 = vpop.f32.mrb[0].mxu0
      %v3117 = vadd.f32 %v2940, %v3116
      %v3118 = vpop.f32.mrb[0].mxu0
      %3119 = vmatprep.mubr.bf16.mxu0 %v1871
      %3120 = vmatmul.mubr.bf16.gmra.mrb[0].mxu0 %v1782
      %v3121 = vpop.f32.mrb[0].mxu0
      %v3122 = vadd.f32 %v2945, %v3121
      %v3123 = vpop.f32.mrb[0].mxu0
      %v3124 = vpop.f32.mrb[0].mxu0
      %v3125 = vadd.f32 %v2948, %v3124
      %v3126 = vpop.f32.mrb[0].mxu0
      %3127 = vmatprep.mubr.bf16.mxu0 %v1873
      %3128 = vmatmul.mubr.bf16.gmra.mrb[0].mxu0 %v1786
      %v3129 = vpop.f32.mrb[0].mxu0
      %v3130 = vadd.f32 %v2953, %v3129
      %v3131 = vpop.f32.mrb[0].mxu0
      %v3132 = vpop.f32.mrb[0].mxu0
      %v3133 = vadd.f32 %v2956, %v3132
      %v3134 = vpop.f32.mrb[0].mxu0
      %3135 = vmatprep.mubr.bf16.mxu0 %v1875
      %3136 = vmatmul.mubr.bf16.gmra.mrb[0].mxu0 %v1790
      %v3137 = vpop.f32.mrb[0].mxu0
      %v3138 = vadd.f32 %v2961, %v3137
      %v3139 = vpop.f32.mrb[0].mxu0
      %v3140 = vpop.f32.mrb[0].mxu0
      %v3141 = vadd.f32 %v2964, %v3140
      %v3142 = vpop.f32.mrb[0].mxu0
      %3143 = vmatprep.mubr.bf16.mxu0 %v1877
      %3144 = vmatmul.mubr.bf16.gmra.mrb[0].mxu0 %v1794
      %v3145 = vpop.f32.mrb[0].mxu0
      %v3146 = vadd.f32 %v2969, %v3145
      %v3147 = vpop.f32.mrb[0].mxu0
      %v3148 = vpop.f32.mrb[0].mxu0
      %v3149 = vadd.f32 %v2972, %v3148
      %v3150 = vpop.f32.mrb[0].mxu0
      %3151 = vmatprep.mubr.bf16.mxu0 %v1879
      %3152 = vmatmul.mubr.bf16.gmra.mrb[0].mxu0 %v1798
      %v3153 = vpop.f32.mrb[0].mxu0
      %v3154 = vadd.f32 %v2977, %v3153
      %v3155 = vpop.f32.mrb[0].mxu0
      %v3156 = vpop.f32.mrb[0].mxu0
      %v3157 = vadd.f32 %v2980, %v3156
      %v3158 = vpop.f32.mrb[0].mxu0
      %3159 = vmatprep.mubr.bf16.mxu0 %v1881
      %3160 = vmatmul.mubr.bf16.gmra.mrb[0].mxu0 %v1802
      %v3161 = vpop.f32.mrb[0].mxu0
      %v3162 = vadd.f32 %v2985, %v3161
      %v3163 = vpop.f32.mrb[0].mxu0
      %v3164 = vpop.f32.mrb[0].mxu0
      %v3165 = vadd.f32 %v2988, %v3164
      %v3166 = vpop.f32.mrb[0].mxu0
      %3167 = vmatprep.mubr.bf16.mxu0 %v1883
      %3168 = vmatmul.mubr.bf16.gmra.mrb[0].mxu0 %v1806
      %v3169 = vpop.f32.mrb[0].mxu0
      %v3170 = vadd.f32 %v2993, %v3169
      %v3171 = vpop.f32.mrb[0].mxu0
      %v3172 = vpop.f32.mrb[0].mxu0
      %v3173 = vadd.f32 %v2996, %v3172
      %v3174 = vpop.f32.mrb[0].mxu0
      %3175 = vmatprep.mubr.bf16.mxu0 %v1885
      %3176 = vmatmul.mubr.bf16.gmra.mrb[0].mxu0 %v1810
      %v3177 = vpop.f32.mrb[0].mxu0
      %v3178 = vadd.f32 %v3001, %v3177
      %v3179 = vpop.f32.mrb[0].mxu0
      %v3180 = vpop.f32.mrb[0].mxu0
      %v3181 = vadd.f32 %v3004, %v3180
      %v3182 = vpop.f32.mrb[0].mxu0
      %3183 = vmatprep.mubr.bf16.mxu0 %v1887
      %3184 = vmatmul.mubr.bf16.gmra.mrb[0].mxu0 %v1814
      %v3185 = vpop.f32.mrb[0].mxu0
      %v3186 = vadd.f32 %v3009, %v3185
      %v3187 = vpop.f32.mrb[0].mxu0
      %v3188 = vpop.f32.mrb[0].mxu0
      %v3189 = vadd.f32 %v3012, %v3188
      %v3190 = vpop.f32.mrb[0].mxu0
      %3191 = vmatprep.mubr.bf16.mxu0 %v1889
      %3192 = vmatmul.mubr.bf16.gmra.mrb[0].mxu0 %v1823
      %v3193 = vpop.f32.mrb[0].mxu0
      %v3194 = vadd.f32 %v3017, %v3193
      %v3195 = vpop.f32.mrb[0].mxu0
      %v3196 = vpop.f32.mrb[0].mxu0
      %v3197 = vadd.f32 %v3020, %v3196
      %v3198 = vpop.f32.mrb[0].mxu0
      %3199 = vmatprep.mubr.bf16.mxu0 %v1891
      %3200 = vmatmul.mubr.bf16.gmra.mrb[0].mxu0 %v1832
      %v3201 = vpop.f32.mrb[0].mxu0
      %v3202 = vadd.f32 %v3025, %v3201
      %v3203 = vpop.f32.mrb[0].mxu0
      %v3204 = vpop.f32.mrb[0].mxu0
      %v3205 = vadd.f32 %v3028, %v3204
      %v3206 = vpop.f32.mrb[0].mxu0
      %3207 = vdwg.mxu0
      %3208 = vmatprep.subr.bf16.mxu0 0
      %3209 = vmatpush1.bf16.msra.mxu0 %v2581
      %3210 = vmatprep.subr.bf16.mxu0 0
      %3211 = vmatpush1.bf16.msra.mxu0 %v2582
      %3212 = vmatprep.subr.bf16.mxu0 0
      %3213 = vmatpush1.bf16.msra.mxu0 %v2583
      %3214 = vmatprep.subr.bf16.mxu0 0
      %3215 = vmatpush1.bf16.msra.mxu0 %v2584
      %3216 = vmatprep.subr.bf16.mxu0 0
      %3217 = vmatpush1.bf16.msra.mxu0 %v2585
      %3218 = vmatprep.subr.bf16.mxu0 0
      %3219 = vmatpush1.bf16.msra.mxu0 %v2586
      %3220 = vmatprep.subr.bf16.mxu0 0
      %3221 = vmatpush1.bf16.msra.mxu0 %v2587
      %3222 = vmatprep.subr.bf16.mxu0 0
      %3223 = vmatpush1.bf16.msra.mxu0 %v2588
      %3224 = vmatprep.subr.bf16.mxu0 0
      %3225 = vmatpush1.bf16.msra.mxu0 %v2589
      %3226 = vmatprep.subr.bf16.mxu0 0
      %3227 = vmatpush1.bf16.msra.mxu0 %v2590
      %3228 = vmatprep.subr.bf16.mxu0 0
      %3229 = vmatpush1.bf16.msra.mxu0 %v2591
      %3230 = vmatprep.subr.bf16.mxu0 0
      %3231 = vmatpush1.bf16.msra.mxu0 %v2592
      %3232 = vmatprep.subr.bf16.mxu0 0
      %3233 = vmatpush1.bf16.msra.mxu0 %v2593
      %3234 = vmatprep.subr.bf16.mxu0 0
      %3235 = vmatpush1.bf16.msra.mxu0 %v2594
      %3236 = vmatprep.subr.bf16.mxu0 0
      %3237 = vmatpush1.bf16.msra.mxu0 %v2595
      %3238 = vmatprep.subr.bf16.mxu0 0
      %3239 = vmatpush1.bf16.msra.mxu0 %v2596
      %3240 = vmatprep.mubr.bf16.mxu0 %v1945
      %3241 = vmatmul.mubr.bf16.gmra.mrb[0].mxu0 %v1922
      %v3242 = vpop.f32.mrb[0].mxu0
      %v3243 = vadd.f32 %v3066, %v3242
      %v3244 = vpop.f32.mrb[0].mxu0
      %v3245 = vpop.f32.mrb[0].mxu0
      %v3246 = vadd.f32 %v3069, %v3245
      %v3247 = vpop.f32.mrb[0].mxu0
      %3248 = vmatprep.mubr.bf16.mxu0 %v1949
      %3249 = vmatmul.mubr.bf16.gmra.mrb[0].mxu0 %v1861
      %v3250 = vpop.f32.mrb[0].mxu0
      %v3251 = vadd.f32 %v3074, %v3250
      %v3252 = vpop.f32.mrb[0].mxu0
      %v3253 = vpop.f32.mrb[0].mxu0
      %v3254 = vadd.f32 %v3077, %v3253
      %v3255 = vpop.f32.mrb[0].mxu0
      %3256 = vmatprep.mubr.bf16.mxu0 %v1953
      %3257 = vmatmul.mubr.bf16.gmra.mrb[0].mxu0 %v1863
      %v3258 = vpop.f32.mrb[0].mxu0
      %v3259 = vadd.f32 %v3082, %v3258
      %v3260 = vpop.f32.mrb[0].mxu0
      %v3261 = vpop.f32.mrb[0].mxu0
      %v3262 = vadd.f32 %v3085, %v3261
      %v3263 = vpop.f32.mrb[0].mxu0
      %3264 = vmatprep.mubr.bf16.mxu0 %v1957
      %3265 = vmatmul.mubr.bf16.gmra.mrb[0].mxu0 %v1865
      %v3266 = vpop.f32.mrb[0].mxu0
      %v3267 = vadd.f32 %v3090, %v3266
      %v3268 = vpop.f32.mrb[0].mxu0
      %v3269 = vpop.f32.mrb[0].mxu0
      %v3270 = vadd.f32 %v3093, %v3269
      %v3271 = vpop.f32.mrb[0].mxu0
      %3272 = vmatprep.mubr.bf16.mxu0 %v1961
      %3273 = vmatmul.mubr.bf16.gmra.mrb[0].mxu0 %v1867
      %v3274 = vpop.f32.mrb[0].mxu0
      %v3275 = vadd.f32 %v3098, %v3274
      %v3276 = vpop.f32.mrb[0].mxu0
      %v3277 = vpop.f32.mrb[0].mxu0
      %v3278 = vadd.f32 %v3101, %v3277
      %v3279 = vpop.f32.mrb[0].mxu0
      %3280 = vmatprep.mubr.bf16.mxu0 %v1965
      %3281 = vmatmul.mubr.bf16.gmra.mrb[0].mxu0 %v1869
      %v3282 = vpop.f32.mrb[0].mxu0
      %v3283 = vadd.f32 %v3106, %v3282
      %v3284 = vpop.f32.mrb[0].mxu0
      %v3285 = vpop.f32.mrb[0].mxu0
      %v3286 = vadd.f32 %v3109, %v3285
      %v3287 = vpop.f32.mrb[0].mxu0
      %3288 = vmatprep.mubr.bf16.mxu0 %v1969
      %3289 = vmatmul.mubr.bf16.gmra.mrb[0].mxu0 %v1871
      %v3290 = vpop.f32.mrb[0].mxu0
      %v3291 = vadd.f32 %v3114, %v3290
      %v3292 = vpop.f32.mrb[0].mxu0
      %v3293 = vpop.f32.mrb[0].mxu0
      %v3294 = vadd.f32 %v3117, %v3293
      %v3295 = vpop.f32.mrb[0].mxu0
      %3296 = vmatprep.mubr.bf16.mxu0 %v1973
      %3297 = vmatmul.mubr.bf16.gmra.mrb[0].mxu0 %v1873
      %v3298 = vpop.f32.mrb[0].mxu0
      %v3299 = vadd.f32 %v3122, %v3298
      %v3300 = vpop.f32.mrb[0].mxu0
      %v3301 = vpop.f32.mrb[0].mxu0
      %v3302 = vadd.f32 %v3125, %v3301
      %v3303 = vpop.f32.mrb[0].mxu0
      %3304 = vmatprep.mubr.bf16.mxu0 %v1977
      %3305 = vmatmul.mubr.bf16.gmra.mrb[0].mxu0 %v1875
      %v3306 = vpop.f32.mrb[0].mxu0
      %v3307 = vadd.f32 %v3130, %v3306
      %v3308 = vpop.f32.mrb[0].mxu0
      %v3309 = vpop.f32.mrb[0].mxu0
      %v3310 = vadd.f32 %v3133, %v3309
      %v3311 = vpop.f32.mrb[0].mxu0
      %3312 = vmatprep.mubr.bf16.mxu0 %v1981
      %3313 = vmatmul.mubr.bf16.gmra.mrb[0].mxu0 %v1877
      %v3314 = vpop.f32.mrb[0].mxu0
      %v3315 = vadd.f32 %v3138, %v3314
      %v3316 = vpop.f32.mrb[0].mxu0
      %v3317 = vpop.f32.mrb[0].mxu0
      %v3318 = vadd.f32 %v3141, %v3317
      %v3319 = vpop.f32.mrb[0].mxu0
      %3320 = vmatprep.mubr.bf16.mxu0 %v1985
      %3321 = vmatmul.mubr.bf16.gmra.mrb[0].mxu0 %v1879
      %v3322 = vpop.f32.mrb[0].mxu0
      %v3323 = vadd.f32 %v3146, %v3322
      %v3324 = vpop.f32.mrb[0].mxu0
      %v3325 = vpop.f32.mrb[0].mxu0
      %v3326 = vadd.f32 %v3149, %v3325
      %v3327 = vpop.f32.mrb[0].mxu0
      %3328 = vmatprep.mubr.bf16.mxu0 %v1989
      %3329 = vmatmul.mubr.bf16.gmra.mrb[0].mxu0 %v1881
      %v3330 = vpop.f32.mrb[0].mxu0
      %v3331 = vadd.f32 %v3154, %v3330
      %v3332 = vpop.f32.mrb[0].mxu0
      %v3333 = vpop.f32.mrb[0].mxu0
      %v3334 = vadd.f32 %v3157, %v3333
      %v3335 = vpop.f32.mrb[0].mxu0
      %3336 = vmatprep.mubr.bf16.mxu0 %v1993
      %3337 = vmatmul.mubr.bf16.gmra.mrb[0].mxu0 %v1883
      %v3338 = vpop.f32.mrb[0].mxu0
      %v3339 = vadd.f32 %v3162, %v3338
      %v3340 = vpop.f32.mrb[0].mxu0
      %v3341 = vpop.f32.mrb[0].mxu0
      %v3342 = vadd.f32 %v3165, %v3341
      %v3343 = vpop.f32.mrb[0].mxu0
      %3344 = vmatprep.mubr.bf16.mxu0 %v1997
      %3345 = vmatmul.mubr.bf16.gmra.mrb[0].mxu0 %v1885
      %v3346 = vpop.f32.mrb[0].mxu0
      %v3347 = vadd.f32 %v3170, %v3346
      %v3348 = vpop.f32.mrb[0].mxu0
      %v3349 = vpop.f32.mrb[0].mxu0
      %v3350 = vadd.f32 %v3173, %v3349
      %v3351 = vpop.f32.mrb[0].mxu0
      %3352 = vmatprep.mubr.bf16.mxu0 %v2001
      %3353 = vmatmul.mubr.bf16.gmra.mrb[0].mxu0 %v1887
      %v3354 = vpop.f32.mrb[0].mxu0
      %v3355 = vadd.f32 %v3178, %v3354
      %v3356 = vpop.f32.mrb[0].mxu0
      %v3357 = vpop.f32.mrb[0].mxu0
      %v3358 = vadd.f32 %v3181, %v3357
      %v3359 = vpop.f32.mrb[0].mxu0
      %3360 = vmatprep.mubr.bf16.mxu0 %v2005
      %3361 = vmatmul.mubr.bf16.gmra.mrb[0].mxu0 %v1889
      %v3362 = vpop.f32.mrb[0].mxu0
      %v3363 = vadd.f32 %v3186, %v3362
      %v3364 = vpop.f32.mrb[0].mxu0
      %v3365 = vpop.f32.mrb[0].mxu0
      %v3366 = vadd.f32 %v3189, %v3365
      %v3367 = vpop.f32.mrb[0].mxu0
      %3368 = vmatprep.mubr.bf16.mxu0 %v2014
      %3369 = vmatmul.mubr.bf16.gmra.mrb[0].mxu0 %v1924
      %v3370 = vpop.f32.mrb[0].mxu0
      %v3371 = vadd.f32 %v3194, %v3370
      %v3372 = vpop.f32.mrb[0].mxu0
      %v3373 = vpop.f32.mrb[0].mxu0
      %v3374 = vadd.f32 %v3197, %v3373
      %v3375 = vpop.f32.mrb[0].mxu0
      %3376 = vmatprep.mubr.bf16.mxu0 %v2023
      %3377 = vmatmul.mubr.bf16.gmra.mrb[0].mxu0 %v1926
      %v3378 = vpop.f32.mrb[0].mxu0
      %v3379 = vadd.f32 %v3202, %v3378
      %v3380 = vpop.f32.mrb[0].mxu0
      %v3381 = vpop.f32.mrb[0].mxu0
      %v3382 = vadd.f32 %v3205, %v3381
      %v3383 = vpop.f32.mrb[0].mxu0
      %3384 = vdwg.mxu0
      %3385 = vmatprep.subr.bf16.mxu0 0
      %3386 = vmatpush1.bf16.msra.mxu0 %v2597
      %3387 = vmatprep.subr.bf16.mxu0 0
      %3388 = vmatpush1.bf16.msra.mxu0 %v2598
      %3389 = vmatprep.subr.bf16.mxu0 0
      %3390 = vmatpush1.bf16.msra.mxu0 %v2599
      %3391 = vmatprep.subr.bf16.mxu0 0
      %3392 = vmatpush1.bf16.msra.mxu0 %v2600
      %3393 = vmatprep.subr.bf16.mxu0 0
      %3394 = vmatpush1.bf16.msra.mxu0 %v2601
      %3395 = vmatprep.subr.bf16.mxu0 0
      %3396 = vmatpush1.bf16.msra.mxu0 %v2602
      %3397 = vmatprep.subr.bf16.mxu0 0
      %3398 = vmatpush1.bf16.msra.mxu0 %v2603
      %3399 = vmatprep.subr.bf16.mxu0 0
      %3400 = vmatpush1.bf16.msra.mxu0 %v2604
      %3401 = vmatprep.subr.bf16.mxu0 0
      %3402 = vmatpush1.bf16.msra.mxu0 0
      %3403 = vmatprep.subr.bf16.mxu0 0
      %3404 = vmatpush1.bf16.msra.mxu0 0
      %3405 = vmatprep.subr.bf16.mxu0 0
      %3406 = vmatpush1.bf16.msra.mxu0 0
      %3407 = vmatprep.subr.bf16.mxu0 0
      %3408 = vmatpush1.bf16.msra.mxu0 0
      %3409 = vmatprep.subr.bf16.mxu0 0
      %3410 = vmatpush1.bf16.msra.mxu0 0
      %3411 = vmatprep.subr.bf16.mxu0 0
      %3412 = vmatpush1.bf16.msra.mxu0 0
      %3413 = vmatprep.subr.bf16.mxu0 0
      %3414 = vmatpush1.bf16.msra.mxu0 0
      %3415 = vmatprep.subr.bf16.mxu0 0
      %3416 = vmatpush1.bf16.msra.mxu0 0
      %3417 = vmatprep.mubr.bf16.mxu0 0
      %3418 = vmatmul.mubr.bf16.gmra.mrb[0].mxu0 %v2048
      %v3419 = vpop.f32.mrb[0].mxu0
      %v3420 = vadd.f32 %v3243, %v3419
      %v3421 = vpop.f32.mrb[0].mxu0
      %v3422 = vpop.f32.mrb[0].mxu0
      %v3423 = vadd.f32 %v3246, %v3422
      %v3424 = vpop.f32.mrb[0].mxu0
      %3425 = vmatprep.mubr.bf16.mxu0 0
      %3426 = vmatmul.mubr.bf16.gmra.mrb[0].mxu0 %v2050
      %v3427 = vpop.f32.mrb[0].mxu0
      %v3428 = vadd.f32 %v3251, %v3427
      %v3429 = vpop.f32.mrb[0].mxu0
      %v3430 = vpop.f32.mrb[0].mxu0
      %v3431 = vadd.f32 %v3254, %v3430
      %v3432 = vpop.f32.mrb[0].mxu0
      %3433 = vmatprep.mubr.bf16.mxu0 0
      %3434 = vmatmul.mubr.bf16.gmra.mrb[0].mxu0 %v2052
      %v3435 = vpop.f32.mrb[0].mxu0
      %v3436 = vadd.f32 %v3259, %v3435
      %v3437 = vpop.f32.mrb[0].mxu0
      %v3438 = vpop.f32.mrb[0].mxu0
      %v3439 = vadd.f32 %v3262, %v3438
      %v3440 = vpop.f32.mrb[0].mxu0
      %3441 = vmatprep.mubr.bf16.mxu0 0
      %3442 = vmatmul.mubr.bf16.gmra.mrb[0].mxu0 %v2054
      %v3443 = vpop.f32.mrb[0].mxu0
      %v3444 = vadd.f32 %v3267, %v3443
      %v3445 = vpop.f32.mrb[0].mxu0
      %v3446 = vpop.f32.mrb[0].mxu0
      %v3447 = vadd.f32 %v3270, %v3446
      %v3448 = vpop.f32.mrb[0].mxu0
      %3449 = vmatprep.mubr.bf16.mxu0 0
      %3450 = vmatmul.mubr.bf16.gmra.mrb[0].mxu0 %v2056
      %v3451 = vpop.f32.mrb[0].mxu0
      %v3452 = vadd.f32 %v3275, %v3451
      %v3453 = vpop.f32.mrb[0].mxu0
      %v3454 = vpop.f32.mrb[0].mxu0
      %v3455 = vadd.f32 %v3278, %v3454
      %v3456 = vpop.f32.mrb[0].mxu0
      %3457 = vmatprep.mubr.bf16.mxu0 0
      %3458 = vmatmul.mubr.bf16.gmra.mrb[0].mxu0 %v2058
      %v3459 = vpop.f32.mrb[0].mxu0
      %v3460 = vadd.f32 %v3283, %v3459
      %v3461 = vpop.f32.mrb[0].mxu0
      %v3462 = vpop.f32.mrb[0].mxu0
      %v3463 = vadd.f32 %v3286, %v3462
      %v3464 = vpop.f32.mrb[0].mxu0
      %3465 = vmatprep.mubr.bf16.mxu0 0
      %3466 = vmatmul.mubr.bf16.gmra.mrb[0].mxu0 %v2060
      %v3467 = vpop.f32.mrb[0].mxu0
      %v3468 = vadd.f32 %v3291, %v3467
      %v3469 = vpop.f32.mrb[0].mxu0
      %v3470 = vpop.f32.mrb[0].mxu0
      %v3471 = vadd.f32 %v3294, %v3470
      %v3472 = vpop.f32.mrb[0].mxu0
      %3473 = vmatprep.mubr.bf16.mxu0 0
      %3474 = vmatmul.mubr.bf16.gmra.mrb[0].mxu0 %v2062
      %v3475 = vpop.f32.mrb[0].mxu0
      %v3476 = vadd.f32 %v3299, %v3475
      %v3477 = vpop.f32.mrb[0].mxu0
      %v3478 = vpop.f32.mrb[0].mxu0
      %v3479 = vadd.f32 %v3302, %v3478
      %v3480 = vpop.f32.mrb[0].mxu0
      %3481 = vmatprep.mubr.bf16.mxu0 0
      %3482 = vmatmul.mubr.bf16.gmra.mrb[0].mxu0 %v2064
      %v3483 = vpop.f32.mrb[0].mxu0
      %v3484 = vadd.f32 %v3307, %v3483
      %v3485 = vpop.f32.mrb[0].mxu0
      %v3486 = vpop.f32.mrb[0].mxu0
      %v3487 = vadd.f32 %v3310, %v3486
      %v3488 = vpop.f32.mrb[0].mxu0
      %3489 = vmatprep.mubr.bf16.mxu0 0
      %3490 = vmatmul.mubr.bf16.gmra.mrb[0].mxu0 %v2066
      %v3491 = vpop.f32.mrb[0].mxu0
      %v3492 = vadd.f32 %v3315, %v3491
      %v3493 = vpop.f32.mrb[0].mxu0
      %v3494 = vpop.f32.mrb[0].mxu0
      %v3495 = vadd.f32 %v3318, %v3494
      %v3496 = vpop.f32.mrb[0].mxu0
      %3497 = vmatprep.mubr.bf16.mxu0 0
      %3498 = vmatmul.mubr.bf16.gmra.mrb[0].mxu0 %v2068
      %v3499 = vpop.f32.mrb[0].mxu0
      %v3500 = vadd.f32 %v3323, %v3499
      %v3501 = vpop.f32.mrb[0].mxu0
      %v3502 = vpop.f32.mrb[0].mxu0
      %v3503 = vadd.f32 %v3326, %v3502
      %v3504 = vpop.f32.mrb[0].mxu0
      %3505 = vmatprep.mubr.bf16.mxu0 0
      %3506 = vmatmul.mubr.bf16.gmra.mrb[0].mxu0 %v2070
      %v3507 = vpop.f32.mrb[0].mxu0
      %v3508 = vadd.f32 %v3331, %v3507
      %v3509 = vpop.f32.mrb[0].mxu0
      %v3510 = vpop.f32.mrb[0].mxu0
      %v3511 = vadd.f32 %v3334, %v3510
      %v3512 = vpop.f32.mrb[0].mxu0
      %3513 = vmatprep.mubr.bf16.mxu0 0
      %3514 = vmatmul.mubr.bf16.gmra.mrb[0].mxu0 %v2072
      %v3515 = vpop.f32.mrb[0].mxu0
      %v3516 = vadd.f32 %v3339, %v3515
      %v3517 = vpop.f32.mrb[0].mxu0
      %v3518 = vpop.f32.mrb[0].mxu0
      %v3519 = vadd.f32 %v3342, %v3518
      %v3520 = vpop.f32.mrb[0].mxu0
      %3521 = vmatprep.mubr.bf16.mxu0 0
      %3522 = vmatmul.mubr.bf16.gmra.mrb[0].mxu0 %v2074
      %v3523 = vpop.f32.mrb[0].mxu0
      %v3524 = vadd.f32 %v3347, %v3523
      %v3525 = vpop.f32.mrb[0].mxu0
      %v3526 = vpop.f32.mrb[0].mxu0
      %v3527 = vadd.f32 %v3350, %v3526
      %v3528 = vpop.f32.mrb[0].mxu0
      %3529 = vmatprep.mubr.bf16.mxu0 0
      %3530 = vmatmul.mubr.bf16.gmra.mrb[0].mxu0 %v2076
      %v3531 = vpop.f32.mrb[0].mxu0
      %v3532 = vadd.f32 %v3355, %v3531
      %v3533 = vpop.f32.mrb[0].mxu0
      %v3534 = vpop.f32.mrb[0].mxu0
      %v3535 = vadd.f32 %v3358, %v3534
      %v3536 = vpop.f32.mrb[0].mxu0
      %3537 = vmatprep.mubr.bf16.mxu0 0
      %3538 = vmatmul.mubr.bf16.gmra.mrb[0].mxu0 %v2078
      %v3539 = vpop.f32.mrb[0].mxu0
      %v3540 = vadd.f32 %v3363, %v3539
      %v3541 = vpop.f32.mrb[0].mxu0
      %v3542 = vpop.f32.mrb[0].mxu0
      %v3543 = vadd.f32 %v3366, %v3542
      %v3544 = vpop.f32.mrb[0].mxu0
      %3545 = vmatprep.mubr.bf16.mxu0 0
      %3546 = vmatmul.mubr.bf16.gmra.mrb[0].mxu0 %v2080
      %v3547 = vpop.f32.mrb[0].mxu0
      %v3548 = vadd.f32 %v3371, %v3547
      %v3549 = vpop.f32.mrb[0].mxu0
      %v3550 = vpop.f32.mrb[0].mxu0
      %v3551 = vadd.f32 %v3374, %v3550
      %v3552 = vpop.f32.mrb[0].mxu0
      %3553 = vmatprep.mubr.bf16.mxu0 0
      %3554 = vmatmul.mubr.bf16.gmra.mrb[0].mxu0 %v2082
      %v3555 = vpop.f32.mrb[0].mxu0
      %v3556 = vadd.f32 %v3379, %v3555
      %v3557 = vpop.f32.mrb[0].mxu0
      %v3558 = vpop.f32.mrb[0].mxu0
      %v3559 = vadd.f32 %v3382, %v3558
      %v3560 = vpop.f32.mrb[0].mxu0
      %3561 = vdwg.mxu0
      %v3598 = vcombine.high %v3420, %v3420
      %v3600 = vunpack.c.l.s4 1983009808
      %v3601 = vunpack.c.0.s8 %v3600
      %v3602 = vlaneseq
      %v3603 = vshrl.u32 %v3602, 7
      %v3604 = vsub.s32 %v3601, %v3603
      %v3605 = vrot.slane %v3420, %v3604
      %v3607 = vunpack.c.l.s4 1983009808
      %v3608 = vunpack.c.0.s8 %v3607
      %v3609 = vlaneseq
      %v3610 = vshrl.u32 %v3609, 7
      %v3611 = vsub.s32 %v3608, %v3610
      %v3612 = vrot.slane %v3598, %v3611
      %v3613 = vcombine.high %v3605, %v3605
      %v3614 = vcombine.high %v3612, %v3612
      %v3615 = vcombine.high %v3423, %v3423
      %v3617 = vunpack.c.l.s4 1983009808
      %v3618 = vunpack.c.0.s8 %v3617
      %v3619 = vlaneseq
      %v3620 = vshrl.u32 %v3619, 7
      %v3621 = vsub.s32 %v3618, %v3620
      %v3622 = vrot.slane %v3423, %v3621
      %v3624 = vunpack.c.l.s4 1983009808
      %v3625 = vunpack.c.0.s8 %v3624
      %v3626 = vlaneseq
      %v3627 = vshrl.u32 %v3626, 7
      %v3628 = vsub.s32 %v3625, %v3627
      %v3629 = vrot.slane %v3615, %v3628
      %v3630 = vcombine.high %v3622, %v3622
      %v3631 = vcombine.high %v3629, %v3629
      %v3632 = vcombine.high %v3428, %v3428
      %v3634 = vunpack.c.l.s4 1983009808
      %v3635 = vunpack.c.0.s8 %v3634
      %v3636 = vlaneseq
      %v3637 = vshrl.u32 %v3636, 7
      %v3638 = vsub.s32 %v3635, %v3637
      %v3639 = vrot.slane %v3428, %v3638
      %v3641 = vunpack.c.l.s4 1983009808
      %v3642 = vunpack.c.0.s8 %v3641
      %v3643 = vlaneseq
      %v3644 = vshrl.u32 %v3643, 7
      %v3645 = vsub.s32 %v3642, %v3644
      %v3646 = vrot.slane %v3632, %v3645
      %v3647 = vcombine.high %v3639, %v3639
      %v3648 = vcombine.high %v3646, %v3646
      %v3649 = vcombine.high %v3431, %v3431
      %v3651 = vunpack.c.l.s4 1983009808
      %v3652 = vunpack.c.0.s8 %v3651
      %v3653 = vlaneseq
      %v3654 = vshrl.u32 %v3653, 7
      %v3655 = vsub.s32 %v3652, %v3654
      %v3656 = vrot.slane %v3431, %v3655
      %v3658 = vunpack.c.l.s4 1983009808
      %v3659 = vunpack.c.0.s8 %v3658
      %v3660 = vlaneseq
      %v3661 = vshrl.u32 %v3660, 7
      %v3662 = vsub.s32 %v3659, %v3661
      %v3663 = vrot.slane %v3649, %v3662
      %v3664 = vcombine.high %v3656, %v3656
      %v3665 = vcombine.high %v3663, %v3663
      %v3666 = vcombine.high %v3436, %v3436
      %v3668 = vunpack.c.l.s4 1983009808
      %v3669 = vunpack.c.0.s8 %v3668
      %v3670 = vlaneseq
      %v3671 = vshrl.u32 %v3670, 7
      %v3672 = vsub.s32 %v3669, %v3671
      %v3673 = vrot.slane %v3436, %v3672
      %v3675 = vunpack.c.l.s4 1983009808
      %v3676 = vunpack.c.0.s8 %v3675
      %v3677 = vlaneseq
      %v3678 = vshrl.u32 %v3677, 7
      %v3679 = vsub.s32 %v3676, %v3678
      %v3680 = vrot.slane %v3666, %v3679
      %v3681 = vcombine.high %v3680, %v3680
      %v3682 = vcombine.high %v3439, %v3439
      %v3684 = vunpack.c.l.s4 1983009808
      %v3685 = vunpack.c.0.s8 %v3684
      %v3686 = vlaneseq
      %v3687 = vshrl.u32 %v3686, 7
      %v3688 = vsub.s32 %v3685, %v3687
      %v3689 = vrot.slane %v3439, %v3688
      %v3691 = vunpack.c.l.s4 1983009808
      %v3692 = vunpack.c.0.s8 %v3691
      %v3693 = vlaneseq
      %v3694 = vshrl.u32 %v3693, 7
      %v3695 = vsub.s32 %v3692, %v3694
      %v3696 = vrot.slane %v3682, %v3695
      %v3697 = vcombine.high %v3689, %v3689
      %v3698 = vcombine.high %v3696, %v3696
      %v3699 = vcombine.high %v3444, %v3444
      %v3701 = vunpack.c.l.s4 1983009808
      %v3702 = vunpack.c.0.s8 %v3701
      %v3703 = vlaneseq
      %v3704 = vshrl.u32 %v3703, 7
      %v3705 = vsub.s32 %v3702, %v3704
      %v3706 = vrot.slane %v3444, %v3705
      %v3708 = vunpack.c.l.s4 1983009808
      %v3709 = vunpack.c.0.s8 %v3708
      %v3710 = vlaneseq
      %v3711 = vshrl.u32 %v3710, 7
      %v3712 = vsub.s32 %v3709, %v3711
      %v3713 = vrot.slane %v3699, %v3712
      %v3714 = vcombine.high %v3706, %v3706
      %v3715 = vcombine.high %v3713, %v3713
      %v3716 = vcombine.high %v3447, %v3447
      %v3718 = vunpack.c.l.s4 1983009808
      %v3719 = vunpack.c.0.s8 %v3718
      %v3720 = vlaneseq
      %v3721 = vshrl.u32 %v3720, 7
      %v3722 = vsub.s32 %v3719, %v3721
      %v3723 = vrot.slane %v3447, %v3722
      %v3725 = vunpack.c.l.s4 1983009808
      %v3726 = vunpack.c.0.s8 %v3725
      %v3727 = vlaneseq
      %v3728 = vshrl.u32 %v3727, 7
      %v3729 = vsub.s32 %v3726, %v3728
      %v3730 = vrot.slane %v3716, %v3729
      %v3731 = vcombine.high %v3723, %v3723
      %v3732 = vcombine.high %v3730, %v3730
      %v3733 = vcombine.high %v3452, %v3452
      %v3735 = vunpack.c.l.s4 1983009808
      %v3736 = vunpack.c.0.s8 %v3735
      %v3737 = vlaneseq
      %v3738 = vshrl.u32 %v3737, 7
      %v3739 = vsub.s32 %v3736, %v3738
      %v3740 = vrot.slane %v3452, %v3739
      %v3742 = vunpack.c.l.s4 1983009808
      %v3743 = vunpack.c.0.s8 %v3742
      %v3744 = vlaneseq
      %v3745 = vshrl.u32 %v3744, 7
      %v3746 = vsub.s32 %v3743, %v3745
      %v3747 = vrot.slane %v3733, %v3746
      %v3748 = vcombine.high %v3740, %v3740
      %v3749 = vcombine.high %v3455, %v3455
      %v3751 = vunpack.c.l.s4 1983009808
      %v3752 = vunpack.c.0.s8 %v3751
      %v3753 = vlaneseq
      %v3754 = vshrl.u32 %v3753, 7
      %v3755 = vsub.s32 %v3752, %v3754
      %v3756 = vrot.slane %v3455, %v3755
      %v3758 = vunpack.c.l.s4 1983009808
      %v3759 = vunpack.c.0.s8 %v3758
      %v3760 = vlaneseq
      %v3761 = vshrl.u32 %v3760, 7
      %v3762 = vsub.s32 %v3759, %v3761
      %v3763 = vrot.slane %v3749, %v3762
      %v3764 = vcombine.high %v3756, %v3756
      %v3765 = vcombine.high %v3763, %v3763
      %v3766 = vcombine.high %v3460, %v3460
      %v3768 = vunpack.c.l.s4 1983009808
      %v3769 = vunpack.c.0.s8 %v3768
      %v3770 = vlaneseq
      %v3771 = vshrl.u32 %v3770, 7
      %v3772 = vsub.s32 %v3769, %v3771
      %v3773 = vrot.slane %v3460, %v3772
      %v3775 = vunpack.c.l.s4 1983009808
      %v3776 = vunpack.c.0.s8 %v3775
      %v3777 = vlaneseq
      %v3778 = vshrl.u32 %v3777, 7
      %v3779 = vsub.s32 %v3776, %v3778
      %v3780 = vrot.slane %v3766, %v3779
      %v3781 = vcombine.high %v3773, %v3773
      %v3782 = vcombine.high %v3780, %v3780
      %v3783 = vcombine.high %v3463, %v3463
      %v3785 = vunpack.c.l.s4 1983009808
      %v3786 = vunpack.c.0.s8 %v3785
      %v3787 = vlaneseq
      %v3788 = vshrl.u32 %v3787, 7
      %v3789 = vsub.s32 %v3786, %v3788
      %v3790 = vrot.slane %v3463, %v3789
      %v3792 = vunpack.c.l.s4 1983009808
      %v3793 = vunpack.c.0.s8 %v3792
      %v3794 = vlaneseq
      %v3795 = vshrl.u32 %v3794, 7
      %v3796 = vsub.s32 %v3793, %v3795
      %v3797 = vrot.slane %v3783, %v3796
      %v3798 = vcombine.high %v3790, %v3790
      %v3799 = vcombine.high %v3797, %v3797
      %v3800 = vcombine.high %v3468, %v3468
      %v3802 = vunpack.c.l.s4 1983009808
      %v3803 = vunpack.c.0.s8 %v3802
      %v3804 = vlaneseq
      %v3805 = vshrl.u32 %v3804, 7
      %v3806 = vsub.s32 %v3803, %v3805
      %v3807 = vrot.slane %v3468, %v3806
      %v3809 = vunpack.c.l.s4 1983009808
      %v3810 = vunpack.c.0.s8 %v3809
      %v3811 = vlaneseq
      %v3812 = vshrl.u32 %v3811, 7
      %v3813 = vsub.s32 %v3810, %v3812
      %v3814 = vrot.slane %v3800, %v3813
      %v3815 = vcombine.high %v3807, %v3807
      %v3816 = vcombine.high %v3814, %v3814
      %v3817 = vcombine.high %v3471, %v3471
      %v3819 = vunpack.c.l.s4 1983009808
      %v3820 = vunpack.c.0.s8 %v3819
      %v3821 = vlaneseq
      %v3822 = vshrl.u32 %v3821, 7
      %v3823 = vsub.s32 %v3820, %v3822
      %v3824 = vrot.slane %v3471, %v3823
      %v3826 = vunpack.c.l.s4 1983009808
      %v3827 = vunpack.c.0.s8 %v3826
      %v3828 = vlaneseq
      %v3829 = vshrl.u32 %v3828, 7
      %v3830 = vsub.s32 %v3827, %v3829
      %v3831 = vrot.slane %v3817, %v3830
      %v3832 = vcombine.high %v3831, %v3831
      %v3833 = vcombine.high %v3476, %v3476
      %v3835 = vunpack.c.l.s4 1983009808
      %v3836 = vunpack.c.0.s8 %v3835
      %v3837 = vlaneseq
      %v3838 = vshrl.u32 %v3837, 7
      %v3839 = vsub.s32 %v3836, %v3838
      %v3840 = vrot.slane %v3476, %v3839
      %v3842 = vunpack.c.l.s4 1983009808
      %v3843 = vunpack.c.0.s8 %v3842
      %v3844 = vlaneseq
      %v3845 = vshrl.u32 %v3844, 7
      %v3846 = vsub.s32 %v3843, %v3845
      %v3847 = vrot.slane %v3833, %v3846
      %v3848 = vcombine.high %v3840, %v3840
      %v3849 = vcombine.high %v3847, %v3847
      %v3850 = vcombine.high %v3479, %v3479
      %v3852 = vunpack.c.l.s4 1983009808
      %v3853 = vunpack.c.0.s8 %v3852
      %v3854 = vlaneseq
      %v3855 = vshrl.u32 %v3854, 7
      %v3856 = vsub.s32 %v3853, %v3855
      %v3857 = vrot.slane %v3479, %v3856
      %v3859 = vunpack.c.l.s4 1983009808
      %v3860 = vunpack.c.0.s8 %v3859
      %v3861 = vlaneseq
      %v3862 = vshrl.u32 %v3861, 7
      %v3863 = vsub.s32 %v3860, %v3862
      %v3864 = vrot.slane %v3850, %v3863
      %v3865 = vcombine.high %v3857, %v3857
      %v3866 = vcombine.high %v3864, %v3864
      %v3867 = vcombine.high %v3484, %v3484
      %v3869 = vunpack.c.l.s4 1983009808
      %v3870 = vunpack.c.0.s8 %v3869
      %v3871 = vlaneseq
      %v3872 = vshrl.u32 %v3871, 7
      %v3873 = vsub.s32 %v3870, %v3872
      %v3874 = vrot.slane %v3484, %v3873
      %v3876 = vunpack.c.l.s4 1983009808
      %v3877 = vunpack.c.0.s8 %v3876
      %v3878 = vlaneseq
      %v3879 = vshrl.u32 %v3878, 7
      %v3880 = vsub.s32 %v3877, %v3879
      %v3881 = vrot.slane %v3867, %v3880
      %v3882 = vcombine.high %v3874, %v3874
      %v3883 = vcombine.high %v3881, %v3881
      %v3884 = vcombine.high %v3487, %v3487
      %v3886 = vunpack.c.l.s4 1983009808
      %v3887 = vunpack.c.0.s8 %v3886
      %v3888 = vlaneseq
      %v3889 = vshrl.u32 %v3888, 7
      %v3890 = vsub.s32 %v3887, %v3889
      %v3891 = vrot.slane %v3487, %v3890
      %v3893 = vunpack.c.l.s4 1983009808
      %v3894 = vunpack.c.0.s8 %v3893
      %v3895 = vlaneseq
      %v3896 = vshrl.u32 %v3895, 7
      %v3897 = vsub.s32 %v3894, %v3896
      %v3898 = vrot.slane %v3884, %v3897
      %v3899 = vcombine.high %v3891, %v3891
      %v3900 = vcombine.high %v3492, %v3492
      %v3902 = vunpack.c.l.s4 1983009808
      %v3903 = vunpack.c.0.s8 %v3902
      %v3904 = vlaneseq
      %v3905 = vshrl.u32 %v3904, 7
      %v3906 = vsub.s32 %v3903, %v3905
      %v3907 = vrot.slane %v3492, %v3906
      %v3909 = vunpack.c.l.s4 1983009808
      %v3910 = vunpack.c.0.s8 %v3909
      %v3911 = vlaneseq
      %v3912 = vshrl.u32 %v3911, 7
      %v3913 = vsub.s32 %v3910, %v3912
      %v3914 = vrot.slane %v3900, %v3913
      %v3915 = vcombine.high %v3907, %v3907
      %v3916 = vcombine.high %v3914, %v3914
      %v3917 = vcombine.high %v3495, %v3495
      %v3919 = vunpack.c.l.s4 1983009808
      %v3920 = vunpack.c.0.s8 %v3919
      %v3921 = vlaneseq
      %v3922 = vshrl.u32 %v3921, 7
      %v3923 = vsub.s32 %v3920, %v3922
      %v3924 = vrot.slane %v3495, %v3923
      %v3926 = vunpack.c.l.s4 1983009808
      %v3927 = vunpack.c.0.s8 %v3926
      %v3928 = vlaneseq
      %v3929 = vshrl.u32 %v3928, 7
      %v3930 = vsub.s32 %v3927, %v3929
      %v3931 = vrot.slane %v3917, %v3930
      %v3932 = vcombine.high %v3924, %v3924
      %v3933 = vcombine.high %v3931, %v3931
      %v3934 = vcombine.high %v3500, %v3500
      %v3936 = vunpack.c.l.s4 1983009808
      %v3937 = vunpack.c.0.s8 %v3936
      %v3938 = vlaneseq
      %v3939 = vshrl.u32 %v3938, 7
      %v3940 = vsub.s32 %v3937, %v3939
      %v3941 = vrot.slane %v3500, %v3940
      %v3943 = vunpack.c.l.s4 1983009808
      %v3944 = vunpack.c.0.s8 %v3943
      %v3945 = vlaneseq
      %v3946 = vshrl.u32 %v3945, 7
      %v3947 = vsub.s32 %v3944, %v3946
      %v3948 = vrot.slane %v3934, %v3947
      %v3949 = vcombine.high %v3941, %v3941
      %v3950 = vcombine.high %v3948, %v3948
      %v3951 = vcombine.high %v3503, %v3503
      %v3953 = vunpack.c.l.s4 1983009808
      %v3954 = vunpack.c.0.s8 %v3953
      %v3955 = vlaneseq
      %v3956 = vshrl.u32 %v3955, 7
      %v3957 = vsub.s32 %v3954, %v3956
      %v3958 = vrot.slane %v3503, %v3957
      %v3960 = vunpack.c.l.s4 1983009808
      %v3961 = vunpack.c.0.s8 %v3960
      %v3962 = vlaneseq
      %v3963 = vshrl.u32 %v3962, 7
      %v3964 = vsub.s32 %v3961, %v3963
      %v3965 = vrot.slane %v3951, %v3964
      %v3966 = vcombine.high %v3958, %v3958
      %v3967 = vcombine.high %v3965, %v3965
      %v3968 = vcombine.high %v3508, %v3508
      %v3970 = vunpack.c.l.s4 1983009808
      %v3971 = vunpack.c.0.s8 %v3970
      %v3972 = vlaneseq
      %v3973 = vshrl.u32 %v3972, 7
      %v3974 = vsub.s32 %v3971, %v3973
      %v3975 = vrot.slane %v3508, %v3974
      %v3977 = vunpack.c.l.s4 1983009808
      %v3978 = vunpack.c.0.s8 %v3977
      %v3979 = vlaneseq
      %v3980 = vshrl.u32 %v3979, 7
      %v3981 = vsub.s32 %v3978, %v3980
      %v3982 = vrot.slane %v3968, %v3981
      %v3983 = vcombine.high %v3982, %v3982
      %v3984 = vcombine.high %v3511, %v3511
      %v3986 = vunpack.c.l.s4 1983009808
      %v3987 = vunpack.c.0.s8 %v3986
      %v3988 = vlaneseq
      %v3989 = vshrl.u32 %v3988, 7
      %v3990 = vsub.s32 %v3987, %v3989
      %v3991 = vrot.slane %v3511, %v3990
      %v3993 = vunpack.c.l.s4 1983009808
      %v3994 = vunpack.c.0.s8 %v3993
      %v3995 = vlaneseq
      %v3996 = vshrl.u32 %v3995, 7
      %v3997 = vsub.s32 %v3994, %v3996
      %v3998 = vrot.slane %v3984, %v3997
      %v3999 = vcombine.high %v3991, %v3991
      %v4000 = vcombine.high %v3998, %v3998
      %v4001 = vcombine.high %v3516, %v3516
      %v4003 = vunpack.c.l.s4 1983009808
      %v4004 = vunpack.c.0.s8 %v4003
      %v4005 = vlaneseq
      %v4006 = vshrl.u32 %v4005, 7
      %v4007 = vsub.s32 %v4004, %v4006
      %v4008 = vrot.slane %v3516, %v4007
      %v4010 = vunpack.c.l.s4 1983009808
      %v4011 = vunpack.c.0.s8 %v4010
      %v4012 = vlaneseq
      %v4013 = vshrl.u32 %v4012, 7
      %v4014 = vsub.s32 %v4011, %v4013
      %v4015 = vrot.slane %v4001, %v4014
      %v4016 = vcombine.high %v4008, %v4008
      %v4017 = vcombine.high %v4015, %v4015
      %v4018 = vcombine.high %v3519, %v3519
      %v4020 = vunpack.c.l.s4 1983009808
      %v4021 = vunpack.c.0.s8 %v4020
      %v4022 = vlaneseq
      %v4023 = vshrl.u32 %v4022, 7
      %v4024 = vsub.s32 %v4021, %v4023
      %v4025 = vrot.slane %v3519, %v4024
      %v4027 = vunpack.c.l.s4 1983009808
      %v4028 = vunpack.c.0.s8 %v4027
      %v4029 = vlaneseq
      %v4030 = vshrl.u32 %v4029, 7
      %v4031 = vsub.s32 %v4028, %v4030
      %v4032 = vrot.slane %v4018, %v4031
      %v4033 = vcombine.high %v4025, %v4025
      %v4034 = vcombine.high %v4032, %v4032
      %v4035 = vcombine.high %v3524, %v3524
      %v4037 = vunpack.c.l.s4 1983009808
      %v4038 = vunpack.c.0.s8 %v4037
      %v4039 = vlaneseq
      %v4040 = vshrl.u32 %v4039, 7
      %v4041 = vsub.s32 %v4038, %v4040
      %v4042 = vrot.slane %v3524, %v4041
      %v4044 = vunpack.c.l.s4 1983009808
      %v4045 = vunpack.c.0.s8 %v4044
      %v4046 = vlaneseq
      %v4047 = vshrl.u32 %v4046, 7
      %v4048 = vsub.s32 %v4045, %v4047
      %v4049 = vrot.slane %v4035, %v4048
      %v4050 = vcombine.high %v4042, %v4042
      %v4051 = vcombine.high %v3527, %v3527
      %v4053 = vunpack.c.l.s4 1983009808
      %v4054 = vunpack.c.0.s8 %v4053
      %v4055 = vlaneseq
      %v4056 = vshrl.u32 %v4055, 7
      %v4057 = vsub.s32 %v4054, %v4056
      %v4058 = vrot.slane %v3527, %v4057
      %v4060 = vunpack.c.l.s4 1983009808
      %v4061 = vunpack.c.0.s8 %v4060
      %v4062 = vlaneseq
      %v4063 = vshrl.u32 %v4062, 7
      %v4064 = vsub.s32 %v4061, %v4063
      %v4065 = vrot.slane %v4051, %v4064
      %v4066 = vcombine.high %v4058, %v4058
      %v4067 = vcombine.high %v4065, %v4065
      %v4068 = vcombine.high %v3532, %v3532
      %v4070 = vunpack.c.l.s4 1983009808
      %v4071 = vunpack.c.0.s8 %v4070
      %v4072 = vlaneseq
      %v4073 = vshrl.u32 %v4072, 7
      %v4074 = vsub.s32 %v4071, %v4073
      %v4075 = vrot.slane %v3532, %v4074
      %v4077 = vunpack.c.l.s4 1983009808
      %v4078 = vunpack.c.0.s8 %v4077
      %v4079 = vlaneseq
      %v4080 = vshrl.u32 %v4079, 7
      %v4081 = vsub.s32 %v4078, %v4080
      %v4082 = vrot.slane %v4068, %v4081
      %v4083 = vcombine.high %v4075, %v4075
      %v4084 = vcombine.high %v4082, %v4082
      %v4085 = vcombine.high %v3535, %v3535
      %v4087 = vunpack.c.l.s4 1983009808
      %v4088 = vunpack.c.0.s8 %v4087
      %v4089 = vlaneseq
      %v4090 = vshrl.u32 %v4089, 7
      %v4091 = vsub.s32 %v4088, %v4090
      %v4092 = vrot.slane %v3535, %v4091
      %v4094 = vunpack.c.l.s4 1983009808
      %v4095 = vunpack.c.0.s8 %v4094
      %v4096 = vlaneseq
      %v4097 = vshrl.u32 %v4096, 7
      %v4098 = vsub.s32 %v4095, %v4097
      %v4099 = vrot.slane %v4085, %v4098
      %v4100 = vcombine.high %v4092, %v4092
      %v4101 = vcombine.high %v4099, %v4099
      %v4102 = vcombine.high %v3540, %v3540
      %v4104 = vunpack.c.l.s4 1983009808
      %v4105 = vunpack.c.0.s8 %v4104
      %v4106 = vlaneseq
      %v4107 = vshrl.u32 %v4106, 7
      %v4108 = vsub.s32 %v4105, %v4107
      %v4109 = vrot.slane %v3540, %v4108
      %v4111 = vunpack.c.l.s4 1983009808
      %v4112 = vunpack.c.0.s8 %v4111
      %v4113 = vlaneseq
      %v4114 = vshrl.u32 %v4113, 7
      %v4115 = vsub.s32 %v4112, %v4114
      %v4116 = vrot.slane %v4102, %v4115
      %v4117 = vcombine.high %v4109, %v4109
      %v4118 = vcombine.high %v4116, %v4116
      %v4119 = vcombine.high %v3543, %v3543
      %v4121 = vunpack.c.l.s4 1983009808
      %v4122 = vunpack.c.0.s8 %v4121
      %v4123 = vlaneseq
      %v4124 = vshrl.u32 %v4123, 7
      %v4125 = vsub.s32 %v4122, %v4124
      %v4126 = vrot.slane %v3543, %v4125
      %v4128 = vunpack.c.l.s4 1983009808
      %v4129 = vunpack.c.0.s8 %v4128
      %v4130 = vlaneseq
      %v4131 = vshrl.u32 %v4130, 7
      %v4132 = vsub.s32 %v4129, %v4131
      %v4133 = vrot.slane %v4119, %v4132
      %v4134 = vcombine.high %v4133, %v4133
      %v4135 = vcombine.high %v3548, %v3548
      %v4137 = vunpack.c.l.s4 1983009808
      %v4138 = vunpack.c.0.s8 %v4137
      %v4139 = vlaneseq
      %v4140 = vshrl.u32 %v4139, 7
      %v4141 = vsub.s32 %v4138, %v4140
      %v4142 = vrot.slane %v3548, %v4141
      %v4144 = vunpack.c.l.s4 1983009808
      %v4145 = vunpack.c.0.s8 %v4144
      %v4146 = vlaneseq
      %v4147 = vshrl.u32 %v4146, 7
      %v4148 = vsub.s32 %v4145, %v4147
      %v4149 = vrot.slane %v4135, %v4148
      %v4150 = vcombine.high %v4142, %v4142
      %v4151 = vcombine.high %v4149, %v4149
      %v4152 = vcombine.high %v3551, %v3551
      %v4154 = vunpack.c.l.s4 1983009808
      %v4155 = vunpack.c.0.s8 %v4154
      %v4156 = vlaneseq
      %v4157 = vshrl.u32 %v4156, 7
      %v4158 = vsub.s32 %v4155, %v4157
      %v4159 = vrot.slane %v3551, %v4158
      %v4161 = vunpack.c.l.s4 1983009808
      %v4162 = vunpack.c.0.s8 %v4161
      %v4163 = vlaneseq
      %v4164 = vshrl.u32 %v4163, 7
      %v4165 = vsub.s32 %v4162, %v4164
      %v4166 = vrot.slane %v4152, %v4165
      %v4167 = vcombine.high %v4159, %v4159
      %v4168 = vcombine.high %v4166, %v4166
      %v4169 = vcombine.high %v3556, %v3556
      %v4171 = vunpack.c.l.s4 1983009808
      %v4172 = vunpack.c.0.s8 %v4171
      %v4173 = vlaneseq
      %v4174 = vshrl.u32 %v4173, 7
      %v4175 = vsub.s32 %v4172, %v4174
      %v4176 = vrot.slane %v3556, %v4175
      %v4178 = vunpack.c.l.s4 1983009808
      %v4179 = vunpack.c.0.s8 %v4178
      %v4180 = vlaneseq
      %v4181 = vshrl.u32 %v4180, 7
      %v4182 = vsub.s32 %v4179, %v4181
      %v4183 = vrot.slane %v4169, %v4182
      %v4184 = vcombine.high %v4176, %v4176
      %v4185 = vcombine.high %v4183, %v4183
      %v4186 = vcombine.high %v3559, %v3559
      %v4188 = vunpack.c.l.s4 1983009808
      %v4189 = vunpack.c.0.s8 %v4188
      %v4190 = vlaneseq
      %v4191 = vshrl.u32 %v4190, 7
      %v4192 = vsub.s32 %v4189, %v4191
      %v4193 = vrot.slane %v3559, %v4192
      %v4195 = vunpack.c.l.s4 1983009808
      %v4196 = vunpack.c.0.s8 %v4195
      %v4197 = vlaneseq
      %v4198 = vshrl.u32 %v4197, 7
      %v4199 = vsub.s32 %v4196, %v4198
      %v4200 = vrot.slane %v4186, %v4199
      %v4201 = vcombine.high %v4193, %v4193
      %v4330 = vcombine.low %v3605, %v3613
      %v4331 = vcombine.low %v3612, %v3614
      %v4333 = vunpack.c.l.s4 1983009808
      %v4334 = vunpack.c.0.s8 %v4333
      %v4335 = vlaneseq
      %v4336 = vshrl.u32 %v4335, 7
      %v4337 = vsub.s32 %v4334, %v4336
      %v4338 = vrot.slane %v4330, %v4337
      %v4340 = vunpack.c.l.s4 1983009808
      %v4341 = vunpack.c.0.s8 %v4340
      %v4342 = vlaneseq
      %v4343 = vshrl.u32 %v4342, 7
      %v4344 = vsub.s32 %v4341, %v4343
      %v4345 = vrot.slane %v4331, %v4344
      %v4346 = vcombine.low %v4338, %v4345
      %v4347 = vcombine.low %v3622, %v3630
      %v4348 = vcombine.low %v3629, %v3631
      %v4350 = vunpack.c.l.s4 1983009808
      %v4351 = vunpack.c.0.s8 %v4350
      %v4352 = vlaneseq
      %v4353 = vshrl.u32 %v4352, 7
      %v4354 = vsub.s32 %v4351, %v4353
      %v4355 = vrot.slane %v4347, %v4354
      %v4357 = vunpack.c.l.s4 1983009808
      %v4358 = vunpack.c.0.s8 %v4357
      %v4359 = vlaneseq
      %v4360 = vshrl.u32 %v4359, 7
      %v4361 = vsub.s32 %v4358, %v4360
      %v4362 = vrot.slane %v4348, %v4361
      %v4363 = vcombine.low %v4355, %v4362
      %v4364 = vcombine.low %v3647, %v3646
      %v4365 = vcombine.low %v3648, %v3656
      %v4367 = vunpack.c.l.s4 1983009808
      %v4368 = vunpack.c.0.s8 %v4367
      %v4369 = vlaneseq
      %v4370 = vshrl.u32 %v4369, 7
      %v4371 = vsub.s32 %v4368, %v4370
      %v4372 = vrot.slane %v4364, %v4371
      %v4374 = vunpack.c.l.s4 1983009808
      %v4375 = vunpack.c.0.s8 %v4374
      %v4376 = vlaneseq
      %v4377 = vshrl.u32 %v4376, 7
      %v4378 = vsub.s32 %v4375, %v4377
      %v4379 = vrot.slane %v4365, %v4378
      %v4380 = vcombine.low %v4372, %v4379
      %v4381 = vcombine.low %v3664, %v3663
      %v4382 = vcombine.low %v3665, %v3673
      %v4384 = vunpack.c.l.s4 1983009808
      %v4385 = vunpack.c.0.s8 %v4384
      %v4386 = vlaneseq
      %v4387 = vshrl.u32 %v4386, 7
      %v4388 = vsub.s32 %v4385, %v4387
      %v4389 = vrot.slane %v4381, %v4388
      %v4391 = vunpack.c.l.s4 1983009808
      %v4392 = vunpack.c.0.s8 %v4391
      %v4393 = vlaneseq
      %v4394 = vshrl.u32 %v4393, 7
      %v4395 = vsub.s32 %v4392, %v4394
      %v4396 = vrot.slane %v4382, %v4395
      %v4397 = vcombine.low %v4389, %v4396
      %v4398 = vcombine.low %v3680, %v3681
      %v4399 = vcombine.low %v3689, %v3697
      %v4401 = vunpack.c.l.s4 1983009808
      %v4402 = vunpack.c.0.s8 %v4401
      %v4403 = vlaneseq
      %v4404 = vshrl.u32 %v4403, 7
      %v4405 = vsub.s32 %v4402, %v4404
      %v4406 = vrot.slane %v4398, %v4405
      %v4408 = vunpack.c.l.s4 1983009808
      %v4409 = vunpack.c.0.s8 %v4408
      %v4410 = vlaneseq
      %v4411 = vshrl.u32 %v4410, 7
      %v4412 = vsub.s32 %v4409, %v4411
      %v4413 = vrot.slane %v4399, %v4412
      %v4414 = vcombine.low %v4406, %v4413
      %v4415 = vcombine.low %v3696, %v3698
      %v4416 = vcombine.low %v3706, %v3714
      %v4418 = vunpack.c.l.s4 1983009808
      %v4419 = vunpack.c.0.s8 %v4418
      %v4420 = vlaneseq
      %v4421 = vshrl.u32 %v4420, 7
      %v4422 = vsub.s32 %v4419, %v4421
      %v4423 = vrot.slane %v4415, %v4422
      %v4425 = vunpack.c.l.s4 1983009808
      %v4426 = vunpack.c.0.s8 %v4425
      %v4427 = vlaneseq
      %v4428 = vshrl.u32 %v4427, 7
      %v4429 = vsub.s32 %v4426, %v4428
      %v4430 = vrot.slane %v4416, %v4429
      %v4431 = vcombine.low %v4423, %v4430
      %v4432 = vcombine.low %v3715, %v3723
      %v4433 = vcombine.low %v3731, %v3730
      %v4435 = vunpack.c.l.s4 1983009808
      %v4436 = vunpack.c.0.s8 %v4435
      %v4437 = vlaneseq
      %v4438 = vshrl.u32 %v4437, 7
      %v4439 = vsub.s32 %v4436, %v4438
      %v4440 = vrot.slane %v4432, %v4439
      %v4442 = vunpack.c.l.s4 1983009808
      %v4443 = vunpack.c.0.s8 %v4442
      %v4444 = vlaneseq
      %v4445 = vshrl.u32 %v4444, 7
      %v4446 = vsub.s32 %v4443, %v4445
      %v4447 = vrot.slane %v4433, %v4446
      %v4448 = vcombine.low %v4440, %v4447
      %v4449 = vcombine.low %v3732, %v3740
      %v4450 = vcombine.low %v3748, %v3747
      %v4452 = vunpack.c.l.s4 1983009808
      %v4453 = vunpack.c.0.s8 %v4452
      %v4454 = vlaneseq
      %v4455 = vshrl.u32 %v4454, 7
      %v4456 = vsub.s32 %v4453, %v4455
      %v4457 = vrot.slane %v4449, %v4456
      %v4459 = vunpack.c.l.s4 1983009808
      %v4460 = vunpack.c.0.s8 %v4459
      %v4461 = vlaneseq
      %v4462 = vshrl.u32 %v4461, 7
      %v4463 = vsub.s32 %v4460, %v4462
      %v4464 = vrot.slane %v4450, %v4463
      %v4465 = vcombine.low %v4457, %v4464
      %v4466 = vcombine.low %v3756, %v3764
      %v4467 = vcombine.low %v3763, %v3765
      %v4469 = vunpack.c.l.s4 1983009808
      %v4470 = vunpack.c.0.s8 %v4469
      %v4471 = vlaneseq
      %v4472 = vshrl.u32 %v4471, 7
      %v4473 = vsub.s32 %v4470, %v4472
      %v4474 = vrot.slane %v4466, %v4473
      %v4476 = vunpack.c.l.s4 1983009808
      %v4477 = vunpack.c.0.s8 %v4476
      %v4478 = vlaneseq
      %v4479 = vshrl.u32 %v4478, 7
      %v4480 = vsub.s32 %v4477, %v4479
      %v4481 = vrot.slane %v4467, %v4480
      %v4482 = vcombine.low %v4474, %v4481
      %v4483 = vcombine.low %v3773, %v3781
      %v4484 = vcombine.low %v3780, %v3782
      %v4486 = vunpack.c.l.s4 1983009808
      %v4487 = vunpack.c.0.s8 %v4486
      %v4488 = vlaneseq
      %v4489 = vshrl.u32 %v4488, 7
      %v4490 = vsub.s32 %v4487, %v4489
      %v4491 = vrot.slane %v4483, %v4490
      %v4493 = vunpack.c.l.s4 1983009808
      %v4494 = vunpack.c.0.s8 %v4493
      %v4495 = vlaneseq
      %v4496 = vshrl.u32 %v4495, 7
      %v4497 = vsub.s32 %v4494, %v4496
      %v4498 = vrot.slane %v4484, %v4497
      %v4499 = vcombine.low %v4491, %v4498
      %v4500 = vcombine.low %v3798, %v3797
      %v4501 = vcombine.low %v3799, %v3807
      %v4503 = vunpack.c.l.s4 1983009808
      %v4504 = vunpack.c.0.s8 %v4503
      %v4505 = vlaneseq
      %v4506 = vshrl.u32 %v4505, 7
      %v4507 = vsub.s32 %v4504, %v4506
      %v4508 = vrot.slane %v4500, %v4507
      %v4510 = vunpack.c.l.s4 1983009808
      %v4511 = vunpack.c.0.s8 %v4510
      %v4512 = vlaneseq
      %v4513 = vshrl.u32 %v4512, 7
      %v4514 = vsub.s32 %v4511, %v4513
      %v4515 = vrot.slane %v4501, %v4514
      %v4516 = vcombine.low %v4508, %v4515
      %v4517 = vcombine.low %v3815, %v3814
      %v4518 = vcombine.low %v3816, %v3824
      %v4520 = vunpack.c.l.s4 1983009808
      %v4521 = vunpack.c.0.s8 %v4520
      %v4522 = vlaneseq
      %v4523 = vshrl.u32 %v4522, 7
      %v4524 = vsub.s32 %v4521, %v4523
      %v4525 = vrot.slane %v4517, %v4524
      %v4527 = vunpack.c.l.s4 1983009808
      %v4528 = vunpack.c.0.s8 %v4527
      %v4529 = vlaneseq
      %v4530 = vshrl.u32 %v4529, 7
      %v4531 = vsub.s32 %v4528, %v4530
      %v4532 = vrot.slane %v4518, %v4531
      %v4533 = vcombine.low %v4525, %v4532
      %v4534 = vcombine.low %v3831, %v3832
      %v4535 = vcombine.low %v3840, %v3848
      %v4537 = vunpack.c.l.s4 1983009808
      %v4538 = vunpack.c.0.s8 %v4537
      %v4539 = vlaneseq
      %v4540 = vshrl.u32 %v4539, 7
      %v4541 = vsub.s32 %v4538, %v4540
      %v4542 = vrot.slane %v4534, %v4541
      %v4544 = vunpack.c.l.s4 1983009808
      %v4545 = vunpack.c.0.s8 %v4544
      %v4546 = vlaneseq
      %v4547 = vshrl.u32 %v4546, 7
      %v4548 = vsub.s32 %v4545, %v4547
      %v4549 = vrot.slane %v4535, %v4548
      %v4550 = vcombine.low %v4542, %v4549
      %v4551 = vcombine.low %v3847, %v3849
      %v4552 = vcombine.low %v3857, %v3865
      %v4554 = vunpack.c.l.s4 1983009808
      %v4555 = vunpack.c.0.s8 %v4554
      %v4556 = vlaneseq
      %v4557 = vshrl.u32 %v4556, 7
      %v4558 = vsub.s32 %v4555, %v4557
      %v4559 = vrot.slane %v4551, %v4558
      %v4561 = vunpack.c.l.s4 1983009808
      %v4562 = vunpack.c.0.s8 %v4561
      %v4563 = vlaneseq
      %v4564 = vshrl.u32 %v4563, 7
      %v4565 = vsub.s32 %v4562, %v4564
      %v4566 = vrot.slane %v4552, %v4565
      %v4567 = vcombine.low %v4559, %v4566
      %v4568 = vcombine.low %v3866, %v3874
      %v4569 = vcombine.low %v3882, %v3881
      %v4571 = vunpack.c.l.s4 1983009808
      %v4572 = vunpack.c.0.s8 %v4571
      %v4573 = vlaneseq
      %v4574 = vshrl.u32 %v4573, 7
      %v4575 = vsub.s32 %v4572, %v4574
      %v4576 = vrot.slane %v4568, %v4575
      %v4578 = vunpack.c.l.s4 1983009808
      %v4579 = vunpack.c.0.s8 %v4578
      %v4580 = vlaneseq
      %v4581 = vshrl.u32 %v4580, 7
      %v4582 = vsub.s32 %v4579, %v4581
      %v4583 = vrot.slane %v4569, %v4582
      %v4584 = vcombine.low %v4576, %v4583
      %v4585 = vcombine.low %v3883, %v3891
      %v4586 = vcombine.low %v3899, %v3898
      %v4588 = vunpack.c.l.s4 1983009808
      %v4589 = vunpack.c.0.s8 %v4588
      %v4590 = vlaneseq
      %v4591 = vshrl.u32 %v4590, 7
      %v4592 = vsub.s32 %v4589, %v4591
      %v4593 = vrot.slane %v4585, %v4592
      %v4595 = vunpack.c.l.s4 1983009808
      %v4596 = vunpack.c.0.s8 %v4595
      %v4597 = vlaneseq
      %v4598 = vshrl.u32 %v4597, 7
      %v4599 = vsub.s32 %v4596, %v4598
      %v4600 = vrot.slane %v4586, %v4599
      %v4601 = vcombine.low %v4593, %v4600
      %v4602 = vcombine.low %v3907, %v3915
      %v4603 = vcombine.low %v3914, %v3916
      %v4605 = vunpack.c.l.s4 1983009808
      %v4606 = vunpack.c.0.s8 %v4605
      %v4607 = vlaneseq
      %v4608 = vshrl.u32 %v4607, 7
      %v4609 = vsub.s32 %v4606, %v4608
      %v4610 = vrot.slane %v4602, %v4609
      %v4612 = vunpack.c.l.s4 1983009808
      %v4613 = vunpack.c.0.s8 %v4612
      %v4614 = vlaneseq
      %v4615 = vshrl.u32 %v4614, 7
      %v4616 = vsub.s32 %v4613, %v4615
      %v4617 = vrot.slane %v4603, %v4616
      %v4618 = vcombine.low %v4610, %v4617
      %v4619 = vcombine.low %v3924, %v3932
      %v4620 = vcombine.low %v3931, %v3933
      %v4622 = vunpack.c.l.s4 1983009808
      %v4623 = vunpack.c.0.s8 %v4622
      %v4624 = vlaneseq
      %v4625 = vshrl.u32 %v4624, 7
      %v4626 = vsub.s32 %v4623, %v4625
      %v4627 = vrot.slane %v4619, %v4626
      %v4629 = vunpack.c.l.s4 1983009808
      %v4630 = vunpack.c.0.s8 %v4629
      %v4631 = vlaneseq
      %v4632 = vshrl.u32 %v4631, 7
      %v4633 = vsub.s32 %v4630, %v4632
      %v4634 = vrot.slane %v4620, %v4633
      %v4635 = vcombine.low %v4627, %v4634
      %v4636 = vcombine.low %v3949, %v3948
      %v4637 = vcombine.low %v3950, %v3958
      %v4639 = vunpack.c.l.s4 1983009808
      %v4640 = vunpack.c.0.s8 %v4639
      %v4641 = vlaneseq
      %v4642 = vshrl.u32 %v4641, 7
      %v4643 = vsub.s32 %v4640, %v4642
      %v4644 = vrot.slane %v4636, %v4643
      %v4646 = vunpack.c.l.s4 1983009808
      %v4647 = vunpack.c.0.s8 %v4646
      %v4648 = vlaneseq
      %v4649 = vshrl.u32 %v4648, 7
      %v4650 = vsub.s32 %v4647, %v4649
      %v4651 = vrot.slane %v4637, %v4650
      %v4652 = vcombine.low %v4644, %v4651
      %v4653 = vcombine.low %v3966, %v3965
      %v4654 = vcombine.low %v3967, %v3975
      %v4656 = vunpack.c.l.s4 1983009808
      %v4657 = vunpack.c.0.s8 %v4656
      %v4658 = vlaneseq
      %v4659 = vshrl.u32 %v4658, 7
      %v4660 = vsub.s32 %v4657, %v4659
      %v4661 = vrot.slane %v4653, %v4660
      %v4663 = vunpack.c.l.s4 1983009808
      %v4664 = vunpack.c.0.s8 %v4663
      %v4665 = vlaneseq
      %v4666 = vshrl.u32 %v4665, 7
      %v4667 = vsub.s32 %v4664, %v4666
      %v4668 = vrot.slane %v4654, %v4667
      %v4669 = vcombine.low %v4661, %v4668
      %v4670 = vcombine.low %v3982, %v3983
      %v4671 = vcombine.low %v3991, %v3999
      %v4673 = vunpack.c.l.s4 1983009808
      %v4674 = vunpack.c.0.s8 %v4673
      %v4675 = vlaneseq
      %v4676 = vshrl.u32 %v4675, 7
      %v4677 = vsub.s32 %v4674, %v4676
      %v4678 = vrot.slane %v4670, %v4677
      %v4680 = vunpack.c.l.s4 1983009808
      %v4681 = vunpack.c.0.s8 %v4680
      %v4682 = vlaneseq
      %v4683 = vshrl.u32 %v4682, 7
      %v4684 = vsub.s32 %v4681, %v4683
      %v4685 = vrot.slane %v4671, %v4684
      %v4686 = vcombine.low %v4678, %v4685
      %v4687 = vcombine.low %v3998, %v4000
      %v4688 = vcombine.low %v4008, %v4016
      %v4690 = vunpack.c.l.s4 1983009808
      %v4691 = vunpack.c.0.s8 %v4690
      %v4692 = vlaneseq
      %v4693 = vshrl.u32 %v4692, 7
      %v4694 = vsub.s32 %v4691, %v4693
      %v4695 = vrot.slane %v4687, %v4694
      %v4697 = vunpack.c.l.s4 1983009808
      %v4698 = vunpack.c.0.s8 %v4697
      %v4699 = vlaneseq
      %v4700 = vshrl.u32 %v4699, 7
      %v4701 = vsub.s32 %v4698, %v4700
      %v4702 = vrot.slane %v4688, %v4701
      %v4703 = vcombine.low %v4695, %v4702
      %v4704 = vcombine.low %v4017, %v4025
      %v4705 = vcombine.low %v4033, %v4032
      %v4707 = vunpack.c.l.s4 1983009808
      %v4708 = vunpack.c.0.s8 %v4707
      %v4709 = vlaneseq
      %v4710 = vshrl.u32 %v4709, 7
      %v4711 = vsub.s32 %v4708, %v4710
      %v4712 = vrot.slane %v4704, %v4711
      %v4714 = vunpack.c.l.s4 1983009808
      %v4715 = vunpack.c.0.s8 %v4714
      %v4716 = vlaneseq
      %v4717 = vshrl.u32 %v4716, 7
      %v4718 = vsub.s32 %v4715, %v4717
      %v4719 = vrot.slane %v4705, %v4718
      %v4720 = vcombine.low %v4712, %v4719
      %v4721 = vcombine.low %v4034, %v4042
      %v4722 = vcombine.low %v4050, %v4049
      %v4724 = vunpack.c.l.s4 1983009808
      %v4725 = vunpack.c.0.s8 %v4724
      %v4726 = vlaneseq
      %v4727 = vshrl.u32 %v4726, 7
      %v4728 = vsub.s32 %v4725, %v4727
      %v4729 = vrot.slane %v4721, %v4728
      %v4731 = vunpack.c.l.s4 1983009808
      %v4732 = vunpack.c.0.s8 %v4731
      %v4733 = vlaneseq
      %v4734 = vshrl.u32 %v4733, 7
      %v4735 = vsub.s32 %v4732, %v4734
      %v4736 = vrot.slane %v4722, %v4735
      %v4737 = vcombine.low %v4729, %v4736
      %v4738 = vcombine.low %v4058, %v4066
      %v4739 = vcombine.low %v4065, %v4067
      %v4741 = vunpack.c.l.s4 1983009808
      %v4742 = vunpack.c.0.s8 %v4741
      %v4743 = vlaneseq
      %v4744 = vshrl.u32 %v4743, 7
      %v4745 = vsub.s32 %v4742, %v4744
      %v4746 = vrot.slane %v4738, %v4745
      %v4748 = vunpack.c.l.s4 1983009808
      %v4749 = vunpack.c.0.s8 %v4748
      %v4750 = vlaneseq
      %v4751 = vshrl.u32 %v4750, 7
      %v4752 = vsub.s32 %v4749, %v4751
      %v4753 = vrot.slane %v4739, %v4752
      %v4754 = vcombine.low %v4746, %v4753
      %v4755 = vcombine.low %v4075, %v4083
      %v4756 = vcombine.low %v4082, %v4084
      %v4758 = vunpack.c.l.s4 1983009808
      %v4759 = vunpack.c.0.s8 %v4758
      %v4760 = vlaneseq
      %v4761 = vshrl.u32 %v4760, 7
      %v4762 = vsub.s32 %v4759, %v4761
      %v4763 = vrot.slane %v4755, %v4762
      %v4765 = vunpack.c.l.s4 1983009808
      %v4766 = vunpack.c.0.s8 %v4765
      %v4767 = vlaneseq
      %v4768 = vshrl.u32 %v4767, 7
      %v4769 = vsub.s32 %v4766, %v4768
      %v4770 = vrot.slane %v4756, %v4769
      %v4771 = vcombine.low %v4763, %v4770
      %v4772 = vcombine.low %v4100, %v4099
      %v4773 = vcombine.low %v4101, %v4109
      %v4775 = vunpack.c.l.s4 1983009808
      %v4776 = vunpack.c.0.s8 %v4775
      %v4777 = vlaneseq
      %v4778 = vshrl.u32 %v4777, 7
      %v4779 = vsub.s32 %v4776, %v4778
      %v4780 = vrot.slane %v4772, %v4779
      %v4782 = vunpack.c.l.s4 1983009808
      %v4783 = vunpack.c.0.s8 %v4782
      %v4784 = vlaneseq
      %v4785 = vshrl.u32 %v4784, 7
      %v4786 = vsub.s32 %v4783, %v4785
      %v4787 = vrot.slane %v4773, %v4786
      %v4788 = vcombine.low %v4780, %v4787
      %v4789 = vcombine.low %v4117, %v4116
      %v4790 = vcombine.low %v4118, %v4126
      %v4792 = vunpack.c.l.s4 1983009808
      %v4793 = vunpack.c.0.s8 %v4792
      %v4794 = vlaneseq
      %v4795 = vshrl.u32 %v4794, 7
      %v4796 = vsub.s32 %v4793, %v4795
      %v4797 = vrot.slane %v4789, %v4796
      %v4799 = vunpack.c.l.s4 1983009808
      %v4800 = vunpack.c.0.s8 %v4799
      %v4801 = vlaneseq
      %v4802 = vshrl.u32 %v4801, 7
      %v4803 = vsub.s32 %v4800, %v4802
      %v4804 = vrot.slane %v4790, %v4803
      %v4805 = vcombine.low %v4797, %v4804
      %v4806 = vcombine.low %v4133, %v4134
      %v4807 = vcombine.low %v4142, %v4150
      %v4809 = vunpack.c.l.s4 1983009808
      %v4810 = vunpack.c.0.s8 %v4809
      %v4811 = vlaneseq
      %v4812 = vshrl.u32 %v4811, 7
      %v4813 = vsub.s32 %v4810, %v4812
      %v4814 = vrot.slane %v4806, %v4813
      %v4816 = vunpack.c.l.s4 1983009808
      %v4817 = vunpack.c.0.s8 %v4816
      %v4818 = vlaneseq
      %v4819 = vshrl.u32 %v4818, 7
      %v4820 = vsub.s32 %v4817, %v4819
      %v4821 = vrot.slane %v4807, %v4820
      %v4822 = vcombine.low %v4814, %v4821
      %v4823 = vcombine.low %v4149, %v4151
      %v4824 = vcombine.low %v4159, %v4167
      %v4826 = vunpack.c.l.s4 1983009808
      %v4827 = vunpack.c.0.s8 %v4826
      %v4828 = vlaneseq
      %v4829 = vshrl.u32 %v4828, 7
      %v4830 = vsub.s32 %v4827, %v4829
      %v4831 = vrot.slane %v4823, %v4830
      %v4833 = vunpack.c.l.s4 1983009808
      %v4834 = vunpack.c.0.s8 %v4833
      %v4835 = vlaneseq
      %v4836 = vshrl.u32 %v4835, 7
      %v4837 = vsub.s32 %v4834, %v4836
      %v4838 = vrot.slane %v4824, %v4837
      %v4839 = vcombine.low %v4831, %v4838
      %v4840 = vcombine.low %v4168, %v4176
      %v4841 = vcombine.low %v4184, %v4183
      %v4843 = vunpack.c.l.s4 1983009808
      %v4844 = vunpack.c.0.s8 %v4843
      %v4845 = vlaneseq
      %v4846 = vshrl.u32 %v4845, 7
      %v4847 = vsub.s32 %v4844, %v4846
      %v4848 = vrot.slane %v4840, %v4847
      %v4850 = vunpack.c.l.s4 1983009808
      %v4851 = vunpack.c.0.s8 %v4850
      %v4852 = vlaneseq
      %v4853 = vshrl.u32 %v4852, 7
      %v4854 = vsub.s32 %v4851, %v4853
      %v4855 = vrot.slane %v4841, %v4854
      %v4856 = vcombine.low %v4848, %v4855
      %v4857 = vcombine.low %v4185, %v4193
      %v4858 = vcombine.low %v4201, %v4200
      %v4860 = vunpack.c.l.s4 1983009808
      %v4861 = vunpack.c.0.s8 %v4860
      %v4862 = vlaneseq
      %v4863 = vshrl.u32 %v4862, 7
      %v4864 = vsub.s32 %v4861, %v4863
      %v4865 = vrot.slane %v4857, %v4864
      %v4867 = vunpack.c.l.s4 1983009808
      %v4868 = vunpack.c.0.s8 %v4867
      %v4869 = vlaneseq
      %v4870 = vshrl.u32 %v4869, 7
      %v4871 = vsub.s32 %v4868, %v4870
      %v4872 = vrot.slane %v4858, %v4871
      %v4873 = vcombine.low %v4865, %v4872
      %v4906 = vpack.c.bf16 %v4363, %v4346
      %v4907 = vpack.c.bf16 %v4397, %v4380
      %v4908 = vpack.c.bf16 %v4431, %v4414
      %v4909 = vpack.c.bf16 %v4465, %v4448
      %v4910 = vpack.c.bf16 %v4499, %v4482
      %v4911 = vpack.c.bf16 %v4533, %v4516
      %v4912 = vpack.c.bf16 %v4567, %v4550
      %v4913 = vpack.c.bf16 %v4601, %v4584
      %v4914 = vpack.c.bf16 %v4635, %v4618
      %v4915 = vpack.c.bf16 %v4669, %v4652
      %v4916 = vpack.c.bf16 %v4703, %v4686
      %v4917 = vpack.c.bf16 %v4737, %v4720
      %v4918 = vpack.c.bf16 %v4771, %v4754
      %v4919 = vpack.c.bf16 %v4805, %v4788
      %v4920 = vpack.c.bf16 %v4839, %v4822
      %v4921 = vpack.c.bf16 %v4873, %v4856
      %v4938 = vunpack.c.l.b16 %v4906
      %v4939 = vunpack.c.h.b16 %v4906
      %v4940 = vunpack.c.l.b16 %v4907
      %v4941 = vunpack.c.h.b16 %v4907
      %v4942 = vunpack.c.l.b16 %v4908
      %v4943 = vunpack.c.h.b16 %v4908
      %v4944 = vunpack.c.l.b16 %v4909
      %v4945 = vunpack.c.h.b16 %v4909
      %v4946 = vunpack.c.l.b16 %v4910
      %v4947 = vunpack.c.h.b16 %v4910
      %v4948 = vunpack.c.l.b16 %v4911
      %v4949 = vunpack.c.h.b16 %v4911
      %v4950 = vunpack.c.l.b16 %v4912
      %v4951 = vunpack.c.h.b16 %v4912
      %v4952 = vunpack.c.l.b16 %v4913
      %v4953 = vunpack.c.h.b16 %v4913
      %v4954 = vunpack.c.l.b16 %v4914
      %v4955 = vunpack.c.h.b16 %v4914
      %v4956 = vunpack.c.l.b16 %v4915
      %v4957 = vunpack.c.h.b16 %v4915
      %v4958 = vunpack.c.l.b16 %v4916
      %v4959 = vunpack.c.h.b16 %v4916
      %v4960 = vunpack.c.l.b16 %v4917
      %v4961 = vunpack.c.h.b16 %v4917
      %v4962 = vunpack.c.l.b16 %v4918
      %v4963 = vunpack.c.h.b16 %v4918
      %v4964 = vunpack.c.l.b16 %v4919
      %v4965 = vunpack.c.h.b16 %v4919
      %v4966 = vunpack.c.l.b16 %v4920
      %v4967 = vunpack.c.h.b16 %v4920
      %v4968 = vunpack.c.l.b16 %v4921
      %v4969 = vunpack.c.h.b16 %v4921
      %v4970 = vpack.c.b16 %v4938, %v4938
      %v4971 = vpack.c.b16 %v4939, %v4939
      %v4972 = vpack.c.b16 %v4940, %v4940
      %v4973 = vpack.c.b16 %v4941, %v4941
      %v4974 = vpack.c.b16 %v4942, %v4942
      %v4975 = vpack.c.b16 %v4943, %v4943
      %v4976 = vpack.c.b16 %v4944, %v4944
      %v4977 = vpack.c.b16 %v4945, %v4945
      %v4978 = vpack.c.b16 %v4946, %v4946
      %v4979 = vpack.c.b16 %v4947, %v4947
      %v4980 = vpack.c.b16 %v4948, %v4948
      %v4981 = vpack.c.b16 %v4949, %v4949
      %v4982 = vpack.c.b16 %v4950, %v4950
      %v4983 = vpack.c.b16 %v4951, %v4951
      %v4984 = vpack.c.b16 %v4952, %v4952
      %v4985 = vpack.c.b16 %v4953, %v4953
      %v4986 = vpack.c.b16 %v4954, %v4954
      %v4987 = vpack.c.b16 %v4955, %v4955
      %v4988 = vpack.c.b16 %v4956, %v4956
      %v4989 = vpack.c.b16 %v4957, %v4957
      %v4990 = vpack.c.b16 %v4958, %v4958
      %v4991 = vpack.c.b16 %v4959, %v4959
      %v4992 = vpack.c.b16 %v4960, %v4960
      %v4993 = vpack.c.b16 %v4961, %v4961
      %v4994 = vpack.c.b16 %v4962, %v4962
      %v4995 = vpack.c.b16 %v4963, %v4963
      %v4996 = vpack.c.b16 %v4964, %v4964
      %v4997 = vpack.c.b16 %v4965, %v4965
      %v4998 = vpack.c.b16 %v4966, %v4966
      %v4999 = vpack.c.b16 %v4967, %v4967
      %v5000 = vpack.c.b16 %v4968, %v4968
      %v5001 = vpack.c.b16 %v4969, %v4969
      %5034 = vst [vmem:[%s430] sm:$0xf] %v4970
      %5035 = vst [vmem:[%s430 + $0x4] sm:$0xf] %v4971
      %5036 = vst [vmem:[%s430 + $0x8] sm:$0xf] %v4972
      %5037 = vst [vmem:[%s430 + $0xc] sm:$0xf] %v4973
      %5038 = vst [vmem:[%s430 + $0x10] sm:$0xf] %v4974
      %5039 = vst [vmem:[%s430 + $0x14] sm:$0xf] %v4975
      %5040 = vst [vmem:[%s430 + $0x18] sm:$0xf] %v4976
      %5041 = vst [vmem:[%s430 + $0x1c] sm:$0xf] %v4977
      %5042 = vst [vmem:[%s430 + $0x20] sm:$0xf] %v4978
      %5043 = vst [vmem:[%s430 + $0x24] sm:$0xf] %v4979
      %5044 = vst [vmem:[%s430 + $0x28] sm:$0xf] %v4980
      %5045 = vst [vmem:[%s430 + $0x2c] sm:$0xf] %v4981
      %5046 = vst [vmem:[%s430 + $0x30] sm:$0xf] %v4982
      %5047 = vst [vmem:[%s430 + $0x34] sm:$0xf] %v4983
      %5048 = vst [vmem:[%s430 + $0x38] sm:$0xf] %v4984
      %5049 = vst [vmem:[%s430 + $0x3c] sm:$0xf] %v4985
      %5050 = vst [vmem:[%s430 + $0x40] sm:$0xf] %v4986
      %5051 = vst [vmem:[%s430 + $0x44] sm:$0xf] %v4987
      %5052 = vst [vmem:[%s430 + $0x48] sm:$0xf] %v4988
      %5053 = vst [vmem:[%s430 + $0x4c] sm:$0xf] %v4989
      %5054 = vst [vmem:[%s430 + $0x50] sm:$0xf] %v4990
      %5055 = vst [vmem:[%s430 + $0x54] sm:$0xf] %v4991
      %5056 = vst [vmem:[%s430 + $0x58] sm:$0xf] %v4992
      %5057 = vst [vmem:[%s430 + $0x5c] sm:$0xf] %v4993
      %5058 = vst [vmem:[%s430 + $0x60] sm:$0xf] %v4994
      %5059 = vst [vmem:[%s430 + $0x64] sm:$0xf] %v4995
      %5060 = vst [vmem:[%s430 + $0x68] sm:$0xf] %v4996
      %5061 = vst [vmem:[%s430 + $0x6c] sm:$0xf] %v4997
      %5062 = vst [vmem:[%s430 + $0x70] sm:$0xf] %v4998
      %5063 = vst [vmem:[%s430 + $0x74] sm:$0xf] %v4999
      %5064 = vst [vmem:[%s430 + $0x78] sm:$0xf] %v5000
      %5065 = vst [vmem:[%s430 + $0x7c] sm:$0xf] %v5001
      %v5066 = vadd.f32 %v4346, %v4363
      %v5067 = vadd.f32 %v5066, %v4380
      %v5068 = vadd.f32 %v5067, %v4397
      %v5069 = vadd.f32 %v5068, %v4414
      %v5070 = vadd.f32 %v5069, %v4431
      %v5071 = vadd.f32 %v5070, %v4448
      %v5072 = vadd.f32 %v5071, %v4465
      %v5073 = vadd.f32 %v5072, %v4482
      %v5074 = vadd.f32 %v5073, %v4499
      %v5075 = vadd.f32 %v5074, %v4516
      %v5076 = vadd.f32 %v5075, %v4533
      %v5077 = vadd.f32 %v5076, %v4550
      %v5078 = vadd.f32 %v5077, %v4567
      %v5079 = vadd.f32 %v5078, %v4584
      %v5080 = vadd.f32 %v5079, %v4601
      %v5081 = vadd.f32 %v5080, %v4618
      %v5082 = vadd.f32 %v5081, %v4635
      %v5083 = vadd.f32 %v5082, %v4652
      %v5084 = vadd.f32 %v5083, %v4669
      %v5085 = vadd.f32 %v5084, %v4686
      %v5086 = vadd.f32 %v5085, %v4703
      %v5087 = vadd.f32 %v5086, %v4720
      %v5088 = vadd.f32 %v5087, %v4737
      %v5089 = vadd.f32 %v5088, %v4754
      %v5090 = vadd.f32 %v5089, %v4771
      %v5091 = vadd.f32 %v5090, %v4788
      %v5092 = vadd.f32 %v5091, %v4805
      %v5093 = vadd.f32 %v5092, %v4822
      %v5094 = vadd.f32 %v5093, %v4839
      %v5095 = vadd.f32 %v5094, %v4856
      %v5096 = vadd.f32 %v5095, %v4873
      %v5097 = vrot.slane %v5096, 4
      %v5098 = vadd.f32 %v5096, %v5097
      %v5099 = vrot.slane %v5098, 2
      %v5100 = vadd.f32 %v5098, %v5099
      %v5101 = vrot.slane %v5100, 1
      %v5102 = vadd.f32 %v5100, %v5101
      %v5103 = vrcp.pop 256.0
      %v5104 = vmul.f32 %v5102, %v5103
      %v5106 = vcombine.high %v5104, %v5104
      %v5108 = vunpack.c.l.s4 1983009808
      %v5109 = vunpack.c.0.s8 %v5108
      %v5110 = vlaneseq
      %v5111 = vshrl.u32 %v5110, 7
      %v5112 = vsub.s32 %v5109, %v5111
      %v5113 = vrot.slane %v5104, %v5112
      %v5115 = vunpack.c.l.s4 1983009808
      %v5116 = vunpack.c.0.s8 %v5115
      %v5117 = vlaneseq
      %v5118 = vshrl.u32 %v5117, 7
      %v5119 = vsub.s32 %v5116, %v5118
      %v5120 = vrot.slane %v5106, %v5119
      %v5121 = vcombine.high %v5113, %v5113
      %v5122 = vcombine.high %v5120, %v5120
      %v5127 = vsub.f32 %v3605, %v5113
      %v5128 = vsub.f32 %v3613, %v5121
      %v5129 = vsub.f32 %v3612, %v5120
      %v5130 = vsub.f32 %v3614, %v5122
      %v5131 = vsub.f32 %v3622, %v5113
      %v5132 = vsub.f32 %v3630, %v5121
      %v5133 = vsub.f32 %v3629, %v5120
      %v5134 = vsub.f32 %v3631, %v5122
      %v5135 = vsub.f32 %v3647, %v5113
      %v5136 = vsub.f32 %v3646, %v5121
      %v5137 = vsub.f32 %v3648, %v5120
      %v5138 = vsub.f32 %v3656, %v5122
      %v5139 = vsub.f32 %v3664, %v5113
      %v5140 = vsub.f32 %v3663, %v5121
      %v5141 = vsub.f32 %v3665, %v5120
      %v5142 = vsub.f32 %v3673, %v5122
      %v5143 = vsub.f32 %v3680, %v5113
      %v5144 = vsub.f32 %v3681, %v5121
      %v5145 = vsub.f32 %v3689, %v5120
      %v5146 = vsub.f32 %v3697, %v5122
      %v5147 = vsub.f32 %v3696, %v5113
      %v5148 = vsub.f32 %v3698, %v5121
      %v5149 = vsub.f32 %v3706, %v5120
      %v5150 = vsub.f32 %v3714, %v5122
      %v5151 = vsub.f32 %v3715, %v5113
      %v5152 = vsub.f32 %v3723, %v5121
      %v5153 = vsub.f32 %v3731, %v5120
      %v5154 = vsub.f32 %v3730, %v5122
      %v5155 = vsub.f32 %v3732, %v5113
      %v5156 = vsub.f32 %v3740, %v5121
      %v5157 = vsub.f32 %v3748, %v5120
      %v5158 = vsub.f32 %v3747, %v5122
      %v5159 = vsub.f32 %v3756, %v5113
      %v5160 = vsub.f32 %v3764, %v5121
      %v5161 = vsub.f32 %v3763, %v5120
      %v5162 = vsub.f32 %v3765, %v5122
      %v5163 = vsub.f32 %v3773, %v5113
      %v5164 = vsub.f32 %v3781, %v5121
      %v5165 = vsub.f32 %v3780, %v5120
      %v5166 = vsub.f32 %v3782, %v5122
      %v5167 = vsub.f32 %v3798, %v5113
      %v5168 = vsub.f32 %v3797, %v5121
      %v5169 = vsub.f32 %v3799, %v5120
      %v5170 = vsub.f32 %v3807, %v5122
      %v5171 = vsub.f32 %v3815, %v5113
      %v5172 = vsub.f32 %v3814, %v5121
      %v5173 = vsub.f32 %v3816, %v5120
      %v5174 = vsub.f32 %v3824, %v5122
      %v5175 = vsub.f32 %v3831, %v5113
      %v5176 = vsub.f32 %v3832, %v5121
      %v5177 = vsub.f32 %v3840, %v5120
      %v5178 = vsub.f32 %v3848, %v5122
      %v5179 = vsub.f32 %v3847, %v5113
      %v5180 = vsub.f32 %v3849, %v5121
      %v5181 = vsub.f32 %v3857, %v5120
      %v5182 = vsub.f32 %v3865, %v5122
      %v5183 = vsub.f32 %v3866, %v5113
      %v5184 = vsub.f32 %v3874, %v5121
      %v5185 = vsub.f32 %v3882, %v5120
      %v5186 = vsub.f32 %v3881, %v5122
      %v5187 = vsub.f32 %v3883, %v5113
      %v5188 = vsub.f32 %v3891, %v5121
      %v5189 = vsub.f32 %v3899, %v5120
      %v5190 = vsub.f32 %v3898, %v5122
      %v5191 = vsub.f32 %v3907, %v5113
      %v5192 = vsub.f32 %v3915, %v5121
      %v5193 = vsub.f32 %v3914, %v5120
      %v5194 = vsub.f32 %v3916, %v5122
      %v5195 = vsub.f32 %v3924, %v5113
      %v5196 = vsub.f32 %v3932, %v5121
      %v5197 = vsub.f32 %v3931, %v5120
      %v5198 = vsub.f32 %v3933, %v5122
      %v5199 = vsub.f32 %v3949, %v5113
      %v5200 = vsub.f32 %v3948, %v5121
      %v5201 = vsub.f32 %v3950, %v5120
      %v5202 = vsub.f32 %v3958, %v5122
      %v5203 = vsub.f32 %v3966, %v5113
      %v5204 = vsub.f32 %v3965, %v5121
      %v5205 = vsub.f32 %v3967, %v5120
      %v5206 = vsub.f32 %v3975, %v5122
      %v5207 = vsub.f32 %v3982, %v5113
      %v5208 = vsub.f32 %v3983, %v5121
      %v5209 = vsub.f32 %v3991, %v5120
      %v5210 = vsub.f32 %v3999, %v5122
      %v5211 = vsub.f32 %v3998, %v5113
      %v5212 = vsub.f32 %v4000, %v5121
      %v5213 = vsub.f32 %v4008, %v5120
      %v5214 = vsub.f32 %v4016, %v5122
      %v5215 = vsub.f32 %v4017, %v5113
      %v5216 = vsub.f32 %v4025, %v5121
      %v5217 = vsub.f32 %v4033, %v5120
      %v5218 = vsub.f32 %v4032, %v5122
      %v5219 = vsub.f32 %v4034, %v5113
      %v5220 = vsub.f32 %v4042, %v5121
      %v5221 = vsub.f32 %v4050, %v5120
      %v5222 = vsub.f32 %v4049, %v5122
      %v5223 = vsub.f32 %v4058, %v5113
      %v5224 = vsub.f32 %v4066, %v5121
      %v5225 = vsub.f32 %v4065, %v5120
      %v5226 = vsub.f32 %v4067, %v5122
      %v5227 = vsub.f32 %v4075, %v5113
      %v5228 = vsub.f32 %v4083, %v5121
      %v5229 = vsub.f32 %v4082, %v5120
      %v5230 = vsub.f32 %v4084, %v5122
      %v5231 = vsub.f32 %v4100, %v5113
      %v5232 = vsub.f32 %v4099, %v5121
      %v5233 = vsub.f32 %v4101, %v5120
      %v5234 = vsub.f32 %v4109, %v5122
      %v5235 = vsub.f32 %v4117, %v5113
      %v5236 = vsub.f32 %v4116, %v5121
      %v5237 = vsub.f32 %v4118, %v5120
      %v5238 = vsub.f32 %v4126, %v5122
      %v5239 = vsub.f32 %v4133, %v5113
      %v5240 = vsub.f32 %v4134, %v5121
      %v5241 = vsub.f32 %v4142, %v5120
      %v5242 = vsub.f32 %v4150, %v5122
      %v5243 = vsub.f32 %v4149, %v5113
      %v5244 = vsub.f32 %v4151, %v5121
      %v5245 = vsub.f32 %v4159, %v5120
      %v5246 = vsub.f32 %v4167, %v5122
      %v5247 = vsub.f32 %v4168, %v5113
      %v5248 = vsub.f32 %v4176, %v5121
      %v5249 = vsub.f32 %v4184, %v5120
      %v5250 = vsub.f32 %v4183, %v5122
      %v5251 = vsub.f32 %v4185, %v5113
      %v5252 = vsub.f32 %v4193, %v5121
      %v5253 = vsub.f32 %v4201, %v5120
      %v5254 = vsub.f32 %v4200, %v5122
      %v5255 = vmul.f32 %v5127, %v5127
      %v5256 = vmul.f32 %v5128, %v5128
      %v5257 = vmul.f32 %v5129, %v5129
      %v5258 = vmul.f32 %v5130, %v5130
      %v5259 = vmul.f32 %v5131, %v5131
      %v5260 = vmul.f32 %v5132, %v5132
      %v5261 = vmul.f32 %v5133, %v5133
      %v5262 = vmul.f32 %v5134, %v5134
      %v5263 = vmul.f32 %v5135, %v5135
      %v5264 = vmul.f32 %v5136, %v5136
      %v5265 = vmul.f32 %v5137, %v5137
      %v5266 = vmul.f32 %v5138, %v5138
      %v5267 = vmul.f32 %v5139, %v5139
      %v5268 = vmul.f32 %v5140, %v5140
      %v5269 = vmul.f32 %v5141, %v5141
      %v5270 = vmul.f32 %v5142, %v5142
      %v5271 = vmul.f32 %v5143, %v5143
      %v5272 = vmul.f32 %v5144, %v5144
      %v5273 = vmul.f32 %v5145, %v5145
      %v5274 = vmul.f32 %v5146, %v5146
      %v5275 = vmul.f32 %v5147, %v5147
      %v5276 = vmul.f32 %v5148, %v5148
      %v5277 = vmul.f32 %v5149, %v5149
      %v5278 = vmul.f32 %v5150, %v5150
      %v5279 = vmul.f32 %v5151, %v5151
      %v5280 = vmul.f32 %v5152, %v5152
      %v5281 = vmul.f32 %v5153, %v5153
      %v5282 = vmul.f32 %v5154, %v5154
      %v5283 = vmul.f32 %v5155, %v5155
      %v5284 = vmul.f32 %v5156, %v5156
      %v5285 = vmul.f32 %v5157, %v5157
      %v5286 = vmul.f32 %v5158, %v5158
      %v5287 = vmul.f32 %v5159, %v5159
      %v5288 = vmul.f32 %v5160, %v5160
      %v5289 = vmul.f32 %v5161, %v5161
      %v5290 = vmul.f32 %v5162, %v5162
      %v5291 = vmul.f32 %v5163, %v5163
      %v5292 = vmul.f32 %v5164, %v5164
      %v5293 = vmul.f32 %v5165, %v5165
      %v5294 = vmul.f32 %v5166, %v5166
      %v5295 = vmul.f32 %v5167, %v5167
      %v5296 = vmul.f32 %v5168, %v5168
      %v5297 = vmul.f32 %v5169, %v5169
      %v5298 = vmul.f32 %v5170, %v5170
      %v5299 = vmul.f32 %v5171, %v5171
      %v5300 = vmul.f32 %v5172, %v5172
      %v5301 = vmul.f32 %v5173, %v5173
      %v5302 = vmul.f32 %v5174, %v5174
      %v5303 = vmul.f32 %v5175, %v5175
      %v5304 = vmul.f32 %v5176, %v5176
      %v5305 = vmul.f32 %v5177, %v5177
      %v5306 = vmul.f32 %v5178, %v5178
      %v5307 = vmul.f32 %v5179, %v5179
      %v5308 = vmul.f32 %v5180, %v5180
      %v5309 = vmul.f32 %v5181, %v5181
      %v5310 = vmul.f32 %v5182, %v5182
      %v5311 = vmul.f32 %v5183, %v5183
      %v5312 = vmul.f32 %v5184, %v5184
      %v5313 = vmul.f32 %v5185, %v5185
      %v5314 = vmul.f32 %v5186, %v5186
      %v5315 = vmul.f32 %v5187, %v5187
      %v5316 = vmul.f32 %v5188, %v5188
      %v5317 = vmul.f32 %v5189, %v5189
      %v5318 = vmul.f32 %v5190, %v5190
      %v5319 = vmul.f32 %v5191, %v5191
      %v5320 = vmul.f32 %v5192, %v5192
      %v5321 = vmul.f32 %v5193, %v5193
      %v5322 = vmul.f32 %v5194, %v5194
      %v5323 = vmul.f32 %v5195, %v5195
      %v5324 = vmul.f32 %v5196, %v5196
      %v5325 = vmul.f32 %v5197, %v5197
      %v5326 = vmul.f32 %v5198, %v5198
      %v5327 = vmul.f32 %v5199, %v5199
      %v5328 = vmul.f32 %v5200, %v5200
      %v5329 = vmul.f32 %v5201, %v5201
      %v5330 = vmul.f32 %v5202, %v5202
      %v5331 = vmul.f32 %v5203, %v5203
      %v5332 = vmul.f32 %v5204, %v5204
      %v5333 = vmul.f32 %v5205, %v5205
      %v5334 = vmul.f32 %v5206, %v5206
      %v5335 = vmul.f32 %v5207, %v5207
      %v5336 = vmul.f32 %v5208, %v5208
      %v5337 = vmul.f32 %v5209, %v5209
      %v5338 = vmul.f32 %v5210, %v5210
      %v5339 = vmul.f32 %v5211, %v5211
      %v5340 = vmul.f32 %v5212, %v5212
      %v5341 = vmul.f32 %v5213, %v5213
      %v5342 = vmul.f32 %v5214, %v5214
      %v5343 = vmul.f32 %v5215, %v5215
      %v5344 = vmul.f32 %v5216, %v5216
      %v5345 = vmul.f32 %v5217, %v5217
      %v5346 = vmul.f32 %v5218, %v5218
      %v5347 = vmul.f32 %v5219, %v5219
      %v5348 = vmul.f32 %v5220, %v5220
      %v5349 = vmul.f32 %v5221, %v5221
      %v5350 = vmul.f32 %v5222, %v5222
      %v5351 = vmul.f32 %v5223, %v5223
      %v5352 = vmul.f32 %v5224, %v5224
      %v5353 = vmul.f32 %v5225, %v5225
      %v5354 = vmul.f32 %v5226, %v5226
      %v5355 = vmul.f32 %v5227, %v5227
      %v5356 = vmul.f32 %v5228, %v5228
      %v5357 = vmul.f32 %v5229, %v5229
      %v5358 = vmul.f32 %v5230, %v5230
      %v5359 = vmul.f32 %v5231, %v5231
      %v5360 = vmul.f32 %v5232, %v5232
      %v5361 = vmul.f32 %v5233, %v5233
      %v5362 = vmul.f32 %v5234, %v5234
      %v5363 = vmul.f32 %v5235, %v5235
      %v5364 = vmul.f32 %v5236, %v5236
      %v5365 = vmul.f32 %v5237, %v5237
      %v5366 = vmul.f32 %v5238, %v5238
      %v5367 = vmul.f32 %v5239, %v5239
      %v5368 = vmul.f32 %v5240, %v5240
      %v5369 = vmul.f32 %v5241, %v5241
      %v5370 = vmul.f32 %v5242, %v5242
      %v5371 = vmul.f32 %v5243, %v5243
      %v5372 = vmul.f32 %v5244, %v5244
      %v5373 = vmul.f32 %v5245, %v5245
      %v5374 = vmul.f32 %v5246, %v5246
      %v5375 = vmul.f32 %v5247, %v5247
      %v5376 = vmul.f32 %v5248, %v5248
      %v5377 = vmul.f32 %v5249, %v5249
      %v5378 = vmul.f32 %v5250, %v5250
      %v5379 = vmul.f32 %v5251, %v5251
      %v5380 = vmul.f32 %v5252, %v5252
      %v5381 = vmul.f32 %v5253, %v5253
      %v5382 = vmul.f32 %v5254, %v5254
      %v5511 = vcombine.low %v5255, %v5256
      %v5512 = vcombine.low %v5257, %v5258
      %v5514 = vunpack.c.l.s4 1983009808
      %v5515 = vunpack.c.0.s8 %v5514
      %v5516 = vlaneseq
      %v5517 = vshrl.u32 %v5516, 7
      %v5518 = vsub.s32 %v5515, %v5517
      %v5519 = vrot.slane %v5511, %v5518
      %v5521 = vunpack.c.l.s4 1983009808
      %v5522 = vunpack.c.0.s8 %v5521
      %v5523 = vlaneseq
      %v5524 = vshrl.u32 %v5523, 7
      %v5525 = vsub.s32 %v5522, %v5524
      %v5526 = vrot.slane %v5512, %v5525
      %v5527 = vcombine.low %v5519, %v5526
      %v5528 = vcombine.low %v5259, %v5260
      %v5529 = vcombine.low %v5261, %v5262
      %v5531 = vunpack.c.l.s4 1983009808
      %v5532 = vunpack.c.0.s8 %v5531
      %v5533 = vlaneseq
      %v5534 = vshrl.u32 %v5533, 7
      %v5535 = vsub.s32 %v5532, %v5534
      %v5536 = vrot.slane %v5528, %v5535
      %v5538 = vunpack.c.l.s4 1983009808
      %v5539 = vunpack.c.0.s8 %v5538
      %v5540 = vlaneseq
      %v5541 = vshrl.u32 %v5540, 7
      %v5542 = vsub.s32 %v5539, %v5541
      %v5543 = vrot.slane %v5529, %v5542
      %v5544 = vcombine.low %v5536, %v5543
      %v5545 = vcombine.low %v5263, %v5264
      %v5546 = vcombine.low %v5265, %v5266
      %v5548 = vunpack.c.l.s4 1983009808
      %v5549 = vunpack.c.0.s8 %v5548
      %v5550 = vlaneseq
      %v5551 = vshrl.u32 %v5550, 7
      %v5552 = vsub.s32 %v5549, %v5551
      %v5553 = vrot.slane %v5545, %v5552
      %v5555 = vunpack.c.l.s4 1983009808
      %v5556 = vunpack.c.0.s8 %v5555
      %v5557 = vlaneseq
      %v5558 = vshrl.u32 %v5557, 7
      %v5559 = vsub.s32 %v5556, %v5558
      %v5560 = vrot.slane %v5546, %v5559
      %v5561 = vcombine.low %v5553, %v5560
      %v5562 = vcombine.low %v5267, %v5268
      %v5563 = vcombine.low %v5269, %v5270
      %v5565 = vunpack.c.l.s4 1983009808
      %v5566 = vunpack.c.0.s8 %v5565
      %v5567 = vlaneseq
      %v5568 = vshrl.u32 %v5567, 7
      %v5569 = vsub.s32 %v5566, %v5568
      %v5570 = vrot.slane %v5562, %v5569
      %v5572 = vunpack.c.l.s4 1983009808
      %v5573 = vunpack.c.0.s8 %v5572
      %v5574 = vlaneseq
      %v5575 = vshrl.u32 %v5574, 7
      %v5576 = vsub.s32 %v5573, %v5575
      %v5577 = vrot.slane %v5563, %v5576
      %v5578 = vcombine.low %v5570, %v5577
      %v5579 = vcombine.low %v5271, %v5272
      %v5580 = vcombine.low %v5273, %v5274
      %v5582 = vunpack.c.l.s4 1983009808
      %v5583 = vunpack.c.0.s8 %v5582
      %v5584 = vlaneseq
      %v5585 = vshrl.u32 %v5584, 7
      %v5586 = vsub.s32 %v5583, %v5585
      %v5587 = vrot.slane %v5579, %v5586
      %v5589 = vunpack.c.l.s4 1983009808
      %v5590 = vunpack.c.0.s8 %v5589
      %v5591 = vlaneseq
      %v5592 = vshrl.u32 %v5591, 7
      %v5593 = vsub.s32 %v5590, %v5592
      %v5594 = vrot.slane %v5580, %v5593
      %v5595 = vcombine.low %v5587, %v5594
      %v5596 = vcombine.low %v5275, %v5276
      %v5597 = vcombine.low %v5277, %v5278
      %v5599 = vunpack.c.l.s4 1983009808
      %v5600 = vunpack.c.0.s8 %v5599
      %v5601 = vlaneseq
      %v5602 = vshrl.u32 %v5601, 7
      %v5603 = vsub.s32 %v5600, %v5602
      %v5604 = vrot.slane %v5596, %v5603
      %v5606 = vunpack.c.l.s4 1983009808
      %v5607 = vunpack.c.0.s8 %v5606
      %v5608 = vlaneseq
      %v5609 = vshrl.u32 %v5608, 7
      %v5610 = vsub.s32 %v5607, %v5609
      %v5611 = vrot.slane %v5597, %v5610
      %v5612 = vcombine.low %v5604, %v5611
      %v5613 = vcombine.low %v5279, %v5280
      %v5614 = vcombine.low %v5281, %v5282
      %v5616 = vunpack.c.l.s4 1983009808
      %v5617 = vunpack.c.0.s8 %v5616
      %v5618 = vlaneseq
      %v5619 = vshrl.u32 %v5618, 7
      %v5620 = vsub.s32 %v5617, %v5619
      %v5621 = vrot.slane %v5613, %v5620
      %v5623 = vunpack.c.l.s4 1983009808
      %v5624 = vunpack.c.0.s8 %v5623
      %v5625 = vlaneseq
      %v5626 = vshrl.u32 %v5625, 7
      %v5627 = vsub.s32 %v5624, %v5626
      %v5628 = vrot.slane %v5614, %v5627
      %v5629 = vcombine.low %v5621, %v5628
      %v5630 = vcombine.low %v5283, %v5284
      %v5631 = vcombine.low %v5285, %v5286
      %v5633 = vunpack.c.l.s4 1983009808
      %v5634 = vunpack.c.0.s8 %v5633
      %v5635 = vlaneseq
      %v5636 = vshrl.u32 %v5635, 7
      %v5637 = vsub.s32 %v5634, %v5636
      %v5638 = vrot.slane %v5630, %v5637
      %v5640 = vunpack.c.l.s4 1983009808
      %v5641 = vunpack.c.0.s8 %v5640
      %v5642 = vlaneseq
      %v5643 = vshrl.u32 %v5642, 7
      %v5644 = vsub.s32 %v5641, %v5643
      %v5645 = vrot.slane %v5631, %v5644
      %v5646 = vcombine.low %v5638, %v5645
      %v5647 = vcombine.low %v5287, %v5288
      %v5648 = vcombine.low %v5289, %v5290
      %v5650 = vunpack.c.l.s4 1983009808
      %v5651 = vunpack.c.0.s8 %v5650
      %v5652 = vlaneseq
      %v5653 = vshrl.u32 %v5652, 7
      %v5654 = vsub.s32 %v5651, %v5653
      %v5655 = vrot.slane %v5647, %v5654
      %v5657 = vunpack.c.l.s4 1983009808
      %v5658 = vunpack.c.0.s8 %v5657
      %v5659 = vlaneseq
      %v5660 = vshrl.u32 %v5659, 7
      %v5661 = vsub.s32 %v5658, %v5660
      %v5662 = vrot.slane %v5648, %v5661
      %v5663 = vcombine.low %v5655, %v5662
      %v5664 = vcombine.low %v5291, %v5292
      %v5665 = vcombine.low %v5293, %v5294
      %v5667 = vunpack.c.l.s4 1983009808
      %v5668 = vunpack.c.0.s8 %v5667
      %v5669 = vlaneseq
      %v5670 = vshrl.u32 %v5669, 7
      %v5671 = vsub.s32 %v5668, %v5670
      %v5672 = vrot.slane %v5664, %v5671
      %v5674 = vunpack.c.l.s4 1983009808
      %v5675 = vunpack.c.0.s8 %v5674
      %v5676 = vlaneseq
      %v5677 = vshrl.u32 %v5676, 7
      %v5678 = vsub.s32 %v5675, %v5677
      %v5679 = vrot.slane %v5665, %v5678
      %v5680 = vcombine.low %v5672, %v5679
      %v5681 = vcombine.low %v5295, %v5296
      %v5682 = vcombine.low %v5297, %v5298
      %v5684 = vunpack.c.l.s4 1983009808
      %v5685 = vunpack.c.0.s8 %v5684
      %v5686 = vlaneseq
      %v5687 = vshrl.u32 %v5686, 7
      %v5688 = vsub.s32 %v5685, %v5687
      %v5689 = vrot.slane %v5681, %v5688
      %v5691 = vunpack.c.l.s4 1983009808
      %v5692 = vunpack.c.0.s8 %v5691
      %v5693 = vlaneseq
      %v5694 = vshrl.u32 %v5693, 7
      %v5695 = vsub.s32 %v5692, %v5694
      %v5696 = vrot.slane %v5682, %v5695
      %v5697 = vcombine.low %v5689, %v5696
      %v5698 = vcombine.low %v5299, %v5300
      %v5699 = vcombine.low %v5301, %v5302
      %v5701 = vunpack.c.l.s4 1983009808
      %v5702 = vunpack.c.0.s8 %v5701
      %v5703 = vlaneseq
      %v5704 = vshrl.u32 %v5703, 7
      %v5705 = vsub.s32 %v5702, %v5704
      %v5706 = vrot.slane %v5698, %v5705
      %v5708 = vunpack.c.l.s4 1983009808
      %v5709 = vunpack.c.0.s8 %v5708
      %v5710 = vlaneseq
      %v5711 = vshrl.u32 %v5710, 7
      %v5712 = vsub.s32 %v5709, %v5711
      %v5713 = vrot.slane %v5699, %v5712
      %v5714 = vcombine.low %v5706, %v5713
      %v5715 = vcombine.low %v5303, %v5304
      %v5716 = vcombine.low %v5305, %v5306
      %v5718 = vunpack.c.l.s4 1983009808
      %v5719 = vunpack.c.0.s8 %v5718
      %v5720 = vlaneseq
      %v5721 = vshrl.u32 %v5720, 7
      %v5722 = vsub.s32 %v5719, %v5721
      %v5723 = vrot.slane %v5715, %v5722
      %v5725 = vunpack.c.l.s4 1983009808
      %v5726 = vunpack.c.0.s8 %v5725
      %v5727 = vlaneseq
      %v5728 = vshrl.u32 %v5727, 7
      %v5729 = vsub.s32 %v5726, %v5728
      %v5730 = vrot.slane %v5716, %v5729
      %v5731 = vcombine.low %v5723, %v5730
      %v5732 = vcombine.low %v5307, %v5308
      %v5733 = vcombine.low %v5309, %v5310
      %v5735 = vunpack.c.l.s4 1983009808
      %v5736 = vunpack.c.0.s8 %v5735
      %v5737 = vlaneseq
      %v5738 = vshrl.u32 %v5737, 7
      %v5739 = vsub.s32 %v5736, %v5738
      %v5740 = vrot.slane %v5732, %v5739
      %v5742 = vunpack.c.l.s4 1983009808
      %v5743 = vunpack.c.0.s8 %v5742
      %v5744 = vlaneseq
      %v5745 = vshrl.u32 %v5744, 7
      %v5746 = vsub.s32 %v5743, %v5745
      %v5747 = vrot.slane %v5733, %v5746
      %v5748 = vcombine.low %v5740, %v5747
      %v5749 = vcombine.low %v5311, %v5312
      %v5750 = vcombine.low %v5313, %v5314
      %v5752 = vunpack.c.l.s4 1983009808
      %v5753 = vunpack.c.0.s8 %v5752
      %v5754 = vlaneseq
      %v5755 = vshrl.u32 %v5754, 7
      %v5756 = vsub.s32 %v5753, %v5755
      %v5757 = vrot.slane %v5749, %v5756
      %v5759 = vunpack.c.l.s4 1983009808
      %v5760 = vunpack.c.0.s8 %v5759
      %v5761 = vlaneseq
      %v5762 = vshrl.u32 %v5761, 7
      %v5763 = vsub.s32 %v5760, %v5762
      %v5764 = vrot.slane %v5750, %v5763
      %v5765 = vcombine.low %v5757, %v5764
      %v5766 = vcombine.low %v5315, %v5316
      %v5767 = vcombine.low %v5317, %v5318
      %v5769 = vunpack.c.l.s4 1983009808
      %v5770 = vunpack.c.0.s8 %v5769
      %v5771 = vlaneseq
      %v5772 = vshrl.u32 %v5771, 7
      %v5773 = vsub.s32 %v5770, %v5772
      %v5774 = vrot.slane %v5766, %v5773
      %v5776 = vunpack.c.l.s4 1983009808
      %v5777 = vunpack.c.0.s8 %v5776
      %v5778 = vlaneseq
      %v5779 = vshrl.u32 %v5778, 7
      %v5780 = vsub.s32 %v5777, %v5779
      %v5781 = vrot.slane %v5767, %v5780
      %v5782 = vcombine.low %v5774, %v5781
      %v5783 = vcombine.low %v5319, %v5320
      %v5784 = vcombine.low %v5321, %v5322
      %v5786 = vunpack.c.l.s4 1983009808
      %v5787 = vunpack.c.0.s8 %v5786
      %v5788 = vlaneseq
      %v5789 = vshrl.u32 %v5788, 7
      %v5790 = vsub.s32 %v5787, %v5789
      %v5791 = vrot.slane %v5783, %v5790
      %v5793 = vunpack.c.l.s4 1983009808
      %v5794 = vunpack.c.0.s8 %v5793
      %v5795 = vlaneseq
      %v5796 = vshrl.u32 %v5795, 7
      %v5797 = vsub.s32 %v5794, %v5796
      %v5798 = vrot.slane %v5784, %v5797
      %v5799 = vcombine.low %v5791, %v5798
      %v5800 = vcombine.low %v5323, %v5324
      %v5801 = vcombine.low %v5325, %v5326
      %v5803 = vunpack.c.l.s4 1983009808
      %v5804 = vunpack.c.0.s8 %v5803
      %v5805 = vlaneseq
      %v5806 = vshrl.u32 %v5805, 7
      %v5807 = vsub.s32 %v5804, %v5806
      %v5808 = vrot.slane %v5800, %v5807
      %v5810 = vunpack.c.l.s4 1983009808
      %v5811 = vunpack.c.0.s8 %v5810
      %v5812 = vlaneseq
      %v5813 = vshrl.u32 %v5812, 7
      %v5814 = vsub.s32 %v5811, %v5813
      %v5815 = vrot.slane %v5801, %v5814
      %v5816 = vcombine.low %v5808, %v5815
      %v5817 = vcombine.low %v5327, %v5328
      %v5818 = vcombine.low %v5329, %v5330
      %v5820 = vunpack.c.l.s4 1983009808
      %v5821 = vunpack.c.0.s8 %v5820
      %v5822 = vlaneseq
      %v5823 = vshrl.u32 %v5822, 7
      %v5824 = vsub.s32 %v5821, %v5823
      %v5825 = vrot.slane %v5817, %v5824
      %v5827 = vunpack.c.l.s4 1983009808
      %v5828 = vunpack.c.0.s8 %v5827
      %v5829 = vlaneseq
      %v5830 = vshrl.u32 %v5829, 7
      %v5831 = vsub.s32 %v5828, %v5830
      %v5832 = vrot.slane %v5818, %v5831
      %v5833 = vcombine.low %v5825, %v5832
      %v5834 = vcombine.low %v5331, %v5332
      %v5835 = vcombine.low %v5333, %v5334
      %v5837 = vunpack.c.l.s4 1983009808
      %v5838 = vunpack.c.0.s8 %v5837
      %v5839 = vlaneseq
      %v5840 = vshrl.u32 %v5839, 7
      %v5841 = vsub.s32 %v5838, %v5840
      %v5842 = vrot.slane %v5834, %v5841
      %v5844 = vunpack.c.l.s4 1983009808
      %v5845 = vunpack.c.0.s8 %v5844
      %v5846 = vlaneseq
      %v5847 = vshrl.u32 %v5846, 7
      %v5848 = vsub.s32 %v5845, %v5847
      %v5849 = vrot.slane %v5835, %v5848
      %v5850 = vcombine.low %v5842, %v5849
      %v5851 = vcombine.low %v5335, %v5336
      %v5852 = vcombine.low %v5337, %v5338
      %v5854 = vunpack.c.l.s4 1983009808
      %v5855 = vunpack.c.0.s8 %v5854
      %v5856 = vlaneseq
      %v5857 = vshrl.u32 %v5856, 7
      %v5858 = vsub.s32 %v5855, %v5857
      %v5859 = vrot.slane %v5851, %v5858
      %v5861 = vunpack.c.l.s4 1983009808
      %v5862 = vunpack.c.0.s8 %v5861
      %v5863 = vlaneseq
      %v5864 = vshrl.u32 %v5863, 7
      %v5865 = vsub.s32 %v5862, %v5864
      %v5866 = vrot.slane %v5852, %v5865
      %v5867 = vcombine.low %v5859, %v5866
      %v5868 = vcombine.low %v5339, %v5340
      %v5869 = vcombine.low %v5341, %v5342
      %v5871 = vunpack.c.l.s4 1983009808
      %v5872 = vunpack.c.0.s8 %v5871
      %v5873 = vlaneseq
      %v5874 = vshrl.u32 %v5873, 7
      %v5875 = vsub.s32 %v5872, %v5874
      %v5876 = vrot.slane %v5868, %v5875
      %v5878 = vunpack.c.l.s4 1983009808
      %v5879 = vunpack.c.0.s8 %v5878
      %v5880 = vlaneseq
      %v5881 = vshrl.u32 %v5880, 7
      %v5882 = vsub.s32 %v5879, %v5881
      %v5883 = vrot.slane %v5869, %v5882
      %v5884 = vcombine.low %v5876, %v5883
      %v5885 = vcombine.low %v5343, %v5344
      %v5886 = vcombine.low %v5345, %v5346
      %v5888 = vunpack.c.l.s4 1983009808
      %v5889 = vunpack.c.0.s8 %v5888
      %v5890 = vlaneseq
      %v5891 = vshrl.u32 %v5890, 7
      %v5892 = vsub.s32 %v5889, %v5891
      %v5893 = vrot.slane %v5885, %v5892
      %v5895 = vunpack.c.l.s4 1983009808
      %v5896 = vunpack.c.0.s8 %v5895
      %v5897 = vlaneseq
      %v5898 = vshrl.u32 %v5897, 7
      %v5899 = vsub.s32 %v5896, %v5898
      %v5900 = vrot.slane %v5886, %v5899
      %v5901 = vcombine.low %v5893, %v5900
      %v5902 = vcombine.low %v5347, %v5348
      %v5903 = vcombine.low %v5349, %v5350
      %v5905 = vunpack.c.l.s4 1983009808
      %v5906 = vunpack.c.0.s8 %v5905
      %v5907 = vlaneseq
      %v5908 = vshrl.u32 %v5907, 7
      %v5909 = vsub.s32 %v5906, %v5908
      %v5910 = vrot.slane %v5902, %v5909
      %v5912 = vunpack.c.l.s4 1983009808
      %v5913 = vunpack.c.0.s8 %v5912
      %v5914 = vlaneseq
      %v5915 = vshrl.u32 %v5914, 7
      %v5916 = vsub.s32 %v5913, %v5915
      %v5917 = vrot.slane %v5903, %v5916
      %v5918 = vcombine.low %v5910, %v5917
      %v5919 = vcombine.low %v5351, %v5352
      %v5920 = vcombine.low %v5353, %v5354
      %v5922 = vunpack.c.l.s4 1983009808
      %v5923 = vunpack.c.0.s8 %v5922
      %v5924 = vlaneseq
      %v5925 = vshrl.u32 %v5924, 7
      %v5926 = vsub.s32 %v5923, %v5925
      %v5927 = vrot.slane %v5919, %v5926
      %v5929 = vunpack.c.l.s4 1983009808
      %v5930 = vunpack.c.0.s8 %v5929
      %v5931 = vlaneseq
      %v5932 = vshrl.u32 %v5931, 7
      %v5933 = vsub.s32 %v5930, %v5932
      %v5934 = vrot.slane %v5920, %v5933
      %v5935 = vcombine.low %v5927, %v5934
      %v5936 = vcombine.low %v5355, %v5356
      %v5937 = vcombine.low %v5357, %v5358
      %v5939 = vunpack.c.l.s4 1983009808
      %v5940 = vunpack.c.0.s8 %v5939
      %v5941 = vlaneseq
      %v5942 = vshrl.u32 %v5941, 7
      %v5943 = vsub.s32 %v5940, %v5942
      %v5944 = vrot.slane %v5936, %v5943
      %v5946 = vunpack.c.l.s4 1983009808
      %v5947 = vunpack.c.0.s8 %v5946
      %v5948 = vlaneseq
      %v5949 = vshrl.u32 %v5948, 7
      %v5950 = vsub.s32 %v5947, %v5949
      %v5951 = vrot.slane %v5937, %v5950
      %v5952 = vcombine.low %v5944, %v5951
      %v5953 = vcombine.low %v5359, %v5360
      %v5954 = vcombine.low %v5361, %v5362
      %v5956 = vunpack.c.l.s4 1983009808
      %v5957 = vunpack.c.0.s8 %v5956
      %v5958 = vlaneseq
      %v5959 = vshrl.u32 %v5958, 7
      %v5960 = vsub.s32 %v5957, %v5959
      %v5961 = vrot.slane %v5953, %v5960
      %v5963 = vunpack.c.l.s4 1983009808
      %v5964 = vunpack.c.0.s8 %v5963
      %v5965 = vlaneseq
      %v5966 = vshrl.u32 %v5965, 7
      %v5967 = vsub.s32 %v5964, %v5966
      %v5968 = vrot.slane %v5954, %v5967
      %v5969 = vcombine.low %v5961, %v5968
      %v5970 = vcombine.low %v5363, %v5364
      %v5971 = vcombine.low %v5365, %v5366
      %v5973 = vunpack.c.l.s4 1983009808
      %v5974 = vunpack.c.0.s8 %v5973
      %v5975 = vlaneseq
      %v5976 = vshrl.u32 %v5975, 7
      %v5977 = vsub.s32 %v5974, %v5976
      %v5978 = vrot.slane %v5970, %v5977
      %v5980 = vunpack.c.l.s4 1983009808
      %v5981 = vunpack.c.0.s8 %v5980
      %v5982 = vlaneseq
      %v5983 = vshrl.u32 %v5982, 7
      %v5984 = vsub.s32 %v5981, %v5983
      %v5985 = vrot.slane %v5971, %v5984
      %v5986 = vcombine.low %v5978, %v5985
      %v5987 = vcombine.low %v5367, %v5368
      %v5988 = vcombine.low %v5369, %v5370
      %v5990 = vunpack.c.l.s4 1983009808
      %v5991 = vunpack.c.0.s8 %v5990
      %v5992 = vlaneseq
      %v5993 = vshrl.u32 %v5992, 7
      %v5994 = vsub.s32 %v5991, %v5993
      %v5995 = vrot.slane %v5987, %v5994
      %v5997 = vunpack.c.l.s4 1983009808
      %v5998 = vunpack.c.0.s8 %v5997
      %v5999 = vlaneseq
      %v6000 = vshrl.u32 %v5999, 7
      %v6001 = vsub.s32 %v5998, %v6000
      %v6002 = vrot.slane %v5988, %v6001
      %v6003 = vcombine.low %v5995, %v6002
      %v6004 = vcombine.low %v5371, %v5372
      %v6005 = vcombine.low %v5373, %v5374
      %v6007 = vunpack.c.l.s4 1983009808
      %v6008 = vunpack.c.0.s8 %v6007
      %v6009 = vlaneseq
      %v6010 = vshrl.u32 %v6009, 7
      %v6011 = vsub.s32 %v6008, %v6010
      %v6012 = vrot.slane %v6004, %v6011
      %v6014 = vunpack.c.l.s4 1983009808
      %v6015 = vunpack.c.0.s8 %v6014
      %v6016 = vlaneseq
      %v6017 = vshrl.u32 %v6016, 7
      %v6018 = vsub.s32 %v6015, %v6017
      %v6019 = vrot.slane %v6005, %v6018
      %v6020 = vcombine.low %v6012, %v6019
      %v6021 = vcombine.low %v5375, %v5376
      %v6022 = vcombine.low %v5377, %v5378
      %v6024 = vunpack.c.l.s4 1983009808
      %v6025 = vunpack.c.0.s8 %v6024
      %v6026 = vlaneseq
      %v6027 = vshrl.u32 %v6026, 7
      %v6028 = vsub.s32 %v6025, %v6027
      %v6029 = vrot.slane %v6021, %v6028
      %v6031 = vunpack.c.l.s4 1983009808
      %v6032 = vunpack.c.0.s8 %v6031
      %v6033 = vlaneseq
      %v6034 = vshrl.u32 %v6033, 7
      %v6035 = vsub.s32 %v6032, %v6034
      %v6036 = vrot.slane %v6022, %v6035
      %v6037 = vcombine.low %v6029, %v6036
      %v6038 = vcombine.low %v5379, %v5380
      %v6039 = vcombine.low %v5381, %v5382
      %v6041 = vunpack.c.l.s4 1983009808
      %v6042 = vunpack.c.0.s8 %v6041
      %v6043 = vlaneseq
      %v6044 = vshrl.u32 %v6043, 7
      %v6045 = vsub.s32 %v6042, %v6044
      %v6046 = vrot.slane %v6038, %v6045
      %v6048 = vunpack.c.l.s4 1983009808
      %v6049 = vunpack.c.0.s8 %v6048
      %v6050 = vlaneseq
      %v6051 = vshrl.u32 %v6050, 7
      %v6052 = vsub.s32 %v6049, %v6051
      %v6053 = vrot.slane %v6039, %v6052
      %v6054 = vcombine.low %v6046, %v6053
      %v6087 = vadd.f32 %v5527, %v5544
      %v6088 = vadd.f32 %v6087, %v5561
      %v6089 = vadd.f32 %v6088, %v5578
      %v6090 = vadd.f32 %v6089, %v5595
      %v6091 = vadd.f32 %v6090, %v5612
      %v6092 = vadd.f32 %v6091, %v5629
      %v6093 = vadd.f32 %v6092, %v5646
      %v6094 = vadd.f32 %v6093, %v5663
      %v6095 = vadd.f32 %v6094, %v5680
      %v6096 = vadd.f32 %v6095, %v5697
      %v6097 = vadd.f32 %v6096, %v5714
      %v6098 = vadd.f32 %v6097, %v5731
      %v6099 = vadd.f32 %v6098, %v5748
      %v6100 = vadd.f32 %v6099, %v5765
      %v6101 = vadd.f32 %v6100, %v5782
      %v6102 = vadd.f32 %v6101, %v5799
      %v6103 = vadd.f32 %v6102, %v5816
      %v6104 = vadd.f32 %v6103, %v5833
      %v6105 = vadd.f32 %v6104, %v5850
      %v6106 = vadd.f32 %v6105, %v5867
      %v6107 = vadd.f32 %v6106, %v5884
      %v6108 = vadd.f32 %v6107, %v5901
      %v6109 = vadd.f32 %v6108, %v5918
      %v6110 = vadd.f32 %v6109, %v5935
      %v6111 = vadd.f32 %v6110, %v5952
      %v6112 = vadd.f32 %v6111, %v5969
      %v6113 = vadd.f32 %v6112, %v5986
      %v6114 = vadd.f32 %v6113, %v6003
      %v6115 = vadd.f32 %v6114, %v6020
      %v6116 = vadd.f32 %v6115, %v6037
      %v6117 = vadd.f32 %v6116, %v6054
      %v6118 = vrot.slane %v6117, 4
      %v6119 = vadd.f32 %v6117, %v6118
      %v6120 = vrot.slane %v6119, 2
      %v6121 = vadd.f32 %v6119, %v6120
      %v6122 = vrot.slane %v6121, 1
      %v6123 = vadd.f32 %v6121, %v6122
      %vm6124 = vcmask 1040384
      %v6125 = vsel %vm6124, %v5102, %v6123
      %6126 = vst [vmem:[%s438] sm:$0x3] %v6125
      %s6127 = smul.u32 16, %s23
      %p6128 = scmp.lt.s32.totalorder %s22, 1
      %s6129 = scalar_select %p6128, %s22, 1
      %p6130 = scmp.lt.s32.totalorder %s6127, 15
      %s6131 = scalar_select %p6130, %s6127, 15
      %s6132 = smul.addr %s6131, 2
      %s6133 = smul.addr %s6129, 32
      %s6134 = sadd.s32 %s6132, %s6133
      %s6135 = smul.addr %s6134, 4
      %s6136 = scalar_lea.vmem %s5, %s6135
      %p6137 = scmp.lt.s32.totalorder %s22, 1
      %s6138 = scalar_select %p6137, %s22, 1
      %p6139 = scmp.lt.s32.totalorder %s23, 0
      %s6140 = scalar_select %p6139, %s23, 0
      %s6141 = sadd.s32 %s6140, %s6138
      %s6142 = smul.addr %s6141, 2
      %s6143 = scalar_lea.vmem %s6, %s6142
      // Predicated region
      $region41: #{bottleneck_forward.5} parent=39 // pred_check
        %p6144 = pneg %p192
      $region42: #{bottleneck_forward.5} parent=39 // pred_check_branch
        %6146 = sbr.rel (%p6144) target = $region44
      $region43: #{bottleneck_forward.5} parent=39 // pred_region
        %s6147 = smul.u32 16, %s23
      $region44: #{bottleneck_forward.5} parent=39 // pred_fallthru
        _
      // Predicated region
      $region45: #{bottleneck_forward.5} parent=39 // pred_check
        %p6148 = pneg %p220
      $region46: #{bottleneck_forward.5} parent=39 // pred_check_branch
        %6150 = sbr.rel (%p6148) target = $region48
      $region47: #{bottleneck_forward.5} parent=39 // pred_region
        _
      $region48: #{bottleneck_forward.5} parent=39 // pred_fallthru
        _
    $region40: #{bottleneck_forward.5} parent=5 // pred_fallthru
      _
    %p6151 = scmp.le.s32.totalorder 2, %s13
    // Predicated region
    $region49: #{bottleneck_forward.5} parent=5 // pred_check
      %p6152 = pneg %p6151
    $region50: #{bottleneck_forward.5} parent=5 // pred_check_branch
      %6154 = sbr.rel (%p6152) target = $region52
    $region51: #{bottleneck_forward.5} parent=5 // pred_region
      %s6155 = ssub.s32 %s13, 2
      // Predicated region
      $region53: #{bottleneck_forward.5} parent=51 // pred_check
        %p6156 = pneg %p198
      $region54: #{bottleneck_forward.5} parent=51 // pred_check_branch
        %6158 = sbr.rel (%p6156) target = $region56
      $region55: #{bottleneck_forward.5} parent=51 // pred_region
        %s6159 = smul.u32 16, %s25
        %p6160 = scmp.lt.s32.totalorder %s24, 1
        %s6161 = scalar_select %p6160, %s24, 1
        %p6162 = scmp.lt.s32.totalorder %s6159, 15
        %s6163 = scalar_select %p6162, %s6159, 15
        %s6164 = smul.addr %s6163, 2
        %s6165 = smul.addr %s6161, 32
        %s6166 = sadd.s32 %s6164, %s6165
        %s6167 = smul.addr %s6166, 4
        %s6168 = scalar_lea.vmem %s5, %s6167
      $region56: #{bottleneck_forward.5} parent=51 // pred_fallthru
        _
      // Predicated region
      $region57: #{bottleneck_forward.5} parent=51 // pred_check
        %p6169 = pneg %p226
      $region58: #{bottleneck_forward.5} parent=51 // pred_check_branch
        %6171 = sbr.rel (%p6169) target = $region60
      $region59: #{bottleneck_forward.5} parent=51 // pred_region
        %p6172 = scmp.lt.s32.totalorder %s24, 1
        %s6173 = scalar_select %p6172, %s24, 1
        %p6174 = scmp.lt.s32.totalorder %s25, 0
        %s6175 = scalar_select %p6174, %s25, 0
        %s6176 = sadd.s32 %s6175, %s6173
        %s6177 = smul.addr %s6176, 2
        %s6178 = scalar_lea.vmem %s6, %s6177
      $region60: #{bottleneck_forward.5} parent=51 // pred_fallthru
        _
    $region52: #{bottleneck_forward.5} parent=5 // pred_fallthru
      _
  $region6: #{bottleneck_forward.5} parent=0 // loop_footer
    %s17 = sadd.s32 1, %s13
  $region7: #{bottleneck_forward.5} parent=0 // loop_footer_branch
    %12 = sbr.rel target = $region3
  $region8: #{bottleneck_forward.5} parent=0 // loop_exit
    _

</llo_original>
